<compile_context>
chip_gen: v5e
topology: v5e:2x2
jax: 0.10.0
libtpu: 0.0.40
codegen_flags: <defaults>
</compile_context>

<pallas_src>
import functools

import jax
import jax.numpy as jnp
from jax.experimental import pallas as pl
from jax.experimental.pallas import tpu as pltpu

BN_EPS = 1e-5
_PHASES = ((0, 0), (0, 1), (1, 0), (1, 1))   # (py, px) sub-pixel output phases
_TAPS = ((0, 0), (0, 1), (1, 0), (1, 1))     # (dy, dx) 2x2 input taps / phase


def _round_up(x, m):
    return ((x + m - 1) // m) * m


def _pick_block_n(n):
    # Largest lane-aligned tile that still gives >= 2 blocks (v7x megacore).
    for cand in (1024, 512, 256, 128):
        if n % cand == 0 and n // cand >= 2:
            return cand
    return n


# --------------------------------------------------------------------------
# Kernel A: fused Linear + BatchNorm1d(train) + ReLU
#   grid = (N // tn,); whole batch in one M tile, full K in one tile, so the
#   batch statistics are computed right in the matmul epilogue.
# --------------------------------------------------------------------------
def _fc_bn_relu_kernel(x_ref, w_ref, b_ref, g_ref, be_ref, o_ref, *, batch, eps):
    y = jnp.dot(x_ref[...].astype(jnp.bfloat16), w_ref[...],
                preferred_element_type=jnp.float32) + b_ref[...]
    rows = jax.lax.broadcasted_iota(jnp.int32, y.shape, 0)
    valid = rows < batch
    inv_n = 1.0 / batch
    mean = jnp.sum(jnp.where(valid, y, 0.0), axis=0, keepdims=True) * inv_n
    cent = jnp.where(valid, y - mean, 0.0)
    var = jnp.sum(cent * cent, axis=0, keepdims=True) * inv_n
    scale = g_ref[...] * jax.lax.rsqrt(var + eps)
    out = (y - mean) * scale + be_ref[...]
    o_ref[...] = jnp.where(valid, jnp.maximum(out, 0.0), 0.0)


def fc_bn_relu(x_padded, w, bias, gamma, beta, *, batch):
    """relu(batchnorm1d_train(x @ w + bias)).

    x_padded : (Mp, Kp) f32, true batch rows first, padded rows zero.
    w        : (Kp, N) bf16 (pre-padded / pre-cast offline).
    """
    Mp, Kp = x_padded.shape
    N = w.shape[1]
    bn = _pick_block_n(N)
    return pl.pallas_call(
        functools.partial(_fc_bn_relu_kernel, batch=batch, eps=BN_EPS),
        grid=(N // bn,),
        in_specs=[
            pl.BlockSpec((Mp, Kp), lambda j: (0, 0)),
            pl.BlockSpec((Kp, bn), lambda j: (0, j)),
            pl.BlockSpec((1, bn), lambda j: (0, j)),
            pl.BlockSpec((1, bn), lambda j: (0, j)),
            pl.BlockSpec((1, bn), lambda j: (0, j)),
        ],
        out_specs=pl.BlockSpec((Mp, bn), lambda j: (0, j)),
        out_shape=jax.ShapeDtypeStruct((Mp, N), jnp.float32),
        compiler_params=pltpu.CompilerParams(dimension_semantics=("parallel",)),
    )(x_padded, w, bias, gamma, beta)


# --------------------------------------------------------------------------
# Kernel B: fused ConvTranspose2d(Cin,64,4,2,1) + BatchNorm2d(train) + ReLU
#   Single invocation: in-kernel im2col (9 shifted views of the padded NHWC
#   activation), 4 phase matmuls on the MXU, BN stats + affine + ReLU fused.
# --------------------------------------------------------------------------
def _deconv1_bn_relu_kernel(xp_ref, w_ref, b_ref, g_ref, be_ref, o_ref, *, eps):
    B, Hp, Wp, Cin = xp_ref.shape
    H, W = Hp - 2, Wp - 2
    M = B * H * W
    Cout = o_ref.shape[-1]

    # In-kernel im2col: the 9 shifted, flattened views of the padded input.
    shifted = {}
    for a in range(3):
        for c in range(3):
            shifted[(a, c)] = (xp_ref[:, a:a + H, c:c + W, :]
                               .reshape(M, Cin).astype(jnp.bfloat16))

    ys = []
    s1 = jnp.zeros((1, Cout), jnp.float32)
    s2 = jnp.zeros((1, Cout), jnp.float32)
    for pi, (py, px) in enumerate(_PHASES):
        a_p = jnp.concatenate(
            [shifted[(1 + py - dy, 1 + px - dx)] for (dy, dx) in _TAPS], axis=1)
        y = jnp.dot(a_p, w_ref[pi], preferred_element_type=jnp.float32) + b_ref[...]
        ys.append(y)
        s1 = s1 + jnp.sum(y, axis=0, keepdims=True)
        s2 = s2 + jnp.sum(y * y, axis=0, keepdims=True)

    # BatchNorm2d(train) over all N * H_out * W_out positions (= 4 * M).
    cnt = 4.0 * M
    mean = s1 / cnt
    var = s2 / cnt - mean * mean
    scale = g_ref[...] * jax.lax.rsqrt(var + eps)
    shift = be_ref[...] - mean * scale
    for pi in range(4):
        o_ref[pi] = jnp.maximum(ys[pi] * scale + shift, 0.0)


# --------------------------------------------------------------------------
# Kernel C: fused ConvTranspose2d(64,Cout,4,2,1) + Tanh (small Cout, VPU path)
#   All 4 phases folded into the body; per-output-channel dot via multiply +
#   lane reduction (no 1-column MXU matmul, no M padding).
# --------------------------------------------------------------------------
def _deconv2_tanh_kernel(hp_ref, w_ref, b_ref, o_ref):
    B, Hp, Wp, Cin = hp_ref.shape
    H, W = Hp - 2, Wp - 2
    M = B * H * W
    Cout = o_ref.shape[-1]

    shifted = {}
    for a in range(3):
        for c in range(3):
            shifted[(a, c)] = hp_ref[:, a:a + H, c:c + W, :].reshape(M, Cin)

    for pi, (qy, qx) in enumerate(_PHASES):
        cols = []
        for co in range(Cout):
            acc = jnp.zeros((M, 1), jnp.float32) + b_ref[:, co:co + 1]
            for ti, (dy, dx) in enumerate(_TAPS):
                s = shifted[(1 + qy - dy, 1 + qx - dx)]
                r = (pi * 4 + ti) * Cout + co
                acc = acc + jnp.sum(s * w_ref[r:r + 1, :], axis=1, keepdims=True)
            cols.append(acc)
        y = cols[0] if Cout == 1 else jnp.concatenate(cols, axis=1)
        o_ref[pi] = jnp.tanh(y)


# --------------------------------------------------------------------------
# Wrappers for the deconv kernels (pad + phase interleave are tiny XLA glue)
# --------------------------------------------------------------------------
def _interleave_phases(y, B, H, W, C):
    """(4, B*H*W, C) phase-major -> (B, 2H, 2W, C)."""
    y = y.reshape(2, 2, B, H, W, C)                 # (py, px, b, m, n, c)
    y = jnp.transpose(y, (2, 3, 0, 4, 1, 5))        # (b, m, py, n, px, c)
    return y.reshape(B, 2 * H, 2 * W, C)


def deconv1_bn_relu(x, w_phase, bias, gamma, beta):
    """ConvTranspose2d(Cin,Cout,4,2,1) + BatchNorm2d(train) + ReLU, NHWC."""
    B, H, W, _ = x.shape
    Cout = w_phase.shape[-1]
    xpad = jnp.pad(x, ((0, 0), (1, 1), (1, 1), (0, 0)))
    out = pl.pallas_call(
        functools.partial(_deconv1_bn_relu_kernel, eps=BN_EPS),
        out_shape=jax.ShapeDtypeStruct((4, B * H * W, Cout), jnp.float32),
    )(xpad, w_phase, bias, gamma, beta)
    return _interleave_phases(out, B, H, W, Cout)


def deconv2_tanh(x, w_rows, bias):
    """ConvTranspose2d(Cin,Cout,4,2,1) + Tanh, NHWC."""
    B, H, W, _ = x.shape
    Cout = bias.shape[-1]
    xpad = jnp.pad(x, ((0, 0), (1, 1), (1, 1), (0, 0)))
    out = pl.pallas_call(
        _deconv2_tanh_kernel,
        out_shape=jax.ShapeDtypeStruct((4, B * H * W, Cout), jnp.float32),
    )(xpad, w_rows, bias)
    return _interleave_phases(out, B, H, W, Cout)


# --------------------------------------------------------------------------
# One-time (offline) weight preprocessing
# --------------------------------------------------------------------------
def _phase_weights(w_torch):
    """ConvTranspose2d weight (Cin, Cout, 4, 4) -> per-phase (4, 4*Cin, Cout)."""
    mats = []
    for (py, px) in _PHASES:
        blocks = [w_torch[:, :, (1 - py) + 2 * dy, (1 - px) + 2 * dx]
                  for (dy, dx) in _TAPS]                       # each (Cin, Cout)
        mats.append(jnp.concatenate(blocks, axis=0))           # (4*Cin, Cout)
    return jnp.stack(mats, axis=0)


def _phase_tap_weights(w_torch):
    """ConvTranspose2d weight (Cin, Cout, 4, 4) -> (4*4*Cout, Cin) rows,
       row index = (phase*4 + tap)*Cout + cout."""
    rows = []
    for (py, px) in _PHASES:
        for (dy, dx) in _TAPS:
            w_tap = w_torch[:, :, (1 - py) + 2 * dy, (1 - px) + 2 * dx]   # (Cin, Cout)
            rows.append(jnp.transpose(w_tap))                             # (Cout, Cin)
    return jnp.concatenate(rows, axis=0)


def prepare_generator_params(params, input_size=16):
    """Hoisted weight prep: bf16 cast / K-pad, NHWC column permute of w2,
       per-phase ConvTranspose matrix packing.  Called once, outside jit."""
    s4 = input_size // 4
    in_dim = params["w1"].shape[0]
    k1p = _round_up(in_dim, 128)

    # NCHW -> NHWC permutation of fc2 output columns (pure weight-side move).
    perm = jnp.arange(128 * s4 * s4).reshape(128, s4, s4).transpose(1, 2, 0).reshape(-1)

    w1p = jnp.zeros((k1p, params["w1"].shape[1]), jnp.bfloat16)
    w1p = w1p.at[:in_dim].set(params["w1"].astype(jnp.bfloat16))

    row = lambda v: v.astype(jnp.float32)[None, :]
    return dict(
        w1=w1p,
        b1=row(params["b1"]), g1=row(params["g1"]), be1=row(params["be1"]),
        w2=params["w2"][:, perm].astype(jnp.bfloat16),
        b2=row(params["b2"][perm]), g2=row(params["g2"][perm]),
        be2=row(params["be2"][perm]),
        dw1=_phase_weights(params["dw1"]).astype(jnp.bfloat16),      # (4, 512, 64)
        db1=row(params["db1"]), g3=row(params["g3"]), be3=row(params["be3"]),
        dw2=_phase_tap_weights(params["dw2"]).astype(jnp.float32),   # (16*Cout, 64)
        db2=row(params["db2"]),
    )


# --------------------------------------------------------------------------
# Forward pass
# --------------------------------------------------------------------------
def generator_forward(z, prepped, *, input_size=16):
    B, in_dim = z.shape
    s4 = input_size // 4
    K1p = prepped["w1"].shape[0]
    Mp = _round_up(B, 16)

    # fc block: two fused Linear + BN1d(train) + ReLU pallas_calls.
    zp = jnp.zeros((Mp, K1p), jnp.float32).at[:B, :in_dim].set(z.astype(jnp.float32))
    h = fc_bn_relu(zp, prepped["w1"], prepped["b1"], prepped["g1"], prepped["be1"],
                   batch=B)
    h = fc_bn_relu(h, prepped["w2"], prepped["b2"], prepped["g2"], prepped["be2"],
                   batch=B)

    # w2 columns were permuted offline -> fc2 output is already NHWC-ordered.
    x = h[:B].reshape(B, s4, s4, 128)

    # deconv1 + BN2d(train) + ReLU (one kernel), then deconv2 + tanh (one kernel).
    x = deconv1_bn_relu(x, prepped["dw1"], prepped["db1"], prepped["g3"], prepped["be3"])
    y = deconv2_tanh(x, prepped["dw2"], prepped["db2"])
    return jnp.transpose(y, (0, 3, 1, 2))   # NCHW, like PyTorch


# --------------------------------------------------------------------------
# Parameters (deterministic, matches PyTorch initialize_weights shapes)
# --------------------------------------------------------------------------
def init_generator_params(key, input_dim=100, output_dim=1, input_size=16):
    s4 = input_size // 4
    f2 = 128 * s4 * s4
    ks = jax.random.split(key, 6)
    std = 0.02
    return dict(
        w1=std * jax.random.normal(ks[0], (input_dim, 1024), jnp.float32),
        b1=0.05 * jax.random.uniform(ks[1], (1024,), jnp.float32, -1.0, 1.0),
        g1=jnp.ones((1024,), jnp.float32),
        be1=jnp.zeros((1024,), jnp.float32),
        w2=std * jax.random.normal(ks[2], (1024, f2), jnp.float32),
        b2=0.03 * jax.random.uniform(ks[3], (f2,), jnp.float32, -1.0, 1.0),
        g2=jnp.ones((f2,), jnp.float32),
        be2=jnp.zeros((f2,), jnp.float32),
        dw1=std * jax.random.normal(ks[4], (128, 64, 4, 4), jnp.float32),
        db1=jnp.zeros((64,), jnp.float32),
        g3=jnp.ones((64,), jnp.float32),
        be3=jnp.zeros((64,), jnp.float32),
        dw2=std * jax.random.normal(ks[5], (64, output_dim, 4, 4), jnp.float32),
        db2=jnp.zeros((output_dim,), jnp.float32),
    )


# --------------------------------------------------------------------------
# Pure-JAX reference (bf16-rounded matmul operands, like the kernels)
# --------------------------------------------------------------------------
def _conv_transpose_ref(x, w, b):
    """Direct scatter definition of nn.ConvTranspose2d(k=4, s=2, p=1), NHWC."""
    N, H, W, _ = x.shape
    Cout = w.shape[1]
    full = (H - 1) * 2 + 4
    out = jnp.zeros((N, full, full, Cout), jnp.float32)
    for ky in range(4):
        for kx in range(4):
            contrib = jnp.einsum("nhwc,cd->nhwd", x, w[:, :, ky, kx])
            out = out.at[:, ky:ky + (H - 1) * 2 + 1:2,
                         kx:kx + (W - 1) * 2 + 1:2, :].add(contrib)
    return out[:, 1:full - 1, 1:full - 1, :] + b


def _reference_forward(z, params, input_size):
    bf = lambda v: v.astype(jnp.bfloat16).astype(jnp.float32)

    def bn(y, g, b, axes):
        m = jnp.mean(y, axis=axes, keepdims=True)
        v = jnp.mean((y - m) ** 2, axis=axes, keepdims=True)
        return g * (y - m) / jnp.sqrt(v + BN_EPS) + b

    B = z.shape[0]
    s4 = input_size // 4
    h = bf(z) @ bf(params["w1"]) + params["b1"]
    h = jnp.maximum(bn(h, params["g1"], params["be1"], (0,)), 0.0)
    h = bf(h) @ bf(params["w2"]) + params["b2"]
    h = jnp.maximum(bn(h, params["g2"], params["be2"], (0,)), 0.0)
    x = jnp.transpose(h.reshape(B, 128, s4, s4), (0, 2, 3, 1))
    x = _conv_transpose_ref(bf(x), bf(params["dw1"]), params["db1"])
    x = jnp.maximum(bn(x, params["g3"], params["be3"], (0, 1, 2)), 0.0)
    y = jnp.tanh(_conv_transpose_ref(x, params["dw2"], params["db2"]))
    return jnp.transpose(y, (0, 3, 1, 2))


if __name__ == "__main__":
    key = jax.random.PRNGKey(0)
    B, input_dim, output_dim, input_size = 4, 100, 1, 16
    kz, kp = jax.random.split(key)

    params = init_generator_params(kp, input_dim, output_dim, input_size)
    # One-time weight preprocessing, hoisted out of the per-forward path.
    prepped = prepare_generator_params(params, input_size=input_size)

    z = jax.random.normal(kz, (B, input_dim), jnp.float32)
    fwd = jax.jit(functools.partial(generator_forward, input_size=input_size))
    out = jax.block_until_ready(fwd(z, prepped))

    assert out.shape == (B, output_dim, input_size, input_size), out.shape
    assert bool(jnp.all(jnp.isfinite(out)))
    assert bool(jnp.all(jnp.abs(out) <= 1.0 + 1e-6))   # tanh range

    ref = _reference_forward(z, params, input_size)
    err = float(jnp.max(jnp.abs(out - ref)))
    assert err < 8e-2, f"mismatch vs pure-JAX reference: max|diff|={err}"

    print("KERNEL_OK")
</pallas_src>

<mosaic_0001>
module attributes {stable_mosaic.version = 11 : i64} {
  func.func @_fc_bn_relu_kernel(%arg0: i32, %arg1: memref<16x1024xf32, #tpu.memory_space<vmem>>, %arg2: memref<1024x1024xbf16, #tpu.memory_space<vmem>>, %arg3: memref<1x1024xf32, #tpu.memory_space<vmem>>, %arg4: memref<1x1024xf32, #tpu.memory_space<vmem>>, %arg5: memref<1x1024xf32, #tpu.memory_space<vmem>>, %arg6: memref<16x1024xf32, #tpu.memory_space<vmem>>) attributes {dimension_semantics = [#tpu.dimension_semantics<parallel>], iteration_bounds = array<i64: 2>, scalar_prefetch = 0 : i64, scratch_operands = 0 : i64, tpu.core_type = #tpu.core_type<tc>, window_params = [{pipeline_mode = #tpu.pipeline_mode<synchronous>, transform_indices = @transform_0, window_bounds = array<i64: 16, 1024>}, {transform_indices = @transform_1, window_bounds = array<i64: 1024, 1024>}, {transform_indices = @transform_2, window_bounds = array<i64: 1, 1024>}, {transform_indices = @transform_3, window_bounds = array<i64: 1, 1024>}, {transform_indices = @transform_4, window_bounds = array<i64: 1, 1024>}, {transform_indices = @transform_5, window_bounds = array<i64: 16, 1024>}]} {
    %c0 = arith.constant 0 : index
    %c0_0 = arith.constant 0 : index
    %0 = vector.load %arg1[%c0, %c0_0] : memref<16x1024xf32, #tpu.memory_space<vmem>>, vector<16x1024xf32>
    %1 = arith.truncf %0 : vector<16x1024xf32> to vector<16x1024xbf16>
    %c0_1 = arith.constant 0 : index
    %c0_2 = arith.constant 0 : index
    %2 = vector.load %arg2[%c0_1, %c0_2] : memref<1024x1024xbf16, #tpu.memory_space<vmem>>, vector<1024x1024xbf16>
    %cst = arith.constant dense<0.000000e+00> : vector<16x1024xf32>
    %3 = tpu.matmul %1, %2, %cst {dimension_numbers = #tpu.dot_dimension_numbers<[1], [0], [0], [1], [0, 0, 1, 1], [], []>} : vector<16x1024xbf16>, vector<1024x1024xbf16>, vector<16x1024xf32> -> vector<16x1024xf32>
    %c0_3 = arith.constant 0 : index
    %c0_4 = arith.constant 0 : index
    %4 = vector.load %arg3[%c0_3, %c0_4] : memref<1x1024xf32, #tpu.memory_space<vmem>>, vector<1x1024xf32>
    %5 = vector.broadcast %4 : vector<1x1024xf32> to vector<16x1024xf32>
    %6 = arith.addf %3, %5 : vector<16x1024xf32>
    %7 = tpu.iota {dimensions = array<i32: 0>} : vector<16x1024xi32>
    %c4_i32 = arith.constant 4 : i32
    %8 = vector.broadcast %c4_i32 : i32 to vector<16x1024xi32>
    %9 = arith.cmpi slt, %7, %8 : vector<16x1024xi32>
    %cst_5 = arith.constant 0.000000e+00 : f32
    %10 = vector.broadcast %cst_5 : f32 to vector<16x1024xf32>
    %11 = arith.select %9, %6, %10 : vector<16x1024xi1>, vector<16x1024xf32>
    %cst_6 = arith.constant dense<0.000000e+00> : vector<1024xf32>
    %12 = vector.multi_reduction <add>, %11, %cst_6 [0] : vector<16x1024xf32> to vector<1024xf32>
    %13 = vector.shape_cast %12 : vector<1024xf32> to vector<1x1024xf32>
    %cst_7 = arith.constant 2.500000e-01 : f32
    %14 = vector.broadcast %cst_7 : f32 to vector<1x1024xf32>
    %15 = arith.mulf %13, %14 : vector<1x1024xf32>
    %16 = vector.broadcast %15 : vector<1x1024xf32> to vector<16x1024xf32>
    %17 = arith.subf %6, %16 : vector<16x1024xf32>
    %cst_8 = arith.constant 0.000000e+00 : f32
    %18 = vector.broadcast %cst_8 : f32 to vector<16x1024xf32>
    %19 = arith.select %9, %17, %18 : vector<16x1024xi1>, vector<16x1024xf32>
    %20 = arith.mulf %19, %19 : vector<16x1024xf32>
    %cst_9 = arith.constant dense<0.000000e+00> : vector<1024xf32>
    %21 = vector.multi_reduction <add>, %20, %cst_9 [0] : vector<16x1024xf32> to vector<1024xf32>
    %22 = vector.shape_cast %21 : vector<1024xf32> to vector<1x1024xf32>
    %cst_10 = arith.constant 2.500000e-01 : f32
    %23 = vector.broadcast %cst_10 : f32 to vector<1x1024xf32>
    %24 = arith.mulf %22, %23 : vector<1x1024xf32>
    %c0_11 = arith.constant 0 : index
    %c0_12 = arith.constant 0 : index
    %25 = vector.load %arg4[%c0_11, %c0_12] : memref<1x1024xf32, #tpu.memory_space<vmem>>, vector<1x1024xf32>
    %cst_13 = arith.constant 9.99999974E-6 : f32
    %26 = vector.broadcast %cst_13 : f32 to vector<1x1024xf32>
    %27 = arith.addf %24, %26 : vector<1x1024xf32>
    %28 = math.rsqrt %27 : vector<1x1024xf32>
    %29 = arith.mulf %25, %28 : vector<1x1024xf32>
    %30 = vector.broadcast %15 : vector<1x1024xf32> to vector<16x1024xf32>
    %31 = arith.subf %6, %30 : vector<16x1024xf32>
    %32 = vector.broadcast %29 : vector<1x1024xf32> to vector<16x1024xf32>
    %33 = arith.mulf %31, %32 : vector<16x1024xf32>
    %c0_14 = arith.constant 0 : index
    %c0_15 = arith.constant 0 : index
    %34 = vector.load %arg5[%c0_14, %c0_15] : memref<1x1024xf32, #tpu.memory_space<vmem>>, vector<1x1024xf32>
    %35 = vector.broadcast %34 : vector<1x1024xf32> to vector<16x1024xf32>
    %36 = arith.addf %33, %35 : vector<16x1024xf32>
    %cst_16 = arith.constant 0.000000e+00 : f32
    %37 = vector.broadcast %cst_16 : f32 to vector<16x1024xf32>
    %38 = arith.maximumf %36, %37 : vector<16x1024xf32>
    %cst_17 = arith.constant 0.000000e+00 : f32
    %39 = vector.broadcast %cst_17 : f32 to vector<16x1024xf32>
    %40 = arith.select %9, %38, %39 : vector<16x1024xi1>, vector<16x1024xf32>
    %c0_18 = arith.constant 0 : index
    %c0_19 = arith.constant 0 : index
    %41 = vector.load %arg6[%c0_18, %c0_19] : memref<16x1024xf32, #tpu.memory_space<vmem>>, vector<16x1024xf32>
    tpu.vector_store %arg6[%c0_18, %c0_19], %40 {strides = array<i32>} : memref<16x1024xf32, #tpu.memory_space<vmem>>, vector<16x1024xf32>,
    return
  }
  func.func @transform_0(%arg0: i32) -> (i32, i32) {
    %c0_i32 = arith.constant 0 : i32
    %c0_i32_0 = arith.constant 0 : i32
    %c0_i32_1 = arith.constant 0 : i32
    return %c0_i32, %c0_i32_0 : i32, i32
  }
  func.func @transform_1(%arg0: i32) -> (i32, i32) {
    %c0_i32 = arith.constant 0 : i32
    %c0_i32_0 = arith.constant 0 : i32
    return %c0_i32, %arg0 : i32, i32
  }
  func.func @transform_2(%arg0: i32) -> (i32, i32) {
    %c0_i32 = arith.constant 0 : i32
    %c0_i32_0 = arith.constant 0 : i32
    return %c0_i32, %arg0 : i32, i32
  }
  func.func @transform_3(%arg0: i32) -> (i32, i32) {
    %c0_i32 = arith.constant 0 : i32
    %c0_i32_0 = arith.constant 0 : i32
    return %c0_i32, %arg0 : i32, i32
  }
  func.func @transform_4(%arg0: i32) -> (i32, i32) {
    %c0_i32 = arith.constant 0 : i32
    %c0_i32_0 = arith.constant 0 : i32
    return %c0_i32, %arg0 : i32, i32
  }
  func.func @transform_5(%arg0: i32) -> (i32, i32) {
    %c0_i32 = arith.constant 0 : i32
    %c0_i32_0 = arith.constant 0 : i32
    return %c0_i32, %arg0 : i32, i32
  }
}

module attributes {stable_mosaic.version = 11 : i64} {
  func.func @_fc_bn_relu_kernel(%arg0: i32, %arg1: memref<16x128xf32, #tpu.memory_space<vmem>>, %arg2: memref<128x512xbf16, #tpu.memory_space<vmem>>, %arg3: memref<1x512xf32, #tpu.memory_space<vmem>>, %arg4: memref<1x512xf32, #tpu.memory_space<vmem>>, %arg5: memref<1x512xf32, #tpu.memory_space<vmem>>, %arg6: memref<16x512xf32, #tpu.memory_space<vmem>>) attributes {dimension_semantics = [#tpu.dimension_semantics<parallel>], iteration_bounds = array<i64: 2>, scalar_prefetch = 0 : i64, scratch_operands = 0 : i64, tpu.core_type = #tpu.core_type<tc>, window_params = [{pipeline_mode = #tpu.pipeline_mode<synchronous>, transform_indices = @transform_0, window_bounds = array<i64: 16, 128>}, {transform_indices = @transform_1, window_bounds = array<i64: 128, 512>}, {transform_indices = @transform_2, window_bounds = array<i64: 1, 512>}, {transform_indices = @transform_3, window_bounds = array<i64: 1, 512>}, {transform_indices = @transform_4, window_bounds = array<i64: 1, 512>}, {transform_indices = @transform_5, window_bounds = array<i64: 16, 512>}]} {
    %c0 = arith.constant 0 : index
    %c0_0 = arith.constant 0 : index
    %0 = vector.load %arg1[%c0, %c0_0] : memref<16x128xf32, #tpu.memory_space<vmem>>, vector<16x128xf32>
    %1 = arith.truncf %0 : vector<16x128xf32> to vector<16x128xbf16>
    %c0_1 = arith.constant 0 : index
    %c0_2 = arith.constant 0 : index
    %2 = vector.load %arg2[%c0_1, %c0_2] : memref<128x512xbf16, #tpu.memory_space<vmem>>, vector<128x512xbf16>
    %cst = arith.constant dense<0.000000e+00> : vector<16x512xf32>
    %3 = tpu.matmul %1, %2, %cst {dimension_numbers = #tpu.dot_dimension_numbers<[1], [0], [0], [1], [0, 0, 1, 1], [], []>} : vector<16x128xbf16>, vector<128x512xbf16>, vector<16x512xf32> -> vector<16x512xf32>
    %c0_3 = arith.constant 0 : index
    %c0_4 = arith.constant 0 : index
    %4 = vector.load %arg3[%c0_3, %c0_4] : memref<1x512xf32, #tpu.memory_space<vmem>>, vector<1x512xf32>
    %5 = vector.broadcast %4 : vector<1x512xf32> to vector<16x512xf32>
    %6 = arith.addf %3, %5 : vector<16x512xf32>
    %7 = tpu.iota {dimensions = array<i32: 0>} : vector<16x512xi32>
    %c4_i32 = arith.constant 4 : i32
    %8 = vector.broadcast %c4_i32 : i32 to vector<16x512xi32>
    %9 = arith.cmpi slt, %7, %8 : vector<16x512xi32>
    %cst_5 = arith.constant 0.000000e+00 : f32
    %10 = vector.broadcast %cst_5 : f32 to vector<16x512xf32>
    %11 = arith.select %9, %6, %10 : vector<16x512xi1>, vector<16x512xf32>
    %cst_6 = arith.constant dense<0.000000e+00> : vector<512xf32>
    %12 = vector.multi_reduction <add>, %11, %cst_6 [0] : vector<16x512xf32> to vector<512xf32>
    %13 = vector.shape_cast %12 : vector<512xf32> to vector<1x512xf32>
    %cst_7 = arith.constant 2.500000e-01 : f32
    %14 = vector.broadcast %cst_7 : f32 to vector<1x512xf32>
    %15 = arith.mulf %13, %14 : vector<1x512xf32>
    %16 = vector.broadcast %15 : vector<1x512xf32> to vector<16x512xf32>
    %17 = arith.subf %6, %16 : vector<16x512xf32>
    %cst_8 = arith.constant 0.000000e+00 : f32
    %18 = vector.broadcast %cst_8 : f32 to vector<16x512xf32>
    %19 = arith.select %9, %17, %18 : vector<16x512xi1>, vector<16x512xf32>
    %20 = arith.mulf %19, %19 : vector<16x512xf32>
    %cst_9 = arith.constant dense<0.000000e+00> : vector<512xf32>
    %21 = vector.multi_reduction <add>, %20, %cst_9 [0] : vector<16x512xf32> to vector<512xf32>
    %22 = vector.shape_cast %21 : vector<512xf32> to vector<1x512xf32>
    %cst_10 = arith.constant 2.500000e-01 : f32
    %23 = vector.broadcast %cst_10 : f32 to vector<1x512xf32>
    %24 = arith.mulf %22, %23 : vector<1x512xf32>
    %c0_11 = arith.constant 0 : index
    %c0_12 = arith.constant 0 : index
    %25 = vector.load %arg4[%c0_11, %c0_12] : memref<1x512xf32, #tpu.memory_space<vmem>>, vector<1x512xf32>
    %cst_13 = arith.constant 9.99999974E-6 : f32
    %26 = vector.broadcast %cst_13 : f32 to vector<1x512xf32>
    %27 = arith.addf %24, %26 : vector<1x512xf32>
    %28 = math.rsqrt %27 : vector<1x512xf32>
    %29 = arith.mulf %25, %28 : vector<1x512xf32>
    %30 = vector.broadcast %15 : vector<1x512xf32> to vector<16x512xf32>
    %31 = arith.subf %6, %30 : vector<16x512xf32>
    %32 = vector.broadcast %29 : vector<1x512xf32> to vector<16x512xf32>
    %33 = arith.mulf %31, %32 : vector<16x512xf32>
    %c0_14 = arith.constant 0 : index
    %c0_15 = arith.constant 0 : index
    %34 = vector.load %arg5[%c0_14, %c0_15] : memref<1x512xf32, #tpu.memory_space<vmem>>, vector<1x512xf32>
    %35 = vector.broadcast %34 : vector<1x512xf32> to vector<16x512xf32>
    %36 = arith.addf %33, %35 : vector<16x512xf32>
    %cst_16 = arith.constant 0.000000e+00 : f32
    %37 = vector.broadcast %cst_16 : f32 to vector<16x512xf32>
    %38 = arith.maximumf %36, %37 : vector<16x512xf32>
    %cst_17 = arith.constant 0.000000e+00 : f32
    %39 = vector.broadcast %cst_17 : f32 to vector<16x512xf32>
    %40 = arith.select %9, %38, %39 : vector<16x512xi1>, vector<16x512xf32>
    %c0_18 = arith.constant 0 : index
    %c0_19 = arith.constant 0 : index
    %41 = vector.load %arg6[%c0_18, %c0_19] : memref<16x512xf32, #tpu.memory_space<vmem>>, vector<16x512xf32>
    tpu.vector_store %arg6[%c0_18, %c0_19], %40 {strides = array<i32>} : memref<16x512xf32, #tpu.memory_space<vmem>>, vector<16x512xf32>,
    return
  }
  func.func @transform_0(%arg0: i32) -> (i32, i32) {
    %c0_i32 = arith.constant 0 : i32
    %c0_i32_0 = arith.constant 0 : i32
    %c0_i32_1 = arith.constant 0 : i32
    return %c0_i32, %c0_i32_0 : i32, i32
  }
  func.func @transform_1(%arg0: i32) -> (i32, i32) {
    %c0_i32 = arith.constant 0 : i32
    %c0_i32_0 = arith.constant 0 : i32
    return %c0_i32, %arg0 : i32, i32
  }
  func.func @transform_2(%arg0: i32) -> (i32, i32) {
    %c0_i32 = arith.constant 0 : i32
    %c0_i32_0 = arith.constant 0 : i32
    return %c0_i32, %arg0 : i32, i32
  }
  func.func @transform_3(%arg0: i32) -> (i32, i32) {
    %c0_i32 = arith.constant 0 : i32
    %c0_i32_0 = arith.constant 0 : i32
    return %c0_i32, %arg0 : i32, i32
  }
  func.func @transform_4(%arg0: i32) -> (i32, i32) {
    %c0_i32 = arith.constant 0 : i32
    %c0_i32_0 = arith.constant 0 : i32
    return %c0_i32, %arg0 : i32, i32
  }
  func.func @transform_5(%arg0: i32) -> (i32, i32) {
    %c0_i32 = arith.constant 0 : i32
    %c0_i32_0 = arith.constant 0 : i32
    return %c0_i32, %arg0 : i32, i32
  }
}

module attributes {stable_mosaic.version = 11 : i64} {
  func.func @_deconv1_bn_relu_kernel(%arg0: memref<4x6x6x128xf32, #tpu.memory_space<vmem>>, %arg1: memref<4x512x64xbf16, #tpu.memory_space<vmem>>, %arg2: memref<1x64xf32, #tpu.memory_space<vmem>>, %arg3: memref<1x64xf32, #tpu.memory_space<vmem>>, %arg4: memref<1x64xf32, #tpu.memory_space<vmem>>, %arg5: memref<4x64x64xf32, #tpu.memory_space<vmem>>) attributes {dimension_semantics = [], scalar_prefetch = 0 : i64, scratch_operands = 0 : i64, tpu.core_type = #tpu.core_type<tc>} {
    %c0 = arith.constant 0 : index
    %c0_0 = arith.constant 0 : index
    %c0_1 = arith.constant 0 : index
    %c0_2 = arith.constant 0 : index
    %0 = vector.load %arg0[%c0, %c0_0, %c0_1, %c0_2] : memref<4x6x6x128xf32, #tpu.memory_space<vmem>>, vector<4x4x4x128xf32>
    %1 = vector.shape_cast %0 : vector<4x4x4x128xf32> to vector<64x128xf32>
    %2 = arith.truncf %1 : vector<64x128xf32> to vector<64x128xbf16>
    %c0_3 = arith.constant 0 : index
    %c0_4 = arith.constant 0 : index
    %c1 = arith.constant 1 : index
    %c0_5 = arith.constant 0 : index
    %3 = vector.load %arg0[%c0_3, %c0_4, %c1, %c0_5] : memref<4x6x6x128xf32, #tpu.memory_space<vmem>>, vector<4x4x4x128xf32>
    %4 = vector.shape_cast %3 : vector<4x4x4x128xf32> to vector<64x128xf32>
    %5 = arith.truncf %4 : vector<64x128xf32> to vector<64x128xbf16>
    %c0_6 = arith.constant 0 : index
    %c0_7 = arith.constant 0 : index
    %c2 = arith.constant 2 : index
    %c0_8 = arith.constant 0 : index
    %6 = vector.load %arg0[%c0_6, %c0_7, %c2, %c0_8] : memref<4x6x6x128xf32, #tpu.memory_space<vmem>>, vector<4x4x4x128xf32>
    %7 = vector.shape_cast %6 : vector<4x4x4x128xf32> to vector<64x128xf32>
    %8 = arith.truncf %7 : vector<64x128xf32> to vector<64x128xbf16>
    %c0_9 = arith.constant 0 : index
    %c1_10 = arith.constant 1 : index
    %c0_11 = arith.constant 0 : index
    %c0_12 = arith.constant 0 : index
    %9 = vector.load %arg0[%c0_9, %c1_10, %c0_11, %c0_12] : memref<4x6x6x128xf32, #tpu.memory_space<vmem>>, vector<4x4x4x128xf32>
    %10 = vector.shape_cast %9 : vector<4x4x4x128xf32> to vector<64x128xf32>
    %11 = arith.truncf %10 : vector<64x128xf32> to vector<64x128xbf16>
    %c0_13 = arith.constant 0 : index
    %c1_14 = arith.constant 1 : index
    %c1_15 = arith.constant 1 : index
    %c0_16 = arith.constant 0 : index
    %12 = vector.load %arg0[%c0_13, %c1_14, %c1_15, %c0_16] : memref<4x6x6x128xf32, #tpu.memory_space<vmem>>, vector<4x4x4x128xf32>
    %13 = vector.shape_cast %12 : vector<4x4x4x128xf32> to vector<64x128xf32>
    %14 = arith.truncf %13 : vector<64x128xf32> to vector<64x128xbf16>
    %c0_17 = arith.constant 0 : index
    %c1_18 = arith.constant 1 : index
    %c2_19 = arith.constant 2 : index
    %c0_20 = arith.constant 0 : index
    %15 = vector.load %arg0[%c0_17, %c1_18, %c2_19, %c0_20] : memref<4x6x6x128xf32, #tpu.memory_space<vmem>>, vector<4x4x4x128xf32>
    %16 = vector.shape_cast %15 : vector<4x4x4x128xf32> to vector<64x128xf32>
    %17 = arith.truncf %16 : vector<64x128xf32> to vector<64x128xbf16>
    %c0_21 = arith.constant 0 : index
    %c2_22 = arith.constant 2 : index
    %c0_23 = arith.constant 0 : index
    %c0_24 = arith.constant 0 : index
    %18 = vector.load %arg0[%c0_21, %c2_22, %c0_23, %c0_24] : memref<4x6x6x128xf32, #tpu.memory_space<vmem>>, vector<4x4x4x128xf32>
    %19 = vector.shape_cast %18 : vector<4x4x4x128xf32> to vector<64x128xf32>
    %20 = arith.truncf %19 : vector<64x128xf32> to vector<64x128xbf16>
    %c0_25 = arith.constant 0 : index
    %c2_26 = arith.constant 2 : index
    %c1_27 = arith.constant 1 : index
    %c0_28 = arith.constant 0 : index
    %21 = vector.load %arg0[%c0_25, %c2_26, %c1_27, %c0_28] : memref<4x6x6x128xf32, #tpu.memory_space<vmem>>, vector<4x4x4x128xf32>
    %22 = vector.shape_cast %21 : vector<4x4x4x128xf32> to vector<64x128xf32>
    %23 = arith.truncf %22 : vector<64x128xf32> to vector<64x128xbf16>
    %c0_29 = arith.constant 0 : index
    %c2_30 = arith.constant 2 : index
    %c2_31 = arith.constant 2 : index
    %c0_32 = arith.constant 0 : index
    %24 = vector.load %arg0[%c0_29, %c2_30, %c2_31, %c0_32] : memref<4x6x6x128xf32, #tpu.memory_space<vmem>>, vector<4x4x4x128xf32>
    %25 = vector.shape_cast %24 : vector<4x4x4x128xf32> to vector<64x128xf32>
    %26 = arith.truncf %25 : vector<64x128xf32> to vector<64x128xbf16>
    %cst = arith.constant 0.000000e+00 : f32
    %27 = vector.broadcast %cst : f32 to vector<1x64xf32>
    %cst_33 = arith.constant 0.000000e+00 : f32
    %28 = vector.broadcast %cst_33 : f32 to vector<1x64xf32>
    %29 = tpu.concatenate %14, %11, %5, %2 in 1 : vector<64x128xbf16>, vector<64x128xbf16>, vector<64x128xbf16>, vector<64x128xbf16> -> vector<64x512xbf16>
    %c0_34 = arith.constant 0 : index
    %c0_35 = arith.constant 0 : index
    %c0_36 = arith.constant 0 : index
    %30 = vector.load %arg1[%c0_34, %c0_35, %c0_36] : memref<4x512x64xbf16, #tpu.memory_space<vmem>>, vector<1x512x64xbf16>
    %31 = vector.shape_cast %30 : vector<1x512x64xbf16> to vector<512x64xbf16>
    %cst_37 = arith.constant dense<0.000000e+00> : vector<64x64xf32>
    %32 = tpu.matmul %29, %31, %cst_37 {dimension_numbers = #tpu.dot_dimension_numbers<[1], [0], [0], [1], [0, 0, 1, 1], [], []>} : vector<64x512xbf16>, vector<512x64xbf16>, vector<64x64xf32> -> vector<64x64xf32>
    %c0_38 = arith.constant 0 : index
    %c0_39 = arith.constant 0 : index
    %33 = vector.load %arg2[%c0_38, %c0_39] : memref<1x64xf32, #tpu.memory_space<vmem>>, vector<1x64xf32>
    %34 = vector.broadcast %33 : vector<1x64xf32> to vector<64x64xf32>
    %35 = arith.addf %32, %34 : vector<64x64xf32>
    %cst_40 = arith.constant dense<0.000000e+00> : vector<64xf32>
    %36 = vector.multi_reduction <add>, %35, %cst_40 [0] : vector<64x64xf32> to vector<64xf32>
    %37 = vector.shape_cast %36 : vector<64xf32> to vector<1x64xf32>
    %38 = arith.addf %27, %37 : vector<1x64xf32>
    %39 = arith.mulf %35, %35 : vector<64x64xf32>
    %cst_41 = arith.constant dense<0.000000e+00> : vector<64xf32>
    %40 = vector.multi_reduction <add>, %39, %cst_41 [0] : vector<64x64xf32> to vector<64xf32>
    %41 = vector.shape_cast %40 : vector<64xf32> to vector<1x64xf32>
    %42 = arith.addf %28, %41 : vector<1x64xf32>
    %43 = tpu.concatenate %17, %14, %8, %5 in 1 : vector<64x128xbf16>, vector<64x128xbf16>, vector<64x128xbf16>, vector<64x128xbf16> -> vector<64x512xbf16>
    %c1_42 = arith.constant 1 : index
    %c0_43 = arith.constant 0 : index
    %c0_44 = arith.constant 0 : index
    %44 = vector.load %arg1[%c1_42, %c0_43, %c0_44] : memref<4x512x64xbf16, #tpu.memory_space<vmem>>, vector<1x512x64xbf16>
    %45 = vector.shape_cast %44 : vector<1x512x64xbf16> to vector<512x64xbf16>
    %cst_45 = arith.constant dense<0.000000e+00> : vector<64x64xf32>
    %46 = tpu.matmul %43, %45, %cst_45 {dimension_numbers = #tpu.dot_dimension_numbers<[1], [0], [0], [1], [0, 0, 1, 1], [], []>} : vector<64x512xbf16>, vector<512x64xbf16>, vector<64x64xf32> -> vector<64x64xf32>
    %c0_46 = arith.constant 0 : index
    %c0_47 = arith.constant 0 : index
    %47 = vector.load %arg2[%c0_46, %c0_47] : memref<1x64xf32, #tpu.memory_space<vmem>>, vector<1x64xf32>
    %48 = vector.broadcast %47 : vector<1x64xf32> to vector<64x64xf32>
    %49 = arith.addf %46, %48 : vector<64x64xf32>
    %cst_48 = arith.constant dense<0.000000e+00> : vector<64xf32>
    %50 = vector.multi_reduction <add>, %49, %cst_48 [0] : vector<64x64xf32> to vector<64xf32>
    %51 = vector.shape_cast %50 : vector<64xf32> to vector<1x64xf32>
    %52 = arith.addf %38, %51 : vector<1x64xf32>
    %53 = arith.mulf %49, %49 : vector<64x64xf32>
    %cst_49 = arith.constant dense<0.000000e+00> : vector<64xf32>
    %54 = vector.multi_reduction <add>, %53, %cst_49 [0] : vector<64x64xf32> to vector<64xf32>
    %55 = vector.shape_cast %54 : vector<64xf32> to vector<1x64xf32>
    %56 = arith.addf %42, %55 : vector<1x64xf32>
    %57 = tpu.concatenate %23, %20, %14, %11 in 1 : vector<64x128xbf16>, vector<64x128xbf16>, vector<64x128xbf16>, vector<64x128xbf16> -> vector<64x512xbf16>
    %c2_50 = arith.constant 2 : index
    %c0_51 = arith.constant 0 : index
    %c0_52 = arith.constant 0 : index
    %58 = vector.load %arg1[%c2_50, %c0_51, %c0_52] : memref<4x512x64xbf16, #tpu.memory_space<vmem>>, vector<1x512x64xbf16>
    %59 = vector.shape_cast %58 : vector<1x512x64xbf16> to vector<512x64xbf16>
    %cst_53 = arith.constant dense<0.000000e+00> : vector<64x64xf32>
    %60 = tpu.matmul %57, %59, %cst_53 {dimension_numbers = #tpu.dot_dimension_numbers<[1], [0], [0], [1], [0, 0, 1, 1], [], []>} : vector<64x512xbf16>, vector<512x64xbf16>, vector<64x64xf32> -> vector<64x64xf32>
    %c0_54 = arith.constant 0 : index
    %c0_55 = arith.constant 0 : index
    %61 = vector.load %arg2[%c0_54, %c0_55] : memref<1x64xf32, #tpu.memory_space<vmem>>, vector<1x64xf32>
    %62 = vector.broadcast %61 : vector<1x64xf32> to vector<64x64xf32>
    %63 = arith.addf %60, %62 : vector<64x64xf32>
    %cst_56 = arith.constant dense<0.000000e+00> : vector<64xf32>
    %64 = vector.multi_reduction <add>, %63, %cst_56 [0] : vector<64x64xf32> to vector<64xf32>
    %65 = vector.shape_cast %64 : vector<64xf32> to vector<1x64xf32>
    %66 = arith.addf %52, %65 : vector<1x64xf32>
    %67 = arith.mulf %63, %63 : vector<64x64xf32>
    %cst_57 = arith.constant dense<0.000000e+00> : vector<64xf32>
    %68 = vector.multi_reduction <add>, %67, %cst_57 [0] : vector<64x64xf32> to vector<64xf32>
    %69 = vector.shape_cast %68 : vector<64xf32> to vector<1x64xf32>
    %70 = arith.addf %56, %69 : vector<1x64xf32>
    %71 = tpu.concatenate %26, %23, %17, %14 in 1 : vector<64x128xbf16>, vector<64x128xbf16>, vector<64x128xbf16>, vector<64x128xbf16> -> vector<64x512xbf16>
    %c3 = arith.constant 3 : index
    %c0_58 = arith.constant 0 : index
    %c0_59 = arith.constant 0 : index
    %72 = vector.load %arg1[%c3, %c0_58, %c0_59] : memref<4x512x64xbf16, #tpu.memory_space<vmem>>, vector<1x512x64xbf16>
    %73 = vector.shape_cast %72 : vector<1x512x64xbf16> to vector<512x64xbf16>
    %cst_60 = arith.constant dense<0.000000e+00> : vector<64x64xf32>
    %74 = tpu.matmul %71, %73, %cst_60 {dimension_numbers = #tpu.dot_dimension_numbers<[1], [0], [0], [1], [0, 0, 1, 1], [], []>} : vector<64x512xbf16>, vector<512x64xbf16>, vector<64x64xf32> -> vector<64x64xf32>
    %c0_61 = arith.constant 0 : index
    %c0_62 = arith.constant 0 : index
    %75 = vector.load %arg2[%c0_61, %c0_62] : memref<1x64xf32, #tpu.memory_space<vmem>>, vector<1x64xf32>
    %76 = vector.broadcast %75 : vector<1x64xf32> to vector<64x64xf32>
    %77 = arith.addf %74, %76 : vector<64x64xf32>
    %cst_63 = arith.constant dense<0.000000e+00> : vector<64xf32>
    %78 = vector.multi_reduction <add>, %77, %cst_63 [0] : vector<64x64xf32> to vector<64xf32>
    %79 = vector.shape_cast %78 : vector<64xf32> to vector<1x64xf32>
    %80 = arith.addf %66, %79 : vector<1x64xf32>
    %81 = arith.mulf %77, %77 : vector<64x64xf32>
    %cst_64 = arith.constant dense<0.000000e+00> : vector<64xf32>
    %82 = vector.multi_reduction <add>, %81, %cst_64 [0] : vector<64x64xf32> to vector<64xf32>
    %83 = vector.shape_cast %82 : vector<64xf32> to vector<1x64xf32>
    %84 = arith.addf %70, %83 : vector<1x64xf32>
    %cst_65 = arith.constant 2.560000e+02 : f32
    %85 = vector.broadcast %cst_65 : f32 to vector<1x64xf32>
    %86 = arith.divf %80, %85 : vector<1x64xf32>
    %cst_66 = arith.constant 2.560000e+02 : f32
    %87 = vector.broadcast %cst_66 : f32 to vector<1x64xf32>
    %88 = arith.divf %84, %87 : vector<1x64xf32>
    %89 = arith.mulf %86, %86 : vector<1x64xf32>
    %90 = arith.subf %88, %89 : vector<1x64xf32>
    %c0_67 = arith.constant 0 : index
    %c0_68 = arith.constant 0 : index
    %91 = vector.load %arg3[%c0_67, %c0_68] : memref<1x64xf32, #tpu.memory_space<vmem>>, vector<1x64xf32>
    %cst_69 = arith.constant 9.99999974E-6 : f32
    %92 = vector.broadcast %cst_69 : f32 to vector<1x64xf32>
    %93 = arith.addf %90, %92 : vector<1x64xf32>
    %94 = math.rsqrt %93 : vector<1x64xf32>
    %95 = arith.mulf %91, %94 : vector<1x64xf32>
    %c0_70 = arith.constant 0 : index
    %c0_71 = arith.constant 0 : index
    %96 = vector.load %arg4[%c0_70, %c0_71] : memref<1x64xf32, #tpu.memory_space<vmem>>, vector<1x64xf32>
    %97 = arith.mulf %86, %95 : vector<1x64xf32>
    %98 = arith.subf %96, %97 : vector<1x64xf32>
    %99 = vector.broadcast %95 : vector<1x64xf32> to vector<64x64xf32>
    %100 = arith.mulf %35, %99 : vector<64x64xf32>
    %101 = vector.broadcast %98 : vector<1x64xf32> to vector<64x64xf32>
    %102 = arith.addf %100, %101 : vector<64x64xf32>
    %cst_72 = arith.constant 0.000000e+00 : f32
    %103 = vector.broadcast %cst_72 : f32 to vector<64x64xf32>
    %104 = arith.maximumf %102, %103 : vector<64x64xf32>
    %c0_73 = arith.constant 0 : index
    %c0_74 = arith.constant 0 : index
    %c0_75 = arith.constant 0 : index
    %105 = vector.load %arg5[%c0_73, %c0_74, %c0_75] : memref<4x64x64xf32, #tpu.memory_space<vmem>>, vector<1x64x64xf32>
    %106 = vector.shape_cast %105 : vector<1x64x64xf32> to vector<64x64xf32>
    %107 = vector.shape_cast %104 : vector<64x64xf32> to vector<1x64x64xf32>
    tpu.vector_store %arg5[%c0_73, %c0_74, %c0_75], %107 {strides = array<i32>} : memref<4x64x64xf32, #tpu.memory_space<vmem>>, vector<1x64x64xf32>,
    %108 = vector.broadcast %95 : vector<1x64xf32> to vector<64x64xf32>
    %109 = arith.mulf %49, %108 : vector<64x64xf32>
    %110 = vector.broadcast %98 : vector<1x64xf32> to vector<64x64xf32>
    %111 = arith.addf %109, %110 : vector<64x64xf32>
    %cst_76 = arith.constant 0.000000e+00 : f32
    %112 = vector.broadcast %cst_76 : f32 to vector<64x64xf32>
    %113 = arith.maximumf %111, %112 : vector<64x64xf32>
    %c1_77 = arith.constant 1 : index
    %c0_78 = arith.constant 0 : index
    %c0_79 = arith.constant 0 : index
    %114 = vector.load %arg5[%c1_77, %c0_78, %c0_79] : memref<4x64x64xf32, #tpu.memory_space<vmem>>, vector<1x64x64xf32>
    %115 = vector.shape_cast %114 : vector<1x64x64xf32> to vector<64x64xf32>
    %116 = vector.shape_cast %113 : vector<64x64xf32> to vector<1x64x64xf32>
    tpu.vector_store %arg5[%c1_77, %c0_78, %c0_79], %116 {strides = array<i32>} : memref<4x64x64xf32, #tpu.memory_space<vmem>>, vector<1x64x64xf32>,
    %117 = vector.broadcast %95 : vector<1x64xf32> to vector<64x64xf32>
    %118 = arith.mulf %63, %117 : vector<64x64xf32>
    %119 = vector.broadcast %98 : vector<1x64xf32> to vector<64x64xf32>
    %120 = arith.addf %118, %119 : vector<64x64xf32>
    %cst_80 = arith.constant 0.000000e+00 : f32
    %121 = vector.broadcast %cst_80 : f32 to vector<64x64xf32>
    %122 = arith.maximumf %120, %121 : vector<64x64xf32>
    %c2_81 = arith.constant 2 : index
    %c0_82 = arith.constant 0 : index
    %c0_83 = arith.constant 0 : index
    %123 = vector.load %arg5[%c2_81, %c0_82, %c0_83] : memref<4x64x64xf32, #tpu.memory_space<vmem>>, vector<1x64x64xf32>
    %124 = vector.shape_cast %123 : vector<1x64x64xf32> to vector<64x64xf32>
    %125 = vector.shape_cast %122 : vector<64x64xf32> to vector<1x64x64xf32>
    tpu.vector_store %arg5[%c2_81, %c0_82, %c0_83], %125 {strides = array<i32>} : memref<4x64x64xf32, #tpu.memory_space<vmem>>, vector<1x64x64xf32>,
    %126 = vector.broadcast %95 : vector<1x64xf32> to vector<64x64xf32>
    %127 = arith.mulf %77, %126 : vector<64x64xf32>
    %128 = vector.broadcast %98 : vector<1x64xf32> to vector<64x64xf32>
    %129 = arith.addf %127, %128 : vector<64x64xf32>
    %cst_84 = arith.constant 0.000000e+00 : f32
    %130 = vector.broadcast %cst_84 : f32 to vector<64x64xf32>
    %131 = arith.maximumf %129, %130 : vector<64x64xf32>
    %c3_85 = arith.constant 3 : index
    %c0_86 = arith.constant 0 : index
    %c0_87 = arith.constant 0 : index
    %132 = vector.load %arg5[%c3_85, %c0_86, %c0_87] : memref<4x64x64xf32, #tpu.memory_space<vmem>>, vector<1x64x64xf32>
    %133 = vector.shape_cast %132 : vector<1x64x64xf32> to vector<64x64xf32>
    %134 = vector.shape_cast %131 : vector<64x64xf32> to vector<1x64x64xf32>
    tpu.vector_store %arg5[%c3_85, %c0_86, %c0_87], %134 {strides = array<i32>} : memref<4x64x64xf32, #tpu.memory_space<vmem>>, vector<1x64x64xf32>,
    return
  }
}

module attributes {stable_mosaic.version = 11 : i64} {
  func.func @_deconv2_tanh_kernel(%arg0: memref<4x10x10x64xf32, #tpu.memory_space<vmem>>, %arg1: memref<16x64xf32, #tpu.memory_space<vmem>>, %arg2: memref<1x1xf32, #tpu.memory_space<vmem>>, %arg3: memref<4x256x1xf32, #tpu.memory_space<vmem>>) attributes {dimension_semantics = [], scalar_prefetch = 0 : i64, scratch_operands = 0 : i64, tpu.core_type = #tpu.core_type<tc>} {
    %c0 = arith.constant 0 : index
    %c0_0 = arith.constant 0 : index
    %c0_1 = arith.constant 0 : index
    %c0_2 = arith.constant 0 : index
    %0 = vector.load %arg0[%c0, %c0_0, %c0_1, %c0_2] : memref<4x10x10x64xf32, #tpu.memory_space<vmem>>, vector<4x8x8x64xf32>
    %1 = vector.shape_cast %0 : vector<4x8x8x64xf32> to vector<256x64xf32>
    %c0_3 = arith.constant 0 : index
    %c0_4 = arith.constant 0 : index
    %c1 = arith.constant 1 : index
    %c0_5 = arith.constant 0 : index
    %2 = vector.load %arg0[%c0_3, %c0_4, %c1, %c0_5] : memref<4x10x10x64xf32, #tpu.memory_space<vmem>>, vector<4x8x8x64xf32>
    %3 = vector.shape_cast %2 : vector<4x8x8x64xf32> to vector<256x64xf32>
    %c0_6 = arith.constant 0 : index
    %c0_7 = arith.constant 0 : index
    %c2 = arith.constant 2 : index
    %c0_8 = arith.constant 0 : index
    %4 = vector.load %arg0[%c0_6, %c0_7, %c2, %c0_8] : memref<4x10x10x64xf32, #tpu.memory_space<vmem>>, vector<4x8x8x64xf32>
    %5 = vector.shape_cast %4 : vector<4x8x8x64xf32> to vector<256x64xf32>
    %c0_9 = arith.constant 0 : index
    %c1_10 = arith.constant 1 : index
    %c0_11 = arith.constant 0 : index
    %c0_12 = arith.constant 0 : index
    %6 = vector.load %arg0[%c0_9, %c1_10, %c0_11, %c0_12] : memref<4x10x10x64xf32, #tpu.memory_space<vmem>>, vector<4x8x8x64xf32>
    %7 = vector.shape_cast %6 : vector<4x8x8x64xf32> to vector<256x64xf32>
    %c0_13 = arith.constant 0 : index
    %c1_14 = arith.constant 1 : index
    %c1_15 = arith.constant 1 : index
    %c0_16 = arith.constant 0 : index
    %8 = vector.load %arg0[%c0_13, %c1_14, %c1_15, %c0_16] : memref<4x10x10x64xf32, #tpu.memory_space<vmem>>, vector<4x8x8x64xf32>
    %9 = vector.shape_cast %8 : vector<4x8x8x64xf32> to vector<256x64xf32>
    %c0_17 = arith.constant 0 : index
    %c1_18 = arith.constant 1 : index
    %c2_19 = arith.constant 2 : index
    %c0_20 = arith.constant 0 : index
    %10 = vector.load %arg0[%c0_17, %c1_18, %c2_19, %c0_20] : memref<4x10x10x64xf32, #tpu.memory_space<vmem>>, vector<4x8x8x64xf32>
    %11 = vector.shape_cast %10 : vector<4x8x8x64xf32> to vector<256x64xf32>
    %c0_21 = arith.constant 0 : index
    %c2_22 = arith.constant 2 : index
    %c0_23 = arith.constant 0 : index
    %c0_24 = arith.constant 0 : index
    %12 = vector.load %arg0[%c0_21, %c2_22, %c0_23, %c0_24] : memref<4x10x10x64xf32, #tpu.memory_space<vmem>>, vector<4x8x8x64xf32>
    %13 = vector.shape_cast %12 : vector<4x8x8x64xf32> to vector<256x64xf32>
    %c0_25 = arith.constant 0 : index
    %c2_26 = arith.constant 2 : index
    %c1_27 = arith.constant 1 : index
    %c0_28 = arith.constant 0 : index
    %14 = vector.load %arg0[%c0_25, %c2_26, %c1_27, %c0_28] : memref<4x10x10x64xf32, #tpu.memory_space<vmem>>, vector<4x8x8x64xf32>
    %15 = vector.shape_cast %14 : vector<4x8x8x64xf32> to vector<256x64xf32>
    %c0_29 = arith.constant 0 : index
    %c2_30 = arith.constant 2 : index
    %c2_31 = arith.constant 2 : index
    %c0_32 = arith.constant 0 : index
    %16 = vector.load %arg0[%c0_29, %c2_30, %c2_31, %c0_32] : memref<4x10x10x64xf32, #tpu.memory_space<vmem>>, vector<4x8x8x64xf32>
    %17 = vector.shape_cast %16 : vector<4x8x8x64xf32> to vector<256x64xf32>
    %cst = arith.constant 0.000000e+00 : f32
    %18 = vector.broadcast %cst : f32 to vector<256x1xf32>
    %c0_33 = arith.constant 0 : index
    %c0_34 = arith.constant 0 : index
    %19 = vector.load %arg2[%c0_33, %c0_34] : memref<1x1xf32, #tpu.memory_space<vmem>>, vector<1x1xf32>
    %20 = vector.broadcast %19 : vector<1x1xf32> to vector<256x1xf32>
    %21 = arith.addf %18, %20 : vector<256x1xf32>
    %c0_35 = arith.constant 0 : index
    %c0_36 = arith.constant 0 : index
    %22 = vector.load %arg1[%c0_35, %c0_36] : memref<16x64xf32, #tpu.memory_space<vmem>>, vector<1x64xf32>
    %23 = vector.broadcast %22 : vector<1x64xf32> to vector<256x64xf32>
    %24 = arith.mulf %9, %23 : vector<256x64xf32>
    %cst_37 = arith.constant dense<0.000000e+00> : vector<256xf32>
    %25 = vector.multi_reduction <add>, %24, %cst_37 [1] : vector<256x64xf32> to vector<256xf32>
    %26 = vector.shape_cast %25 : vector<256xf32> to vector<256x1xf32>
    %27 = arith.addf %21, %26 : vector<256x1xf32>
    %c1_38 = arith.constant 1 : index
    %c0_39 = arith.constant 0 : index
    %28 = vector.load %arg1[%c1_38, %c0_39] : memref<16x64xf32, #tpu.memory_space<vmem>>, vector<1x64xf32>
    %29 = vector.broadcast %28 : vector<1x64xf32> to vector<256x64xf32>
    %30 = arith.mulf %7, %29 : vector<256x64xf32>
    %cst_40 = arith.constant dense<0.000000e+00> : vector<256xf32>
    %31 = vector.multi_reduction <add>, %30, %cst_40 [1] : vector<256x64xf32> to vector<256xf32>
    %32 = vector.shape_cast %31 : vector<256xf32> to vector<256x1xf32>
    %33 = arith.addf %27, %32 : vector<256x1xf32>
    %c2_41 = arith.constant 2 : index
    %c0_42 = arith.constant 0 : index
    %34 = vector.load %arg1[%c2_41, %c0_42] : memref<16x64xf32, #tpu.memory_space<vmem>>, vector<1x64xf32>
    %35 = vector.broadcast %34 : vector<1x64xf32> to vector<256x64xf32>
    %36 = arith.mulf %3, %35 : vector<256x64xf32>
    %cst_43 = arith.constant dense<0.000000e+00> : vector<256xf32>
    %37 = vector.multi_reduction <add>, %36, %cst_43 [1] : vector<256x64xf32> to vector<256xf32>
    %38 = vector.shape_cast %37 : vector<256xf32> to vector<256x1xf32>
    %39 = arith.addf %33, %38 : vector<256x1xf32>
    %c3 = arith.constant 3 : index
    %c0_44 = arith.constant 0 : index
    %40 = vector.load %arg1[%c3, %c0_44] : memref<16x64xf32, #tpu.memory_space<vmem>>, vector<1x64xf32>
    %41 = vector.broadcast %40 : vector<1x64xf32> to vector<256x64xf32>
    %42 = arith.mulf %1, %41 : vector<256x64xf32>
    %cst_45 = arith.constant dense<0.000000e+00> : vector<256xf32>
    %43 = vector.multi_reduction <add>, %42, %cst_45 [1] : vector<256x64xf32> to vector<256xf32>
    %44 = vector.shape_cast %43 : vector<256xf32> to vector<256x1xf32>
    %45 = arith.addf %39, %44 : vector<256x1xf32>
    %46 = math.tanh %45 : vector<256x1xf32>
    %c0_46 = arith.constant 0 : index
    %c0_47 = arith.constant 0 : index
    %c0_48 = arith.constant 0 : index
    %47 = vector.load %arg3[%c0_46, %c0_47, %c0_48] : memref<4x256x1xf32, #tpu.memory_space<vmem>>, vector<1x256x1xf32>
    %48 = vector.shape_cast %47 : vector<1x256x1xf32> to vector<256x1xf32>
    %49 = vector.shape_cast %46 : vector<256x1xf32> to vector<1x256x1xf32>
    tpu.vector_store %arg3[%c0_46, %c0_47, %c0_48], %49 {strides = array<i32>} : memref<4x256x1xf32, #tpu.memory_space<vmem>>, vector<1x256x1xf32>,
    %cst_49 = arith.constant 0.000000e+00 : f32
    %50 = vector.broadcast %cst_49 : f32 to vector<256x1xf32>
    %c0_50 = arith.constant 0 : index
    %c0_51 = arith.constant 0 : index
    %51 = vector.load %arg2[%c0_50, %c0_51] : memref<1x1xf32, #tpu.memory_space<vmem>>, vector<1x1xf32>
    %52 = vector.broadcast %51 : vector<1x1xf32> to vector<256x1xf32>
    %53 = arith.addf %50, %52 : vector<256x1xf32>
    %c4 = arith.constant 4 : index
    %c0_52 = arith.constant 0 : index
    %54 = vector.load %arg1[%c4, %c0_52] : memref<16x64xf32, #tpu.memory_space<vmem>>, vector<1x64xf32>
    %55 = vector.broadcast %54 : vector<1x64xf32> to vector<256x64xf32>
    %56 = arith.mulf %11, %55 : vector<256x64xf32>
    %cst_53 = arith.constant dense<0.000000e+00> : vector<256xf32>
    %57 = vector.multi_reduction <add>, %56, %cst_53 [1] : vector<256x64xf32> to vector<256xf32>
    %58 = vector.shape_cast %57 : vector<256xf32> to vector<256x1xf32>
    %59 = arith.addf %53, %58 : vector<256x1xf32>
    %c5 = arith.constant 5 : index
    %c0_54 = arith.constant 0 : index
    %60 = vector.load %arg1[%c5, %c0_54] : memref<16x64xf32, #tpu.memory_space<vmem>>, vector<1x64xf32>
    %61 = vector.broadcast %60 : vector<1x64xf32> to vector<256x64xf32>
    %62 = arith.mulf %9, %61 : vector<256x64xf32>
    %cst_55 = arith.constant dense<0.000000e+00> : vector<256xf32>
    %63 = vector.multi_reduction <add>, %62, %cst_55 [1] : vector<256x64xf32> to vector<256xf32>
    %64 = vector.shape_cast %63 : vector<256xf32> to vector<256x1xf32>
    %65 = arith.addf %59, %64 : vector<256x1xf32>
    %c6 = arith.constant 6 : index
    %c0_56 = arith.constant 0 : index
    %66 = vector.load %arg1[%c6, %c0_56] : memref<16x64xf32, #tpu.memory_space<vmem>>, vector<1x64xf32>
    %67 = vector.broadcast %66 : vector<1x64xf32> to vector<256x64xf32>
    %68 = arith.mulf %5, %67 : vector<256x64xf32>
    %cst_57 = arith.constant dense<0.000000e+00> : vector<256xf32>
    %69 = vector.multi_reduction <add>, %68, %cst_57 [1] : vector<256x64xf32> to vector<256xf32>
    %70 = vector.shape_cast %69 : vector<256xf32> to vector<256x1xf32>
    %71 = arith.addf %65, %70 : vector<256x1xf32>
    %c7 = arith.constant 7 : index
    %c0_58 = arith.constant 0 : index
    %72 = vector.load %arg1[%c7, %c0_58] : memref<16x64xf32, #tpu.memory_space<vmem>>, vector<1x64xf32>
    %73 = vector.broadcast %72 : vector<1x64xf32> to vector<256x64xf32>
    %74 = arith.mulf %3, %73 : vector<256x64xf32>
    %cst_59 = arith.constant dense<0.000000e+00> : vector<256xf32>
    %75 = vector.multi_reduction <add>, %74, %cst_59 [1] : vector<256x64xf32> to vector<256xf32>
    %76 = vector.shape_cast %75 : vector<256xf32> to vector<256x1xf32>
    %77 = arith.addf %71, %76 : vector<256x1xf32>
    %78 = math.tanh %77 : vector<256x1xf32>
    %c1_60 = arith.constant 1 : index
    %c0_61 = arith.constant 0 : index
    %c0_62 = arith.constant 0 : index
    %79 = vector.load %arg3[%c1_60, %c0_61, %c0_62] : memref<4x256x1xf32, #tpu.memory_space<vmem>>, vector<1x256x1xf32>
    %80 = vector.shape_cast %79 : vector<1x256x1xf32> to vector<256x1xf32>
    %81 = vector.shape_cast %78 : vector<256x1xf32> to vector<1x256x1xf32>
    tpu.vector_store %arg3[%c1_60, %c0_61, %c0_62], %81 {strides = array<i32>} : memref<4x256x1xf32, #tpu.memory_space<vmem>>, vector<1x256x1xf32>,
    %cst_63 = arith.constant 0.000000e+00 : f32
    %82 = vector.broadcast %cst_63 : f32 to vector<256x1xf32>
    %c0_64 = arith.constant 0 : index
    %c0_65 = arith.constant 0 : index
    %83 = vector.load %arg2[%c0_64, %c0_65] : memref<1x1xf32, #tpu.memory_space<vmem>>, vector<1x1xf32>
    %84 = vector.broadcast %83 : vector<1x1xf32> to vector<256x1xf32>
    %85 = arith.addf %82, %84 : vector<256x1xf32>
    %c8 = arith.constant 8 : index
    %c0_66 = arith.constant 0 : index
    %86 = vector.load %arg1[%c8, %c0_66] : memref<16x64xf32, #tpu.memory_space<vmem>>, vector<1x64xf32>
    %87 = vector.broadcast %86 : vector<1x64xf32> to vector<256x64xf32>
    %88 = arith.mulf %15, %87 : vector<256x64xf32>
    %cst_67 = arith.constant dense<0.000000e+00> : vector<256xf32>
    %89 = vector.multi_reduction <add>, %88, %cst_67 [1] : vector<256x64xf32> to vector<256xf32>
    %90 = vector.shape_cast %89 : vector<256xf32> to vector<256x1xf32>
    %91 = arith.addf %85, %90 : vector<256x1xf32>
    %c9 = arith.constant 9 : index
    %c0_68 = arith.constant 0 : index
    %92 = vector.load %arg1[%c9, %c0_68] : memref<16x64xf32, #tpu.memory_space<vmem>>, vector<1x64xf32>
    %93 = vector.broadcast %92 : vector<1x64xf32> to vector<256x64xf32>
    %94 = arith.mulf %13, %93 : vector<256x64xf32>
    %cst_69 = arith.constant dense<0.000000e+00> : vector<256xf32>
    %95 = vector.multi_reduction <add>, %94, %cst_69 [1] : vector<256x64xf32> to vector<256xf32>
    %96 = vector.shape_cast %95 : vector<256xf32> to vector<256x1xf32>
    %97 = arith.addf %91, %96 : vector<256x1xf32>
    %c10 = arith.constant 10 : index
    %c0_70 = arith.constant 0 : index
    %98 = vector.load %arg1[%c10, %c0_70] : memref<16x64xf32, #tpu.memory_space<vmem>>, vector<1x64xf32>
    %99 = vector.broadcast %98 : vector<1x64xf32> to vector<256x64xf32>
    %100 = arith.mulf %9, %99 : vector<256x64xf32>
    %cst_71 = arith.constant dense<0.000000e+00> : vector<256xf32>
    %101 = vector.multi_reduction <add>, %100, %cst_71 [1] : vector<256x64xf32> to vector<256xf32>
    %102 = vector.shape_cast %101 : vector<256xf32> to vector<256x1xf32>
    %103 = arith.addf %97, %102 : vector<256x1xf32>
    %c11 = arith.constant 11 : index
    %c0_72 = arith.constant 0 : index
    %104 = vector.load %arg1[%c11, %c0_72] : memref<16x64xf32, #tpu.memory_space<vmem>>, vector<1x64xf32>
    %105 = vector.broadcast %104 : vector<1x64xf32> to vector<256x64xf32>
    %106 = arith.mulf %7, %105 : vector<256x64xf32>
    %cst_73 = arith.constant dense<0.000000e+00> : vector<256xf32>
    %107 = vector.multi_reduction <add>, %106, %cst_73 [1] : vector<256x64xf32> to vector<256xf32>
    %108 = vector.shape_cast %107 : vector<256xf32> to vector<256x1xf32>
    %109 = arith.addf %103, %108 : vector<256x1xf32>
    %110 = math.tanh %109 : vector<256x1xf32>
    %c2_74 = arith.constant 2 : index
    %c0_75 = arith.constant 0 : index
    %c0_76 = arith.constant 0 : index
    %111 = vector.load %arg3[%c2_74, %c0_75, %c0_76] : memref<4x256x1xf32, #tpu.memory_space<vmem>>, vector<1x256x1xf32>
    %112 = vector.shape_cast %111 : vector<1x256x1xf32> to vector<256x1xf32>
    %113 = vector.shape_cast %110 : vector<256x1xf32> to vector<1x256x1xf32>
    tpu.vector_store %arg3[%c2_74, %c0_75, %c0_76], %113 {strides = array<i32>} : memref<4x256x1xf32, #tpu.memory_space<vmem>>, vector<1x256x1xf32>,
    %cst_77 = arith.constant 0.000000e+00 : f32
    %114 = vector.broadcast %cst_77 : f32 to vector<256x1xf32>
    %c0_78 = arith.constant 0 : index
    %c0_79 = arith.constant 0 : index
    %115 = vector.load %arg2[%c0_78, %c0_79] : memref<1x1xf32, #tpu.memory_space<vmem>>, vector<1x1xf32>
    %116 = vector.broadcast %115 : vector<1x1xf32> to vector<256x1xf32>
    %117 = arith.addf %114, %116 : vector<256x1xf32>
    %c12 = arith.constant 12 : index
    %c0_80 = arith.constant 0 : index
    %118 = vector.load %arg1[%c12, %c0_80] : memref<16x64xf32, #tpu.memory_space<vmem>>, vector<1x64xf32>
    %119 = vector.broadcast %118 : vector<1x64xf32> to vector<256x64xf32>
    %120 = arith.mulf %17, %119 : vector<256x64xf32>
    %cst_81 = arith.constant dense<0.000000e+00> : vector<256xf32>
    %121 = vector.multi_reduction <add>, %120, %cst_81 [1] : vector<256x64xf32> to vector<256xf32>
    %122 = vector.shape_cast %121 : vector<256xf32> to vector<256x1xf32>
    %123 = arith.addf %117, %122 : vector<256x1xf32>
    %c13 = arith.constant 13 : index
    %c0_82 = arith.constant 0 : index
    %124 = vector.load %arg1[%c13, %c0_82] : memref<16x64xf32, #tpu.memory_space<vmem>>, vector<1x64xf32>
    %125 = vector.broadcast %124 : vector<1x64xf32> to vector<256x64xf32>
    %126 = arith.mulf %15, %125 : vector<256x64xf32>
    %cst_83 = arith.constant dense<0.000000e+00> : vector<256xf32>
    %127 = vector.multi_reduction <add>, %126, %cst_83 [1] : vector<256x64xf32> to vector<256xf32>
    %128 = vector.shape_cast %127 : vector<256xf32> to vector<256x1xf32>
    %129 = arith.addf %123, %128 : vector<256x1xf32>
    %c14 = arith.constant 14 : index
    %c0_84 = arith.constant 0 : index
    %130 = vector.load %arg1[%c14, %c0_84] : memref<16x64xf32, #tpu.memory_space<vmem>>, vector<1x64xf32>
    %131 = vector.broadcast %130 : vector<1x64xf32> to vector<256x64xf32>
    %132 = arith.mulf %11, %131 : vector<256x64xf32>
    %cst_85 = arith.constant dense<0.000000e+00> : vector<256xf32>
    %133 = vector.multi_reduction <add>, %132, %cst_85 [1] : vector<256x64xf32> to vector<256xf32>
    %134 = vector.shape_cast %133 : vector<256xf32> to vector<256x1xf32>
    %135 = arith.addf %129, %134 : vector<256x1xf32>
    %c15 = arith.constant 15 : index
    %c0_86 = arith.constant 0 : index
    %136 = vector.load %arg1[%c15, %c0_86] : memref<16x64xf32, #tpu.memory_space<vmem>>, vector<1x64xf32>
    %137 = vector.broadcast %136 : vector<1x64xf32> to vector<256x64xf32>
    %138 = arith.mulf %9, %137 : vector<256x64xf32>
    %cst_87 = arith.constant dense<0.000000e+00> : vector<256xf32>
    %139 = vector.multi_reduction <add>, %138, %cst_87 [1] : vector<256x64xf32> to vector<256xf32>
    %140 = vector.shape_cast %139 : vector<256xf32> to vector<256x1xf32>
    %141 = arith.addf %135, %140 : vector<256x1xf32>
    %142 = math.tanh %141 : vector<256x1xf32>
    %c3_88 = arith.constant 3 : index
    %c0_89 = arith.constant 0 : index
    %c0_90 = arith.constant 0 : index
    %143 = vector.load %arg3[%c3_88, %c0_89, %c0_90] : memref<4x256x1xf32, #tpu.memory_space<vmem>>, vector<1x256x1xf32>
    %144 = vector.shape_cast %143 : vector<1x256x1xf32> to vector<256x1xf32>
    %145 = vector.shape_cast %142 : vector<256x1xf32> to vector<1x256x1xf32>
    tpu.vector_store %arg3[%c3_88, %c0_89, %c0_90], %145 {strides = array<i32>} : memref<4x256x1xf32, #tpu.memory_space<vmem>>, vector<1x256x1xf32>,
    return
  }
}

</mosaic_0001>

<llo_original>
// kernel: generator_forward.4
$region0: #{generator_forward.4}
  #allocation0 [shape = 'u32[]', space=smem, size = 0x4, offset = 0x4, fixed_abs, tag = 'smem constant byte address 0x4 - core index']
  #allocation1 [shape = 'u32[72,128]{1,0:T(1,128)}', space=vmem, size = 0x9000, scoped, tag = 'internal scratch']
  %s0 = inlined_call_operand.vmem [shape: f32[16,128], index: 0, kind: input, shape index: {}]
  %s1 = inlined_call_operand.hbm [shape: bf16[128,1024], index: 1, kind: input, shape index: {}]
  %s2 = inlined_call_operand.hbm [shape: f32[1,1024], index: 2, kind: input, shape index: {}]
  %s3 = inlined_call_operand.hbm [shape: f32[1,1024], index: 3, kind: input, shape index: {}]
  %s4 = inlined_call_operand.hbm [shape: f32[1,1024], index: 4, kind: input, shape index: {}]
  %s5 = inlined_call_operand.vmem [shape: f32[16,1024], index: 5, kind: output, shape index: {}]
  %s6 = sld [smem:[#allocation0]]
  $region88: #{generator_forward.4} parent=0
    _
  %s8 = ssub.s32 1, %s6
  %s9 = scalar_select 0, %s8, %s6
  $region1: #{generator_forward.4} parent=0
    #allocation2 [shape = 'u8[262144]{0}', space=vmem, size = 0x40000, scoped, tag = 'input window, operand 1']
    #allocation3 [shape = 's32[2]{0}', space=sflag, size = 0x8, scoped, tag = 'scoped memory for generator_forward.4']
    #allocation4 [shape = 'u8[4096]{0}', space=vmem, size = 0x1000, scoped, tag = 'input window, operand 2']
    #allocation5 [shape = 's32[2]{0}', space=sflag, size = 0x8, scoped, tag = 'scoped memory for generator_forward.4']
    #allocation6 [shape = 'u8[4096]{0}', space=vmem, size = 0x1000, scoped, tag = 'input window, operand 3']
    #allocation7 [shape = 'u8[4096]{0}', space=vmem, size = 0x1000, scoped, tag = 'input window, operand 4']
    #allocation8 [shape = 's32[2]{0}', space=sflag, size = 0x8, scoped, tag = 'scoped memory for generator_forward.4']
    #allocation9 [shape = 'u8[65536]{0}', space=vmem, size = 0x10000, scoped, tag = 'output window, operand 0']
    %10 = vsyncpa [#allocation3], 0
    %s11 = scalar_lea.sflag [#allocation3], 1
    %12 = vsyncpa %s11, 0
    %13 = vsyncpa [#allocation5], 0
    %s14 = scalar_lea.sflag [#allocation5], 1
    %15 = vsyncpa %s14, 0
    %16 = vsyncpa [#allocation8], 0
    %s17 = scalar_lea.sflag [#allocation8], 1
    %18 = vsyncpa %s17, 0
    loop: start=0, step=1, limit=4
    $region2: #{generator_forward.4} parent=1 // loop_pre_header
      _
    $region3: #{generator_forward.4} parent=1 // loop_header
      %s20 = sphi 0, %s24
      %p21 = scmp.ge.s32.totalorder %s20, 4
      %s28 = sphi 0, %s28
      %s30 = sphi 0, %s28
      %s31 = sphi 0, %s30
      %s45 = sphi 0, %s31
      %s51 = sphi 0, %s53
      %s54 = sphi 0, %s51
      %s55 = sphi 0, %s54
      %s71 = sphi 0, %s55
      %s77 = sphi 0, %s79
      %s80 = sphi 0, %s77
      %s81 = sphi 0, %s80
      %s97 = sphi 0, %s81
      %s103 = sphi 0, %s105
      %s106 = sphi 0, %s103
      %s107 = sphi 0, %s106
      %s123 = sphi 0, %s107
      %s129 = sphi 0, %s131
      %s132 = sphi 0, %s129
      %s133 = sphi 0, %s132
      %s149 = sphi 0, %s133
      %s155 = sphi 0, %s157
      %s158 = sphi 0, %s155
      %s159 = sphi 0, %s158
      %s175 = sphi 0, %s159
    $region4: #{generator_forward.4} parent=1 // loop_header_branch
      %23 = sbr.rel (%p21) target = $region8
    $region5: #{generator_forward.4} parent=1 // loop_body
      %s25 = ssub.s32 %s20, 1
      %s26 = ssub.s32 %s20, 2
      %s27 = sadd.s32 %s20, 1
      %s29 = sadd.s32 %s28, 1
      %p32 = scmp.eq.s32.totalorder %s20, 1
      %p33 = scmp.ne.s32.totalorder %s28, %s30
      %p34 = scmp.eq.s32.totalorder %s20, 0
      %p35 = por %p33, %p34
      %p36 = scmp.ne.s32.totalorder %s28, %s30
      %p37 = scmp.eq.s32.totalorder %s25, 1
      %p38 = por %p36, %p37
      %p39 = scmp.ne.s32.totalorder %s30, %s31
      %p40 = scmp.eq.s32.totalorder %s25, 0
      %p41 = por %p39, %p40
      %p42 = scmp.ne.s32.totalorder %s30, %s31
      %p43 = scmp.eq.s32.totalorder %s26, 1
      %p44 = por %p42, %p43
      %p46 = scmp.ne.s32.totalorder %s31, %s45
      %p47 = scmp.eq.s32.totalorder %s26, 0
      %p48 = por %p46, %p47
      %s49 = ssub.s32 %s20, %s27
      %p50 = scmp.eq.s32.totalorder %s49, 0
      %s52 = sadd.s32 %s51, 1
      %s53 = scalar_select %p50, %s51, %s52
      %p56 = pneg %p50
      %p57 = scmp.eq.s32.totalorder %s20, 1
      %p58 = por %p56, %p57
      %p59 = scmp.ne.s32.totalorder %s51, %s54
      %p60 = scmp.eq.s32.totalorder %s20, 0
      %p61 = por %p59, %p60
      %p62 = scmp.ne.s32.totalorder %s51, %s54
      %p63 = scmp.eq.s32.totalorder %s25, 1
      %p64 = por %p62, %p63
      %p65 = scmp.ne.s32.totalorder %s54, %s55
      %p66 = scmp.eq.s32.totalorder %s25, 0
      %p67 = por %p65, %p66
      %p68 = scmp.ne.s32.totalorder %s54, %s55
      %p69 = scmp.eq.s32.totalorder %s26, 1
      %p70 = por %p68, %p69
      %p72 = scmp.ne.s32.totalorder %s55, %s71
      %p73 = scmp.eq.s32.totalorder %s26, 0
      %p74 = por %p72, %p73
      %s75 = ssub.s32 %s20, %s27
      %p76 = scmp.eq.s32.totalorder %s75, 0
      %s78 = sadd.s32 %s77, 1
      %s79 = scalar_select %p76, %s77, %s78
      %p82 = pneg %p76
      %p83 = scmp.eq.s32.totalorder %s20, 1
      %p84 = por %p82, %p83
      %p85 = scmp.ne.s32.totalorder %s77, %s80
      %p86 = scmp.eq.s32.totalorder %s20, 0
      %p87 = por %p85, %p86
      %p88 = scmp.ne.s32.totalorder %s77, %s80
      %p89 = scmp.eq.s32.totalorder %s25, 1
      %p90 = por %p88, %p89
      %p91 = scmp.ne.s32.totalorder %s80, %s81
      %p92 = scmp.eq.s32.totalorder %s25, 0
      %p93 = por %p91, %p92
      %p94 = scmp.ne.s32.totalorder %s80, %s81
      %p95 = scmp.eq.s32.totalorder %s26, 1
      %p96 = por %p94, %p95
      %p98 = scmp.ne.s32.totalorder %s81, %s97
      %p99 = scmp.eq.s32.totalorder %s26, 0
      %p100 = por %p98, %p99
      %s101 = ssub.s32 %s20, %s27
      %p102 = scmp.eq.s32.totalorder %s101, 0
      %s104 = sadd.s32 %s103, 1
      %s105 = scalar_select %p102, %s103, %s104
      %p108 = pneg %p102
      %p109 = scmp.eq.s32.totalorder %s20, 1
      %p110 = por %p108, %p109
      %p111 = scmp.ne.s32.totalorder %s103, %s106
      %p112 = scmp.eq.s32.totalorder %s20, 0
      %p113 = por %p111, %p112
      %p114 = scmp.ne.s32.totalorder %s103, %s106
      %p115 = scmp.eq.s32.totalorder %s25, 1
      %p116 = por %p114, %p115
      %p117 = scmp.ne.s32.totalorder %s106, %s107
      %p118 = scmp.eq.s32.totalorder %s25, 0
      %p119 = por %p117, %p118
      %p120 = scmp.ne.s32.totalorder %s106, %s107
      %p121 = scmp.eq.s32.totalorder %s26, 1
      %p122 = por %p120, %p121
      %p124 = scmp.ne.s32.totalorder %s107, %s123
      %p125 = scmp.eq.s32.totalorder %s26, 0
      %p126 = por %p124, %p125
      %s127 = ssub.s32 %s20, %s27
      %p128 = scmp.eq.s32.totalorder %s127, 0
      %s130 = sadd.s32 %s129, 1
      %s131 = scalar_select %p128, %s129, %s130
      %p134 = pneg %p128
      %p135 = scmp.eq.s32.totalorder %s20, 1
      %p136 = por %p134, %p135
      %p137 = scmp.ne.s32.totalorder %s129, %s132
      %p138 = scmp.eq.s32.totalorder %s20, 0
      %p139 = por %p137, %p138
      %p140 = scmp.ne.s32.totalorder %s129, %s132
      %p141 = scmp.eq.s32.totalorder %s25, 1
      %p142 = por %p140, %p141
      %p143 = scmp.ne.s32.totalorder %s132, %s133
      %p144 = scmp.eq.s32.totalorder %s25, 0
      %p145 = por %p143, %p144
      %p146 = scmp.ne.s32.totalorder %s132, %s133
      %p147 = scmp.eq.s32.totalorder %s26, 1
      %p148 = por %p146, %p147
      %p150 = scmp.ne.s32.totalorder %s133, %s149
      %p151 = scmp.eq.s32.totalorder %s26, 0
      %p152 = por %p150, %p151
      %s153 = ssub.s32 %s20, %s27
      %p154 = scmp.eq.s32.totalorder %s153, 0
      %s156 = sadd.s32 %s155, 1
      %s157 = scalar_select %p154, %s155, %s156
      %p160 = pneg %p154
      %p161 = scmp.eq.s32.totalorder %s20, 1
      %p162 = por %p160, %p161
      %p163 = scmp.ne.s32.totalorder %s155, %s158
      %p164 = scmp.eq.s32.totalorder %s20, 0
      %p165 = por %p163, %p164
      %p166 = scmp.ne.s32.totalorder %s155, %s158
      %p167 = scmp.eq.s32.totalorder %s25, 1
      %p168 = por %p166, %p167
      %p169 = scmp.ne.s32.totalorder %s158, %s159
      %p170 = scmp.eq.s32.totalorder %s25, 0
      %p171 = por %p169, %p170
      %p172 = scmp.ne.s32.totalorder %s158, %s159
      %p173 = scmp.eq.s32.totalorder %s26, 1
      %p174 = por %p172, %p173
      %p176 = scmp.ne.s32.totalorder %s159, %s175
      %p177 = scmp.eq.s32.totalorder %s26, 0
      %p178 = por %p176, %p177
      %p179 = scmp.le.s32.totalorder 1, %s20
      %p180 = scmp.lt.s32.totalorder %s20, 3
      %p181 = pnand %p179, %p180
      %p182 = pneg %p181
      // Predicated region
      $region9: #{generator_forward.4} parent=5 // pred_check
        _
      $region10: #{generator_forward.4} parent=5 // pred_check_branch
        %184 = sbr.rel (%p181) target = $region12
      $region11: #{generator_forward.4} parent=5 // pred_region
        %s185 = ssub.s32 %s20, 1
        // Predicated region
        $region13: #{generator_forward.4} parent=11 // pred_check
          %p186 = pneg %p41
        $region14: #{generator_forward.4} parent=11 // pred_check_branch
          %188 = sbr.rel (%p186) target = $region16
        $region15: #{generator_forward.4} parent=11 // pred_region
          _
        $region16: #{generator_forward.4} parent=11 // pred_fallthru
          _
      $region12: #{generator_forward.4} parent=5 // pred_fallthru
        _
      %p189 = scmp.lt.s32.totalorder %s20, 2
      // Predicated region
      $region17: #{generator_forward.4} parent=5 // pred_check
        %p190 = pneg %p189
      $region18: #{generator_forward.4} parent=5 // pred_check_branch
        %192 = sbr.rel (%p190) target = $region20
      $region19: #{generator_forward.4} parent=5 // pred_region
        // Predicated region
        $region21: #{generator_forward.4} parent=19 // pred_check
          %p193 = pneg %p61
        $region22: #{generator_forward.4} parent=19 // pred_check_branch
          %195 = sbr.rel (%p193) target = $region24
        $region23: #{generator_forward.4} parent=19 // pred_region
          %s196 = sand.u32 %s51, 1
          %s197 = scalar_lea.sflag [#allocation3], %s196
          %s198 = sand.u32 %s51, 1
          %s199 = smul.addr %s198, 256
          %s200 = scalar_lea.vmem [#allocation2], %s199
          %s201 = smul.u32 4, %s20
          %203 = vsyncadd %s197, 0
          %s204 = smul.addr %s201, 4
          %s205 = scalar_lea.hbm %s1, %s204
          %s206 = sshll.u32 %s205, 4
          %s207 = int_to_ptr.hbm [resolvable:$true] %s206
          %s208 = sshll.u32 %s200, 4
          %s209 = int_to_ptr.vmem [resolvable:$true] %s208
          %214 = dma.hbm_to_vmem [thread:$0]  %s207, 4096, %s209, %s197, 512, 256, 16
        $region24: #{generator_forward.4} parent=19 // pred_fallthru
          _
        // Predicated region
        $region25: #{generator_forward.4} parent=19 // pred_check
          %p215 = pneg %p87
        $region26: #{generator_forward.4} parent=19 // pred_check_branch
          %217 = sbr.rel (%p215) target = $region28
        $region27: #{generator_forward.4} parent=19 // pred_region
          %s218 = sand.u32 %s20, 1
          %s219 = scalar_lea.sflag [#allocation5], %s218
          %s220 = sand.u32 %s77, 1
          %s221 = smul.addr %s220, 4
          %s222 = scalar_lea.vmem [#allocation4], %s221
          %s223 = smul.u32 4, %s20
          %225 = vsyncadd %s219, 0
          %s226 = scalar_lea.hbm %s2, %s223
          %s228 = sshll.u32 %s226, 4
          %s229 = int_to_ptr.hbm [resolvable:$true] %s228
          %s230 = sshll.u32 %s222, 4
          %s231 = int_to_ptr.vmem [resolvable:$true] %s230
          %233 = dma.hbm_to_vmem [thread:$0]  %s229, 64, %s231, %s219
        $region28: #{generator_forward.4} parent=19 // pred_fallthru
          _
        // Predicated region
        $region29: #{generator_forward.4} parent=19 // pred_check
          %p234 = pneg %p113
        $region30: #{generator_forward.4} parent=19 // pred_check_branch
          %236 = sbr.rel (%p234) target = $region32
        $region31: #{generator_forward.4} parent=19 // pred_region
          %s237 = sand.u32 %s20, 1
          %s238 = scalar_lea.sflag [#allocation5], %s237
          %s239 = sand.u32 %s103, 1
          %s240 = smul.addr %s239, 4
          %s241 = scalar_lea.vmem [#allocation6], %s240
          %s242 = smul.u32 4, %s20
          %244 = vsyncadd %s238, 0
          %s245 = scalar_lea.hbm %s3, %s242
          %s247 = sshll.u32 %s245, 4
          %s248 = int_to_ptr.hbm [resolvable:$true] %s247
          %s249 = sshll.u32 %s241, 4
          %s250 = int_to_ptr.vmem [resolvable:$true] %s249
          %252 = dma.hbm_to_vmem [thread:$0]  %s248, 64, %s250, %s238
        $region32: #{generator_forward.4} parent=19 // pred_fallthru
          _
        // Predicated region
        $region33: #{generator_forward.4} parent=19 // pred_check
          %p253 = pneg %p139
        $region34: #{generator_forward.4} parent=19 // pred_check_branch
          %255 = sbr.rel (%p253) target = $region36
        $region35: #{generator_forward.4} parent=19 // pred_region
          %s256 = sand.u32 %s129, 1
          %s257 = scalar_lea.sflag [#allocation8], %s256
          %s258 = sand.u32 %s129, 1
          %s259 = smul.addr %s258, 4
          %s260 = scalar_lea.vmem [#allocation7], %s259
          %s261 = smul.u32 4, %s20
          %263 = vsyncadd %s257, 0
          %s264 = scalar_lea.hbm %s4, %s261
          %s266 = sshll.u32 %s264, 4
          %s267 = int_to_ptr.hbm [resolvable:$true] %s266
          %s268 = sshll.u32 %s260, 4
          %s269 = int_to_ptr.vmem [resolvable:$true] %s268
          %271 = dma.hbm_to_vmem [thread:$0]  %s267, 64, %s269, %s257
        $region36: #{generator_forward.4} parent=19 // pred_fallthru
          _
      $region20: #{generator_forward.4} parent=5 // pred_fallthru
        _
      %p272 = scmp.le.s32.totalorder 1, %s20
      %p273 = scmp.lt.s32.totalorder %s20, 3
      %p274 = pnand %p272, %p273
      %p275 = pneg %p274
      // Predicated region
      $region37: #{generator_forward.4} parent=5 // pred_check
        _
      $region38: #{generator_forward.4} parent=5 // pred_check_branch
        %277 = sbr.rel (%p274) target = $region40
      $region39: #{generator_forward.4} parent=5 // pred_region
        %s278 = ssub.s32 %s20, 1
        %s279 = sand.u32 %s54, 1
        %s280 = scalar_lea.sflag [#allocation3], %s279
        %s281 = sand.u32 %s54, 1
        %s282 = smul.addr %s281, 256
        %s283 = scalar_lea.vmem [#allocation2], %s282
        // Predicated region
        $region41: #{generator_forward.4} parent=39 // pred_check
          %p284 = pneg %p67
        $region42: #{generator_forward.4} parent=39 // pred_check_branch
          %286 = sbr.rel (%p284) target = $region44
        $region43: #{generator_forward.4} parent=39 // pred_region
          %288 = dma.done %s280, 4096
        $region44: #{generator_forward.4} parent=39 // pred_fallthru
          _
        %s289 = sand.u32 %s25, 1
        %s290 = scalar_lea.sflag [#allocation5], %s289
        %s291 = sand.u32 %s80, 1
        %s292 = smul.addr %s291, 4
        %s293 = scalar_lea.vmem [#allocation4], %s292
        // Predicated region
        $region45: #{generator_forward.4} parent=39 // pred_check
          %p294 = pneg %p93
        $region46: #{generator_forward.4} parent=39 // pred_check_branch
          %296 = sbr.rel (%p294) target = $region48
        $region47: #{generator_forward.4} parent=39 // pred_region
          %298 = dma.done %s290, 64
        $region48: #{generator_forward.4} parent=39 // pred_fallthru
          _
        %s299 = sand.u32 %s25, 1
        %s300 = scalar_lea.sflag [#allocation5], %s299
        %s301 = sand.u32 %s106, 1
        %s302 = smul.addr %s301, 4
        %s303 = scalar_lea.vmem [#allocation6], %s302
        // Predicated region
        $region49: #{generator_forward.4} parent=39 // pred_check
          %p304 = pneg %p119
        $region50: #{generator_forward.4} parent=39 // pred_check_branch
          %306 = sbr.rel (%p304) target = $region52
        $region51: #{generator_forward.4} parent=39 // pred_region
          %308 = dma.done %s300, 64
        $region52: #{generator_forward.4} parent=39 // pred_fallthru
          _
        %s309 = sand.u32 %s132, 1
        %s310 = scalar_lea.sflag [#allocation8], %s309
        %s311 = sand.u32 %s132, 1
        %s312 = smul.addr %s311, 4
        %s313 = scalar_lea.vmem [#allocation7], %s312
        // Predicated region
        $region53: #{generator_forward.4} parent=39 // pred_check
          %p314 = pneg %p145
        $region54: #{generator_forward.4} parent=39 // pred_check_branch
          %316 = sbr.rel (%p314) target = $region56
        $region55: #{generator_forward.4} parent=39 // pred_region
          %318 = dma.done %s310, 64
        $region56: #{generator_forward.4} parent=39 // pred_fallthru
          _
        %p319 = pneg %p41
        %p320 = pneg %p38
        %s321 = sand.u32 %s54, 1
        %s322 = scalar_lea.sflag [#allocation3], %s321
        %s323 = sand.u32 %s54, 1
        %s324 = smul.addr %s323, 256
        %s325 = scalar_lea.vmem [#allocation2], %s324
        %p326 = pneg %p67
        %p327 = pneg %p64
        %s328 = sand.u32 %s25, 1
        %s329 = scalar_lea.sflag [#allocation5], %s328
        %s330 = sand.u32 %s80, 1
        %s331 = smul.addr %s330, 4
        %s332 = scalar_lea.vmem [#allocation4], %s331
        %p333 = pneg %p93
        %p334 = pneg %p90
        %s335 = sand.u32 %s25, 1
        %s336 = scalar_lea.sflag [#allocation5], %s335
        %s337 = sand.u32 %s106, 1
        %s338 = smul.addr %s337, 4
        %s339 = scalar_lea.vmem [#allocation6], %s338
        %p340 = pneg %p119
        %p341 = pneg %p116
        %s342 = sand.u32 %s132, 1
        %s343 = scalar_lea.sflag [#allocation8], %s342
        %s344 = sand.u32 %s132, 1
        %s345 = smul.addr %s344, 4
        %s346 = scalar_lea.vmem [#allocation7], %s345
        %p347 = pneg %p145
        %p348 = pneg %p142
        %p349 = pneg %p171
        %p350 = pneg %p168
        %s351 = sand.u32 %s158, 1
        %s352 = sand.u32 %s158, 1
        %s353 = smul.addr %s352, 64
        %s354 = scalar_lea.vmem [#allocation9], %s353
        %s355 = smul.u32 4, %s25
        %s356 = smul.u32 4, %s25
        %s357 = smul.u32 4, %s25
        %s358 = smul.u32 4, %s25
        %s359 = smul.u32 4, %s25
        %v360 = vld [vmem:[%s0] sm:$0xff]
        %v361 = vld [vmem:[%s0 + $0x8] sm:$0xff]
        %v362 = vpack.c.bf16 %v361, %v360
        %v363 = vld [vmem:[%s283] sm:$0xff]
        %v364 = vld [vmem:[%s283 + $0x8] sm:$0xff]
        %v365 = vld [vmem:[%s283 + $0x10] sm:$0xff]
        %v366 = vld [vmem:[%s283 + $0x18] sm:$0xff]
        %v367 = vld [vmem:[%s283 + $0x20] sm:$0xff]
        %v368 = vld [vmem:[%s283 + $0x28] sm:$0xff]
        %v369 = vld [vmem:[%s283 + $0x30] sm:$0xff]
        %v370 = vld [vmem:[%s283 + $0x38] sm:$0xff]
        %v371 = vld [vmem:[%s283 + $0x40] sm:$0xff]
        %v372 = vld [vmem:[%s283 + $0x48] sm:$0xff]
        %v373 = vld [vmem:[%s283 + $0x50] sm:$0xff]
        %v374 = vld [vmem:[%s283 + $0x58] sm:$0xff]
        %v375 = vld [vmem:[%s283 + $0x60] sm:$0xff]
        %v376 = vld [vmem:[%s283 + $0x68] sm:$0xff]
        %v377 = vld [vmem:[%s283 + $0x70] sm:$0xff]
        %v378 = vld [vmem:[%s283 + $0x78] sm:$0xff]
        %v379 = vld [vmem:[%s283 + $0x80] sm:$0xff]
        %v380 = vld [vmem:[%s283 + $0x88] sm:$0xff]
        %v381 = vld [vmem:[%s283 + $0x90] sm:$0xff]
        %v382 = vld [vmem:[%s283 + $0x98] sm:$0xff]
        %v383 = vld [vmem:[%s283 + $0xa0] sm:$0xff]
        %v384 = vld [vmem:[%s283 + $0xa8] sm:$0xff]
        %v385 = vld [vmem:[%s283 + $0xb0] sm:$0xff]
        %v386 = vld [vmem:[%s283 + $0xb8] sm:$0xff]
        %v387 = vld [vmem:[%s283 + $0xc0] sm:$0xff]
        %v388 = vld [vmem:[%s283 + $0xc8] sm:$0xff]
        %v389 = vld [vmem:[%s283 + $0xd0] sm:$0xff]
        %v390 = vld [vmem:[%s283 + $0xd8] sm:$0xff]
        %v391 = vld [vmem:[%s283 + $0xe0] sm:$0xff]
        %v392 = vld [vmem:[%s283 + $0xe8] sm:$0xff]
        %v393 = vld [vmem:[%s283 + $0xf0] sm:$0xff]
        %v394 = vld [vmem:[%s283 + $0xf8] sm:$0xff]
        %v395 = vld [vmem:[%s293] sm:$0xf]
        %v397 = vperm.slane %v395, 0
        %v398 = vperm.slane %v395, 1
        %v399 = vperm.slane %v395, 2
        %v400 = vperm.slane %v395, 3
        %v437 = vunpack.c.l.b16 %v363
        %v438 = vunpack.c.h.b16 %v363
        %v439 = vunpack.c.l.b16 %v364
        %v440 = vunpack.c.h.b16 %v364
        %v441 = vunpack.c.l.b16 %v365
        %v442 = vunpack.c.h.b16 %v365
        %v443 = vunpack.c.l.b16 %v366
        %v444 = vunpack.c.h.b16 %v366
        %v445 = vunpack.c.l.b16 %v367
        %v446 = vunpack.c.h.b16 %v367
        %v447 = vunpack.c.l.b16 %v368
        %v448 = vunpack.c.h.b16 %v368
        %v449 = vunpack.c.l.b16 %v369
        %v450 = vunpack.c.h.b16 %v369
        %v451 = vunpack.c.l.b16 %v370
        %v452 = vunpack.c.h.b16 %v370
        %v453 = vunpack.c.l.b16 %v371
        %v454 = vunpack.c.h.b16 %v371
        %v455 = vunpack.c.l.b16 %v372
        %v456 = vunpack.c.h.b16 %v372
        %v457 = vunpack.c.l.b16 %v373
        %v458 = vunpack.c.h.b16 %v373
        %v459 = vunpack.c.l.b16 %v374
        %v460 = vunpack.c.h.b16 %v374
        %v461 = vunpack.c.l.b16 %v375
        %v462 = vunpack.c.h.b16 %v375
        %v463 = vunpack.c.l.b16 %v376
        %v464 = vunpack.c.h.b16 %v376
        %v465 = vunpack.c.l.b16 %v377
        %v466 = vunpack.c.h.b16 %v377
        %v467 = vunpack.c.l.b16 %v378
        %v468 = vunpack.c.h.b16 %v378
        %v469 = vunpack.c.l.b16 %v379
        %v470 = vunpack.c.h.b16 %v379
        %v471 = vunpack.c.l.b16 %v380
        %v472 = vunpack.c.h.b16 %v380
        %v473 = vunpack.c.l.b16 %v381
        %v474 = vunpack.c.h.b16 %v381
        %v475 = vunpack.c.l.b16 %v382
        %v476 = vunpack.c.h.b16 %v382
        %v477 = vunpack.c.l.b16 %v383
        %v478 = vunpack.c.h.b16 %v383
        %v479 = vunpack.c.l.b16 %v384
        %v480 = vunpack.c.h.b16 %v384
        %v481 = vunpack.c.l.b16 %v385
        %v482 = vunpack.c.h.b16 %v385
        %v483 = vunpack.c.l.b16 %v386
        %v484 = vunpack.c.h.b16 %v386
        %v485 = vunpack.c.l.b16 %v387
        %v486 = vunpack.c.h.b16 %v387
        %v487 = vunpack.c.l.b16 %v388
        %v488 = vunpack.c.h.b16 %v388
        %v489 = vunpack.c.l.b16 %v389
        %v490 = vunpack.c.h.b16 %v389
        %v491 = vunpack.c.l.b16 %v390
        %v492 = vunpack.c.h.b16 %v390
        %v493 = vunpack.c.l.b16 %v391
        %v494 = vunpack.c.h.b16 %v391
        %v495 = vunpack.c.l.b16 %v392
        %v496 = vunpack.c.h.b16 %v392
        %v497 = vunpack.c.l.b16 %v393
        %v498 = vunpack.c.h.b16 %v393
        %v499 = vunpack.c.l.b16 %v394
        %v500 = vunpack.c.h.b16 %v394
        %v501 = vpack.c.b16 %v441, %v437
        %v502 = vpack.c.b16 %v442, %v438
        %v503 = vpack.c.b16 %v443, %v439
        %v504 = vpack.c.b16 %v444, %v440
        %v505 = vpack.c.b16 %v449, %v445
        %v506 = vpack.c.b16 %v450, %v446
        %v507 = vpack.c.b16 %v451, %v447
        %v508 = vpack.c.b16 %v452, %v448
        %v509 = vpack.c.b16 %v457, %v453
        %v510 = vpack.c.b16 %v458, %v454
        %v511 = vpack.c.b16 %v459, %v455
        %v512 = vpack.c.b16 %v460, %v456
        %v513 = vpack.c.b16 %v465, %v461
        %v514 = vpack.c.b16 %v466, %v462
        %v515 = vpack.c.b16 %v467, %v463
        %v516 = vpack.c.b16 %v468, %v464
        %v517 = vpack.c.b16 %v473, %v469
        %v518 = vpack.c.b16 %v474, %v470
        %v519 = vpack.c.b16 %v475, %v471
        %v520 = vpack.c.b16 %v476, %v472
        %v521 = vpack.c.b16 %v481, %v477
        %v522 = vpack.c.b16 %v482, %v478
        %v523 = vpack.c.b16 %v483, %v479
        %v524 = vpack.c.b16 %v484, %v480
        %v525 = vpack.c.b16 %v489, %v485
        %v526 = vpack.c.b16 %v490, %v486
        %v527 = vpack.c.b16 %v491, %v487
        %v528 = vpack.c.b16 %v492, %v488
        %v529 = vpack.c.b16 %v497, %v493
        %v530 = vpack.c.b16 %v498, %v494
        %v531 = vpack.c.b16 %v499, %v495
        %v532 = vpack.c.b16 %v500, %v496
        %565 = vmatpush.bf16.msra.mxu0 %v529
        %566 = vmatpush.bf16.msra.mxu0 %v525
        %567 = vmatpush.bf16.msra.mxu0 %v521
        %568 = vmatpush.bf16.msra.mxu0 %v517
        %569 = vmatpush.bf16.msra.mxu0 %v513
        %570 = vmatpush.bf16.msra.mxu0 %v509
        %571 = vmatpush.bf16.msra.mxu0 %v505
        %572 = vmatpush.bf16.msra.mxu0 %v501
        %573 = vmatmul.bf16.gmra.mxu0 %v362
        %v574 = vpop.f32.mrf.mxu0
        %v575 = vadd.f32 %v397, %v574
        %v576 = vpop.f32.mrf.mxu0
        %v577 = vadd.f32 %v397, %v576
        %578 = vdwg.mxu0
        %579 = vmatpush.bf16.msra.mxu0 %v530
        %580 = vmatpush.bf16.msra.mxu0 %v526
        %581 = vmatpush.bf16.msra.mxu0 %v522
        %582 = vmatpush.bf16.msra.mxu0 %v518
        %583 = vmatpush.bf16.msra.mxu0 %v514
        %584 = vmatpush.bf16.msra.mxu0 %v510
        %585 = vmatpush.bf16.msra.mxu0 %v506
        %586 = vmatpush.bf16.msra.mxu0 %v502
        %587 = vmatmul.bf16.gmra.mxu0 %v362
        %v588 = vpop.f32.mrf.mxu0
        %v589 = vadd.f32 %v398, %v588
        %v590 = vpop.f32.mrf.mxu0
        %v591 = vadd.f32 %v398, %v590
        %592 = vdwg.mxu0
        %593 = vmatpush.bf16.msra.mxu0 %v531
        %594 = vmatpush.bf16.msra.mxu0 %v527
        %595 = vmatpush.bf16.msra.mxu0 %v523
        %596 = vmatpush.bf16.msra.mxu0 %v519
        %597 = vmatpush.bf16.msra.mxu0 %v515
        %598 = vmatpush.bf16.msra.mxu0 %v511
        %599 = vmatpush.bf16.msra.mxu0 %v507
        %600 = vmatpush.bf16.msra.mxu0 %v503
        %601 = vmatmul.bf16.gmra.mxu0 %v362
        %v602 = vpop.f32.mrf.mxu0
        %v603 = vadd.f32 %v399, %v602
        %v604 = vpop.f32.mrf.mxu0
        %v605 = vadd.f32 %v399, %v604
        %606 = vdwg.mxu0
        %607 = vmatpush.bf16.msra.mxu0 %v532
        %608 = vmatpush.bf16.msra.mxu0 %v528
        %609 = vmatpush.bf16.msra.mxu0 %v524
        %610 = vmatpush.bf16.msra.mxu0 %v520
        %611 = vmatpush.bf16.msra.mxu0 %v516
        %612 = vmatpush.bf16.msra.mxu0 %v512
        %613 = vmatpush.bf16.msra.mxu0 %v508
        %614 = vmatpush.bf16.msra.mxu0 %v504
        %615 = vmatmul.bf16.gmra.mxu0 %v362
        %v616 = vpop.f32.mrf.mxu0
        %v617 = vadd.f32 %v400, %v616
        %v618 = vpop.f32.mrf.mxu0
        %v619 = vadd.f32 %v400, %v618
        %620 = vdwg.mxu0
        %v621 = vlaneseq
        %v622 = vshrl.u32 %v621, 7
        %v623 = vadd.s32 %v622, 8
        %vm624 = vcmp.lt.s32.totalorder %v622, 4
        %vm625 = vcmp.lt.s32.totalorder %v623, 4
        %v626 = vsel %vm624, %v575, 0.0
        %v627 = vsel %vm624, %v589, 0.0
        %v628 = vsel %vm624, %v603, 0.0
        %v629 = vsel %vm624, %v617, 0.0
        %v630 = vsel %vm625, %v577, 0.0
        %v631 = vsel %vm625, %v591, 0.0
        %v632 = vsel %vm625, %v605, 0.0
        %v633 = vsel %vm625, %v619, 0.0
        %v634 = vadd.f32 %v626, %v630
        %v635 = vrot.slane %v634, 4
        %v636 = vadd.f32 %v634, %v635
        %v637 = vrot.slane %v636, 2
        %v638 = vadd.f32 %v636, %v637
        %v639 = vrot.slane %v638, 1
        %v640 = vadd.f32 %v638, %v639
        %v641 = vadd.f32 %v627, %v631
        %v642 = vrot.slane %v641, 4
        %v643 = vadd.f32 %v641, %v642
        %v644 = vrot.slane %v643, 2
        %v645 = vadd.f32 %v643, %v644
        %v646 = vrot.slane %v645, 1
        %v647 = vadd.f32 %v645, %v646
        %v648 = vadd.f32 %v628, %v632
        %v649 = vrot.slane %v648, 4
        %v650 = vadd.f32 %v648, %v649
        %v651 = vrot.slane %v650, 2
        %v652 = vadd.f32 %v650, %v651
        %v653 = vrot.slane %v652, 1
        %v654 = vadd.f32 %v652, %v653
        %v655 = vadd.f32 %v629, %v633
        %v656 = vrot.slane %v655, 4
        %v657 = vadd.f32 %v655, %v656
        %v658 = vrot.slane %v657, 2
        %v659 = vadd.f32 %v657, %v658
        %v660 = vrot.slane %v659, 1
        %v661 = vadd.f32 %v659, %v660
        %v662 = vmul.f32 %v640, 0.25
        %v663 = vmul.f32 %v647, 0.25
        %v664 = vmul.f32 %v654, 0.25
        %v665 = vmul.f32 %v661, 0.25
        %v666 = vsub.f32 %v575, %v662
        %v667 = vsub.f32 %v589, %v663
        %v668 = vsub.f32 %v603, %v664
        %v669 = vsub.f32 %v617, %v665
        %v670 = vsub.f32 %v577, %v662
        %v671 = vsub.f32 %v591, %v663
        %v672 = vsub.f32 %v605, %v664
        %v673 = vsub.f32 %v619, %v665
        %v674 = vsel %vm624, %v666, 0.0
        %v675 = vsel %vm624, %v667, 0.0
        %v676 = vsel %vm624, %v668, 0.0
        %v677 = vsel %vm624, %v669, 0.0
        %v678 = vsel %vm625, %v670, 0.0
        %v679 = vsel %vm625, %v671, 0.0
        %v680 = vsel %vm625, %v672, 0.0
        %v681 = vsel %vm625, %v673, 0.0
        %v682 = vmul.f32 %v674, %v674
        %v683 = vmul.f32 %v675, %v675
        %v684 = vmul.f32 %v676, %v676
        %v685 = vmul.f32 %v677, %v677
        %v686 = vmul.f32 %v678, %v678
        %v687 = vmul.f32 %v679, %v679
        %v688 = vmul.f32 %v680, %v680
        %v689 = vmul.f32 %v681, %v681
        %v690 = vadd.f32 %v682, %v686
        %v691 = vrot.slane %v690, 4
        %v692 = vadd.f32 %v690, %v691
        %v693 = vrot.slane %v692, 2
        %v694 = vadd.f32 %v692, %v693
        %v695 = vrot.slane %v694, 1
        %v696 = vadd.f32 %v694, %v695
        %v697 = vadd.f32 %v683, %v687
        %v698 = vrot.slane %v697, 4
        %v699 = vadd.f32 %v697, %v698
        %v700 = vrot.slane %v699, 2
        %v701 = vadd.f32 %v699, %v700
        %v702 = vrot.slane %v701, 1
        %v703 = vadd.f32 %v701, %v702
        %v704 = vadd.f32 %v684, %v688
        %v705 = vrot.slane %v704, 4
        %v706 = vadd.f32 %v704, %v705
        %v707 = vrot.slane %v706, 2
        %v708 = vadd.f32 %v706, %v707
        %v709 = vrot.slane %v708, 1
        %v710 = vadd.f32 %v708, %v709
        %v711 = vadd.f32 %v685, %v689
        %v712 = vrot.slane %v711, 4
        %v713 = vadd.f32 %v711, %v712
        %v714 = vrot.slane %v713, 2
        %v715 = vadd.f32 %v713, %v714
        %v716 = vrot.slane %v715, 1
        %v717 = vadd.f32 %v715, %v716
        %v718 = vmul.f32 %v696, 0.25
        %v719 = vmul.f32 %v703, 0.25
        %v720 = vmul.f32 %v710, 0.25
        %v721 = vmul.f32 %v717, 0.25
        %v722 = vld [vmem:[%s303] sm:$0xf]
        %v723 = vadd.f32 %v718, 1e-05
        %v724 = vadd.f32 %v719, 1e-05
        %v725 = vadd.f32 %v720, 1e-05
        %v726 = vadd.f32 %v721, 1e-05
        %v727 = vrsqrt.pop %v723
        %v728 = vmul.f32 %v727, %v723
        %v729 = vmul.f32 %v728, %v727
        %v730 = vmul.f32 0.5, %v729
        %v731 = vsub.f32 1.5, %v730
        %v732 = vmul.f32 %v727, %v731
        %vm733 = vweird.f32 %v723
        %vm734 = vweird.f32 %v727
        %vm735 = vmor %vm733, %vm734
        %v736 = vsel %vm735, %v727, %v732
        %v737 = vrsqrt.pop %v724
        %v738 = vmul.f32 %v737, %v724
        %v739 = vmul.f32 %v738, %v737
        %v740 = vmul.f32 0.5, %v739
        %v741 = vsub.f32 1.5, %v740
        %v742 = vmul.f32 %v737, %v741
        %vm743 = vweird.f32 %v724
        %vm744 = vweird.f32 %v737
        %vm745 = vmor %vm743, %vm744
        %v746 = vsel %vm745, %v737, %v742
        %v747 = vrsqrt.pop %v725
        %v748 = vmul.f32 %v747, %v725
        %v749 = vmul.f32 %v748, %v747
        %v750 = vmul.f32 0.5, %v749
        %v751 = vsub.f32 1.5, %v750
        %v752 = vmul.f32 %v747, %v751
        %vm753 = vweird.f32 %v725
        %vm754 = vweird.f32 %v747
        %vm755 = vmor %vm753, %vm754
        %v756 = vsel %vm755, %v747, %v752
        %v757 = vrsqrt.pop %v726
        %v758 = vmul.f32 %v757, %v726
        %v759 = vmul.f32 %v758, %v757
        %v760 = vmul.f32 0.5, %v759
        %v761 = vsub.f32 1.5, %v760
        %v762 = vmul.f32 %v757, %v761
        %vm763 = vweird.f32 %v726
        %vm764 = vweird.f32 %v757
        %vm765 = vmor %vm763, %vm764
        %v766 = vsel %vm765, %v757, %v762
        %v771 = vrot.slane %v746, 7
        %v772 = vrot.slane %v756, 6
        %v773 = vrot.slane %v766, 5
        %vm774 = vcmask 1040384
        %v775 = vsel %vm774, %v736, %v771
        %vm776 = vcmask 1042434
        %v777 = vsel %vm776, %v772, %v773
        %vm778 = vcmask 1041408
        %v779 = vsel %vm778, %v775, %v777
        %v781 = vmul.f32 %v722, %v779
        %v783 = vperm.slane %v781, 0
        %v784 = vperm.slane %v781, 1
        %v785 = vperm.slane %v781, 2
        %v786 = vperm.slane %v781, 3
        %v791 = vmul.f32 %v666, %v783
        %v792 = vmul.f32 %v667, %v784
        %v793 = vmul.f32 %v668, %v785
        %v794 = vmul.f32 %v669, %v786
        %v795 = vmul.f32 %v670, %v783
        %v796 = vmul.f32 %v671, %v784
        %v797 = vmul.f32 %v672, %v785
        %v798 = vmul.f32 %v673, %v786
        %v799 = vld [vmem:[%s313] sm:$0xf]
        %v801 = vperm.slane %v799, 0
        %v802 = vperm.slane %v799, 1
        %v803 = vperm.slane %v799, 2
        %v804 = vperm.slane %v799, 3
        %v809 = vadd.f32 %v791, %v801
        %v810 = vadd.f32 %v792, %v802
        %v811 = vadd.f32 %v793, %v803
        %v812 = vadd.f32 %v794, %v804
        %v813 = vadd.f32 %v795, %v801
        %v814 = vadd.f32 %v796, %v802
        %v815 = vadd.f32 %v797, %v803
        %v816 = vadd.f32 %v798, %v804
        %v817 = vmax.f32 %v809, 0.0
        %v818 = vmax.f32 %v810, 0.0
        %v819 = vmax.f32 %v811, 0.0
        %v820 = vmax.f32 %v812, 0.0
        %v821 = vmax.f32 %v813, 0.0
        %v822 = vmax.f32 %v814, 0.0
        %v823 = vmax.f32 %v815, 0.0
        %v824 = vmax.f32 %v816, 0.0
        %v825 = vsel %vm624, %v817, 0.0
        %v826 = vsel %vm624, %v818, 0.0
        %v827 = vsel %vm624, %v819, 0.0
        %v828 = vsel %vm624, %v820, 0.0
        %v829 = vsel %vm625, %v821, 0.0
        %v830 = vsel %vm625, %v822, 0.0
        %v831 = vsel %vm625, %v823, 0.0
        %v832 = vsel %vm625, %v824, 0.0
        %833 = vst [vmem:[%s354] sm:$0xff] %v825
        %834 = vst [vmem:[%s354 + $0x8] sm:$0xff] %v826
        %835 = vst [vmem:[%s354 + $0x10] sm:$0xff] %v827
        %836 = vst [vmem:[%s354 + $0x18] sm:$0xff] %v828
        %837 = vst [vmem:[%s354 + $0x20] sm:$0xff] %v829
        %838 = vst [vmem:[%s354 + $0x28] sm:$0xff] %v830
        %839 = vst [vmem:[%s354 + $0x30] sm:$0xff] %v831
        %840 = vst [vmem:[%s354 + $0x38] sm:$0xff] %v832
        %s841 = sand.u32 %s158, 1
        %s842 = sand.u32 %s158, 1
        %s843 = smul.addr %s842, 64
        %s844 = scalar_lea.vmem [#allocation9], %s843
        // Predicated region
        $region57: #{generator_forward.4} parent=39 // pred_check
          %p845 = pneg %p168
        $region58: #{generator_forward.4} parent=39 // pred_check_branch
          %847 = sbr.rel (%p845) target = $region60
        $region59: #{generator_forward.4} parent=39 // pred_region
          %s848 = smul.u32 4, %s25
          %s849 = smul.addr %s848, 8
          %s850 = scalar_lea.vmem %s5, %s849
          // Predicated region
          $region61: #{generator_forward.4} parent=59 // pred_check
            _
          $region62: #{generator_forward.4} parent=59 // pred_check_branch
            %852 = sbr.rel (0) target = $region64
          $region63: #{generator_forward.4} parent=59 // pred_region
            // Predicated region
            $region65: #{generator_forward.4} parent=63 // pred_check
              _
            $region66: #{generator_forward.4} parent=63 // pred_check_branch
              %854 = sbr.rel (0) target = $region68
            $region67: #{generator_forward.4} parent=63 // pred_region
              loop: start=0, step=1, limit=1
              $region69: #{generator_forward.4} parent=67 // loop_pre_header
                _
              $region70: #{generator_forward.4} parent=67 // loop_header
                %s856 = sphi 0, %s860
                %p857 = scmp.ge.s32.totalorder %s856, 1
                %s861 = sphi %s844, %s844
                %s862 = sphi %s850, %s850
              $region71: #{generator_forward.4} parent=67 // loop_header_branch
                %859 = sbr.rel (%p857) target = $region75
              $region72: #{generator_forward.4} parent=67 // loop_body
                %v863 = vld [vmem:[%s861] sm:$0xff]
                %864 = vst [vmem:[%s862] sm:$0xff] %v863
                %v865 = vld [vmem:[%s861 + $0x8] sm:$0xff]
                %866 = vst [vmem:[%s862 + $0x8] sm:$0xff] %v865
                %v867 = vld [vmem:[%s861 + $0x10] sm:$0xff]
                %868 = vst [vmem:[%s862 + $0x10] sm:$0xff] %v867
                %v869 = vld [vmem:[%s861 + $0x18] sm:$0xff]
                %870 = vst [vmem:[%s862 + $0x18] sm:$0xff] %v869
                %v871 = vld [vmem:[%s861 + $0x20] sm:$0xff]
                %872 = vst [vmem:[%s862 + $0x40] sm:$0xff] %v871
                %v873 = vld [vmem:[%s861 + $0x28] sm:$0xff]
                %874 = vst [vmem:[%s862 + $0x48] sm:$0xff] %v873
                %v875 = vld [vmem:[%s861 + $0x30] sm:$0xff]
                %876 = vst [vmem:[%s862 + $0x50] sm:$0xff] %v875
                %v877 = vld [vmem:[%s861 + $0x38] sm:$0xff]
                %878 = vst [vmem:[%s862 + $0x58] sm:$0xff] %v877
              $region73: #{generator_forward.4} parent=67 // loop_footer
                %s860 = sadd.s32 1, %s856
              $region74: #{generator_forward.4} parent=67 // loop_footer_branch
                %855 = sbr.rel target = $region70
              $region75: #{generator_forward.4} parent=67 // loop_exit
                _
            $region68: #{generator_forward.4} parent=63 // pred_fallthru
              _
            // Predicated region
            $region76: #{generator_forward.4} parent=63 // pred_check
              _
            $region77: #{generator_forward.4} parent=63 // pred_check_branch
              %880 = sbr.rel target = $region79
            $region78: #{generator_forward.4} parent=63 // pred_region
              _
            $region79: #{generator_forward.4} parent=63 // pred_fallthru
              _
          $region64: #{generator_forward.4} parent=59 // pred_fallthru
            _
          %881 = vnop
        $region60: #{generator_forward.4} parent=39 // pred_fallthru
          _
      $region40: #{generator_forward.4} parent=5 // pred_fallthru
        _
      %p882 = scmp.le.s32.totalorder 2, %s20
      // Predicated region
      $region80: #{generator_forward.4} parent=5 // pred_check
        %p883 = pneg %p882
      $region81: #{generator_forward.4} parent=5 // pred_check_branch
        %885 = sbr.rel (%p883) target = $region83
      $region82: #{generator_forward.4} parent=5 // pred_region
        %s886 = ssub.s32 %s20, 2
        // Predicated region
        $region84: #{generator_forward.4} parent=82 // pred_check
          %p887 = pneg %p174
        $region85: #{generator_forward.4} parent=82 // pred_check_branch
          %889 = sbr.rel (%p887) target = $region87
        $region86: #{generator_forward.4} parent=82 // pred_region
          %s890 = sand.u32 %s159, 1
          %s891 = sand.u32 %s159, 1
          %s892 = smul.addr %s891, 64
          %s893 = scalar_lea.vmem [#allocation9], %s892
        $region87: #{generator_forward.4} parent=82 // pred_fallthru
          _
      $region83: #{generator_forward.4} parent=5 // pred_fallthru
        _
    $region6: #{generator_forward.4} parent=1 // loop_footer
      %s24 = sadd.s32 1, %s20
    $region7: #{generator_forward.4} parent=1 // loop_footer_branch
      %19 = sbr.rel target = $region3
    $region8: #{generator_forward.4} parent=1 // loop_exit
      _
    %894 = vsyncpa [#allocation3], 1
    %s895 = scalar_lea.sflag [#allocation3], 1
    %896 = vsyncpa %s895, 1
    %897 = vsyncpa [#allocation5], 1
    %s898 = scalar_lea.sflag [#allocation5], 1
    %899 = vsyncpa %s898, 1
    %900 = vsyncpa [#allocation8], 1
    %s901 = scalar_lea.sflag [#allocation8], 1
    %902 = vsyncpa %s901, 1

// kernel: generator_forward.5
$region0: #{generator_forward.5}
  #allocation0 [shape = 'u32[]', space=smem, size = 0x4, offset = 0x4, fixed_abs, tag = 'smem constant byte address 0x4 - core index']
  #allocation1 [shape = 'u32[72,128]{1,0:T(1,128)}', space=vmem, size = 0x9000, scoped, tag = 'internal scratch']
  %s0 = inlined_call_operand.vmem [shape: f32[16,1024], index: 0, kind: input, shape index: {}]
  %s1 = inlined_call_operand.hbm [shape: bf16[1024,2048], index: 1, kind: input, shape index: {}]
  %s2 = inlined_call_operand.hbm [shape: f32[1,2048], index: 2, kind: input, shape index: {}]
  %s3 = inlined_call_operand.hbm [shape: f32[1,2048], index: 3, kind: input, shape index: {}]
  %s4 = inlined_call_operand.hbm [shape: f32[1,2048], index: 4, kind: input, shape index: {}]
  %s5 = inlined_call_operand.vmem [shape: f32[16,2048], index: 5, kind: output, shape index: {}]
  %s6 = sld [smem:[#allocation0]]
  $region88: #{generator_forward.5} parent=0
    _
  %s8 = ssub.s32 1, %s6
  %s9 = scalar_select 0, %s8, %s6
  $region1: #{generator_forward.5} parent=0
    #allocation2 [shape = 'u8[4194304]{0}', space=vmem, size = 0x400000, scoped, tag = 'input window, operand 1']
    #allocation3 [shape = 's32[2]{0}', space=sflag, size = 0x8, scoped, tag = 'scoped memory for generator_forward.5']
    #allocation4 [shape = 'u8[8192]{0}', space=vmem, size = 0x2000, scoped, tag = 'input window, operand 2']
    #allocation5 [shape = 's32[2]{0}', space=sflag, size = 0x8, scoped, tag = 'scoped memory for generator_forward.5']
    #allocation6 [shape = 'u8[8192]{0}', space=vmem, size = 0x2000, scoped, tag = 'input window, operand 3']
    #allocation7 [shape = 'u8[8192]{0}', space=vmem, size = 0x2000, scoped, tag = 'input window, operand 4']
    #allocation8 [shape = 's32[2]{0}', space=sflag, size = 0x8, scoped, tag = 'scoped memory for generator_forward.5']
    #allocation9 [shape = 'u8[131072]{0}', space=vmem, size = 0x20000, scoped, tag = 'output window, operand 0']
    %10 = vsyncpa [#allocation3], 0
    %s11 = scalar_lea.sflag [#allocation3], 1
    %12 = vsyncpa %s11, 0
    %13 = vsyncpa [#allocation5], 0
    %s14 = scalar_lea.sflag [#allocation5], 1
    %15 = vsyncpa %s14, 0
    %16 = vsyncpa [#allocation8], 0
    %s17 = scalar_lea.sflag [#allocation8], 1
    %18 = vsyncpa %s17, 0
    loop: start=0, step=1, limit=4
    $region2: #{generator_forward.5} parent=1 // loop_pre_header
      _
    $region3: #{generator_forward.5} parent=1 // loop_header
      %s20 = sphi 0, %s24
      %p21 = scmp.ge.s32.totalorder %s20, 4
      %s28 = sphi 0, %s28
      %s30 = sphi 0, %s28
      %s31 = sphi 0, %s30
      %s45 = sphi 0, %s31
      %s51 = sphi 0, %s53
      %s54 = sphi 0, %s51
      %s55 = sphi 0, %s54
      %s71 = sphi 0, %s55
      %s77 = sphi 0, %s79
      %s80 = sphi 0, %s77
      %s81 = sphi 0, %s80
      %s97 = sphi 0, %s81
      %s103 = sphi 0, %s105
      %s106 = sphi 0, %s103
      %s107 = sphi 0, %s106
      %s123 = sphi 0, %s107
      %s129 = sphi 0, %s131
      %s132 = sphi 0, %s129
      %s133 = sphi 0, %s132
      %s149 = sphi 0, %s133
      %s155 = sphi 0, %s157
      %s158 = sphi 0, %s155
      %s159 = sphi 0, %s158
      %s175 = sphi 0, %s159
    $region4: #{generator_forward.5} parent=1 // loop_header_branch
      %23 = sbr.rel (%p21) target = $region8
    $region5: #{generator_forward.5} parent=1 // loop_body
      %s25 = ssub.s32 %s20, 1
      %s26 = ssub.s32 %s20, 2
      %s27 = sadd.s32 %s20, 1
      %s29 = sadd.s32 %s28, 1
      %p32 = scmp.eq.s32.totalorder %s20, 1
      %p33 = scmp.ne.s32.totalorder %s28, %s30
      %p34 = scmp.eq.s32.totalorder %s20, 0
      %p35 = por %p33, %p34
      %p36 = scmp.ne.s32.totalorder %s28, %s30
      %p37 = scmp.eq.s32.totalorder %s25, 1
      %p38 = por %p36, %p37
      %p39 = scmp.ne.s32.totalorder %s30, %s31
      %p40 = scmp.eq.s32.totalorder %s25, 0
      %p41 = por %p39, %p40
      %p42 = scmp.ne.s32.totalorder %s30, %s31
      %p43 = scmp.eq.s32.totalorder %s26, 1
      %p44 = por %p42, %p43
      %p46 = scmp.ne.s32.totalorder %s31, %s45
      %p47 = scmp.eq.s32.totalorder %s26, 0
      %p48 = por %p46, %p47
      %s49 = ssub.s32 %s20, %s27
      %p50 = scmp.eq.s32.totalorder %s49, 0
      %s52 = sadd.s32 %s51, 1
      %s53 = scalar_select %p50, %s51, %s52
      %p56 = pneg %p50
      %p57 = scmp.eq.s32.totalorder %s20, 1
      %p58 = por %p56, %p57
      %p59 = scmp.ne.s32.totalorder %s51, %s54
      %p60 = scmp.eq.s32.totalorder %s20, 0
      %p61 = por %p59, %p60
      %p62 = scmp.ne.s32.totalorder %s51, %s54
      %p63 = scmp.eq.s32.totalorder %s25, 1
      %p64 = por %p62, %p63
      %p65 = scmp.ne.s32.totalorder %s54, %s55
      %p66 = scmp.eq.s32.totalorder %s25, 0
      %p67 = por %p65, %p66
      %p68 = scmp.ne.s32.totalorder %s54, %s55
      %p69 = scmp.eq.s32.totalorder %s26, 1
      %p70 = por %p68, %p69
      %p72 = scmp.ne.s32.totalorder %s55, %s71
      %p73 = scmp.eq.s32.totalorder %s26, 0
      %p74 = por %p72, %p73
      %s75 = ssub.s32 %s20, %s27
      %p76 = scmp.eq.s32.totalorder %s75, 0
      %s78 = sadd.s32 %s77, 1
      %s79 = scalar_select %p76, %s77, %s78
      %p82 = pneg %p76
      %p83 = scmp.eq.s32.totalorder %s20, 1
      %p84 = por %p82, %p83
      %p85 = scmp.ne.s32.totalorder %s77, %s80
      %p86 = scmp.eq.s32.totalorder %s20, 0
      %p87 = por %p85, %p86
      %p88 = scmp.ne.s32.totalorder %s77, %s80
      %p89 = scmp.eq.s32.totalorder %s25, 1
      %p90 = por %p88, %p89
      %p91 = scmp.ne.s32.totalorder %s80, %s81
      %p92 = scmp.eq.s32.totalorder %s25, 0
      %p93 = por %p91, %p92
      %p94 = scmp.ne.s32.totalorder %s80, %s81
      %p95 = scmp.eq.s32.totalorder %s26, 1
      %p96 = por %p94, %p95
      %p98 = scmp.ne.s32.totalorder %s81, %s97
      %p99 = scmp.eq.s32.totalorder %s26, 0
      %p100 = por %p98, %p99
      %s101 = ssub.s32 %s20, %s27
      %p102 = scmp.eq.s32.totalorder %s101, 0
      %s104 = sadd.s32 %s103, 1
      %s105 = scalar_select %p102, %s103, %s104
      %p108 = pneg %p102
      %p109 = scmp.eq.s32.totalorder %s20, 1
      %p110 = por %p108, %p109
      %p111 = scmp.ne.s32.totalorder %s103, %s106
      %p112 = scmp.eq.s32.totalorder %s20, 0
      %p113 = por %p111, %p112
      %p114 = scmp.ne.s32.totalorder %s103, %s106
      %p115 = scmp.eq.s32.totalorder %s25, 1
      %p116 = por %p114, %p115
      %p117 = scmp.ne.s32.totalorder %s106, %s107
      %p118 = scmp.eq.s32.totalorder %s25, 0
      %p119 = por %p117, %p118
      %p120 = scmp.ne.s32.totalorder %s106, %s107
      %p121 = scmp.eq.s32.totalorder %s26, 1
      %p122 = por %p120, %p121
      %p124 = scmp.ne.s32.totalorder %s107, %s123
      %p125 = scmp.eq.s32.totalorder %s26, 0
      %p126 = por %p124, %p125
      %s127 = ssub.s32 %s20, %s27
      %p128 = scmp.eq.s32.totalorder %s127, 0
      %s130 = sadd.s32 %s129, 1
      %s131 = scalar_select %p128, %s129, %s130
      %p134 = pneg %p128
      %p135 = scmp.eq.s32.totalorder %s20, 1
      %p136 = por %p134, %p135
      %p137 = scmp.ne.s32.totalorder %s129, %s132
      %p138 = scmp.eq.s32.totalorder %s20, 0
      %p139 = por %p137, %p138
      %p140 = scmp.ne.s32.totalorder %s129, %s132
      %p141 = scmp.eq.s32.totalorder %s25, 1
      %p142 = por %p140, %p141
      %p143 = scmp.ne.s32.totalorder %s132, %s133
      %p144 = scmp.eq.s32.totalorder %s25, 0
      %p145 = por %p143, %p144
      %p146 = scmp.ne.s32.totalorder %s132, %s133
      %p147 = scmp.eq.s32.totalorder %s26, 1
      %p148 = por %p146, %p147
      %p150 = scmp.ne.s32.totalorder %s133, %s149
      %p151 = scmp.eq.s32.totalorder %s26, 0
      %p152 = por %p150, %p151
      %s153 = ssub.s32 %s20, %s27
      %p154 = scmp.eq.s32.totalorder %s153, 0
      %s156 = sadd.s32 %s155, 1
      %s157 = scalar_select %p154, %s155, %s156
      %p160 = pneg %p154
      %p161 = scmp.eq.s32.totalorder %s20, 1
      %p162 = por %p160, %p161
      %p163 = scmp.ne.s32.totalorder %s155, %s158
      %p164 = scmp.eq.s32.totalorder %s20, 0
      %p165 = por %p163, %p164
      %p166 = scmp.ne.s32.totalorder %s155, %s158
      %p167 = scmp.eq.s32.totalorder %s25, 1
      %p168 = por %p166, %p167
      %p169 = scmp.ne.s32.totalorder %s158, %s159
      %p170 = scmp.eq.s32.totalorder %s25, 0
      %p171 = por %p169, %p170
      %p172 = scmp.ne.s32.totalorder %s158, %s159
      %p173 = scmp.eq.s32.totalorder %s26, 1
      %p174 = por %p172, %p173
      %p176 = scmp.ne.s32.totalorder %s159, %s175
      %p177 = scmp.eq.s32.totalorder %s26, 0
      %p178 = por %p176, %p177
      %p179 = scmp.le.s32.totalorder 1, %s20
      %p180 = scmp.lt.s32.totalorder %s20, 3
      %p181 = pnand %p179, %p180
      %p182 = pneg %p181
      // Predicated region
      $region9: #{generator_forward.5} parent=5 // pred_check
        _
      $region10: #{generator_forward.5} parent=5 // pred_check_branch
        %184 = sbr.rel (%p181) target = $region12
      $region11: #{generator_forward.5} parent=5 // pred_region
        %s185 = ssub.s32 %s20, 1
        // Predicated region
        $region13: #{generator_forward.5} parent=11 // pred_check
          %p186 = pneg %p41
        $region14: #{generator_forward.5} parent=11 // pred_check_branch
          %188 = sbr.rel (%p186) target = $region16
        $region15: #{generator_forward.5} parent=11 // pred_region
          _
        $region16: #{generator_forward.5} parent=11 // pred_fallthru
          _
      $region12: #{generator_forward.5} parent=5 // pred_fallthru
        _
      %p189 = scmp.lt.s32.totalorder %s20, 2
      // Predicated region
      $region17: #{generator_forward.5} parent=5 // pred_check
        %p190 = pneg %p189
      $region18: #{generator_forward.5} parent=5 // pred_check_branch
        %192 = sbr.rel (%p190) target = $region20
      $region19: #{generator_forward.5} parent=5 // pred_region
        // Predicated region
        $region21: #{generator_forward.5} parent=19 // pred_check
          %p193 = pneg %p61
        $region22: #{generator_forward.5} parent=19 // pred_check_branch
          %195 = sbr.rel (%p193) target = $region24
        $region23: #{generator_forward.5} parent=19 // pred_region
          %s196 = sand.u32 %s51, 1
          %s197 = scalar_lea.sflag [#allocation3], %s196
          %s198 = sand.u32 %s51, 1
          %s199 = smul.addr %s198, 4096
          %s200 = scalar_lea.vmem [#allocation2], %s199
          %s201 = smul.u32 8, %s20
          %203 = vsyncadd %s197, 0
          %s204 = smul.addr %s201, 4
          %s205 = scalar_lea.hbm %s1, %s204
          %s206 = sshll.u32 %s205, 4
          %s207 = int_to_ptr.hbm [resolvable:$true] %s206
          %s208 = sshll.u32 %s200, 4
          %s209 = int_to_ptr.vmem [resolvable:$true] %s208
          %214 = dma.hbm_to_vmem [thread:$0]  %s207, 65536, %s209, %s197, 1024, 512, 32
        $region24: #{generator_forward.5} parent=19 // pred_fallthru
          _
        // Predicated region
        $region25: #{generator_forward.5} parent=19 // pred_check
          %p215 = pneg %p87
        $region26: #{generator_forward.5} parent=19 // pred_check_branch
          %217 = sbr.rel (%p215) target = $region28
        $region27: #{generator_forward.5} parent=19 // pred_region
          %s218 = sand.u32 %s20, 1
          %s219 = scalar_lea.sflag [#allocation5], %s218
          %s220 = sand.u32 %s77, 1
          %s221 = smul.addr %s220, 8
          %s222 = scalar_lea.vmem [#allocation4], %s221
          %s223 = smul.u32 8, %s20
          %225 = vsyncadd %s219, 0
          %s226 = scalar_lea.hbm %s2, %s223
          %s228 = sshll.u32 %s226, 4
          %s229 = int_to_ptr.hbm [resolvable:$true] %s228
          %s230 = sshll.u32 %s222, 4
          %s231 = int_to_ptr.vmem [resolvable:$true] %s230
          %233 = dma.hbm_to_vmem [thread:$0]  %s229, 128, %s231, %s219
        $region28: #{generator_forward.5} parent=19 // pred_fallthru
          _
        // Predicated region
        $region29: #{generator_forward.5} parent=19 // pred_check
          %p234 = pneg %p113
        $region30: #{generator_forward.5} parent=19 // pred_check_branch
          %236 = sbr.rel (%p234) target = $region32
        $region31: #{generator_forward.5} parent=19 // pred_region
          %s237 = sand.u32 %s20, 1
          %s238 = scalar_lea.sflag [#allocation5], %s237
          %s239 = sand.u32 %s103, 1
          %s240 = smul.addr %s239, 8
          %s241 = scalar_lea.vmem [#allocation6], %s240
          %s242 = smul.u32 8, %s20
          %244 = vsyncadd %s238, 0
          %s245 = scalar_lea.hbm %s3, %s242
          %s247 = sshll.u32 %s245, 4
          %s248 = int_to_ptr.hbm [resolvable:$true] %s247
          %s249 = sshll.u32 %s241, 4
          %s250 = int_to_ptr.vmem [resolvable:$true] %s249
          %252 = dma.hbm_to_vmem [thread:$0]  %s248, 128, %s250, %s238
        $region32: #{generator_forward.5} parent=19 // pred_fallthru
          _
        // Predicated region
        $region33: #{generator_forward.5} parent=19 // pred_check
          %p253 = pneg %p139
        $region34: #{generator_forward.5} parent=19 // pred_check_branch
          %255 = sbr.rel (%p253) target = $region36
        $region35: #{generator_forward.5} parent=19 // pred_region
          %s256 = sand.u32 %s129, 1
          %s257 = scalar_lea.sflag [#allocation8], %s256
          %s258 = sand.u32 %s129, 1
          %s259 = smul.addr %s258, 8
          %s260 = scalar_lea.vmem [#allocation7], %s259
          %s261 = smul.u32 8, %s20
          %263 = vsyncadd %s257, 0
          %s264 = scalar_lea.hbm %s4, %s261
          %s266 = sshll.u32 %s264, 4
          %s267 = int_to_ptr.hbm [resolvable:$true] %s266
          %s268 = sshll.u32 %s260, 4
          %s269 = int_to_ptr.vmem [resolvable:$true] %s268
          %271 = dma.hbm_to_vmem [thread:$0]  %s267, 128, %s269, %s257
        $region36: #{generator_forward.5} parent=19 // pred_fallthru
          _
      $region20: #{generator_forward.5} parent=5 // pred_fallthru
        _
      %p272 = scmp.le.s32.totalorder 1, %s20
      %p273 = scmp.lt.s32.totalorder %s20, 3
      %p274 = pnand %p272, %p273
      %p275 = pneg %p274
      // Predicated region
      $region37: #{generator_forward.5} parent=5 // pred_check
        _
      $region38: #{generator_forward.5} parent=5 // pred_check_branch
        %277 = sbr.rel (%p274) target = $region40
      $region39: #{generator_forward.5} parent=5 // pred_region
        %s278 = ssub.s32 %s20, 1
        %s279 = sand.u32 %s54, 1
        %s280 = scalar_lea.sflag [#allocation3], %s279
        %s281 = sand.u32 %s54, 1
        %s282 = smul.addr %s281, 4096
        %s283 = scalar_lea.vmem [#allocation2], %s282
        // Predicated region
        $region41: #{generator_forward.5} parent=39 // pred_check
          %p284 = pneg %p67
        $region42: #{generator_forward.5} parent=39 // pred_check_branch
          %286 = sbr.rel (%p284) target = $region44
        $region43: #{generator_forward.5} parent=39 // pred_region
          %288 = dma.done %s280, 65536
        $region44: #{generator_forward.5} parent=39 // pred_fallthru
          _
        %s289 = sand.u32 %s25, 1
        %s290 = scalar_lea.sflag [#allocation5], %s289
        %s291 = sand.u32 %s80, 1
        %s292 = smul.addr %s291, 8
        %s293 = scalar_lea.vmem [#allocation4], %s292
        // Predicated region
        $region45: #{generator_forward.5} parent=39 // pred_check
          %p294 = pneg %p93
        $region46: #{generator_forward.5} parent=39 // pred_check_branch
          %296 = sbr.rel (%p294) target = $region48
        $region47: #{generator_forward.5} parent=39 // pred_region
          %298 = dma.done %s290, 128
        $region48: #{generator_forward.5} parent=39 // pred_fallthru
          _
        %s299 = sand.u32 %s25, 1
        %s300 = scalar_lea.sflag [#allocation5], %s299
        %s301 = sand.u32 %s106, 1
        %s302 = smul.addr %s301, 8
        %s303 = scalar_lea.vmem [#allocation6], %s302
        // Predicated region
        $region49: #{generator_forward.5} parent=39 // pred_check
          %p304 = pneg %p119
        $region50: #{generator_forward.5} parent=39 // pred_check_branch
          %306 = sbr.rel (%p304) target = $region52
        $region51: #{generator_forward.5} parent=39 // pred_region
          %308 = dma.done %s300, 128
        $region52: #{generator_forward.5} parent=39 // pred_fallthru
          _
        %s309 = sand.u32 %s132, 1
        %s310 = scalar_lea.sflag [#allocation8], %s309
        %s311 = sand.u32 %s132, 1
        %s312 = smul.addr %s311, 8
        %s313 = scalar_lea.vmem [#allocation7], %s312
        // Predicated region
        $region53: #{generator_forward.5} parent=39 // pred_check
          %p314 = pneg %p145
        $region54: #{generator_forward.5} parent=39 // pred_check_branch
          %316 = sbr.rel (%p314) target = $region56
        $region55: #{generator_forward.5} parent=39 // pred_region
          %318 = dma.done %s310, 128
        $region56: #{generator_forward.5} parent=39 // pred_fallthru
          _
        %p319 = pneg %p41
        %p320 = pneg %p38
        %s321 = sand.u32 %s54, 1
        %s322 = scalar_lea.sflag [#allocation3], %s321
        %s323 = sand.u32 %s54, 1
        %s324 = smul.addr %s323, 4096
        %s325 = scalar_lea.vmem [#allocation2], %s324
        %p326 = pneg %p67
        %p327 = pneg %p64
        %s328 = sand.u32 %s25, 1
        %s329 = scalar_lea.sflag [#allocation5], %s328
        %s330 = sand.u32 %s80, 1
        %s331 = smul.addr %s330, 8
        %s332 = scalar_lea.vmem [#allocation4], %s331
        %p333 = pneg %p93
        %p334 = pneg %p90
        %s335 = sand.u32 %s25, 1
        %s336 = scalar_lea.sflag [#allocation5], %s335
        %s337 = sand.u32 %s106, 1
        %s338 = smul.addr %s337, 8
        %s339 = scalar_lea.vmem [#allocation6], %s338
        %p340 = pneg %p119
        %p341 = pneg %p116
        %s342 = sand.u32 %s132, 1
        %s343 = scalar_lea.sflag [#allocation8], %s342
        %s344 = sand.u32 %s132, 1
        %s345 = smul.addr %s344, 8
        %s346 = scalar_lea.vmem [#allocation7], %s345
        %p347 = pneg %p145
        %p348 = pneg %p142
        %p349 = pneg %p171
        %p350 = pneg %p168
        %s351 = sand.u32 %s158, 1
        %s352 = sand.u32 %s158, 1
        %s353 = smul.addr %s352, 128
        %s354 = scalar_lea.vmem [#allocation9], %s353
        %s355 = smul.u32 8, %s25
        %s356 = smul.u32 8, %s25
        %s357 = smul.u32 8, %s25
        %s358 = smul.u32 8, %s25
        %s359 = smul.u32 8, %s25
        %v360 = vld [vmem:[%s0] sm:$0xff]
        %v361 = vld [vmem:[%s0 + $0x8] sm:$0xff]
        %v362 = vld [vmem:[%s0 + $0x10] sm:$0xff]
        %v363 = vld [vmem:[%s0 + $0x18] sm:$0xff]
        %v364 = vld [vmem:[%s0 + $0x20] sm:$0xff]
        %v365 = vld [vmem:[%s0 + $0x28] sm:$0xff]
        %v366 = vld [vmem:[%s0 + $0x30] sm:$0xff]
        %v367 = vld [vmem:[%s0 + $0x38] sm:$0xff]
        %v368 = vld [vmem:[%s0 + $0x40] sm:$0xff]
        %v369 = vld [vmem:[%s0 + $0x48] sm:$0xff]
        %v370 = vld [vmem:[%s0 + $0x50] sm:$0xff]
        %v371 = vld [vmem:[%s0 + $0x58] sm:$0xff]
        %v372 = vld [vmem:[%s0 + $0x60] sm:$0xff]
        %v373 = vld [vmem:[%s0 + $0x68] sm:$0xff]
        %v374 = vld [vmem:[%s0 + $0x70] sm:$0xff]
        %v375 = vld [vmem:[%s0 + $0x78] sm:$0xff]
        %v376 = vpack.c.bf16 %v368, %v360
        %v377 = vpack.c.bf16 %v369, %v361
        %v378 = vpack.c.bf16 %v370, %v362
        %v379 = vpack.c.bf16 %v371, %v363
        %v380 = vpack.c.bf16 %v372, %v364
        %v381 = vpack.c.bf16 %v373, %v365
        %v382 = vpack.c.bf16 %v374, %v366
        %v383 = vpack.c.bf16 %v375, %v367
        %v384 = vld [vmem:[%s283] sm:$0xff]
        %v385 = vld [vmem:[%s283 + $0x8] sm:$0xff]
        %v386 = vld [vmem:[%s283 + $0x10] sm:$0xff]
        %v387 = vld [vmem:[%s283 + $0x18] sm:$0xff]
        %v388 = vld [vmem:[%s283 + $0x20] sm:$0xff]
        %v389 = vld [vmem:[%s283 + $0x28] sm:$0xff]
        %v390 = vld [vmem:[%s283 + $0x30] sm:$0xff]
        %v391 = vld [vmem:[%s283 + $0x38] sm:$0xff]
        %v392 = vld [vmem:[%s283 + $0x40] sm:$0xff]
        %v393 = vld [vmem:[%s283 + $0x48] sm:$0xff]
        %v394 = vld [vmem:[%s283 + $0x50] sm:$0xff]
        %v395 = vld [vmem:[%s283 + $0x58] sm:$0xff]
        %v396 = vld [vmem:[%s283 + $0x60] sm:$0xff]
        %v397 = vld [vmem:[%s283 + $0x68] sm:$0xff]
        %v398 = vld [vmem:[%s283 + $0x70] sm:$0xff]
        %v399 = vld [vmem:[%s283 + $0x78] sm:$0xff]
        %v400 = vld [vmem:[%s283 + $0x80] sm:$0xff]
        %v401 = vld [vmem:[%s283 + $0x88] sm:$0xff]
        %v402 = vld [vmem:[%s283 + $0x90] sm:$0xff]
        %v403 = vld [vmem:[%s283 + $0x98] sm:$0xff]
        %v404 = vld [vmem:[%s283 + $0xa0] sm:$0xff]
        %v405 = vld [vmem:[%s283 + $0xa8] sm:$0xff]
        %v406 = vld [vmem:[%s283 + $0xb0] sm:$0xff]
        %v407 = vld [vmem:[%s283 + $0xb8] sm:$0xff]
        %v408 = vld [vmem:[%s283 + $0xc0] sm:$0xff]
        %v409 = vld [vmem:[%s283 + $0xc8] sm:$0xff]
        %v410 = vld [vmem:[%s283 + $0xd0] sm:$0xff]
        %v411 = vld [vmem:[%s283 + $0xd8] sm:$0xff]
        %v412 = vld [vmem:[%s283 + $0xe0] sm:$0xff]
        %v413 = vld [vmem:[%s283 + $0xe8] sm:$0xff]
        %v414 = vld [vmem:[%s283 + $0xf0] sm:$0xff]
        %v415 = vld [vmem:[%s283 + $0xf8] sm:$0xff]
        %v416 = vld [vmem:[%s283 + $0x100] sm:$0xff]
        %v417 = vld [vmem:[%s283 + $0x108] sm:$0xff]
        %v418 = vld [vmem:[%s283 + $0x110] sm:$0xff]
        %v419 = vld [vmem:[%s283 + $0x118] sm:$0xff]
        %v420 = vld [vmem:[%s283 + $0x120] sm:$0xff]
        %v421 = vld [vmem:[%s283 + $0x128] sm:$0xff]
        %v422 = vld [vmem:[%s283 + $0x130] sm:$0xff]
        %v423 = vld [vmem:[%s283 + $0x138] sm:$0xff]
        %v424 = vld [vmem:[%s283 + $0x140] sm:$0xff]
        %v425 = vld [vmem:[%s283 + $0x148] sm:$0xff]
        %v426 = vld [vmem:[%s283 + $0x150] sm:$0xff]
        %v427 = vld [vmem:[%s283 + $0x158] sm:$0xff]
        %v428 = vld [vmem:[%s283 + $0x160] sm:$0xff]
        %v429 = vld [vmem:[%s283 + $0x168] sm:$0xff]
        %v430 = vld [vmem:[%s283 + $0x170] sm:$0xff]
        %v431 = vld [vmem:[%s283 + $0x178] sm:$0xff]
        %v432 = vld [vmem:[%s283 + $0x180] sm:$0xff]
        %v433 = vld [vmem:[%s283 + $0x188] sm:$0xff]
        %v434 = vld [vmem:[%s283 + $0x190] sm:$0xff]
        %v435 = vld [vmem:[%s283 + $0x198] sm:$0xff]
        %v436 = vld [vmem:[%s283 + $0x1a0] sm:$0xff]
        %v437 = vld [vmem:[%s283 + $0x1a8] sm:$0xff]
        %v438 = vld [vmem:[%s283 + $0x1b0] sm:$0xff]
        %v439 = vld [vmem:[%s283 + $0x1b8] sm:$0xff]
        %v440 = vld [vmem:[%s283 + $0x1c0] sm:$0xff]
        %v441 = vld [vmem:[%s283 + $0x1c8] sm:$0xff]
        %v442 = vld [vmem:[%s283 + $0x1d0] sm:$0xff]
        %v443 = vld [vmem:[%s283 + $0x1d8] sm:$0xff]
        %v444 = vld [vmem:[%s283 + $0x1e0] sm:$0xff]
        %v445 = vld [vmem:[%s283 + $0x1e8] sm:$0xff]
        %v446 = vld [vmem:[%s283 + $0x1f0] sm:$0xff]
        %v447 = vld [vmem:[%s283 + $0x1f8] sm:$0xff]
        %v448 = vld [vmem:[%s283 + $0x200] sm:$0xff]
        %v449 = vld [vmem:[%s283 + $0x208] sm:$0xff]
        %v450 = vld [vmem:[%s283 + $0x210] sm:$0xff]
        %v451 = vld [vmem:[%s283 + $0x218] sm:$0xff]
        %v452 = vld [vmem:[%s283 + $0x220] sm:$0xff]
        %v453 = vld [vmem:[%s283 + $0x228] sm:$0xff]
        %v454 = vld [vmem:[%s283 + $0x230] sm:$0xff]
        %v455 = vld [vmem:[%s283 + $0x238] sm:$0xff]
        %v456 = vld [vmem:[%s283 + $0x240] sm:$0xff]
        %v457 = vld [vmem:[%s283 + $0x248] sm:$0xff]
        %v458 = vld [vmem:[%s283 + $0x250] sm:$0xff]
        %v459 = vld [vmem:[%s283 + $0x258] sm:$0xff]
        %v460 = vld [vmem:[%s283 + $0x260] sm:$0xff]
        %v461 = vld [vmem:[%s283 + $0x268] sm:$0xff]
        %v462 = vld [vmem:[%s283 + $0x270] sm:$0xff]
        %v463 = vld [vmem:[%s283 + $0x278] sm:$0xff]
        %v464 = vld [vmem:[%s283 + $0x280] sm:$0xff]
        %v465 = vld [vmem:[%s283 + $0x288] sm:$0xff]
        %v466 = vld [vmem:[%s283 + $0x290] sm:$0xff]
        %v467 = vld [vmem:[%s283 + $0x298] sm:$0xff]
        %v468 = vld [vmem:[%s283 + $0x2a0] sm:$0xff]
        %v469 = vld [vmem:[%s283 + $0x2a8] sm:$0xff]
        %v470 = vld [vmem:[%s283 + $0x2b0] sm:$0xff]
        %v471 = vld [vmem:[%s283 + $0x2b8] sm:$0xff]
        %v472 = vld [vmem:[%s283 + $0x2c0] sm:$0xff]
        %v473 = vld [vmem:[%s283 + $0x2c8] sm:$0xff]
        %v474 = vld [vmem:[%s283 + $0x2d0] sm:$0xff]
        %v475 = vld [vmem:[%s283 + $0x2d8] sm:$0xff]
        %v476 = vld [vmem:[%s283 + $0x2e0] sm:$0xff]
        %v477 = vld [vmem:[%s283 + $0x2e8] sm:$0xff]
        %v478 = vld [vmem:[%s283 + $0x2f0] sm:$0xff]
        %v479 = vld [vmem:[%s283 + $0x2f8] sm:$0xff]
        %v480 = vld [vmem:[%s283 + $0x300] sm:$0xff]
        %v481 = vld [vmem:[%s283 + $0x308] sm:$0xff]
        %v482 = vld [vmem:[%s283 + $0x310] sm:$0xff]
        %v483 = vld [vmem:[%s283 + $0x318] sm:$0xff]
        %v484 = vld [vmem:[%s283 + $0x320] sm:$0xff]
        %v485 = vld [vmem:[%s283 + $0x328] sm:$0xff]
        %v486 = vld [vmem:[%s283 + $0x330] sm:$0xff]
        %v487 = vld [vmem:[%s283 + $0x338] sm:$0xff]
        %v488 = vld [vmem:[%s283 + $0x340] sm:$0xff]
        %v489 = vld [vmem:[%s283 + $0x348] sm:$0xff]
        %v490 = vld [vmem:[%s283 + $0x350] sm:$0xff]
        %v491 = vld [vmem:[%s283 + $0x358] sm:$0xff]
        %v492 = vld [vmem:[%s283 + $0x360] sm:$0xff]
        %v493 = vld [vmem:[%s283 + $0x368] sm:$0xff]
        %v494 = vld [vmem:[%s283 + $0x370] sm:$0xff]
        %v495 = vld [vmem:[%s283 + $0x378] sm:$0xff]
        %v496 = vld [vmem:[%s283 + $0x380] sm:$0xff]
        %v497 = vld [vmem:[%s283 + $0x388] sm:$0xff]
        %v498 = vld [vmem:[%s283 + $0x390] sm:$0xff]
        %v499 = vld [vmem:[%s283 + $0x398] sm:$0xff]
        %v500 = vld [vmem:[%s283 + $0x3a0] sm:$0xff]
        %v501 = vld [vmem:[%s283 + $0x3a8] sm:$0xff]
        %v502 = vld [vmem:[%s283 + $0x3b0] sm:$0xff]
        %v503 = vld [vmem:[%s283 + $0x3b8] sm:$0xff]
        %v504 = vld [vmem:[%s283 + $0x3c0] sm:$0xff]
        %v505 = vld [vmem:[%s283 + $0x3c8] sm:$0xff]
        %v506 = vld [vmem:[%s283 + $0x3d0] sm:$0xff]
        %v507 = vld [vmem:[%s283 + $0x3d8] sm:$0xff]
        %v508 = vld [vmem:[%s283 + $0x3e0] sm:$0xff]
        %v509 = vld [vmem:[%s283 + $0x3e8] sm:$0xff]
        %v510 = vld [vmem:[%s283 + $0x3f0] sm:$0xff]
        %v511 = vld [vmem:[%s283 + $0x3f8] sm:$0xff]
        %v512 = vld [vmem:[%s283 + $0x400] sm:$0xff]
        %v513 = vld [vmem:[%s283 + $0x408] sm:$0xff]
        %v514 = vld [vmem:[%s283 + $0x410] sm:$0xff]
        %v515 = vld [vmem:[%s283 + $0x418] sm:$0xff]
        %v516 = vld [vmem:[%s283 + $0x420] sm:$0xff]
        %v517 = vld [vmem:[%s283 + $0x428] sm:$0xff]
        %v518 = vld [vmem:[%s283 + $0x430] sm:$0xff]
        %v519 = vld [vmem:[%s283 + $0x438] sm:$0xff]
        %v520 = vld [vmem:[%s283 + $0x440] sm:$0xff]
        %v521 = vld [vmem:[%s283 + $0x448] sm:$0xff]
        %v522 = vld [vmem:[%s283 + $0x450] sm:$0xff]
        %v523 = vld [vmem:[%s283 + $0x458] sm:$0xff]
        %v524 = vld [vmem:[%s283 + $0x460] sm:$0xff]
        %v525 = vld [vmem:[%s283 + $0x468] sm:$0xff]
        %v526 = vld [vmem:[%s283 + $0x470] sm:$0xff]
        %v527 = vld [vmem:[%s283 + $0x478] sm:$0xff]
        %v528 = vld [vmem:[%s283 + $0x480] sm:$0xff]
        %v529 = vld [vmem:[%s283 + $0x488] sm:$0xff]
        %v530 = vld [vmem:[%s283 + $0x490] sm:$0xff]
        %v531 = vld [vmem:[%s283 + $0x498] sm:$0xff]
        %v532 = vld [vmem:[%s283 + $0x4a0] sm:$0xff]
        %v533 = vld [vmem:[%s283 + $0x4a8] sm:$0xff]
        %v534 = vld [vmem:[%s283 + $0x4b0] sm:$0xff]
        %v535 = vld [vmem:[%s283 + $0x4b8] sm:$0xff]
        %v536 = vld [vmem:[%s283 + $0x4c0] sm:$0xff]
        %v537 = vld [vmem:[%s283 + $0x4c8] sm:$0xff]
        %v538 = vld [vmem:[%s283 + $0x4d0] sm:$0xff]
        %v539 = vld [vmem:[%s283 + $0x4d8] sm:$0xff]
        %v540 = vld [vmem:[%s283 + $0x4e0] sm:$0xff]
        %v541 = vld [vmem:[%s283 + $0x4e8] sm:$0xff]
        %v542 = vld [vmem:[%s283 + $0x4f0] sm:$0xff]
        %v543 = vld [vmem:[%s283 + $0x4f8] sm:$0xff]
        %v544 = vld [vmem:[%s283 + $0x500] sm:$0xff]
        %v545 = vld [vmem:[%s283 + $0x508] sm:$0xff]
        %v546 = vld [vmem:[%s283 + $0x510] sm:$0xff]
        %v547 = vld [vmem:[%s283 + $0x518] sm:$0xff]
        %v548 = vld [vmem:[%s283 + $0x520] sm:$0xff]
        %v549 = vld [vmem:[%s283 + $0x528] sm:$0xff]
        %v550 = vld [vmem:[%s283 + $0x530] sm:$0xff]
        %v551 = vld [vmem:[%s283 + $0x538] sm:$0xff]
        %v552 = vld [vmem:[%s283 + $0x540] sm:$0xff]
        %v553 = vld [vmem:[%s283 + $0x548] sm:$0xff]
        %v554 = vld [vmem:[%s283 + $0x550] sm:$0xff]
        %v555 = vld [vmem:[%s283 + $0x558] sm:$0xff]
        %v556 = vld [vmem:[%s283 + $0x560] sm:$0xff]
        %v557 = vld [vmem:[%s283 + $0x568] sm:$0xff]
        %v558 = vld [vmem:[%s283 + $0x570] sm:$0xff]
        %v559 = vld [vmem:[%s283 + $0x578] sm:$0xff]
        %v560 = vld [vmem:[%s283 + $0x580] sm:$0xff]
        %v561 = vld [vmem:[%s283 + $0x588] sm:$0xff]
        %v562 = vld [vmem:[%s283 + $0x590] sm:$0xff]
        %v563 = vld [vmem:[%s283 + $0x598] sm:$0xff]
        %v564 = vld [vmem:[%s283 + $0x5a0] sm:$0xff]
        %v565 = vld [vmem:[%s283 + $0x5a8] sm:$0xff]
        %v566 = vld [vmem:[%s283 + $0x5b0] sm:$0xff]
        %v567 = vld [vmem:[%s283 + $0x5b8] sm:$0xff]
        %v568 = vld [vmem:[%s283 + $0x5c0] sm:$0xff]
        %v569 = vld [vmem:[%s283 + $0x5c8] sm:$0xff]
        %v570 = vld [vmem:[%s283 + $0x5d0] sm:$0xff]
        %v571 = vld [vmem:[%s283 + $0x5d8] sm:$0xff]
        %v572 = vld [vmem:[%s283 + $0x5e0] sm:$0xff]
        %v573 = vld [vmem:[%s283 + $0x5e8] sm:$0xff]
        %v574 = vld [vmem:[%s283 + $0x5f0] sm:$0xff]
        %v575 = vld [vmem:[%s283 + $0x5f8] sm:$0xff]
        %v576 = vld [vmem:[%s283 + $0x600] sm:$0xff]
        %v577 = vld [vmem:[%s283 + $0x608] sm:$0xff]
        %v578 = vld [vmem:[%s283 + $0x610] sm:$0xff]
        %v579 = vld [vmem:[%s283 + $0x618] sm:$0xff]
        %v580 = vld [vmem:[%s283 + $0x620] sm:$0xff]
        %v581 = vld [vmem:[%s283 + $0x628] sm:$0xff]
        %v582 = vld [vmem:[%s283 + $0x630] sm:$0xff]
        %v583 = vld [vmem:[%s283 + $0x638] sm:$0xff]
        %v584 = vld [vmem:[%s283 + $0x640] sm:$0xff]
        %v585 = vld [vmem:[%s283 + $0x648] sm:$0xff]
        %v586 = vld [vmem:[%s283 + $0x650] sm:$0xff]
        %v587 = vld [vmem:[%s283 + $0x658] sm:$0xff]
        %v588 = vld [vmem:[%s283 + $0x660] sm:$0xff]
        %v589 = vld [vmem:[%s283 + $0x668] sm:$0xff]
        %v590 = vld [vmem:[%s283 + $0x670] sm:$0xff]
        %v591 = vld [vmem:[%s283 + $0x678] sm:$0xff]
        %v592 = vld [vmem:[%s283 + $0x680] sm:$0xff]
        %v593 = vld [vmem:[%s283 + $0x688] sm:$0xff]
        %v594 = vld [vmem:[%s283 + $0x690] sm:$0xff]
        %v595 = vld [vmem:[%s283 + $0x698] sm:$0xff]
        %v596 = vld [vmem:[%s283 + $0x6a0] sm:$0xff]
        %v597 = vld [vmem:[%s283 + $0x6a8] sm:$0xff]
        %v598 = vld [vmem:[%s283 + $0x6b0] sm:$0xff]
        %v599 = vld [vmem:[%s283 + $0x6b8] sm:$0xff]
        %v600 = vld [vmem:[%s283 + $0x6c0] sm:$0xff]
        %v601 = vld [vmem:[%s283 + $0x6c8] sm:$0xff]
        %v602 = vld [vmem:[%s283 + $0x6d0] sm:$0xff]
        %v603 = vld [vmem:[%s283 + $0x6d8] sm:$0xff]
        %v604 = vld [vmem:[%s283 + $0x6e0] sm:$0xff]
        %v605 = vld [vmem:[%s283 + $0x6e8] sm:$0xff]
        %v606 = vld [vmem:[%s283 + $0x6f0] sm:$0xff]
        %v607 = vld [vmem:[%s283 + $0x6f8] sm:$0xff]
        %v608 = vld [vmem:[%s283 + $0x700] sm:$0xff]
        %v609 = vld [vmem:[%s283 + $0x708] sm:$0xff]
        %v610 = vld [vmem:[%s283 + $0x710] sm:$0xff]
        %v611 = vld [vmem:[%s283 + $0x718] sm:$0xff]
        %v612 = vld [vmem:[%s283 + $0x720] sm:$0xff]
        %v613 = vld [vmem:[%s283 + $0x728] sm:$0xff]
        %v614 = vld [vmem:[%s283 + $0x730] sm:$0xff]
        %v615 = vld [vmem:[%s283 + $0x738] sm:$0xff]
        %v616 = vld [vmem:[%s283 + $0x740] sm:$0xff]
        %v617 = vld [vmem:[%s283 + $0x748] sm:$0xff]
        %v618 = vld [vmem:[%s283 + $0x750] sm:$0xff]
        %v619 = vld [vmem:[%s283 + $0x758] sm:$0xff]
        %v620 = vld [vmem:[%s283 + $0x760] sm:$0xff]
        %v621 = vld [vmem:[%s283 + $0x768] sm:$0xff]
        %v622 = vld [vmem:[%s283 + $0x770] sm:$0xff]
        %v623 = vld [vmem:[%s283 + $0x778] sm:$0xff]
        %v624 = vld [vmem:[%s283 + $0x780] sm:$0xff]
        %v625 = vld [vmem:[%s283 + $0x788] sm:$0xff]
        %v626 = vld [vmem:[%s283 + $0x790] sm:$0xff]
        %v627 = vld [vmem:[%s283 + $0x798] sm:$0xff]
        %v628 = vld [vmem:[%s283 + $0x7a0] sm:$0xff]
        %v629 = vld [vmem:[%s283 + $0x7a8] sm:$0xff]
        %v630 = vld [vmem:[%s283 + $0x7b0] sm:$0xff]
        %v631 = vld [vmem:[%s283 + $0x7b8] sm:$0xff]
        %v632 = vld [vmem:[%s283 + $0x7c0] sm:$0xff]
        %v633 = vld [vmem:[%s283 + $0x7c8] sm:$0xff]
        %v634 = vld [vmem:[%s283 + $0x7d0] sm:$0xff]
        %v635 = vld [vmem:[%s283 + $0x7d8] sm:$0xff]
        %v636 = vld [vmem:[%s283 + $0x7e0] sm:$0xff]
        %v637 = vld [vmem:[%s283 + $0x7e8] sm:$0xff]
        %v638 = vld [vmem:[%s283 + $0x7f0] sm:$0xff]
        %v639 = vld [vmem:[%s283 + $0x7f8] sm:$0xff]
        %v640 = vld [vmem:[%s283 + $0x800] sm:$0xff]
        %v641 = vld [vmem:[%s283 + $0x808] sm:$0xff]
        %v642 = vld [vmem:[%s283 + $0x810] sm:$0xff]
        %v643 = vld [vmem:[%s283 + $0x818] sm:$0xff]
        %v644 = vld [vmem:[%s283 + $0x820] sm:$0xff]
        %v645 = vld [vmem:[%s283 + $0x828] sm:$0xff]
        %v646 = vld [vmem:[%s283 + $0x830] sm:$0xff]
        %v647 = vld [vmem:[%s283 + $0x838] sm:$0xff]
        %v648 = vld [vmem:[%s283 + $0x840] sm:$0xff]
        %v649 = vld [vmem:[%s283 + $0x848] sm:$0xff]
        %v650 = vld [vmem:[%s283 + $0x850] sm:$0xff]
        %v651 = vld [vmem:[%s283 + $0x858] sm:$0xff]
        %v652 = vld [vmem:[%s283 + $0x860] sm:$0xff]
        %v653 = vld [vmem:[%s283 + $0x868] sm:$0xff]
        %v654 = vld [vmem:[%s283 + $0x870] sm:$0xff]
        %v655 = vld [vmem:[%s283 + $0x878] sm:$0xff]
        %v656 = vld [vmem:[%s283 + $0x880] sm:$0xff]
        %v657 = vld [vmem:[%s283 + $0x888] sm:$0xff]
        %v658 = vld [vmem:[%s283 + $0x890] sm:$0xff]
        %v659 = vld [vmem:[%s283 + $0x898] sm:$0xff]
        %v660 = vld [vmem:[%s283 + $0x8a0] sm:$0xff]
        %v661 = vld [vmem:[%s283 + $0x8a8] sm:$0xff]
        %v662 = vld [vmem:[%s283 + $0x8b0] sm:$0xff]
        %v663 = vld [vmem:[%s283 + $0x8b8] sm:$0xff]
        %v664 = vld [vmem:[%s283 + $0x8c0] sm:$0xff]
        %v665 = vld [vmem:[%s283 + $0x8c8] sm:$0xff]
        %v666 = vld [vmem:[%s283 + $0x8d0] sm:$0xff]
        %v667 = vld [vmem:[%s283 + $0x8d8] sm:$0xff]
        %v668 = vld [vmem:[%s283 + $0x8e0] sm:$0xff]
        %v669 = vld [vmem:[%s283 + $0x8e8] sm:$0xff]
        %v670 = vld [vmem:[%s283 + $0x8f0] sm:$0xff]
        %v671 = vld [vmem:[%s283 + $0x8f8] sm:$0xff]
        %v672 = vld [vmem:[%s283 + $0x900] sm:$0xff]
        %v673 = vld [vmem:[%s283 + $0x908] sm:$0xff]
        %v674 = vld [vmem:[%s283 + $0x910] sm:$0xff]
        %v675 = vld [vmem:[%s283 + $0x918] sm:$0xff]
        %v676 = vld [vmem:[%s283 + $0x920] sm:$0xff]
        %v677 = vld [vmem:[%s283 + $0x928] sm:$0xff]
        %v678 = vld [vmem:[%s283 + $0x930] sm:$0xff]
        %v679 = vld [vmem:[%s283 + $0x938] sm:$0xff]
        %v680 = vld [vmem:[%s283 + $0x940] sm:$0xff]
        %v681 = vld [vmem:[%s283 + $0x948] sm:$0xff]
        %v682 = vld [vmem:[%s283 + $0x950] sm:$0xff]
        %v683 = vld [vmem:[%s283 + $0x958] sm:$0xff]
        %v684 = vld [vmem:[%s283 + $0x960] sm:$0xff]
        %v685 = vld [vmem:[%s283 + $0x968] sm:$0xff]
        %v686 = vld [vmem:[%s283 + $0x970] sm:$0xff]
        %v687 = vld [vmem:[%s283 + $0x978] sm:$0xff]
        %v688 = vld [vmem:[%s283 + $0x980] sm:$0xff]
        %v689 = vld [vmem:[%s283 + $0x988] sm:$0xff]
        %v690 = vld [vmem:[%s283 + $0x990] sm:$0xff]
        %v691 = vld [vmem:[%s283 + $0x998] sm:$0xff]
        %v692 = vld [vmem:[%s283 + $0x9a0] sm:$0xff]
        %v693 = vld [vmem:[%s283 + $0x9a8] sm:$0xff]
        %v694 = vld [vmem:[%s283 + $0x9b0] sm:$0xff]
        %v695 = vld [vmem:[%s283 + $0x9b8] sm:$0xff]
        %v696 = vld [vmem:[%s283 + $0x9c0] sm:$0xff]
        %v697 = vld [vmem:[%s283 + $0x9c8] sm:$0xff]
        %v698 = vld [vmem:[%s283 + $0x9d0] sm:$0xff]
        %v699 = vld [vmem:[%s283 + $0x9d8] sm:$0xff]
        %v700 = vld [vmem:[%s283 + $0x9e0] sm:$0xff]
        %v701 = vld [vmem:[%s283 + $0x9e8] sm:$0xff]
        %v702 = vld [vmem:[%s283 + $0x9f0] sm:$0xff]
        %v703 = vld [vmem:[%s283 + $0x9f8] sm:$0xff]
        %v704 = vld [vmem:[%s283 + $0xa00] sm:$0xff]
        %v705 = vld [vmem:[%s283 + $0xa08] sm:$0xff]
        %v706 = vld [vmem:[%s283 + $0xa10] sm:$0xff]
        %v707 = vld [vmem:[%s283 + $0xa18] sm:$0xff]
        %v708 = vld [vmem:[%s283 + $0xa20] sm:$0xff]
        %v709 = vld [vmem:[%s283 + $0xa28] sm:$0xff]
        %v710 = vld [vmem:[%s283 + $0xa30] sm:$0xff]
        %v711 = vld [vmem:[%s283 + $0xa38] sm:$0xff]
        %v712 = vld [vmem:[%s283 + $0xa40] sm:$0xff]
        %v713 = vld [vmem:[%s283 + $0xa48] sm:$0xff]
        %v714 = vld [vmem:[%s283 + $0xa50] sm:$0xff]
        %v715 = vld [vmem:[%s283 + $0xa58] sm:$0xff]
        %v716 = vld [vmem:[%s283 + $0xa60] sm:$0xff]
        %v717 = vld [vmem:[%s283 + $0xa68] sm:$0xff]
        %v718 = vld [vmem:[%s283 + $0xa70] sm:$0xff]
        %v719 = vld [vmem:[%s283 + $0xa78] sm:$0xff]
        %v720 = vld [vmem:[%s283 + $0xa80] sm:$0xff]
        %v721 = vld [vmem:[%s283 + $0xa88] sm:$0xff]
        %v722 = vld [vmem:[%s283 + $0xa90] sm:$0xff]
        %v723 = vld [vmem:[%s283 + $0xa98] sm:$0xff]
        %v724 = vld [vmem:[%s283 + $0xaa0] sm:$0xff]
        %v725 = vld [vmem:[%s283 + $0xaa8] sm:$0xff]
        %v726 = vld [vmem:[%s283 + $0xab0] sm:$0xff]
        %v727 = vld [vmem:[%s283 + $0xab8] sm:$0xff]
        %v728 = vld [vmem:[%s283 + $0xac0] sm:$0xff]
        %v729 = vld [vmem:[%s283 + $0xac8] sm:$0xff]
        %v730 = vld [vmem:[%s283 + $0xad0] sm:$0xff]
        %v731 = vld [vmem:[%s283 + $0xad8] sm:$0xff]
        %v732 = vld [vmem:[%s283 + $0xae0] sm:$0xff]
        %v733 = vld [vmem:[%s283 + $0xae8] sm:$0xff]
        %v734 = vld [vmem:[%s283 + $0xaf0] sm:$0xff]
        %v735 = vld [vmem:[%s283 + $0xaf8] sm:$0xff]
        %v736 = vld [vmem:[%s283 + $0xb00] sm:$0xff]
        %v737 = vld [vmem:[%s283 + $0xb08] sm:$0xff]
        %v738 = vld [vmem:[%s283 + $0xb10] sm:$0xff]
        %v739 = vld [vmem:[%s283 + $0xb18] sm:$0xff]
        %v740 = vld [vmem:[%s283 + $0xb20] sm:$0xff]
        %v741 = vld [vmem:[%s283 + $0xb28] sm:$0xff]
        %v742 = vld [vmem:[%s283 + $0xb30] sm:$0xff]
        %v743 = vld [vmem:[%s283 + $0xb38] sm:$0xff]
        %v744 = vld [vmem:[%s283 + $0xb40] sm:$0xff]
        %v745 = vld [vmem:[%s283 + $0xb48] sm:$0xff]
        %v746 = vld [vmem:[%s283 + $0xb50] sm:$0xff]
        %v747 = vld [vmem:[%s283 + $0xb58] sm:$0xff]
        %v748 = vld [vmem:[%s283 + $0xb60] sm:$0xff]
        %v749 = vld [vmem:[%s283 + $0xb68] sm:$0xff]
        %v750 = vld [vmem:[%s283 + $0xb70] sm:$0xff]
        %v751 = vld [vmem:[%s283 + $0xb78] sm:$0xff]
        %v752 = vld [vmem:[%s283 + $0xb80] sm:$0xff]
        %v753 = vld [vmem:[%s283 + $0xb88] sm:$0xff]
        %v754 = vld [vmem:[%s283 + $0xb90] sm:$0xff]
        %v755 = vld [vmem:[%s283 + $0xb98] sm:$0xff]
        %v756 = vld [vmem:[%s283 + $0xba0] sm:$0xff]
        %v757 = vld [vmem:[%s283 + $0xba8] sm:$0xff]
        %v758 = vld [vmem:[%s283 + $0xbb0] sm:$0xff]
        %v759 = vld [vmem:[%s283 + $0xbb8] sm:$0xff]
        %v760 = vld [vmem:[%s283 + $0xbc0] sm:$0xff]
        %v761 = vld [vmem:[%s283 + $0xbc8] sm:$0xff]
        %v762 = vld [vmem:[%s283 + $0xbd0] sm:$0xff]
        %v763 = vld [vmem:[%s283 + $0xbd8] sm:$0xff]
        %v764 = vld [vmem:[%s283 + $0xbe0] sm:$0xff]
        %v765 = vld [vmem:[%s283 + $0xbe8] sm:$0xff]
        %v766 = vld [vmem:[%s283 + $0xbf0] sm:$0xff]
        %v767 = vld [vmem:[%s283 + $0xbf8] sm:$0xff]
        %v768 = vld [vmem:[%s283 + $0xc00] sm:$0xff]
        %v769 = vld [vmem:[%s283 + $0xc08] sm:$0xff]
        %v770 = vld [vmem:[%s283 + $0xc10] sm:$0xff]
        %v771 = vld [vmem:[%s283 + $0xc18] sm:$0xff]
        %v772 = vld [vmem:[%s283 + $0xc20] sm:$0xff]
        %v773 = vld [vmem:[%s283 + $0xc28] sm:$0xff]
        %v774 = vld [vmem:[%s283 + $0xc30] sm:$0xff]
        %v775 = vld [vmem:[%s283 + $0xc38] sm:$0xff]
        %v776 = vld [vmem:[%s283 + $0xc40] sm:$0xff]
        %v777 = vld [vmem:[%s283 + $0xc48] sm:$0xff]
        %v778 = vld [vmem:[%s283 + $0xc50] sm:$0xff]
        %v779 = vld [vmem:[%s283 + $0xc58] sm:$0xff]
        %v780 = vld [vmem:[%s283 + $0xc60] sm:$0xff]
        %v781 = vld [vmem:[%s283 + $0xc68] sm:$0xff]
        %v782 = vld [vmem:[%s283 + $0xc70] sm:$0xff]
        %v783 = vld [vmem:[%s283 + $0xc78] sm:$0xff]
        %v784 = vld [vmem:[%s283 + $0xc80] sm:$0xff]
        %v785 = vld [vmem:[%s283 + $0xc88] sm:$0xff]
        %v786 = vld [vmem:[%s283 + $0xc90] sm:$0xff]
        %v787 = vld [vmem:[%s283 + $0xc98] sm:$0xff]
        %v788 = vld [vmem:[%s283 + $0xca0] sm:$0xff]
        %v789 = vld [vmem:[%s283 + $0xca8] sm:$0xff]
        %v790 = vld [vmem:[%s283 + $0xcb0] sm:$0xff]
        %v791 = vld [vmem:[%s283 + $0xcb8] sm:$0xff]
        %v792 = vld [vmem:[%s283 + $0xcc0] sm:$0xff]
        %v793 = vld [vmem:[%s283 + $0xcc8] sm:$0xff]
        %v794 = vld [vmem:[%s283 + $0xcd0] sm:$0xff]
        %v795 = vld [vmem:[%s283 + $0xcd8] sm:$0xff]
        %v796 = vld [vmem:[%s283 + $0xce0] sm:$0xff]
        %v797 = vld [vmem:[%s283 + $0xce8] sm:$0xff]
        %v798 = vld [vmem:[%s283 + $0xcf0] sm:$0xff]
        %v799 = vld [vmem:[%s283 + $0xcf8] sm:$0xff]
        %v800 = vld [vmem:[%s283 + $0xd00] sm:$0xff]
        %v801 = vld [vmem:[%s283 + $0xd08] sm:$0xff]
        %v802 = vld [vmem:[%s283 + $0xd10] sm:$0xff]
        %v803 = vld [vmem:[%s283 + $0xd18] sm:$0xff]
        %v804 = vld [vmem:[%s283 + $0xd20] sm:$0xff]
        %v805 = vld [vmem:[%s283 + $0xd28] sm:$0xff]
        %v806 = vld [vmem:[%s283 + $0xd30] sm:$0xff]
        %v807 = vld [vmem:[%s283 + $0xd38] sm:$0xff]
        %v808 = vld [vmem:[%s283 + $0xd40] sm:$0xff]
        %v809 = vld [vmem:[%s283 + $0xd48] sm:$0xff]
        %v810 = vld [vmem:[%s283 + $0xd50] sm:$0xff]
        %v811 = vld [vmem:[%s283 + $0xd58] sm:$0xff]
        %v812 = vld [vmem:[%s283 + $0xd60] sm:$0xff]
        %v813 = vld [vmem:[%s283 + $0xd68] sm:$0xff]
        %v814 = vld [vmem:[%s283 + $0xd70] sm:$0xff]
        %v815 = vld [vmem:[%s283 + $0xd78] sm:$0xff]
        %v816 = vld [vmem:[%s283 + $0xd80] sm:$0xff]
        %v817 = vld [vmem:[%s283 + $0xd88] sm:$0xff]
        %v818 = vld [vmem:[%s283 + $0xd90] sm:$0xff]
        %v819 = vld [vmem:[%s283 + $0xd98] sm:$0xff]
        %v820 = vld [vmem:[%s283 + $0xda0] sm:$0xff]
        %v821 = vld [vmem:[%s283 + $0xda8] sm:$0xff]
        %v822 = vld [vmem:[%s283 + $0xdb0] sm:$0xff]
        %v823 = vld [vmem:[%s283 + $0xdb8] sm:$0xff]
        %v824 = vld [vmem:[%s283 + $0xdc0] sm:$0xff]
        %v825 = vld [vmem:[%s283 + $0xdc8] sm:$0xff]
        %v826 = vld [vmem:[%s283 + $0xdd0] sm:$0xff]
        %v827 = vld [vmem:[%s283 + $0xdd8] sm:$0xff]
        %v828 = vld [vmem:[%s283 + $0xde0] sm:$0xff]
        %v829 = vld [vmem:[%s283 + $0xde8] sm:$0xff]
        %v830 = vld [vmem:[%s283 + $0xdf0] sm:$0xff]
        %v831 = vld [vmem:[%s283 + $0xdf8] sm:$0xff]
        %v832 = vld [vmem:[%s283 + $0xe00] sm:$0xff]
        %v833 = vld [vmem:[%s283 + $0xe08] sm:$0xff]
        %v834 = vld [vmem:[%s283 + $0xe10] sm:$0xff]
        %v835 = vld [vmem:[%s283 + $0xe18] sm:$0xff]
        %v836 = vld [vmem:[%s283 + $0xe20] sm:$0xff]
        %v837 = vld [vmem:[%s283 + $0xe28] sm:$0xff]
        %v838 = vld [vmem:[%s283 + $0xe30] sm:$0xff]
        %v839 = vld [vmem:[%s283 + $0xe38] sm:$0xff]
        %v840 = vld [vmem:[%s283 + $0xe40] sm:$0xff]
        %v841 = vld [vmem:[%s283 + $0xe48] sm:$0xff]
        %v842 = vld [vmem:[%s283 + $0xe50] sm:$0xff]
        %v843 = vld [vmem:[%s283 + $0xe58] sm:$0xff]
        %v844 = vld [vmem:[%s283 + $0xe60] sm:$0xff]
        %v845 = vld [vmem:[%s283 + $0xe68] sm:$0xff]
        %v846 = vld [vmem:[%s283 + $0xe70] sm:$0xff]
        %v847 = vld [vmem:[%s283 + $0xe78] sm:$0xff]
        %v848 = vld [vmem:[%s283 + $0xe80] sm:$0xff]
        %v849 = vld [vmem:[%s283 + $0xe88] sm:$0xff]
        %v850 = vld [vmem:[%s283 + $0xe90] sm:$0xff]
        %v851 = vld [vmem:[%s283 + $0xe98] sm:$0xff]
        %v852 = vld [vmem:[%s283 + $0xea0] sm:$0xff]
        %v853 = vld [vmem:[%s283 + $0xea8] sm:$0xff]
        %v854 = vld [vmem:[%s283 + $0xeb0] sm:$0xff]
        %v855 = vld [vmem:[%s283 + $0xeb8] sm:$0xff]
        %v856 = vld [vmem:[%s283 + $0xec0] sm:$0xff]
        %v857 = vld [vmem:[%s283 + $0xec8] sm:$0xff]
        %v858 = vld [vmem:[%s283 + $0xed0] sm:$0xff]
        %v859 = vld [vmem:[%s283 + $0xed8] sm:$0xff]
        %v860 = vld [vmem:[%s283 + $0xee0] sm:$0xff]
        %v861 = vld [vmem:[%s283 + $0xee8] sm:$0xff]
        %v862 = vld [vmem:[%s283 + $0xef0] sm:$0xff]
        %v863 = vld [vmem:[%s283 + $0xef8] sm:$0xff]
        %v864 = vld [vmem:[%s283 + $0xf00] sm:$0xff]
        %v865 = vld [vmem:[%s283 + $0xf08] sm:$0xff]
        %v866 = vld [vmem:[%s283 + $0xf10] sm:$0xff]
        %v867 = vld [vmem:[%s283 + $0xf18] sm:$0xff]
        %v868 = vld [vmem:[%s283 + $0xf20] sm:$0xff]
        %v869 = vld [vmem:[%s283 + $0xf28] sm:$0xff]
        %v870 = vld [vmem:[%s283 + $0xf30] sm:$0xff]
        %v871 = vld [vmem:[%s283 + $0xf38] sm:$0xff]
        %v872 = vld [vmem:[%s283 + $0xf40] sm:$0xff]
        %v873 = vld [vmem:[%s283 + $0xf48] sm:$0xff]
        %v874 = vld [vmem:[%s283 + $0xf50] sm:$0xff]
        %v875 = vld [vmem:[%s283 + $0xf58] sm:$0xff]
        %v876 = vld [vmem:[%s283 + $0xf60] sm:$0xff]
        %v877 = vld [vmem:[%s283 + $0xf68] sm:$0xff]
        %v878 = vld [vmem:[%s283 + $0xf70] sm:$0xff]
        %v879 = vld [vmem:[%s283 + $0xf78] sm:$0xff]
        %v880 = vld [vmem:[%s283 + $0xf80] sm:$0xff]
        %v881 = vld [vmem:[%s283 + $0xf88] sm:$0xff]
        %v882 = vld [vmem:[%s283 + $0xf90] sm:$0xff]
        %v883 = vld [vmem:[%s283 + $0xf98] sm:$0xff]
        %v884 = vld [vmem:[%s283 + $0xfa0] sm:$0xff]
        %v885 = vld [vmem:[%s283 + $0xfa8] sm:$0xff]
        %v886 = vld [vmem:[%s283 + $0xfb0] sm:$0xff]
        %v887 = vld [vmem:[%s283 + $0xfb8] sm:$0xff]
        %v888 = vld [vmem:[%s283 + $0xfc0] sm:$0xff]
        %v889 = vld [vmem:[%s283 + $0xfc8] sm:$0xff]
        %v890 = vld [vmem:[%s283 + $0xfd0] sm:$0xff]
        %v891 = vld [vmem:[%s283 + $0xfd8] sm:$0xff]
        %v892 = vld [vmem:[%s283 + $0xfe0] sm:$0xff]
        %v893 = vld [vmem:[%s283 + $0xfe8] sm:$0xff]
        %v894 = vld [vmem:[%s283 + $0xff0] sm:$0xff]
        %v895 = vld [vmem:[%s283 + $0xff8] sm:$0xff]
        %v896 = vld [vmem:[%s293] sm:$0xff]
        %v898 = vperm.slane %v896, 0
        %v899 = vperm.slane %v896, 1
        %v900 = vperm.slane %v896, 2
        %v901 = vperm.slane %v896, 3
        %v902 = vperm.slane %v896, 4
        %v903 = vperm.slane %v896, 5
        %v904 = vperm.slane %v896, 6
        %v905 = vperm.slane %v896, 7
        %v1426 = vunpack.c.l.b16 %v384
        %v1427 = vunpack.c.h.b16 %v384
        %v1428 = vunpack.c.l.b16 %v385
        %v1429 = vunpack.c.h.b16 %v385
        %v1430 = vunpack.c.l.b16 %v386
        %v1431 = vunpack.c.h.b16 %v386
        %v1432 = vunpack.c.l.b16 %v387
        %v1433 = vunpack.c.h.b16 %v387
        %v1434 = vunpack.c.l.b16 %v388
        %v1435 = vunpack.c.h.b16 %v388
        %v1436 = vunpack.c.l.b16 %v389
        %v1437 = vunpack.c.h.b16 %v389
        %v1438 = vunpack.c.l.b16 %v390
        %v1439 = vunpack.c.h.b16 %v390
        %v1440 = vunpack.c.l.b16 %v391
        %v1441 = vunpack.c.h.b16 %v391
        %v1442 = vunpack.c.l.b16 %v392
        %v1443 = vunpack.c.h.b16 %v392
        %v1444 = vunpack.c.l.b16 %v393
        %v1445 = vunpack.c.h.b16 %v393
        %v1446 = vunpack.c.l.b16 %v394
        %v1447 = vunpack.c.h.b16 %v394
        %v1448 = vunpack.c.l.b16 %v395
        %v1449 = vunpack.c.h.b16 %v395
        %v1450 = vunpack.c.l.b16 %v396
        %v1451 = vunpack.c.h.b16 %v396
        %v1452 = vunpack.c.l.b16 %v397
        %v1453 = vunpack.c.h.b16 %v397
        %v1454 = vunpack.c.l.b16 %v398
        %v1455 = vunpack.c.h.b16 %v398
        %v1456 = vunpack.c.l.b16 %v399
        %v1457 = vunpack.c.h.b16 %v399
        %v1458 = vunpack.c.l.b16 %v400
        %v1459 = vunpack.c.h.b16 %v400
        %v1460 = vunpack.c.l.b16 %v401
        %v1461 = vunpack.c.h.b16 %v401
        %v1462 = vunpack.c.l.b16 %v402
        %v1463 = vunpack.c.h.b16 %v402
        %v1464 = vunpack.c.l.b16 %v403
        %v1465 = vunpack.c.h.b16 %v403
        %v1466 = vunpack.c.l.b16 %v404
        %v1467 = vunpack.c.h.b16 %v404
        %v1468 = vunpack.c.l.b16 %v405
        %v1469 = vunpack.c.h.b16 %v405
        %v1470 = vunpack.c.l.b16 %v406
        %v1471 = vunpack.c.h.b16 %v406
        %v1472 = vunpack.c.l.b16 %v407
        %v1473 = vunpack.c.h.b16 %v407
        %v1474 = vunpack.c.l.b16 %v408
        %v1475 = vunpack.c.h.b16 %v408
        %v1476 = vunpack.c.l.b16 %v409
        %v1477 = vunpack.c.h.b16 %v409
        %v1478 = vunpack.c.l.b16 %v410
        %v1479 = vunpack.c.h.b16 %v410
        %v1480 = vunpack.c.l.b16 %v411
        %v1481 = vunpack.c.h.b16 %v411
        %v1482 = vunpack.c.l.b16 %v412
        %v1483 = vunpack.c.h.b16 %v412
        %v1484 = vunpack.c.l.b16 %v413
        %v1485 = vunpack.c.h.b16 %v413
        %v1486 = vunpack.c.l.b16 %v414
        %v1487 = vunpack.c.h.b16 %v414
        %v1488 = vunpack.c.l.b16 %v415
        %v1489 = vunpack.c.h.b16 %v415
        %v1490 = vunpack.c.l.b16 %v416
        %v1491 = vunpack.c.h.b16 %v416
        %v1492 = vunpack.c.l.b16 %v417
        %v1493 = vunpack.c.h.b16 %v417
        %v1494 = vunpack.c.l.b16 %v418
        %v1495 = vunpack.c.h.b16 %v418
        %v1496 = vunpack.c.l.b16 %v419
        %v1497 = vunpack.c.h.b16 %v419
        %v1498 = vunpack.c.l.b16 %v420
        %v1499 = vunpack.c.h.b16 %v420
        %v1500 = vunpack.c.l.b16 %v421
        %v1501 = vunpack.c.h.b16 %v421
        %v1502 = vunpack.c.l.b16 %v422
        %v1503 = vunpack.c.h.b16 %v422
        %v1504 = vunpack.c.l.b16 %v423
        %v1505 = vunpack.c.h.b16 %v423
        %v1506 = vunpack.c.l.b16 %v424
        %v1507 = vunpack.c.h.b16 %v424
        %v1508 = vunpack.c.l.b16 %v425
        %v1509 = vunpack.c.h.b16 %v425
        %v1510 = vunpack.c.l.b16 %v426
        %v1511 = vunpack.c.h.b16 %v426
        %v1512 = vunpack.c.l.b16 %v427
        %v1513 = vunpack.c.h.b16 %v427
        %v1514 = vunpack.c.l.b16 %v428
        %v1515 = vunpack.c.h.b16 %v428
        %v1516 = vunpack.c.l.b16 %v429
        %v1517 = vunpack.c.h.b16 %v429
        %v1518 = vunpack.c.l.b16 %v430
        %v1519 = vunpack.c.h.b16 %v430
        %v1520 = vunpack.c.l.b16 %v431
        %v1521 = vunpack.c.h.b16 %v431
        %v1522 = vunpack.c.l.b16 %v432
        %v1523 = vunpack.c.h.b16 %v432
        %v1524 = vunpack.c.l.b16 %v433
        %v1525 = vunpack.c.h.b16 %v433
        %v1526 = vunpack.c.l.b16 %v434
        %v1527 = vunpack.c.h.b16 %v434
        %v1528 = vunpack.c.l.b16 %v435
        %v1529 = vunpack.c.h.b16 %v435
        %v1530 = vunpack.c.l.b16 %v436
        %v1531 = vunpack.c.h.b16 %v436
        %v1532 = vunpack.c.l.b16 %v437
        %v1533 = vunpack.c.h.b16 %v437
        %v1534 = vunpack.c.l.b16 %v438
        %v1535 = vunpack.c.h.b16 %v438
        %v1536 = vunpack.c.l.b16 %v439
        %v1537 = vunpack.c.h.b16 %v439
        %v1538 = vunpack.c.l.b16 %v440
        %v1539 = vunpack.c.h.b16 %v440
        %v1540 = vunpack.c.l.b16 %v441
        %v1541 = vunpack.c.h.b16 %v441
        %v1542 = vunpack.c.l.b16 %v442
        %v1543 = vunpack.c.h.b16 %v442
        %v1544 = vunpack.c.l.b16 %v443
        %v1545 = vunpack.c.h.b16 %v443
        %v1546 = vunpack.c.l.b16 %v444
        %v1547 = vunpack.c.h.b16 %v444
        %v1548 = vunpack.c.l.b16 %v445
        %v1549 = vunpack.c.h.b16 %v445
        %v1550 = vunpack.c.l.b16 %v446
        %v1551 = vunpack.c.h.b16 %v446
        %v1552 = vunpack.c.l.b16 %v447
        %v1553 = vunpack.c.h.b16 %v447
        %v1554 = vunpack.c.l.b16 %v448
        %v1555 = vunpack.c.h.b16 %v448
        %v1556 = vunpack.c.l.b16 %v449
        %v1557 = vunpack.c.h.b16 %v449
        %v1558 = vunpack.c.l.b16 %v450
        %v1559 = vunpack.c.h.b16 %v450
        %v1560 = vunpack.c.l.b16 %v451
        %v1561 = vunpack.c.h.b16 %v451
        %v1562 = vunpack.c.l.b16 %v452
        %v1563 = vunpack.c.h.b16 %v452
        %v1564 = vunpack.c.l.b16 %v453
        %v1565 = vunpack.c.h.b16 %v453
        %v1566 = vunpack.c.l.b16 %v454
        %v1567 = vunpack.c.h.b16 %v454
        %v1568 = vunpack.c.l.b16 %v455
        %v1569 = vunpack.c.h.b16 %v455
        %v1570 = vunpack.c.l.b16 %v456
        %v1571 = vunpack.c.h.b16 %v456
        %v1572 = vunpack.c.l.b16 %v457
        %v1573 = vunpack.c.h.b16 %v457
        %v1574 = vunpack.c.l.b16 %v458
        %v1575 = vunpack.c.h.b16 %v458
        %v1576 = vunpack.c.l.b16 %v459
        %v1577 = vunpack.c.h.b16 %v459
        %v1578 = vunpack.c.l.b16 %v460
        %v1579 = vunpack.c.h.b16 %v460
        %v1580 = vunpack.c.l.b16 %v461
        %v1581 = vunpack.c.h.b16 %v461
        %v1582 = vunpack.c.l.b16 %v462
        %v1583 = vunpack.c.h.b16 %v462
        %v1584 = vunpack.c.l.b16 %v463
        %v1585 = vunpack.c.h.b16 %v463
        %v1586 = vunpack.c.l.b16 %v464
        %v1587 = vunpack.c.h.b16 %v464
        %v1588 = vunpack.c.l.b16 %v465
        %v1589 = vunpack.c.h.b16 %v465
        %v1590 = vunpack.c.l.b16 %v466
        %v1591 = vunpack.c.h.b16 %v466
        %v1592 = vunpack.c.l.b16 %v467
        %v1593 = vunpack.c.h.b16 %v467
        %v1594 = vunpack.c.l.b16 %v468
        %v1595 = vunpack.c.h.b16 %v468
        %v1596 = vunpack.c.l.b16 %v469
        %v1597 = vunpack.c.h.b16 %v469
        %v1598 = vunpack.c.l.b16 %v470
        %v1599 = vunpack.c.h.b16 %v470
        %v1600 = vunpack.c.l.b16 %v471
        %v1601 = vunpack.c.h.b16 %v471
        %v1602 = vunpack.c.l.b16 %v472
        %v1603 = vunpack.c.h.b16 %v472
        %v1604 = vunpack.c.l.b16 %v473
        %v1605 = vunpack.c.h.b16 %v473
        %v1606 = vunpack.c.l.b16 %v474
        %v1607 = vunpack.c.h.b16 %v474
        %v1608 = vunpack.c.l.b16 %v475
        %v1609 = vunpack.c.h.b16 %v475
        %v1610 = vunpack.c.l.b16 %v476
        %v1611 = vunpack.c.h.b16 %v476
        %v1612 = vunpack.c.l.b16 %v477
        %v1613 = vunpack.c.h.b16 %v477
        %v1614 = vunpack.c.l.b16 %v478
        %v1615 = vunpack.c.h.b16 %v478
        %v1616 = vunpack.c.l.b16 %v479
        %v1617 = vunpack.c.h.b16 %v479
        %v1618 = vunpack.c.l.b16 %v480
        %v1619 = vunpack.c.h.b16 %v480
        %v1620 = vunpack.c.l.b16 %v481
        %v1621 = vunpack.c.h.b16 %v481
        %v1622 = vunpack.c.l.b16 %v482
        %v1623 = vunpack.c.h.b16 %v482
        %v1624 = vunpack.c.l.b16 %v483
        %v1625 = vunpack.c.h.b16 %v483
        %v1626 = vunpack.c.l.b16 %v484
        %v1627 = vunpack.c.h.b16 %v484
        %v1628 = vunpack.c.l.b16 %v485
        %v1629 = vunpack.c.h.b16 %v485
        %v1630 = vunpack.c.l.b16 %v486
        %v1631 = vunpack.c.h.b16 %v486
        %v1632 = vunpack.c.l.b16 %v487
        %v1633 = vunpack.c.h.b16 %v487
        %v1634 = vunpack.c.l.b16 %v488
        %v1635 = vunpack.c.h.b16 %v488
        %v1636 = vunpack.c.l.b16 %v489
        %v1637 = vunpack.c.h.b16 %v489
        %v1638 = vunpack.c.l.b16 %v490
        %v1639 = vunpack.c.h.b16 %v490
        %v1640 = vunpack.c.l.b16 %v491
        %v1641 = vunpack.c.h.b16 %v491
        %v1642 = vunpack.c.l.b16 %v492
        %v1643 = vunpack.c.h.b16 %v492
        %v1644 = vunpack.c.l.b16 %v493
        %v1645 = vunpack.c.h.b16 %v493
        %v1646 = vunpack.c.l.b16 %v494
        %v1647 = vunpack.c.h.b16 %v494
        %v1648 = vunpack.c.l.b16 %v495
        %v1649 = vunpack.c.h.b16 %v495
        %v1650 = vunpack.c.l.b16 %v496
        %v1651 = vunpack.c.h.b16 %v496
        %v1652 = vunpack.c.l.b16 %v497
        %v1653 = vunpack.c.h.b16 %v497
        %v1654 = vunpack.c.l.b16 %v498
        %v1655 = vunpack.c.h.b16 %v498
        %v1656 = vunpack.c.l.b16 %v499
        %v1657 = vunpack.c.h.b16 %v499
        %v1658 = vunpack.c.l.b16 %v500
        %v1659 = vunpack.c.h.b16 %v500
        %v1660 = vunpack.c.l.b16 %v501
        %v1661 = vunpack.c.h.b16 %v501
        %v1662 = vunpack.c.l.b16 %v502
        %v1663 = vunpack.c.h.b16 %v502
        %v1664 = vunpack.c.l.b16 %v503
        %v1665 = vunpack.c.h.b16 %v503
        %v1666 = vunpack.c.l.b16 %v504
        %v1667 = vunpack.c.h.b16 %v504
        %v1668 = vunpack.c.l.b16 %v505
        %v1669 = vunpack.c.h.b16 %v505
        %v1670 = vunpack.c.l.b16 %v506
        %v1671 = vunpack.c.h.b16 %v506
        %v1672 = vunpack.c.l.b16 %v507
        %v1673 = vunpack.c.h.b16 %v507
        %v1674 = vunpack.c.l.b16 %v508
        %v1675 = vunpack.c.h.b16 %v508
        %v1676 = vunpack.c.l.b16 %v509
        %v1677 = vunpack.c.h.b16 %v509
        %v1678 = vunpack.c.l.b16 %v510
        %v1679 = vunpack.c.h.b16 %v510
        %v1680 = vunpack.c.l.b16 %v511
        %v1681 = vunpack.c.h.b16 %v511
        %v1682 = vunpack.c.l.b16 %v512
        %v1683 = vunpack.c.h.b16 %v512
        %v1684 = vunpack.c.l.b16 %v513
        %v1685 = vunpack.c.h.b16 %v513
        %v1686 = vunpack.c.l.b16 %v514
        %v1687 = vunpack.c.h.b16 %v514
        %v1688 = vunpack.c.l.b16 %v515
        %v1689 = vunpack.c.h.b16 %v515
        %v1690 = vunpack.c.l.b16 %v516
        %v1691 = vunpack.c.h.b16 %v516
        %v1692 = vunpack.c.l.b16 %v517
        %v1693 = vunpack.c.h.b16 %v517
        %v1694 = vunpack.c.l.b16 %v518
        %v1695 = vunpack.c.h.b16 %v518
        %v1696 = vunpack.c.l.b16 %v519
        %v1697 = vunpack.c.h.b16 %v519
        %v1698 = vunpack.c.l.b16 %v520
        %v1699 = vunpack.c.h.b16 %v520
        %v1700 = vunpack.c.l.b16 %v521
        %v1701 = vunpack.c.h.b16 %v521
        %v1702 = vunpack.c.l.b16 %v522
        %v1703 = vunpack.c.h.b16 %v522
        %v1704 = vunpack.c.l.b16 %v523
        %v1705 = vunpack.c.h.b16 %v523
        %v1706 = vunpack.c.l.b16 %v524
        %v1707 = vunpack.c.h.b16 %v524
        %v1708 = vunpack.c.l.b16 %v525
        %v1709 = vunpack.c.h.b16 %v525
        %v1710 = vunpack.c.l.b16 %v526
        %v1711 = vunpack.c.h.b16 %v526
        %v1712 = vunpack.c.l.b16 %v527
        %v1713 = vunpack.c.h.b16 %v527
        %v1714 = vunpack.c.l.b16 %v528
        %v1715 = vunpack.c.h.b16 %v528
        %v1716 = vunpack.c.l.b16 %v529
        %v1717 = vunpack.c.h.b16 %v529
        %v1718 = vunpack.c.l.b16 %v530
        %v1719 = vunpack.c.h.b16 %v530
        %v1720 = vunpack.c.l.b16 %v531
        %v1721 = vunpack.c.h.b16 %v531
        %v1722 = vunpack.c.l.b16 %v532
        %v1723 = vunpack.c.h.b16 %v532
        %v1724 = vunpack.c.l.b16 %v533
        %v1725 = vunpack.c.h.b16 %v533
        %v1726 = vunpack.c.l.b16 %v534
        %v1727 = vunpack.c.h.b16 %v534
        %v1728 = vunpack.c.l.b16 %v535
        %v1729 = vunpack.c.h.b16 %v535
        %v1730 = vunpack.c.l.b16 %v536
        %v1731 = vunpack.c.h.b16 %v536
        %v1732 = vunpack.c.l.b16 %v537
        %v1733 = vunpack.c.h.b16 %v537
        %v1734 = vunpack.c.l.b16 %v538
        %v1735 = vunpack.c.h.b16 %v538
        %v1736 = vunpack.c.l.b16 %v539
        %v1737 = vunpack.c.h.b16 %v539
        %v1738 = vunpack.c.l.b16 %v540
        %v1739 = vunpack.c.h.b16 %v540
        %v1740 = vunpack.c.l.b16 %v541
        %v1741 = vunpack.c.h.b16 %v541
        %v1742 = vunpack.c.l.b16 %v542
        %v1743 = vunpack.c.h.b16 %v542
        %v1744 = vunpack.c.l.b16 %v543
        %v1745 = vunpack.c.h.b16 %v543
        %v1746 = vunpack.c.l.b16 %v544
        %v1747 = vunpack.c.h.b16 %v544
        %v1748 = vunpack.c.l.b16 %v545
        %v1749 = vunpack.c.h.b16 %v545
        %v1750 = vunpack.c.l.b16 %v546
        %v1751 = vunpack.c.h.b16 %v546
        %v1752 = vunpack.c.l.b16 %v547
        %v1753 = vunpack.c.h.b16 %v547
        %v1754 = vunpack.c.l.b16 %v548
        %v1755 = vunpack.c.h.b16 %v548
        %v1756 = vunpack.c.l.b16 %v549
        %v1757 = vunpack.c.h.b16 %v549
        %v1758 = vunpack.c.l.b16 %v550
        %v1759 = vunpack.c.h.b16 %v550
        %v1760 = vunpack.c.l.b16 %v551
        %v1761 = vunpack.c.h.b16 %v551
        %v1762 = vunpack.c.l.b16 %v552
        %v1763 = vunpack.c.h.b16 %v552
        %v1764 = vunpack.c.l.b16 %v553
        %v1765 = vunpack.c.h.b16 %v553
        %v1766 = vunpack.c.l.b16 %v554
        %v1767 = vunpack.c.h.b16 %v554
        %v1768 = vunpack.c.l.b16 %v555
        %v1769 = vunpack.c.h.b16 %v555
        %v1770 = vunpack.c.l.b16 %v556
        %v1771 = vunpack.c.h.b16 %v556
        %v1772 = vunpack.c.l.b16 %v557
        %v1773 = vunpack.c.h.b16 %v557
        %v1774 = vunpack.c.l.b16 %v558
        %v1775 = vunpack.c.h.b16 %v558
        %v1776 = vunpack.c.l.b16 %v559
        %v1777 = vunpack.c.h.b16 %v559
        %v1778 = vunpack.c.l.b16 %v560
        %v1779 = vunpack.c.h.b16 %v560
        %v1780 = vunpack.c.l.b16 %v561
        %v1781 = vunpack.c.h.b16 %v561
        %v1782 = vunpack.c.l.b16 %v562
        %v1783 = vunpack.c.h.b16 %v562
        %v1784 = vunpack.c.l.b16 %v563
        %v1785 = vunpack.c.h.b16 %v563
        %v1786 = vunpack.c.l.b16 %v564
        %v1787 = vunpack.c.h.b16 %v564
        %v1788 = vunpack.c.l.b16 %v565
        %v1789 = vunpack.c.h.b16 %v565
        %v1790 = vunpack.c.l.b16 %v566
        %v1791 = vunpack.c.h.b16 %v566
        %v1792 = vunpack.c.l.b16 %v567
        %v1793 = vunpack.c.h.b16 %v567
        %v1794 = vunpack.c.l.b16 %v568
        %v1795 = vunpack.c.h.b16 %v568
        %v1796 = vunpack.c.l.b16 %v569
        %v1797 = vunpack.c.h.b16 %v569
        %v1798 = vunpack.c.l.b16 %v570
        %v1799 = vunpack.c.h.b16 %v570
        %v1800 = vunpack.c.l.b16 %v571
        %v1801 = vunpack.c.h.b16 %v571
        %v1802 = vunpack.c.l.b16 %v572
        %v1803 = vunpack.c.h.b16 %v572
        %v1804 = vunpack.c.l.b16 %v573
        %v1805 = vunpack.c.h.b16 %v573
        %v1806 = vunpack.c.l.b16 %v574
        %v1807 = vunpack.c.h.b16 %v574
        %v1808 = vunpack.c.l.b16 %v575
        %v1809 = vunpack.c.h.b16 %v575
        %v1810 = vunpack.c.l.b16 %v576
        %v1811 = vunpack.c.h.b16 %v576
        %v1812 = vunpack.c.l.b16 %v577
        %v1813 = vunpack.c.h.b16 %v577
        %v1814 = vunpack.c.l.b16 %v578
        %v1815 = vunpack.c.h.b16 %v578
        %v1816 = vunpack.c.l.b16 %v579
        %v1817 = vunpack.c.h.b16 %v579
        %v1818 = vunpack.c.l.b16 %v580
        %v1819 = vunpack.c.h.b16 %v580
        %v1820 = vunpack.c.l.b16 %v581
        %v1821 = vunpack.c.h.b16 %v581
        %v1822 = vunpack.c.l.b16 %v582
        %v1823 = vunpack.c.h.b16 %v582
        %v1824 = vunpack.c.l.b16 %v583
        %v1825 = vunpack.c.h.b16 %v583
        %v1826 = vunpack.c.l.b16 %v584
        %v1827 = vunpack.c.h.b16 %v584
        %v1828 = vunpack.c.l.b16 %v585
        %v1829 = vunpack.c.h.b16 %v585
        %v1830 = vunpack.c.l.b16 %v586
        %v1831 = vunpack.c.h.b16 %v586
        %v1832 = vunpack.c.l.b16 %v587
        %v1833 = vunpack.c.h.b16 %v587
        %v1834 = vunpack.c.l.b16 %v588
        %v1835 = vunpack.c.h.b16 %v588
        %v1836 = vunpack.c.l.b16 %v589
        %v1837 = vunpack.c.h.b16 %v589
        %v1838 = vunpack.c.l.b16 %v590
        %v1839 = vunpack.c.h.b16 %v590
        %v1840 = vunpack.c.l.b16 %v591
        %v1841 = vunpack.c.h.b16 %v591
        %v1842 = vunpack.c.l.b16 %v592
        %v1843 = vunpack.c.h.b16 %v592
        %v1844 = vunpack.c.l.b16 %v593
        %v1845 = vunpack.c.h.b16 %v593
        %v1846 = vunpack.c.l.b16 %v594
        %v1847 = vunpack.c.h.b16 %v594
        %v1848 = vunpack.c.l.b16 %v595
        %v1849 = vunpack.c.h.b16 %v595
        %v1850 = vunpack.c.l.b16 %v596
        %v1851 = vunpack.c.h.b16 %v596
        %v1852 = vunpack.c.l.b16 %v597
        %v1853 = vunpack.c.h.b16 %v597
        %v1854 = vunpack.c.l.b16 %v598
        %v1855 = vunpack.c.h.b16 %v598
        %v1856 = vunpack.c.l.b16 %v599
        %v1857 = vunpack.c.h.b16 %v599
        %v1858 = vunpack.c.l.b16 %v600
        %v1859 = vunpack.c.h.b16 %v600
        %v1860 = vunpack.c.l.b16 %v601
        %v1861 = vunpack.c.h.b16 %v601
        %v1862 = vunpack.c.l.b16 %v602
        %v1863 = vunpack.c.h.b16 %v602
        %v1864 = vunpack.c.l.b16 %v603
        %v1865 = vunpack.c.h.b16 %v603
        %v1866 = vunpack.c.l.b16 %v604
        %v1867 = vunpack.c.h.b16 %v604
        %v1868 = vunpack.c.l.b16 %v605
        %v1869 = vunpack.c.h.b16 %v605
        %v1870 = vunpack.c.l.b16 %v606
        %v1871 = vunpack.c.h.b16 %v606
        %v1872 = vunpack.c.l.b16 %v607
        %v1873 = vunpack.c.h.b16 %v607
        %v1874 = vunpack.c.l.b16 %v608
        %v1875 = vunpack.c.h.b16 %v608
        %v1876 = vunpack.c.l.b16 %v609
        %v1877 = vunpack.c.h.b16 %v609
        %v1878 = vunpack.c.l.b16 %v610
        %v1879 = vunpack.c.h.b16 %v610
        %v1880 = vunpack.c.l.b16 %v611
        %v1881 = vunpack.c.h.b16 %v611
        %v1882 = vunpack.c.l.b16 %v612
        %v1883 = vunpack.c.h.b16 %v612
        %v1884 = vunpack.c.l.b16 %v613
        %v1885 = vunpack.c.h.b16 %v613
        %v1886 = vunpack.c.l.b16 %v614
        %v1887 = vunpack.c.h.b16 %v614
        %v1888 = vunpack.c.l.b16 %v615
        %v1889 = vunpack.c.h.b16 %v615
        %v1890 = vunpack.c.l.b16 %v616
        %v1891 = vunpack.c.h.b16 %v616
        %v1892 = vunpack.c.l.b16 %v617
        %v1893 = vunpack.c.h.b16 %v617
        %v1894 = vunpack.c.l.b16 %v618
        %v1895 = vunpack.c.h.b16 %v618
        %v1896 = vunpack.c.l.b16 %v619
        %v1897 = vunpack.c.h.b16 %v619
        %v1898 = vunpack.c.l.b16 %v620
        %v1899 = vunpack.c.h.b16 %v620
        %v1900 = vunpack.c.l.b16 %v621
        %v1901 = vunpack.c.h.b16 %v621
        %v1902 = vunpack.c.l.b16 %v622
        %v1903 = vunpack.c.h.b16 %v622
        %v1904 = vunpack.c.l.b16 %v623
        %v1905 = vunpack.c.h.b16 %v623
        %v1906 = vunpack.c.l.b16 %v624
        %v1907 = vunpack.c.h.b16 %v624
        %v1908 = vunpack.c.l.b16 %v625
        %v1909 = vunpack.c.h.b16 %v625
        %v1910 = vunpack.c.l.b16 %v626
        %v1911 = vunpack.c.h.b16 %v626
        %v1912 = vunpack.c.l.b16 %v627
        %v1913 = vunpack.c.h.b16 %v627
        %v1914 = vunpack.c.l.b16 %v628
        %v1915 = vunpack.c.h.b16 %v628
        %v1916 = vunpack.c.l.b16 %v629
        %v1917 = vunpack.c.h.b16 %v629
        %v1918 = vunpack.c.l.b16 %v630
        %v1919 = vunpack.c.h.b16 %v630
        %v1920 = vunpack.c.l.b16 %v631
        %v1921 = vunpack.c.h.b16 %v631
        %v1922 = vunpack.c.l.b16 %v632
        %v1923 = vunpack.c.h.b16 %v632
        %v1924 = vunpack.c.l.b16 %v633
        %v1925 = vunpack.c.h.b16 %v633
        %v1926 = vunpack.c.l.b16 %v634
        %v1927 = vunpack.c.h.b16 %v634
        %v1928 = vunpack.c.l.b16 %v635
        %v1929 = vunpack.c.h.b16 %v635
        %v1930 = vunpack.c.l.b16 %v636
        %v1931 = vunpack.c.h.b16 %v636
        %v1932 = vunpack.c.l.b16 %v637
        %v1933 = vunpack.c.h.b16 %v637
        %v1934 = vunpack.c.l.b16 %v638
        %v1935 = vunpack.c.h.b16 %v638
        %v1936 = vunpack.c.l.b16 %v639
        %v1937 = vunpack.c.h.b16 %v639
        %v1938 = vunpack.c.l.b16 %v640
        %v1939 = vunpack.c.h.b16 %v640
        %v1940 = vunpack.c.l.b16 %v641
        %v1941 = vunpack.c.h.b16 %v641
        %v1942 = vunpack.c.l.b16 %v642
        %v1943 = vunpack.c.h.b16 %v642
        %v1944 = vunpack.c.l.b16 %v643
        %v1945 = vunpack.c.h.b16 %v643
        %v1946 = vunpack.c.l.b16 %v644
        %v1947 = vunpack.c.h.b16 %v644
        %v1948 = vunpack.c.l.b16 %v645
        %v1949 = vunpack.c.h.b16 %v645
        %v1950 = vunpack.c.l.b16 %v646
        %v1951 = vunpack.c.h.b16 %v646
        %v1952 = vunpack.c.l.b16 %v647
        %v1953 = vunpack.c.h.b16 %v647
        %v1954 = vunpack.c.l.b16 %v648
        %v1955 = vunpack.c.h.b16 %v648
        %v1956 = vunpack.c.l.b16 %v649
        %v1957 = vunpack.c.h.b16 %v649
        %v1958 = vunpack.c.l.b16 %v650
        %v1959 = vunpack.c.h.b16 %v650
        %v1960 = vunpack.c.l.b16 %v651
        %v1961 = vunpack.c.h.b16 %v651
        %v1962 = vunpack.c.l.b16 %v652
        %v1963 = vunpack.c.h.b16 %v652
        %v1964 = vunpack.c.l.b16 %v653
        %v1965 = vunpack.c.h.b16 %v653
        %v1966 = vunpack.c.l.b16 %v654
        %v1967 = vunpack.c.h.b16 %v654
        %v1968 = vunpack.c.l.b16 %v655
        %v1969 = vunpack.c.h.b16 %v655
        %v1970 = vunpack.c.l.b16 %v656
        %v1971 = vunpack.c.h.b16 %v656
        %v1972 = vunpack.c.l.b16 %v657
        %v1973 = vunpack.c.h.b16 %v657
        %v1974 = vunpack.c.l.b16 %v658
        %v1975 = vunpack.c.h.b16 %v658
        %v1976 = vunpack.c.l.b16 %v659
        %v1977 = vunpack.c.h.b16 %v659
        %v1978 = vunpack.c.l.b16 %v660
        %v1979 = vunpack.c.h.b16 %v660
        %v1980 = vunpack.c.l.b16 %v661
        %v1981 = vunpack.c.h.b16 %v661
        %v1982 = vunpack.c.l.b16 %v662
        %v1983 = vunpack.c.h.b16 %v662
        %v1984 = vunpack.c.l.b16 %v663
        %v1985 = vunpack.c.h.b16 %v663
        %v1986 = vunpack.c.l.b16 %v664
        %v1987 = vunpack.c.h.b16 %v664
        %v1988 = vunpack.c.l.b16 %v665
        %v1989 = vunpack.c.h.b16 %v665
        %v1990 = vunpack.c.l.b16 %v666
        %v1991 = vunpack.c.h.b16 %v666
        %v1992 = vunpack.c.l.b16 %v667
        %v1993 = vunpack.c.h.b16 %v667
        %v1994 = vunpack.c.l.b16 %v668
        %v1995 = vunpack.c.h.b16 %v668
        %v1996 = vunpack.c.l.b16 %v669
        %v1997 = vunpack.c.h.b16 %v669
        %v1998 = vunpack.c.l.b16 %v670
        %v1999 = vunpack.c.h.b16 %v670
        %v2000 = vunpack.c.l.b16 %v671
        %v2001 = vunpack.c.h.b16 %v671
        %v2002 = vunpack.c.l.b16 %v672
        %v2003 = vunpack.c.h.b16 %v672
        %v2004 = vunpack.c.l.b16 %v673
        %v2005 = vunpack.c.h.b16 %v673
        %v2006 = vunpack.c.l.b16 %v674
        %v2007 = vunpack.c.h.b16 %v674
        %v2008 = vunpack.c.l.b16 %v675
        %v2009 = vunpack.c.h.b16 %v675
        %v2010 = vunpack.c.l.b16 %v676
        %v2011 = vunpack.c.h.b16 %v676
        %v2012 = vunpack.c.l.b16 %v677
        %v2013 = vunpack.c.h.b16 %v677
        %v2014 = vunpack.c.l.b16 %v678
        %v2015 = vunpack.c.h.b16 %v678
        %v2016 = vunpack.c.l.b16 %v679
        %v2017 = vunpack.c.h.b16 %v679
        %v2018 = vunpack.c.l.b16 %v680
        %v2019 = vunpack.c.h.b16 %v680
        %v2020 = vunpack.c.l.b16 %v681
        %v2021 = vunpack.c.h.b16 %v681
        %v2022 = vunpack.c.l.b16 %v682
        %v2023 = vunpack.c.h.b16 %v682
        %v2024 = vunpack.c.l.b16 %v683
        %v2025 = vunpack.c.h.b16 %v683
        %v2026 = vunpack.c.l.b16 %v684
        %v2027 = vunpack.c.h.b16 %v684
        %v2028 = vunpack.c.l.b16 %v685
        %v2029 = vunpack.c.h.b16 %v685
        %v2030 = vunpack.c.l.b16 %v686
        %v2031 = vunpack.c.h.b16 %v686
        %v2032 = vunpack.c.l.b16 %v687
        %v2033 = vunpack.c.h.b16 %v687
        %v2034 = vunpack.c.l.b16 %v688
        %v2035 = vunpack.c.h.b16 %v688
        %v2036 = vunpack.c.l.b16 %v689
        %v2037 = vunpack.c.h.b16 %v689
        %v2038 = vunpack.c.l.b16 %v690
        %v2039 = vunpack.c.h.b16 %v690
        %v2040 = vunpack.c.l.b16 %v691
        %v2041 = vunpack.c.h.b16 %v691
        %v2042 = vunpack.c.l.b16 %v692
        %v2043 = vunpack.c.h.b16 %v692
        %v2044 = vunpack.c.l.b16 %v693
        %v2045 = vunpack.c.h.b16 %v693
        %v2046 = vunpack.c.l.b16 %v694
        %v2047 = vunpack.c.h.b16 %v694
        %v2048 = vunpack.c.l.b16 %v695
        %v2049 = vunpack.c.h.b16 %v695
        %v2050 = vunpack.c.l.b16 %v696
        %v2051 = vunpack.c.h.b16 %v696
        %v2052 = vunpack.c.l.b16 %v697
        %v2053 = vunpack.c.h.b16 %v697
        %v2054 = vunpack.c.l.b16 %v698
        %v2055 = vunpack.c.h.b16 %v698
        %v2056 = vunpack.c.l.b16 %v699
        %v2057 = vunpack.c.h.b16 %v699
        %v2058 = vunpack.c.l.b16 %v700
        %v2059 = vunpack.c.h.b16 %v700
        %v2060 = vunpack.c.l.b16 %v701
        %v2061 = vunpack.c.h.b16 %v701
        %v2062 = vunpack.c.l.b16 %v702
        %v2063 = vunpack.c.h.b16 %v702
        %v2064 = vunpack.c.l.b16 %v703
        %v2065 = vunpack.c.h.b16 %v703
        %v2066 = vunpack.c.l.b16 %v704
        %v2067 = vunpack.c.h.b16 %v704
        %v2068 = vunpack.c.l.b16 %v705
        %v2069 = vunpack.c.h.b16 %v705
        %v2070 = vunpack.c.l.b16 %v706
        %v2071 = vunpack.c.h.b16 %v706
        %v2072 = vunpack.c.l.b16 %v707
        %v2073 = vunpack.c.h.b16 %v707
        %v2074 = vunpack.c.l.b16 %v708
        %v2075 = vunpack.c.h.b16 %v708
        %v2076 = vunpack.c.l.b16 %v709
        %v2077 = vunpack.c.h.b16 %v709
        %v2078 = vunpack.c.l.b16 %v710
        %v2079 = vunpack.c.h.b16 %v710
        %v2080 = vunpack.c.l.b16 %v711
        %v2081 = vunpack.c.h.b16 %v711
        %v2082 = vunpack.c.l.b16 %v712
        %v2083 = vunpack.c.h.b16 %v712
        %v2084 = vunpack.c.l.b16 %v713
        %v2085 = vunpack.c.h.b16 %v713
        %v2086 = vunpack.c.l.b16 %v714
        %v2087 = vunpack.c.h.b16 %v714
        %v2088 = vunpack.c.l.b16 %v715
        %v2089 = vunpack.c.h.b16 %v715
        %v2090 = vunpack.c.l.b16 %v716
        %v2091 = vunpack.c.h.b16 %v716
        %v2092 = vunpack.c.l.b16 %v717
        %v2093 = vunpack.c.h.b16 %v717
        %v2094 = vunpack.c.l.b16 %v718
        %v2095 = vunpack.c.h.b16 %v718
        %v2096 = vunpack.c.l.b16 %v719
        %v2097 = vunpack.c.h.b16 %v719
        %v2098 = vunpack.c.l.b16 %v720
        %v2099 = vunpack.c.h.b16 %v720
        %v2100 = vunpack.c.l.b16 %v721
        %v2101 = vunpack.c.h.b16 %v721
        %v2102 = vunpack.c.l.b16 %v722
        %v2103 = vunpack.c.h.b16 %v722
        %v2104 = vunpack.c.l.b16 %v723
        %v2105 = vunpack.c.h.b16 %v723
        %v2106 = vunpack.c.l.b16 %v724
        %v2107 = vunpack.c.h.b16 %v724
        %v2108 = vunpack.c.l.b16 %v725
        %v2109 = vunpack.c.h.b16 %v725
        %v2110 = vunpack.c.l.b16 %v726
        %v2111 = vunpack.c.h.b16 %v726
        %v2112 = vunpack.c.l.b16 %v727
        %v2113 = vunpack.c.h.b16 %v727
        %v2114 = vunpack.c.l.b16 %v728
        %v2115 = vunpack.c.h.b16 %v728
        %v2116 = vunpack.c.l.b16 %v729
        %v2117 = vunpack.c.h.b16 %v729
        %v2118 = vunpack.c.l.b16 %v730
        %v2119 = vunpack.c.h.b16 %v730
        %v2120 = vunpack.c.l.b16 %v731
        %v2121 = vunpack.c.h.b16 %v731
        %v2122 = vunpack.c.l.b16 %v732
        %v2123 = vunpack.c.h.b16 %v732
        %v2124 = vunpack.c.l.b16 %v733
        %v2125 = vunpack.c.h.b16 %v733
        %v2126 = vunpack.c.l.b16 %v734
        %v2127 = vunpack.c.h.b16 %v734
        %v2128 = vunpack.c.l.b16 %v735
        %v2129 = vunpack.c.h.b16 %v735
        %v2130 = vunpack.c.l.b16 %v736
        %v2131 = vunpack.c.h.b16 %v736
        %v2132 = vunpack.c.l.b16 %v737
        %v2133 = vunpack.c.h.b16 %v737
        %v2134 = vunpack.c.l.b16 %v738
        %v2135 = vunpack.c.h.b16 %v738
        %v2136 = vunpack.c.l.b16 %v739
        %v2137 = vunpack.c.h.b16 %v739
        %v2138 = vunpack.c.l.b16 %v740
        %v2139 = vunpack.c.h.b16 %v740
        %v2140 = vunpack.c.l.b16 %v741
        %v2141 = vunpack.c.h.b16 %v741
        %v2142 = vunpack.c.l.b16 %v742
        %v2143 = vunpack.c.h.b16 %v742
        %v2144 = vunpack.c.l.b16 %v743
        %v2145 = vunpack.c.h.b16 %v743
        %v2146 = vunpack.c.l.b16 %v744
        %v2147 = vunpack.c.h.b16 %v744
        %v2148 = vunpack.c.l.b16 %v745
        %v2149 = vunpack.c.h.b16 %v745
        %v2150 = vunpack.c.l.b16 %v746
        %v2151 = vunpack.c.h.b16 %v746
        %v2152 = vunpack.c.l.b16 %v747
        %v2153 = vunpack.c.h.b16 %v747
        %v2154 = vunpack.c.l.b16 %v748
        %v2155 = vunpack.c.h.b16 %v748
        %v2156 = vunpack.c.l.b16 %v749
        %v2157 = vunpack.c.h.b16 %v749
        %v2158 = vunpack.c.l.b16 %v750
        %v2159 = vunpack.c.h.b16 %v750
        %v2160 = vunpack.c.l.b16 %v751
        %v2161 = vunpack.c.h.b16 %v751
        %v2162 = vunpack.c.l.b16 %v752
        %v2163 = vunpack.c.h.b16 %v752
        %v2164 = vunpack.c.l.b16 %v753
        %v2165 = vunpack.c.h.b16 %v753
        %v2166 = vunpack.c.l.b16 %v754
        %v2167 = vunpack.c.h.b16 %v754
        %v2168 = vunpack.c.l.b16 %v755
        %v2169 = vunpack.c.h.b16 %v755
        %v2170 = vunpack.c.l.b16 %v756
        %v2171 = vunpack.c.h.b16 %v756
        %v2172 = vunpack.c.l.b16 %v757
        %v2173 = vunpack.c.h.b16 %v757
        %v2174 = vunpack.c.l.b16 %v758
        %v2175 = vunpack.c.h.b16 %v758
        %v2176 = vunpack.c.l.b16 %v759
        %v2177 = vunpack.c.h.b16 %v759
        %v2178 = vunpack.c.l.b16 %v760
        %v2179 = vunpack.c.h.b16 %v760
        %v2180 = vunpack.c.l.b16 %v761
        %v2181 = vunpack.c.h.b16 %v761
        %v2182 = vunpack.c.l.b16 %v762
        %v2183 = vunpack.c.h.b16 %v762
        %v2184 = vunpack.c.l.b16 %v763
        %v2185 = vunpack.c.h.b16 %v763
        %v2186 = vunpack.c.l.b16 %v764
        %v2187 = vunpack.c.h.b16 %v764
        %v2188 = vunpack.c.l.b16 %v765
        %v2189 = vunpack.c.h.b16 %v765
        %v2190 = vunpack.c.l.b16 %v766
        %v2191 = vunpack.c.h.b16 %v766
        %v2192 = vunpack.c.l.b16 %v767
        %v2193 = vunpack.c.h.b16 %v767
        %v2194 = vunpack.c.l.b16 %v768
        %v2195 = vunpack.c.h.b16 %v768
        %v2196 = vunpack.c.l.b16 %v769
        %v2197 = vunpack.c.h.b16 %v769
        %v2198 = vunpack.c.l.b16 %v770
        %v2199 = vunpack.c.h.b16 %v770
        %v2200 = vunpack.c.l.b16 %v771
        %v2201 = vunpack.c.h.b16 %v771
        %v2202 = vunpack.c.l.b16 %v772
        %v2203 = vunpack.c.h.b16 %v772
        %v2204 = vunpack.c.l.b16 %v773
        %v2205 = vunpack.c.h.b16 %v773
        %v2206 = vunpack.c.l.b16 %v774
        %v2207 = vunpack.c.h.b16 %v774
        %v2208 = vunpack.c.l.b16 %v775
        %v2209 = vunpack.c.h.b16 %v775
        %v2210 = vunpack.c.l.b16 %v776
        %v2211 = vunpack.c.h.b16 %v776
        %v2212 = vunpack.c.l.b16 %v777
        %v2213 = vunpack.c.h.b16 %v777
        %v2214 = vunpack.c.l.b16 %v778
        %v2215 = vunpack.c.h.b16 %v778
        %v2216 = vunpack.c.l.b16 %v779
        %v2217 = vunpack.c.h.b16 %v779
        %v2218 = vunpack.c.l.b16 %v780
        %v2219 = vunpack.c.h.b16 %v780
        %v2220 = vunpack.c.l.b16 %v781
        %v2221 = vunpack.c.h.b16 %v781
        %v2222 = vunpack.c.l.b16 %v782
        %v2223 = vunpack.c.h.b16 %v782
        %v2224 = vunpack.c.l.b16 %v783
        %v2225 = vunpack.c.h.b16 %v783
        %v2226 = vunpack.c.l.b16 %v784
        %v2227 = vunpack.c.h.b16 %v784
        %v2228 = vunpack.c.l.b16 %v785
        %v2229 = vunpack.c.h.b16 %v785
        %v2230 = vunpack.c.l.b16 %v786
        %v2231 = vunpack.c.h.b16 %v786
        %v2232 = vunpack.c.l.b16 %v787
        %v2233 = vunpack.c.h.b16 %v787
        %v2234 = vunpack.c.l.b16 %v788
        %v2235 = vunpack.c.h.b16 %v788
        %v2236 = vunpack.c.l.b16 %v789
        %v2237 = vunpack.c.h.b16 %v789
        %v2238 = vunpack.c.l.b16 %v790
        %v2239 = vunpack.c.h.b16 %v790
        %v2240 = vunpack.c.l.b16 %v791
        %v2241 = vunpack.c.h.b16 %v791
        %v2242 = vunpack.c.l.b16 %v792
        %v2243 = vunpack.c.h.b16 %v792
        %v2244 = vunpack.c.l.b16 %v793
        %v2245 = vunpack.c.h.b16 %v793
        %v2246 = vunpack.c.l.b16 %v794
        %v2247 = vunpack.c.h.b16 %v794
        %v2248 = vunpack.c.l.b16 %v795
        %v2249 = vunpack.c.h.b16 %v795
        %v2250 = vunpack.c.l.b16 %v796
        %v2251 = vunpack.c.h.b16 %v796
        %v2252 = vunpack.c.l.b16 %v797
        %v2253 = vunpack.c.h.b16 %v797
        %v2254 = vunpack.c.l.b16 %v798
        %v2255 = vunpack.c.h.b16 %v798
        %v2256 = vunpack.c.l.b16 %v799
        %v2257 = vunpack.c.h.b16 %v799
        %v2258 = vunpack.c.l.b16 %v800
        %v2259 = vunpack.c.h.b16 %v800
        %v2260 = vunpack.c.l.b16 %v801
        %v2261 = vunpack.c.h.b16 %v801
        %v2262 = vunpack.c.l.b16 %v802
        %v2263 = vunpack.c.h.b16 %v802
        %v2264 = vunpack.c.l.b16 %v803
        %v2265 = vunpack.c.h.b16 %v803
        %v2266 = vunpack.c.l.b16 %v804
        %v2267 = vunpack.c.h.b16 %v804
        %v2268 = vunpack.c.l.b16 %v805
        %v2269 = vunpack.c.h.b16 %v805
        %v2270 = vunpack.c.l.b16 %v806
        %v2271 = vunpack.c.h.b16 %v806
        %v2272 = vunpack.c.l.b16 %v807
        %v2273 = vunpack.c.h.b16 %v807
        %v2274 = vunpack.c.l.b16 %v808
        %v2275 = vunpack.c.h.b16 %v808
        %v2276 = vunpack.c.l.b16 %v809
        %v2277 = vunpack.c.h.b16 %v809
        %v2278 = vunpack.c.l.b16 %v810
        %v2279 = vunpack.c.h.b16 %v810
        %v2280 = vunpack.c.l.b16 %v811
        %v2281 = vunpack.c.h.b16 %v811
        %v2282 = vunpack.c.l.b16 %v812
        %v2283 = vunpack.c.h.b16 %v812
        %v2284 = vunpack.c.l.b16 %v813
        %v2285 = vunpack.c.h.b16 %v813
        %v2286 = vunpack.c.l.b16 %v814
        %v2287 = vunpack.c.h.b16 %v814
        %v2288 = vunpack.c.l.b16 %v815
        %v2289 = vunpack.c.h.b16 %v815
        %v2290 = vunpack.c.l.b16 %v816
        %v2291 = vunpack.c.h.b16 %v816
        %v2292 = vunpack.c.l.b16 %v817
        %v2293 = vunpack.c.h.b16 %v817
        %v2294 = vunpack.c.l.b16 %v818
        %v2295 = vunpack.c.h.b16 %v818
        %v2296 = vunpack.c.l.b16 %v819
        %v2297 = vunpack.c.h.b16 %v819
        %v2298 = vunpack.c.l.b16 %v820
        %v2299 = vunpack.c.h.b16 %v820
        %v2300 = vunpack.c.l.b16 %v821
        %v2301 = vunpack.c.h.b16 %v821
        %v2302 = vunpack.c.l.b16 %v822
        %v2303 = vunpack.c.h.b16 %v822
        %v2304 = vunpack.c.l.b16 %v823
        %v2305 = vunpack.c.h.b16 %v823
        %v2306 = vunpack.c.l.b16 %v824
        %v2307 = vunpack.c.h.b16 %v824
        %v2308 = vunpack.c.l.b16 %v825
        %v2309 = vunpack.c.h.b16 %v825
        %v2310 = vunpack.c.l.b16 %v826
        %v2311 = vunpack.c.h.b16 %v826
        %v2312 = vunpack.c.l.b16 %v827
        %v2313 = vunpack.c.h.b16 %v827
        %v2314 = vunpack.c.l.b16 %v828
        %v2315 = vunpack.c.h.b16 %v828
        %v2316 = vunpack.c.l.b16 %v829
        %v2317 = vunpack.c.h.b16 %v829
        %v2318 = vunpack.c.l.b16 %v830
        %v2319 = vunpack.c.h.b16 %v830
        %v2320 = vunpack.c.l.b16 %v831
        %v2321 = vunpack.c.h.b16 %v831
        %v2322 = vunpack.c.l.b16 %v832
        %v2323 = vunpack.c.h.b16 %v832
        %v2324 = vunpack.c.l.b16 %v833
        %v2325 = vunpack.c.h.b16 %v833
        %v2326 = vunpack.c.l.b16 %v834
        %v2327 = vunpack.c.h.b16 %v834
        %v2328 = vunpack.c.l.b16 %v835
        %v2329 = vunpack.c.h.b16 %v835
        %v2330 = vunpack.c.l.b16 %v836
        %v2331 = vunpack.c.h.b16 %v836
        %v2332 = vunpack.c.l.b16 %v837
        %v2333 = vunpack.c.h.b16 %v837
        %v2334 = vunpack.c.l.b16 %v838
        %v2335 = vunpack.c.h.b16 %v838
        %v2336 = vunpack.c.l.b16 %v839
        %v2337 = vunpack.c.h.b16 %v839
        %v2338 = vunpack.c.l.b16 %v840
        %v2339 = vunpack.c.h.b16 %v840
        %v2340 = vunpack.c.l.b16 %v841
        %v2341 = vunpack.c.h.b16 %v841
        %v2342 = vunpack.c.l.b16 %v842
        %v2343 = vunpack.c.h.b16 %v842
        %v2344 = vunpack.c.l.b16 %v843
        %v2345 = vunpack.c.h.b16 %v843
        %v2346 = vunpack.c.l.b16 %v844
        %v2347 = vunpack.c.h.b16 %v844
        %v2348 = vunpack.c.l.b16 %v845
        %v2349 = vunpack.c.h.b16 %v845
        %v2350 = vunpack.c.l.b16 %v846
        %v2351 = vunpack.c.h.b16 %v846
        %v2352 = vunpack.c.l.b16 %v847
        %v2353 = vunpack.c.h.b16 %v847
        %v2354 = vunpack.c.l.b16 %v848
        %v2355 = vunpack.c.h.b16 %v848
        %v2356 = vunpack.c.l.b16 %v849
        %v2357 = vunpack.c.h.b16 %v849
        %v2358 = vunpack.c.l.b16 %v850
        %v2359 = vunpack.c.h.b16 %v850
        %v2360 = vunpack.c.l.b16 %v851
        %v2361 = vunpack.c.h.b16 %v851
        %v2362 = vunpack.c.l.b16 %v852
        %v2363 = vunpack.c.h.b16 %v852
        %v2364 = vunpack.c.l.b16 %v853
        %v2365 = vunpack.c.h.b16 %v853
        %v2366 = vunpack.c.l.b16 %v854
        %v2367 = vunpack.c.h.b16 %v854
        %v2368 = vunpack.c.l.b16 %v855
        %v2369 = vunpack.c.h.b16 %v855
        %v2370 = vunpack.c.l.b16 %v856
        %v2371 = vunpack.c.h.b16 %v856
        %v2372 = vunpack.c.l.b16 %v857
        %v2373 = vunpack.c.h.b16 %v857
        %v2374 = vunpack.c.l.b16 %v858
        %v2375 = vunpack.c.h.b16 %v858
        %v2376 = vunpack.c.l.b16 %v859
        %v2377 = vunpack.c.h.b16 %v859
        %v2378 = vunpack.c.l.b16 %v860
        %v2379 = vunpack.c.h.b16 %v860
        %v2380 = vunpack.c.l.b16 %v861
        %v2381 = vunpack.c.h.b16 %v861
        %v2382 = vunpack.c.l.b16 %v862
        %v2383 = vunpack.c.h.b16 %v862
        %v2384 = vunpack.c.l.b16 %v863
        %v2385 = vunpack.c.h.b16 %v863
        %v2386 = vunpack.c.l.b16 %v864
        %v2387 = vunpack.c.h.b16 %v864
        %v2388 = vunpack.c.l.b16 %v865
        %v2389 = vunpack.c.h.b16 %v865
        %v2390 = vunpack.c.l.b16 %v866
        %v2391 = vunpack.c.h.b16 %v866
        %v2392 = vunpack.c.l.b16 %v867
        %v2393 = vunpack.c.h.b16 %v867
        %v2394 = vunpack.c.l.b16 %v868
        %v2395 = vunpack.c.h.b16 %v868
        %v2396 = vunpack.c.l.b16 %v869
        %v2397 = vunpack.c.h.b16 %v869
        %v2398 = vunpack.c.l.b16 %v870
        %v2399 = vunpack.c.h.b16 %v870
        %v2400 = vunpack.c.l.b16 %v871
        %v2401 = vunpack.c.h.b16 %v871
        %v2402 = vunpack.c.l.b16 %v872
        %v2403 = vunpack.c.h.b16 %v872
        %v2404 = vunpack.c.l.b16 %v873
        %v2405 = vunpack.c.h.b16 %v873
        %v2406 = vunpack.c.l.b16 %v874
        %v2407 = vunpack.c.h.b16 %v874
        %v2408 = vunpack.c.l.b16 %v875
        %v2409 = vunpack.c.h.b16 %v875
        %v2410 = vunpack.c.l.b16 %v876
        %v2411 = vunpack.c.h.b16 %v876
        %v2412 = vunpack.c.l.b16 %v877
        %v2413 = vunpack.c.h.b16 %v877
        %v2414 = vunpack.c.l.b16 %v878
        %v2415 = vunpack.c.h.b16 %v878
        %v2416 = vunpack.c.l.b16 %v879
        %v2417 = vunpack.c.h.b16 %v879
        %v2418 = vunpack.c.l.b16 %v880
        %v2419 = vunpack.c.h.b16 %v880
        %v2420 = vunpack.c.l.b16 %v881
        %v2421 = vunpack.c.h.b16 %v881
        %v2422 = vunpack.c.l.b16 %v882
        %v2423 = vunpack.c.h.b16 %v882
        %v2424 = vunpack.c.l.b16 %v883
        %v2425 = vunpack.c.h.b16 %v883
        %v2426 = vunpack.c.l.b16 %v884
        %v2427 = vunpack.c.h.b16 %v884
        %v2428 = vunpack.c.l.b16 %v885
        %v2429 = vunpack.c.h.b16 %v885
        %v2430 = vunpack.c.l.b16 %v886
        %v2431 = vunpack.c.h.b16 %v886
        %v2432 = vunpack.c.l.b16 %v887
        %v2433 = vunpack.c.h.b16 %v887
        %v2434 = vunpack.c.l.b16 %v888
        %v2435 = vunpack.c.h.b16 %v888
        %v2436 = vunpack.c.l.b16 %v889
        %v2437 = vunpack.c.h.b16 %v889
        %v2438 = vunpack.c.l.b16 %v890
        %v2439 = vunpack.c.h.b16 %v890
        %v2440 = vunpack.c.l.b16 %v891
        %v2441 = vunpack.c.h.b16 %v891
        %v2442 = vunpack.c.l.b16 %v892
        %v2443 = vunpack.c.h.b16 %v892
        %v2444 = vunpack.c.l.b16 %v893
        %v2445 = vunpack.c.h.b16 %v893
        %v2446 = vunpack.c.l.b16 %v894
        %v2447 = vunpack.c.h.b16 %v894
        %v2448 = vunpack.c.l.b16 %v895
        %v2449 = vunpack.c.h.b16 %v895
        %v2450 = vpack.c.b16 %v1434, %v1426
        %v2451 = vpack.c.b16 %v1435, %v1427
        %v2452 = vpack.c.b16 %v1436, %v1428
        %v2453 = vpack.c.b16 %v1437, %v1429
        %v2454 = vpack.c.b16 %v1438, %v1430
        %v2455 = vpack.c.b16 %v1439, %v1431
        %v2456 = vpack.c.b16 %v1440, %v1432
        %v2457 = vpack.c.b16 %v1441, %v1433
        %v2458 = vpack.c.b16 %v1450, %v1442
        %v2459 = vpack.c.b16 %v1451, %v1443
        %v2460 = vpack.c.b16 %v1452, %v1444
        %v2461 = vpack.c.b16 %v1453, %v1445
        %v2462 = vpack.c.b16 %v1454, %v1446
        %v2463 = vpack.c.b16 %v1455, %v1447
        %v2464 = vpack.c.b16 %v1456, %v1448
        %v2465 = vpack.c.b16 %v1457, %v1449
        %v2466 = vpack.c.b16 %v1466, %v1458
        %v2467 = vpack.c.b16 %v1467, %v1459
        %v2468 = vpack.c.b16 %v1468, %v1460
        %v2469 = vpack.c.b16 %v1469, %v1461
        %v2470 = vpack.c.b16 %v1470, %v1462
        %v2471 = vpack.c.b16 %v1471, %v1463
        %v2472 = vpack.c.b16 %v1472, %v1464
        %v2473 = vpack.c.b16 %v1473, %v1465
        %v2474 = vpack.c.b16 %v1482, %v1474
        %v2475 = vpack.c.b16 %v1483, %v1475
        %v2476 = vpack.c.b16 %v1484, %v1476
        %v2477 = vpack.c.b16 %v1485, %v1477
        %v2478 = vpack.c.b16 %v1486, %v1478
        %v2479 = vpack.c.b16 %v1487, %v1479
        %v2480 = vpack.c.b16 %v1488, %v1480
        %v2481 = vpack.c.b16 %v1489, %v1481
        %v2482 = vpack.c.b16 %v1498, %v1490
        %v2483 = vpack.c.b16 %v1499, %v1491
        %v2484 = vpack.c.b16 %v1500, %v1492
        %v2485 = vpack.c.b16 %v1501, %v1493
        %v2486 = vpack.c.b16 %v1502, %v1494
        %v2487 = vpack.c.b16 %v1503, %v1495
        %v2488 = vpack.c.b16 %v1504, %v1496
        %v2489 = vpack.c.b16 %v1505, %v1497
        %v2490 = vpack.c.b16 %v1514, %v1506
        %v2491 = vpack.c.b16 %v1515, %v1507
        %v2492 = vpack.c.b16 %v1516, %v1508
        %v2493 = vpack.c.b16 %v1517, %v1509
        %v2494 = vpack.c.b16 %v1518, %v1510
        %v2495 = vpack.c.b16 %v1519, %v1511
        %v2496 = vpack.c.b16 %v1520, %v1512
        %v2497 = vpack.c.b16 %v1521, %v1513
        %v2498 = vpack.c.b16 %v1530, %v1522
        %v2499 = vpack.c.b16 %v1531, %v1523
        %v2500 = vpack.c.b16 %v1532, %v1524
        %v2501 = vpack.c.b16 %v1533, %v1525
        %v2502 = vpack.c.b16 %v1534, %v1526
        %v2503 = vpack.c.b16 %v1535, %v1527
        %v2504 = vpack.c.b16 %v1536, %v1528
        %v2505 = vpack.c.b16 %v1537, %v1529
        %v2506 = vpack.c.b16 %v1546, %v1538
        %v2507 = vpack.c.b16 %v1547, %v1539
        %v2508 = vpack.c.b16 %v1548, %v1540
        %v2509 = vpack.c.b16 %v1549, %v1541
        %v2510 = vpack.c.b16 %v1550, %v1542
        %v2511 = vpack.c.b16 %v1551, %v1543
        %v2512 = vpack.c.b16 %v1552, %v1544
        %v2513 = vpack.c.b16 %v1553, %v1545
        %v2514 = vpack.c.b16 %v1562, %v1554
        %v2515 = vpack.c.b16 %v1563, %v1555
        %v2516 = vpack.c.b16 %v1564, %v1556
        %v2517 = vpack.c.b16 %v1565, %v1557
        %v2518 = vpack.c.b16 %v1566, %v1558
        %v2519 = vpack.c.b16 %v1567, %v1559
        %v2520 = vpack.c.b16 %v1568, %v1560
        %v2521 = vpack.c.b16 %v1569, %v1561
        %v2522 = vpack.c.b16 %v1578, %v1570
        %v2523 = vpack.c.b16 %v1579, %v1571
        %v2524 = vpack.c.b16 %v1580, %v1572
        %v2525 = vpack.c.b16 %v1581, %v1573
        %v2526 = vpack.c.b16 %v1582, %v1574
        %v2527 = vpack.c.b16 %v1583, %v1575
        %v2528 = vpack.c.b16 %v1584, %v1576
        %v2529 = vpack.c.b16 %v1585, %v1577
        %v2530 = vpack.c.b16 %v1594, %v1586
        %v2531 = vpack.c.b16 %v1595, %v1587
        %v2532 = vpack.c.b16 %v1596, %v1588
        %v2533 = vpack.c.b16 %v1597, %v1589
        %v2534 = vpack.c.b16 %v1598, %v1590
        %v2535 = vpack.c.b16 %v1599, %v1591
        %v2536 = vpack.c.b16 %v1600, %v1592
        %v2537 = vpack.c.b16 %v1601, %v1593
        %v2538 = vpack.c.b16 %v1610, %v1602
        %v2539 = vpack.c.b16 %v1611, %v1603
        %v2540 = vpack.c.b16 %v1612, %v1604
        %v2541 = vpack.c.b16 %v1613, %v1605
        %v2542 = vpack.c.b16 %v1614, %v1606
        %v2543 = vpack.c.b16 %v1615, %v1607
        %v2544 = vpack.c.b16 %v1616, %v1608
        %v2545 = vpack.c.b16 %v1617, %v1609
        %v2546 = vpack.c.b16 %v1626, %v1618
        %v2547 = vpack.c.b16 %v1627, %v1619
        %v2548 = vpack.c.b16 %v1628, %v1620
        %v2549 = vpack.c.b16 %v1629, %v1621
        %v2550 = vpack.c.b16 %v1630, %v1622
        %v2551 = vpack.c.b16 %v1631, %v1623
        %v2552 = vpack.c.b16 %v1632, %v1624
        %v2553 = vpack.c.b16 %v1633, %v1625
        %v2554 = vpack.c.b16 %v1642, %v1634
        %v2555 = vpack.c.b16 %v1643, %v1635
        %v2556 = vpack.c.b16 %v1644, %v1636
        %v2557 = vpack.c.b16 %v1645, %v1637
        %v2558 = vpack.c.b16 %v1646, %v1638
        %v2559 = vpack.c.b16 %v1647, %v1639
        %v2560 = vpack.c.b16 %v1648, %v1640
        %v2561 = vpack.c.b16 %v1649, %v1641
        %v2562 = vpack.c.b16 %v1658, %v1650
        %v2563 = vpack.c.b16 %v1659, %v1651
        %v2564 = vpack.c.b16 %v1660, %v1652
        %v2565 = vpack.c.b16 %v1661, %v1653
        %v2566 = vpack.c.b16 %v1662, %v1654
        %v2567 = vpack.c.b16 %v1663, %v1655
        %v2568 = vpack.c.b16 %v1664, %v1656
        %v2569 = vpack.c.b16 %v1665, %v1657
        %v2570 = vpack.c.b16 %v1674, %v1666
        %v2571 = vpack.c.b16 %v1675, %v1667
        %v2572 = vpack.c.b16 %v1676, %v1668
        %v2573 = vpack.c.b16 %v1677, %v1669
        %v2574 = vpack.c.b16 %v1678, %v1670
        %v2575 = vpack.c.b16 %v1679, %v1671
        %v2576 = vpack.c.b16 %v1680, %v1672
        %v2577 = vpack.c.b16 %v1681, %v1673
        %v2578 = vpack.c.b16 %v1690, %v1682
        %v2579 = vpack.c.b16 %v1691, %v1683
        %v2580 = vpack.c.b16 %v1692, %v1684
        %v2581 = vpack.c.b16 %v1693, %v1685
        %v2582 = vpack.c.b16 %v1694, %v1686
        %v2583 = vpack.c.b16 %v1695, %v1687
        %v2584 = vpack.c.b16 %v1696, %v1688
        %v2585 = vpack.c.b16 %v1697, %v1689
        %v2586 = vpack.c.b16 %v1706, %v1698
        %v2587 = vpack.c.b16 %v1707, %v1699
        %v2588 = vpack.c.b16 %v1708, %v1700
        %v2589 = vpack.c.b16 %v1709, %v1701
        %v2590 = vpack.c.b16 %v1710, %v1702
        %v2591 = vpack.c.b16 %v1711, %v1703
        %v2592 = vpack.c.b16 %v1712, %v1704
        %v2593 = vpack.c.b16 %v1713, %v1705
        %v2594 = vpack.c.b16 %v1722, %v1714
        %v2595 = vpack.c.b16 %v1723, %v1715
        %v2596 = vpack.c.b16 %v1724, %v1716
        %v2597 = vpack.c.b16 %v1725, %v1717
        %v2598 = vpack.c.b16 %v1726, %v1718
        %v2599 = vpack.c.b16 %v1727, %v1719
        %v2600 = vpack.c.b16 %v1728, %v1720
        %v2601 = vpack.c.b16 %v1729, %v1721
        %v2602 = vpack.c.b16 %v1738, %v1730
        %v2603 = vpack.c.b16 %v1739, %v1731
        %v2604 = vpack.c.b16 %v1740, %v1732
        %v2605 = vpack.c.b16 %v1741, %v1733
        %v2606 = vpack.c.b16 %v1742, %v1734
        %v2607 = vpack.c.b16 %v1743, %v1735
        %v2608 = vpack.c.b16 %v1744, %v1736
        %v2609 = vpack.c.b16 %v1745, %v1737
        %v2610 = vpack.c.b16 %v1754, %v1746
        %v2611 = vpack.c.b16 %v1755, %v1747
        %v2612 = vpack.c.b16 %v1756, %v1748
        %v2613 = vpack.c.b16 %v1757, %v1749
        %v2614 = vpack.c.b16 %v1758, %v1750
        %v2615 = vpack.c.b16 %v1759, %v1751
        %v2616 = vpack.c.b16 %v1760, %v1752
        %v2617 = vpack.c.b16 %v1761, %v1753
        %v2618 = vpack.c.b16 %v1770, %v1762
        %v2619 = vpack.c.b16 %v1771, %v1763
        %v2620 = vpack.c.b16 %v1772, %v1764
        %v2621 = vpack.c.b16 %v1773, %v1765
        %v2622 = vpack.c.b16 %v1774, %v1766
        %v2623 = vpack.c.b16 %v1775, %v1767
        %v2624 = vpack.c.b16 %v1776, %v1768
        %v2625 = vpack.c.b16 %v1777, %v1769
        %v2626 = vpack.c.b16 %v1786, %v1778
        %v2627 = vpack.c.b16 %v1787, %v1779
        %v2628 = vpack.c.b16 %v1788, %v1780
        %v2629 = vpack.c.b16 %v1789, %v1781
        %v2630 = vpack.c.b16 %v1790, %v1782
        %v2631 = vpack.c.b16 %v1791, %v1783
        %v2632 = vpack.c.b16 %v1792, %v1784
        %v2633 = vpack.c.b16 %v1793, %v1785
        %v2634 = vpack.c.b16 %v1802, %v1794
        %v2635 = vpack.c.b16 %v1803, %v1795
        %v2636 = vpack.c.b16 %v1804, %v1796
        %v2637 = vpack.c.b16 %v1805, %v1797
        %v2638 = vpack.c.b16 %v1806, %v1798
        %v2639 = vpack.c.b16 %v1807, %v1799
        %v2640 = vpack.c.b16 %v1808, %v1800
        %v2641 = vpack.c.b16 %v1809, %v1801
        %v2642 = vpack.c.b16 %v1818, %v1810
        %v2643 = vpack.c.b16 %v1819, %v1811
        %v2644 = vpack.c.b16 %v1820, %v1812
        %v2645 = vpack.c.b16 %v1821, %v1813
        %v2646 = vpack.c.b16 %v1822, %v1814
        %v2647 = vpack.c.b16 %v1823, %v1815
        %v2648 = vpack.c.b16 %v1824, %v1816
        %v2649 = vpack.c.b16 %v1825, %v1817
        %v2650 = vpack.c.b16 %v1834, %v1826
        %v2651 = vpack.c.b16 %v1835, %v1827
        %v2652 = vpack.c.b16 %v1836, %v1828
        %v2653 = vpack.c.b16 %v1837, %v1829
        %v2654 = vpack.c.b16 %v1838, %v1830
        %v2655 = vpack.c.b16 %v1839, %v1831
        %v2656 = vpack.c.b16 %v1840, %v1832
        %v2657 = vpack.c.b16 %v1841, %v1833
        %v2658 = vpack.c.b16 %v1850, %v1842
        %v2659 = vpack.c.b16 %v1851, %v1843
        %v2660 = vpack.c.b16 %v1852, %v1844
        %v2661 = vpack.c.b16 %v1853, %v1845
        %v2662 = vpack.c.b16 %v1854, %v1846
        %v2663 = vpack.c.b16 %v1855, %v1847
        %v2664 = vpack.c.b16 %v1856, %v1848
        %v2665 = vpack.c.b16 %v1857, %v1849
        %v2666 = vpack.c.b16 %v1866, %v1858
        %v2667 = vpack.c.b16 %v1867, %v1859
        %v2668 = vpack.c.b16 %v1868, %v1860
        %v2669 = vpack.c.b16 %v1869, %v1861
        %v2670 = vpack.c.b16 %v1870, %v1862
        %v2671 = vpack.c.b16 %v1871, %v1863
        %v2672 = vpack.c.b16 %v1872, %v1864
        %v2673 = vpack.c.b16 %v1873, %v1865
        %v2674 = vpack.c.b16 %v1882, %v1874
        %v2675 = vpack.c.b16 %v1883, %v1875
        %v2676 = vpack.c.b16 %v1884, %v1876
        %v2677 = vpack.c.b16 %v1885, %v1877
        %v2678 = vpack.c.b16 %v1886, %v1878
        %v2679 = vpack.c.b16 %v1887, %v1879
        %v2680 = vpack.c.b16 %v1888, %v1880
        %v2681 = vpack.c.b16 %v1889, %v1881
        %v2682 = vpack.c.b16 %v1898, %v1890
        %v2683 = vpack.c.b16 %v1899, %v1891
        %v2684 = vpack.c.b16 %v1900, %v1892
        %v2685 = vpack.c.b16 %v1901, %v1893
        %v2686 = vpack.c.b16 %v1902, %v1894
        %v2687 = vpack.c.b16 %v1903, %v1895
        %v2688 = vpack.c.b16 %v1904, %v1896
        %v2689 = vpack.c.b16 %v1905, %v1897
        %v2690 = vpack.c.b16 %v1914, %v1906
        %v2691 = vpack.c.b16 %v1915, %v1907
        %v2692 = vpack.c.b16 %v1916, %v1908
        %v2693 = vpack.c.b16 %v1917, %v1909
        %v2694 = vpack.c.b16 %v1918, %v1910
        %v2695 = vpack.c.b16 %v1919, %v1911
        %v2696 = vpack.c.b16 %v1920, %v1912
        %v2697 = vpack.c.b16 %v1921, %v1913
        %v2698 = vpack.c.b16 %v1930, %v1922
        %v2699 = vpack.c.b16 %v1931, %v1923
        %v2700 = vpack.c.b16 %v1932, %v1924
        %v2701 = vpack.c.b16 %v1933, %v1925
        %v2702 = vpack.c.b16 %v1934, %v1926
        %v2703 = vpack.c.b16 %v1935, %v1927
        %v2704 = vpack.c.b16 %v1936, %v1928
        %v2705 = vpack.c.b16 %v1937, %v1929
        %v2706 = vpack.c.b16 %v1946, %v1938
        %v2707 = vpack.c.b16 %v1947, %v1939
        %v2708 = vpack.c.b16 %v1948, %v1940
        %v2709 = vpack.c.b16 %v1949, %v1941
        %v2710 = vpack.c.b16 %v1950, %v1942
        %v2711 = vpack.c.b16 %v1951, %v1943
        %v2712 = vpack.c.b16 %v1952, %v1944
        %v2713 = vpack.c.b16 %v1953, %v1945
        %v2714 = vpack.c.b16 %v1962, %v1954
        %v2715 = vpack.c.b16 %v1963, %v1955
        %v2716 = vpack.c.b16 %v1964, %v1956
        %v2717 = vpack.c.b16 %v1965, %v1957
        %v2718 = vpack.c.b16 %v1966, %v1958
        %v2719 = vpack.c.b16 %v1967, %v1959
        %v2720 = vpack.c.b16 %v1968, %v1960
        %v2721 = vpack.c.b16 %v1969, %v1961
        %v2722 = vpack.c.b16 %v1978, %v1970
        %v2723 = vpack.c.b16 %v1979, %v1971
        %v2724 = vpack.c.b16 %v1980, %v1972
        %v2725 = vpack.c.b16 %v1981, %v1973
        %v2726 = vpack.c.b16 %v1982, %v1974
        %v2727 = vpack.c.b16 %v1983, %v1975
        %v2728 = vpack.c.b16 %v1984, %v1976
        %v2729 = vpack.c.b16 %v1985, %v1977
        %v2730 = vpack.c.b16 %v1994, %v1986
        %v2731 = vpack.c.b16 %v1995, %v1987
        %v2732 = vpack.c.b16 %v1996, %v1988
        %v2733 = vpack.c.b16 %v1997, %v1989
        %v2734 = vpack.c.b16 %v1998, %v1990
        %v2735 = vpack.c.b16 %v1999, %v1991
        %v2736 = vpack.c.b16 %v2000, %v1992
        %v2737 = vpack.c.b16 %v2001, %v1993
        %v2738 = vpack.c.b16 %v2010, %v2002
        %v2739 = vpack.c.b16 %v2011, %v2003
        %v2740 = vpack.c.b16 %v2012, %v2004
        %v2741 = vpack.c.b16 %v2013, %v2005
        %v2742 = vpack.c.b16 %v2014, %v2006
        %v2743 = vpack.c.b16 %v2015, %v2007
        %v2744 = vpack.c.b16 %v2016, %v2008
        %v2745 = vpack.c.b16 %v2017, %v2009
        %v2746 = vpack.c.b16 %v2026, %v2018
        %v2747 = vpack.c.b16 %v2027, %v2019
        %v2748 = vpack.c.b16 %v2028, %v2020
        %v2749 = vpack.c.b16 %v2029, %v2021
        %v2750 = vpack.c.b16 %v2030, %v2022
        %v2751 = vpack.c.b16 %v2031, %v2023
        %v2752 = vpack.c.b16 %v2032, %v2024
        %v2753 = vpack.c.b16 %v2033, %v2025
        %v2754 = vpack.c.b16 %v2042, %v2034
        %v2755 = vpack.c.b16 %v2043, %v2035
        %v2756 = vpack.c.b16 %v2044, %v2036
        %v2757 = vpack.c.b16 %v2045, %v2037
        %v2758 = vpack.c.b16 %v2046, %v2038
        %v2759 = vpack.c.b16 %v2047, %v2039
        %v2760 = vpack.c.b16 %v2048, %v2040
        %v2761 = vpack.c.b16 %v2049, %v2041
        %v2762 = vpack.c.b16 %v2058, %v2050
        %v2763 = vpack.c.b16 %v2059, %v2051
        %v2764 = vpack.c.b16 %v2060, %v2052
        %v2765 = vpack.c.b16 %v2061, %v2053
        %v2766 = vpack.c.b16 %v2062, %v2054
        %v2767 = vpack.c.b16 %v2063, %v2055
        %v2768 = vpack.c.b16 %v2064, %v2056
        %v2769 = vpack.c.b16 %v2065, %v2057
        %v2770 = vpack.c.b16 %v2074, %v2066
        %v2771 = vpack.c.b16 %v2075, %v2067
        %v2772 = vpack.c.b16 %v2076, %v2068
        %v2773 = vpack.c.b16 %v2077, %v2069
        %v2774 = vpack.c.b16 %v2078, %v2070
        %v2775 = vpack.c.b16 %v2079, %v2071
        %v2776 = vpack.c.b16 %v2080, %v2072
        %v2777 = vpack.c.b16 %v2081, %v2073
        %v2778 = vpack.c.b16 %v2090, %v2082
        %v2779 = vpack.c.b16 %v2091, %v2083
        %v2780 = vpack.c.b16 %v2092, %v2084
        %v2781 = vpack.c.b16 %v2093, %v2085
        %v2782 = vpack.c.b16 %v2094, %v2086
        %v2783 = vpack.c.b16 %v2095, %v2087
        %v2784 = vpack.c.b16 %v2096, %v2088
        %v2785 = vpack.c.b16 %v2097, %v2089
        %v2786 = vpack.c.b16 %v2106, %v2098
        %v2787 = vpack.c.b16 %v2107, %v2099
        %v2788 = vpack.c.b16 %v2108, %v2100
        %v2789 = vpack.c.b16 %v2109, %v2101
        %v2790 = vpack.c.b16 %v2110, %v2102
        %v2791 = vpack.c.b16 %v2111, %v2103
        %v2792 = vpack.c.b16 %v2112, %v2104
        %v2793 = vpack.c.b16 %v2113, %v2105
        %v2794 = vpack.c.b16 %v2122, %v2114
        %v2795 = vpack.c.b16 %v2123, %v2115
        %v2796 = vpack.c.b16 %v2124, %v2116
        %v2797 = vpack.c.b16 %v2125, %v2117
        %v2798 = vpack.c.b16 %v2126, %v2118
        %v2799 = vpack.c.b16 %v2127, %v2119
        %v2800 = vpack.c.b16 %v2128, %v2120
        %v2801 = vpack.c.b16 %v2129, %v2121
        %v2802 = vpack.c.b16 %v2138, %v2130
        %v2803 = vpack.c.b16 %v2139, %v2131
        %v2804 = vpack.c.b16 %v2140, %v2132
        %v2805 = vpack.c.b16 %v2141, %v2133
        %v2806 = vpack.c.b16 %v2142, %v2134
        %v2807 = vpack.c.b16 %v2143, %v2135
        %v2808 = vpack.c.b16 %v2144, %v2136
        %v2809 = vpack.c.b16 %v2145, %v2137
        %v2810 = vpack.c.b16 %v2154, %v2146
        %v2811 = vpack.c.b16 %v2155, %v2147
        %v2812 = vpack.c.b16 %v2156, %v2148
        %v2813 = vpack.c.b16 %v2157, %v2149
        %v2814 = vpack.c.b16 %v2158, %v2150
        %v2815 = vpack.c.b16 %v2159, %v2151
        %v2816 = vpack.c.b16 %v2160, %v2152
        %v2817 = vpack.c.b16 %v2161, %v2153
        %v2818 = vpack.c.b16 %v2170, %v2162
        %v2819 = vpack.c.b16 %v2171, %v2163
        %v2820 = vpack.c.b16 %v2172, %v2164
        %v2821 = vpack.c.b16 %v2173, %v2165
        %v2822 = vpack.c.b16 %v2174, %v2166
        %v2823 = vpack.c.b16 %v2175, %v2167
        %v2824 = vpack.c.b16 %v2176, %v2168
        %v2825 = vpack.c.b16 %v2177, %v2169
        %v2826 = vpack.c.b16 %v2186, %v2178
        %v2827 = vpack.c.b16 %v2187, %v2179
        %v2828 = vpack.c.b16 %v2188, %v2180
        %v2829 = vpack.c.b16 %v2189, %v2181
        %v2830 = vpack.c.b16 %v2190, %v2182
        %v2831 = vpack.c.b16 %v2191, %v2183
        %v2832 = vpack.c.b16 %v2192, %v2184
        %v2833 = vpack.c.b16 %v2193, %v2185
        %v2834 = vpack.c.b16 %v2202, %v2194
        %v2835 = vpack.c.b16 %v2203, %v2195
        %v2836 = vpack.c.b16 %v2204, %v2196
        %v2837 = vpack.c.b16 %v2205, %v2197
        %v2838 = vpack.c.b16 %v2206, %v2198
        %v2839 = vpack.c.b16 %v2207, %v2199
        %v2840 = vpack.c.b16 %v2208, %v2200
        %v2841 = vpack.c.b16 %v2209, %v2201
        %v2842 = vpack.c.b16 %v2218, %v2210
        %v2843 = vpack.c.b16 %v2219, %v2211
        %v2844 = vpack.c.b16 %v2220, %v2212
        %v2845 = vpack.c.b16 %v2221, %v2213
        %v2846 = vpack.c.b16 %v2222, %v2214
        %v2847 = vpack.c.b16 %v2223, %v2215
        %v2848 = vpack.c.b16 %v2224, %v2216
        %v2849 = vpack.c.b16 %v2225, %v2217
        %v2850 = vpack.c.b16 %v2234, %v2226
        %v2851 = vpack.c.b16 %v2235, %v2227
        %v2852 = vpack.c.b16 %v2236, %v2228
        %v2853 = vpack.c.b16 %v2237, %v2229
        %v2854 = vpack.c.b16 %v2238, %v2230
        %v2855 = vpack.c.b16 %v2239, %v2231
        %v2856 = vpack.c.b16 %v2240, %v2232
        %v2857 = vpack.c.b16 %v2241, %v2233
        %v2858 = vpack.c.b16 %v2250, %v2242
        %v2859 = vpack.c.b16 %v2251, %v2243
        %v2860 = vpack.c.b16 %v2252, %v2244
        %v2861 = vpack.c.b16 %v2253, %v2245
        %v2862 = vpack.c.b16 %v2254, %v2246
        %v2863 = vpack.c.b16 %v2255, %v2247
        %v2864 = vpack.c.b16 %v2256, %v2248
        %v2865 = vpack.c.b16 %v2257, %v2249
        %v2866 = vpack.c.b16 %v2266, %v2258
        %v2867 = vpack.c.b16 %v2267, %v2259
        %v2868 = vpack.c.b16 %v2268, %v2260
        %v2869 = vpack.c.b16 %v2269, %v2261
        %v2870 = vpack.c.b16 %v2270, %v2262
        %v2871 = vpack.c.b16 %v2271, %v2263
        %v2872 = vpack.c.b16 %v2272, %v2264
        %v2873 = vpack.c.b16 %v2273, %v2265
        %v2874 = vpack.c.b16 %v2282, %v2274
        %v2875 = vpack.c.b16 %v2283, %v2275
        %v2876 = vpack.c.b16 %v2284, %v2276
        %v2877 = vpack.c.b16 %v2285, %v2277
        %v2878 = vpack.c.b16 %v2286, %v2278
        %v2879 = vpack.c.b16 %v2287, %v2279
        %v2880 = vpack.c.b16 %v2288, %v2280
        %v2881 = vpack.c.b16 %v2289, %v2281
        %v2882 = vpack.c.b16 %v2298, %v2290
        %v2883 = vpack.c.b16 %v2299, %v2291
        %v2884 = vpack.c.b16 %v2300, %v2292
        %v2885 = vpack.c.b16 %v2301, %v2293
        %v2886 = vpack.c.b16 %v2302, %v2294
        %v2887 = vpack.c.b16 %v2303, %v2295
        %v2888 = vpack.c.b16 %v2304, %v2296
        %v2889 = vpack.c.b16 %v2305, %v2297
        %v2890 = vpack.c.b16 %v2314, %v2306
        %v2891 = vpack.c.b16 %v2315, %v2307
        %v2892 = vpack.c.b16 %v2316, %v2308
        %v2893 = vpack.c.b16 %v2317, %v2309
        %v2894 = vpack.c.b16 %v2318, %v2310
        %v2895 = vpack.c.b16 %v2319, %v2311
        %v2896 = vpack.c.b16 %v2320, %v2312
        %v2897 = vpack.c.b16 %v2321, %v2313
        %v2898 = vpack.c.b16 %v2330, %v2322
        %v2899 = vpack.c.b16 %v2331, %v2323
        %v2900 = vpack.c.b16 %v2332, %v2324
        %v2901 = vpack.c.b16 %v2333, %v2325
        %v2902 = vpack.c.b16 %v2334, %v2326
        %v2903 = vpack.c.b16 %v2335, %v2327
        %v2904 = vpack.c.b16 %v2336, %v2328
        %v2905 = vpack.c.b16 %v2337, %v2329
        %v2906 = vpack.c.b16 %v2346, %v2338
        %v2907 = vpack.c.b16 %v2347, %v2339
        %v2908 = vpack.c.b16 %v2348, %v2340
        %v2909 = vpack.c.b16 %v2349, %v2341
        %v2910 = vpack.c.b16 %v2350, %v2342
        %v2911 = vpack.c.b16 %v2351, %v2343
        %v2912 = vpack.c.b16 %v2352, %v2344
        %v2913 = vpack.c.b16 %v2353, %v2345
        %v2914 = vpack.c.b16 %v2362, %v2354
        %v2915 = vpack.c.b16 %v2363, %v2355
        %v2916 = vpack.c.b16 %v2364, %v2356
        %v2917 = vpack.c.b16 %v2365, %v2357
        %v2918 = vpack.c.b16 %v2366, %v2358
        %v2919 = vpack.c.b16 %v2367, %v2359
        %v2920 = vpack.c.b16 %v2368, %v2360
        %v2921 = vpack.c.b16 %v2369, %v2361
        %v2922 = vpack.c.b16 %v2378, %v2370
        %v2923 = vpack.c.b16 %v2379, %v2371
        %v2924 = vpack.c.b16 %v2380, %v2372
        %v2925 = vpack.c.b16 %v2381, %v2373
        %v2926 = vpack.c.b16 %v2382, %v2374
        %v2927 = vpack.c.b16 %v2383, %v2375
        %v2928 = vpack.c.b16 %v2384, %v2376
        %v2929 = vpack.c.b16 %v2385, %v2377
        %v2930 = vpack.c.b16 %v2394, %v2386
        %v2931 = vpack.c.b16 %v2395, %v2387
        %v2932 = vpack.c.b16 %v2396, %v2388
        %v2933 = vpack.c.b16 %v2397, %v2389
        %v2934 = vpack.c.b16 %v2398, %v2390
        %v2935 = vpack.c.b16 %v2399, %v2391
        %v2936 = vpack.c.b16 %v2400, %v2392
        %v2937 = vpack.c.b16 %v2401, %v2393
        %v2938 = vpack.c.b16 %v2410, %v2402
        %v2939 = vpack.c.b16 %v2411, %v2403
        %v2940 = vpack.c.b16 %v2412, %v2404
        %v2941 = vpack.c.b16 %v2413, %v2405
        %v2942 = vpack.c.b16 %v2414, %v2406
        %v2943 = vpack.c.b16 %v2415, %v2407
        %v2944 = vpack.c.b16 %v2416, %v2408
        %v2945 = vpack.c.b16 %v2417, %v2409
        %v2946 = vpack.c.b16 %v2426, %v2418
        %v2947 = vpack.c.b16 %v2427, %v2419
        %v2948 = vpack.c.b16 %v2428, %v2420
        %v2949 = vpack.c.b16 %v2429, %v2421
        %v2950 = vpack.c.b16 %v2430, %v2422
        %v2951 = vpack.c.b16 %v2431, %v2423
        %v2952 = vpack.c.b16 %v2432, %v2424
        %v2953 = vpack.c.b16 %v2433, %v2425
        %v2954 = vpack.c.b16 %v2442, %v2434
        %v2955 = vpack.c.b16 %v2443, %v2435
        %v2956 = vpack.c.b16 %v2444, %v2436
        %v2957 = vpack.c.b16 %v2445, %v2437
        %v2958 = vpack.c.b16 %v2446, %v2438
        %v2959 = vpack.c.b16 %v2447, %v2439
        %v2960 = vpack.c.b16 %v2448, %v2440
        %v2961 = vpack.c.b16 %v2449, %v2441
        %3474 = vmatpush.bf16.msra.mxu0 %v2506
        %3475 = vmatpush.bf16.msra.mxu0 %v2498
        %3476 = vmatpush.bf16.msra.mxu0 %v2490
        %3477 = vmatpush.bf16.msra.mxu0 %v2482
        %3478 = vmatpush.bf16.msra.mxu0 %v2474
        %3479 = vmatpush.bf16.msra.mxu0 %v2466
        %3480 = vmatpush.bf16.msra.mxu0 %v2458
        %3481 = vmatpush.bf16.msra.mxu0 %v2450
        %3482 = vmatmul.bf16.gmra.mxu0 %v376
        %v3483 = vpop.f32.mrf.mxu0
        %v3484 = vadd.f32 %v898, %v3483
        %v3485 = vpop.f32.mrf.mxu0
        %v3486 = vadd.f32 %v898, %v3485
        %3487 = vdwg.mxu0
        %3488 = vmatpush.bf16.msra.mxu0 %v2570
        %3489 = vmatpush.bf16.msra.mxu0 %v2562
        %3490 = vmatpush.bf16.msra.mxu0 %v2554
        %3491 = vmatpush.bf16.msra.mxu0 %v2546
        %3492 = vmatpush.bf16.msra.mxu0 %v2538
        %3493 = vmatpush.bf16.msra.mxu0 %v2530
        %3494 = vmatpush.bf16.msra.mxu0 %v2522
        %3495 = vmatpush.bf16.msra.mxu0 %v2514
        %3496 = vmatmul.bf16.gmra.mxu0 %v377
        %v3497 = vpop.f32.mrf.mxu0
        %v3498 = vadd.f32 %v3484, %v3497
        %v3499 = vpop.f32.mrf.mxu0
        %v3500 = vadd.f32 %v3486, %v3499
        %3501 = vdwg.mxu0
        %3502 = vmatpush.bf16.msra.mxu0 %v2634
        %3503 = vmatpush.bf16.msra.mxu0 %v2626
        %3504 = vmatpush.bf16.msra.mxu0 %v2618
        %3505 = vmatpush.bf16.msra.mxu0 %v2610
        %3506 = vmatpush.bf16.msra.mxu0 %v2602
        %3507 = vmatpush.bf16.msra.mxu0 %v2594
        %3508 = vmatpush.bf16.msra.mxu0 %v2586
        %3509 = vmatpush.bf16.msra.mxu0 %v2578
        %3510 = vmatmul.bf16.gmra.mxu0 %v378
        %v3511 = vpop.f32.mrf.mxu0
        %v3512 = vadd.f32 %v3498, %v3511
        %v3513 = vpop.f32.mrf.mxu0
        %v3514 = vadd.f32 %v3500, %v3513
        %3515 = vdwg.mxu0
        %3516 = vmatpush.bf16.msra.mxu0 %v2698
        %3517 = vmatpush.bf16.msra.mxu0 %v2690
        %3518 = vmatpush.bf16.msra.mxu0 %v2682
        %3519 = vmatpush.bf16.msra.mxu0 %v2674
        %3520 = vmatpush.bf16.msra.mxu0 %v2666
        %3521 = vmatpush.bf16.msra.mxu0 %v2658
        %3522 = vmatpush.bf16.msra.mxu0 %v2650
        %3523 = vmatpush.bf16.msra.mxu0 %v2642
        %3524 = vmatmul.bf16.gmra.mxu0 %v379
        %v3525 = vpop.f32.mrf.mxu0
        %v3526 = vadd.f32 %v3512, %v3525
        %v3527 = vpop.f32.mrf.mxu0
        %v3528 = vadd.f32 %v3514, %v3527
        %3529 = vdwg.mxu0
        %3530 = vmatpush.bf16.msra.mxu0 %v2762
        %3531 = vmatpush.bf16.msra.mxu0 %v2754
        %3532 = vmatpush.bf16.msra.mxu0 %v2746
        %3533 = vmatpush.bf16.msra.mxu0 %v2738
        %3534 = vmatpush.bf16.msra.mxu0 %v2730
        %3535 = vmatpush.bf16.msra.mxu0 %v2722
        %3536 = vmatpush.bf16.msra.mxu0 %v2714
        %3537 = vmatpush.bf16.msra.mxu0 %v2706
        %3538 = vmatmul.bf16.gmra.mxu0 %v380
        %v3539 = vpop.f32.mrf.mxu0
        %v3540 = vadd.f32 %v3526, %v3539
        %v3541 = vpop.f32.mrf.mxu0
        %v3542 = vadd.f32 %v3528, %v3541
        %3543 = vdwg.mxu0
        %3544 = vmatpush.bf16.msra.mxu0 %v2826
        %3545 = vmatpush.bf16.msra.mxu0 %v2818
        %3546 = vmatpush.bf16.msra.mxu0 %v2810
        %3547 = vmatpush.bf16.msra.mxu0 %v2802
        %3548 = vmatpush.bf16.msra.mxu0 %v2794
        %3549 = vmatpush.bf16.msra.mxu0 %v2786
        %3550 = vmatpush.bf16.msra.mxu0 %v2778
        %3551 = vmatpush.bf16.msra.mxu0 %v2770
        %3552 = vmatmul.bf16.gmra.mxu0 %v381
        %v3553 = vpop.f32.mrf.mxu0
        %v3554 = vadd.f32 %v3540, %v3553
        %v3555 = vpop.f32.mrf.mxu0
        %v3556 = vadd.f32 %v3542, %v3555
        %3557 = vdwg.mxu0
        %3558 = vmatpush.bf16.msra.mxu0 %v2890
        %3559 = vmatpush.bf16.msra.mxu0 %v2882
        %3560 = vmatpush.bf16.msra.mxu0 %v2874
        %3561 = vmatpush.bf16.msra.mxu0 %v2866
        %3562 = vmatpush.bf16.msra.mxu0 %v2858
        %3563 = vmatpush.bf16.msra.mxu0 %v2850
        %3564 = vmatpush.bf16.msra.mxu0 %v2842
        %3565 = vmatpush.bf16.msra.mxu0 %v2834
        %3566 = vmatmul.bf16.gmra.mxu0 %v382
        %v3567 = vpop.f32.mrf.mxu0
        %v3568 = vadd.f32 %v3554, %v3567
        %v3569 = vpop.f32.mrf.mxu0
        %v3570 = vadd.f32 %v3556, %v3569
        %3571 = vdwg.mxu0
        %3572 = vmatpush.bf16.msra.mxu0 %v2954
        %3573 = vmatpush.bf16.msra.mxu0 %v2946
        %3574 = vmatpush.bf16.msra.mxu0 %v2938
        %3575 = vmatpush.bf16.msra.mxu0 %v2930
        %3576 = vmatpush.bf16.msra.mxu0 %v2922
        %3577 = vmatpush.bf16.msra.mxu0 %v2914
        %3578 = vmatpush.bf16.msra.mxu0 %v2906
        %3579 = vmatpush.bf16.msra.mxu0 %v2898
        %3580 = vmatmul.bf16.gmra.mxu0 %v383
        %v3581 = vpop.f32.mrf.mxu0
        %v3582 = vadd.f32 %v3568, %v3581
        %v3583 = vpop.f32.mrf.mxu0
        %v3584 = vadd.f32 %v3570, %v3583
        %3585 = vdwg.mxu0
        %3586 = vmatpush.bf16.msra.mxu0 %v2507
        %3587 = vmatpush.bf16.msra.mxu0 %v2499
        %3588 = vmatpush.bf16.msra.mxu0 %v2491
        %3589 = vmatpush.bf16.msra.mxu0 %v2483
        %3590 = vmatpush.bf16.msra.mxu0 %v2475
        %3591 = vmatpush.bf16.msra.mxu0 %v2467
        %3592 = vmatpush.bf16.msra.mxu0 %v2459
        %3593 = vmatpush.bf16.msra.mxu0 %v2451
        %3594 = vmatmul.bf16.gmra.mxu0 %v376
        %v3595 = vpop.f32.mrf.mxu0
        %v3596 = vadd.f32 %v899, %v3595
        %v3597 = vpop.f32.mrf.mxu0
        %v3598 = vadd.f32 %v899, %v3597
        %3599 = vdwg.mxu0
        %3600 = vmatpush.bf16.msra.mxu0 %v2571
        %3601 = vmatpush.bf16.msra.mxu0 %v2563
        %3602 = vmatpush.bf16.msra.mxu0 %v2555
        %3603 = vmatpush.bf16.msra.mxu0 %v2547
        %3604 = vmatpush.bf16.msra.mxu0 %v2539
        %3605 = vmatpush.bf16.msra.mxu0 %v2531
        %3606 = vmatpush.bf16.msra.mxu0 %v2523
        %3607 = vmatpush.bf16.msra.mxu0 %v2515
        %3608 = vmatmul.bf16.gmra.mxu0 %v377
        %v3609 = vpop.f32.mrf.mxu0
        %v3610 = vadd.f32 %v3596, %v3609
        %v3611 = vpop.f32.mrf.mxu0
        %v3612 = vadd.f32 %v3598, %v3611
        %3613 = vdwg.mxu0
        %3614 = vmatpush.bf16.msra.mxu0 %v2635
        %3615 = vmatpush.bf16.msra.mxu0 %v2627
        %3616 = vmatpush.bf16.msra.mxu0 %v2619
        %3617 = vmatpush.bf16.msra.mxu0 %v2611
        %3618 = vmatpush.bf16.msra.mxu0 %v2603
        %3619 = vmatpush.bf16.msra.mxu0 %v2595
        %3620 = vmatpush.bf16.msra.mxu0 %v2587
        %3621 = vmatpush.bf16.msra.mxu0 %v2579
        %3622 = vmatmul.bf16.gmra.mxu0 %v378
        %v3623 = vpop.f32.mrf.mxu0
        %v3624 = vadd.f32 %v3610, %v3623
        %v3625 = vpop.f32.mrf.mxu0
        %v3626 = vadd.f32 %v3612, %v3625
        %3627 = vdwg.mxu0
        %3628 = vmatpush.bf16.msra.mxu0 %v2699
        %3629 = vmatpush.bf16.msra.mxu0 %v2691
        %3630 = vmatpush.bf16.msra.mxu0 %v2683
        %3631 = vmatpush.bf16.msra.mxu0 %v2675
        %3632 = vmatpush.bf16.msra.mxu0 %v2667
        %3633 = vmatpush.bf16.msra.mxu0 %v2659
        %3634 = vmatpush.bf16.msra.mxu0 %v2651
        %3635 = vmatpush.bf16.msra.mxu0 %v2643
        %3636 = vmatmul.bf16.gmra.mxu0 %v379
        %v3637 = vpop.f32.mrf.mxu0
        %v3638 = vadd.f32 %v3624, %v3637
        %v3639 = vpop.f32.mrf.mxu0
        %v3640 = vadd.f32 %v3626, %v3639
        %3641 = vdwg.mxu0
        %3642 = vmatpush.bf16.msra.mxu0 %v2763
        %3643 = vmatpush.bf16.msra.mxu0 %v2755
        %3644 = vmatpush.bf16.msra.mxu0 %v2747
        %3645 = vmatpush.bf16.msra.mxu0 %v2739
        %3646 = vmatpush.bf16.msra.mxu0 %v2731
        %3647 = vmatpush.bf16.msra.mxu0 %v2723
        %3648 = vmatpush.bf16.msra.mxu0 %v2715
        %3649 = vmatpush.bf16.msra.mxu0 %v2707
        %3650 = vmatmul.bf16.gmra.mxu0 %v380
        %v3651 = vpop.f32.mrf.mxu0
        %v3652 = vadd.f32 %v3638, %v3651
        %v3653 = vpop.f32.mrf.mxu0
        %v3654 = vadd.f32 %v3640, %v3653
        %3655 = vdwg.mxu0
        %3656 = vmatpush.bf16.msra.mxu0 %v2827
        %3657 = vmatpush.bf16.msra.mxu0 %v2819
        %3658 = vmatpush.bf16.msra.mxu0 %v2811
        %3659 = vmatpush.bf16.msra.mxu0 %v2803
        %3660 = vmatpush.bf16.msra.mxu0 %v2795
        %3661 = vmatpush.bf16.msra.mxu0 %v2787
        %3662 = vmatpush.bf16.msra.mxu0 %v2779
        %3663 = vmatpush.bf16.msra.mxu0 %v2771
        %3664 = vmatmul.bf16.gmra.mxu0 %v381
        %v3665 = vpop.f32.mrf.mxu0
        %v3666 = vadd.f32 %v3652, %v3665
        %v3667 = vpop.f32.mrf.mxu0
        %v3668 = vadd.f32 %v3654, %v3667
        %3669 = vdwg.mxu0
        %3670 = vmatpush.bf16.msra.mxu0 %v2891
        %3671 = vmatpush.bf16.msra.mxu0 %v2883
        %3672 = vmatpush.bf16.msra.mxu0 %v2875
        %3673 = vmatpush.bf16.msra.mxu0 %v2867
        %3674 = vmatpush.bf16.msra.mxu0 %v2859
        %3675 = vmatpush.bf16.msra.mxu0 %v2851
        %3676 = vmatpush.bf16.msra.mxu0 %v2843
        %3677 = vmatpush.bf16.msra.mxu0 %v2835
        %3678 = vmatmul.bf16.gmra.mxu0 %v382
        %v3679 = vpop.f32.mrf.mxu0
        %v3680 = vadd.f32 %v3666, %v3679
        %v3681 = vpop.f32.mrf.mxu0
        %v3682 = vadd.f32 %v3668, %v3681
        %3683 = vdwg.mxu0
        %3684 = vmatpush.bf16.msra.mxu0 %v2955
        %3685 = vmatpush.bf16.msra.mxu0 %v2947
        %3686 = vmatpush.bf16.msra.mxu0 %v2939
        %3687 = vmatpush.bf16.msra.mxu0 %v2931
        %3688 = vmatpush.bf16.msra.mxu0 %v2923
        %3689 = vmatpush.bf16.msra.mxu0 %v2915
        %3690 = vmatpush.bf16.msra.mxu0 %v2907
        %3691 = vmatpush.bf16.msra.mxu0 %v2899
        %3692 = vmatmul.bf16.gmra.mxu0 %v383
        %v3693 = vpop.f32.mrf.mxu0
        %v3694 = vadd.f32 %v3680, %v3693
        %v3695 = vpop.f32.mrf.mxu0
        %v3696 = vadd.f32 %v3682, %v3695
        %3697 = vdwg.mxu0
        %3698 = vmatpush.bf16.msra.mxu0 %v2508
        %3699 = vmatpush.bf16.msra.mxu0 %v2500
        %3700 = vmatpush.bf16.msra.mxu0 %v2492
        %3701 = vmatpush.bf16.msra.mxu0 %v2484
        %3702 = vmatpush.bf16.msra.mxu0 %v2476
        %3703 = vmatpush.bf16.msra.mxu0 %v2468
        %3704 = vmatpush.bf16.msra.mxu0 %v2460
        %3705 = vmatpush.bf16.msra.mxu0 %v2452
        %3706 = vmatmul.bf16.gmra.mxu0 %v376
        %v3707 = vpop.f32.mrf.mxu0
        %v3708 = vadd.f32 %v900, %v3707
        %v3709 = vpop.f32.mrf.mxu0
        %v3710 = vadd.f32 %v900, %v3709
        %3711 = vdwg.mxu0
        %3712 = vmatpush.bf16.msra.mxu0 %v2572
        %3713 = vmatpush.bf16.msra.mxu0 %v2564
        %3714 = vmatpush.bf16.msra.mxu0 %v2556
        %3715 = vmatpush.bf16.msra.mxu0 %v2548
        %3716 = vmatpush.bf16.msra.mxu0 %v2540
        %3717 = vmatpush.bf16.msra.mxu0 %v2532
        %3718 = vmatpush.bf16.msra.mxu0 %v2524
        %3719 = vmatpush.bf16.msra.mxu0 %v2516
        %3720 = vmatmul.bf16.gmra.mxu0 %v377
        %v3721 = vpop.f32.mrf.mxu0
        %v3722 = vadd.f32 %v3708, %v3721
        %v3723 = vpop.f32.mrf.mxu0
        %v3724 = vadd.f32 %v3710, %v3723
        %3725 = vdwg.mxu0
        %3726 = vmatpush.bf16.msra.mxu0 %v2636
        %3727 = vmatpush.bf16.msra.mxu0 %v2628
        %3728 = vmatpush.bf16.msra.mxu0 %v2620
        %3729 = vmatpush.bf16.msra.mxu0 %v2612
        %3730 = vmatpush.bf16.msra.mxu0 %v2604
        %3731 = vmatpush.bf16.msra.mxu0 %v2596
        %3732 = vmatpush.bf16.msra.mxu0 %v2588
        %3733 = vmatpush.bf16.msra.mxu0 %v2580
        %3734 = vmatmul.bf16.gmra.mxu0 %v378
        %v3735 = vpop.f32.mrf.mxu0
        %v3736 = vadd.f32 %v3722, %v3735
        %v3737 = vpop.f32.mrf.mxu0
        %v3738 = vadd.f32 %v3724, %v3737
        %3739 = vdwg.mxu0
        %3740 = vmatpush.bf16.msra.mxu0 %v2700
        %3741 = vmatpush.bf16.msra.mxu0 %v2692
        %3742 = vmatpush.bf16.msra.mxu0 %v2684
        %3743 = vmatpush.bf16.msra.mxu0 %v2676
        %3744 = vmatpush.bf16.msra.mxu0 %v2668
        %3745 = vmatpush.bf16.msra.mxu0 %v2660
        %3746 = vmatpush.bf16.msra.mxu0 %v2652
        %3747 = vmatpush.bf16.msra.mxu0 %v2644
        %3748 = vmatmul.bf16.gmra.mxu0 %v379
        %v3749 = vpop.f32.mrf.mxu0
        %v3750 = vadd.f32 %v3736, %v3749
        %v3751 = vpop.f32.mrf.mxu0
        %v3752 = vadd.f32 %v3738, %v3751
        %3753 = vdwg.mxu0
        %3754 = vmatpush.bf16.msra.mxu0 %v2764
        %3755 = vmatpush.bf16.msra.mxu0 %v2756
        %3756 = vmatpush.bf16.msra.mxu0 %v2748
        %3757 = vmatpush.bf16.msra.mxu0 %v2740
        %3758 = vmatpush.bf16.msra.mxu0 %v2732
        %3759 = vmatpush.bf16.msra.mxu0 %v2724
        %3760 = vmatpush.bf16.msra.mxu0 %v2716
        %3761 = vmatpush.bf16.msra.mxu0 %v2708
        %3762 = vmatmul.bf16.gmra.mxu0 %v380
        %v3763 = vpop.f32.mrf.mxu0
        %v3764 = vadd.f32 %v3750, %v3763
        %v3765 = vpop.f32.mrf.mxu0
        %v3766 = vadd.f32 %v3752, %v3765
        %3767 = vdwg.mxu0
        %3768 = vmatpush.bf16.msra.mxu0 %v2828
        %3769 = vmatpush.bf16.msra.mxu0 %v2820
        %3770 = vmatpush.bf16.msra.mxu0 %v2812
        %3771 = vmatpush.bf16.msra.mxu0 %v2804
        %3772 = vmatpush.bf16.msra.mxu0 %v2796
        %3773 = vmatpush.bf16.msra.mxu0 %v2788
        %3774 = vmatpush.bf16.msra.mxu0 %v2780
        %3775 = vmatpush.bf16.msra.mxu0 %v2772
        %3776 = vmatmul.bf16.gmra.mxu0 %v381
        %v3777 = vpop.f32.mrf.mxu0
        %v3778 = vadd.f32 %v3764, %v3777
        %v3779 = vpop.f32.mrf.mxu0
        %v3780 = vadd.f32 %v3766, %v3779
        %3781 = vdwg.mxu0
        %3782 = vmatpush.bf16.msra.mxu0 %v2892
        %3783 = vmatpush.bf16.msra.mxu0 %v2884
        %3784 = vmatpush.bf16.msra.mxu0 %v2876
        %3785 = vmatpush.bf16.msra.mxu0 %v2868
        %3786 = vmatpush.bf16.msra.mxu0 %v2860
        %3787 = vmatpush.bf16.msra.mxu0 %v2852
        %3788 = vmatpush.bf16.msra.mxu0 %v2844
        %3789 = vmatpush.bf16.msra.mxu0 %v2836
        %3790 = vmatmul.bf16.gmra.mxu0 %v382
        %v3791 = vpop.f32.mrf.mxu0
        %v3792 = vadd.f32 %v3778, %v3791
        %v3793 = vpop.f32.mrf.mxu0
        %v3794 = vadd.f32 %v3780, %v3793
        %3795 = vdwg.mxu0
        %3796 = vmatpush.bf16.msra.mxu0 %v2956
        %3797 = vmatpush.bf16.msra.mxu0 %v2948
        %3798 = vmatpush.bf16.msra.mxu0 %v2940
        %3799 = vmatpush.bf16.msra.mxu0 %v2932
        %3800 = vmatpush.bf16.msra.mxu0 %v2924
        %3801 = vmatpush.bf16.msra.mxu0 %v2916
        %3802 = vmatpush.bf16.msra.mxu0 %v2908
        %3803 = vmatpush.bf16.msra.mxu0 %v2900
        %3804 = vmatmul.bf16.gmra.mxu0 %v383
        %v3805 = vpop.f32.mrf.mxu0
        %v3806 = vadd.f32 %v3792, %v3805
        %v3807 = vpop.f32.mrf.mxu0
        %v3808 = vadd.f32 %v3794, %v3807
        %3809 = vdwg.mxu0
        %3810 = vmatpush.bf16.msra.mxu0 %v2509
        %3811 = vmatpush.bf16.msra.mxu0 %v2501
        %3812 = vmatpush.bf16.msra.mxu0 %v2493
        %3813 = vmatpush.bf16.msra.mxu0 %v2485
        %3814 = vmatpush.bf16.msra.mxu0 %v2477
        %3815 = vmatpush.bf16.msra.mxu0 %v2469
        %3816 = vmatpush.bf16.msra.mxu0 %v2461
        %3817 = vmatpush.bf16.msra.mxu0 %v2453
        %3818 = vmatmul.bf16.gmra.mxu0 %v376
        %v3819 = vpop.f32.mrf.mxu0
        %v3820 = vadd.f32 %v901, %v3819
        %v3821 = vpop.f32.mrf.mxu0
        %v3822 = vadd.f32 %v901, %v3821
        %3823 = vdwg.mxu0
        %3824 = vmatpush.bf16.msra.mxu0 %v2573
        %3825 = vmatpush.bf16.msra.mxu0 %v2565
        %3826 = vmatpush.bf16.msra.mxu0 %v2557
        %3827 = vmatpush.bf16.msra.mxu0 %v2549
        %3828 = vmatpush.bf16.msra.mxu0 %v2541
        %3829 = vmatpush.bf16.msra.mxu0 %v2533
        %3830 = vmatpush.bf16.msra.mxu0 %v2525
        %3831 = vmatpush.bf16.msra.mxu0 %v2517
        %3832 = vmatmul.bf16.gmra.mxu0 %v377
        %v3833 = vpop.f32.mrf.mxu0
        %v3834 = vadd.f32 %v3820, %v3833
        %v3835 = vpop.f32.mrf.mxu0
        %v3836 = vadd.f32 %v3822, %v3835
        %3837 = vdwg.mxu0
        %3838 = vmatpush.bf16.msra.mxu0 %v2637
        %3839 = vmatpush.bf16.msra.mxu0 %v2629
        %3840 = vmatpush.bf16.msra.mxu0 %v2621
        %3841 = vmatpush.bf16.msra.mxu0 %v2613
        %3842 = vmatpush.bf16.msra.mxu0 %v2605
        %3843 = vmatpush.bf16.msra.mxu0 %v2597
        %3844 = vmatpush.bf16.msra.mxu0 %v2589
        %3845 = vmatpush.bf16.msra.mxu0 %v2581
        %3846 = vmatmul.bf16.gmra.mxu0 %v378
        %v3847 = vpop.f32.mrf.mxu0
        %v3848 = vadd.f32 %v3834, %v3847
        %v3849 = vpop.f32.mrf.mxu0
        %v3850 = vadd.f32 %v3836, %v3849
        %3851 = vdwg.mxu0
        %3852 = vmatpush.bf16.msra.mxu0 %v2701
        %3853 = vmatpush.bf16.msra.mxu0 %v2693
        %3854 = vmatpush.bf16.msra.mxu0 %v2685
        %3855 = vmatpush.bf16.msra.mxu0 %v2677
        %3856 = vmatpush.bf16.msra.mxu0 %v2669
        %3857 = vmatpush.bf16.msra.mxu0 %v2661
        %3858 = vmatpush.bf16.msra.mxu0 %v2653
        %3859 = vmatpush.bf16.msra.mxu0 %v2645
        %3860 = vmatmul.bf16.gmra.mxu0 %v379
        %v3861 = vpop.f32.mrf.mxu0
        %v3862 = vadd.f32 %v3848, %v3861
        %v3863 = vpop.f32.mrf.mxu0
        %v3864 = vadd.f32 %v3850, %v3863
        %3865 = vdwg.mxu0
        %3866 = vmatpush.bf16.msra.mxu0 %v2765
        %3867 = vmatpush.bf16.msra.mxu0 %v2757
        %3868 = vmatpush.bf16.msra.mxu0 %v2749
        %3869 = vmatpush.bf16.msra.mxu0 %v2741
        %3870 = vmatpush.bf16.msra.mxu0 %v2733
        %3871 = vmatpush.bf16.msra.mxu0 %v2725
        %3872 = vmatpush.bf16.msra.mxu0 %v2717
        %3873 = vmatpush.bf16.msra.mxu0 %v2709
        %3874 = vmatmul.bf16.gmra.mxu0 %v380
        %v3875 = vpop.f32.mrf.mxu0
        %v3876 = vadd.f32 %v3862, %v3875
        %v3877 = vpop.f32.mrf.mxu0
        %v3878 = vadd.f32 %v3864, %v3877
        %3879 = vdwg.mxu0
        %3880 = vmatpush.bf16.msra.mxu0 %v2829
        %3881 = vmatpush.bf16.msra.mxu0 %v2821
        %3882 = vmatpush.bf16.msra.mxu0 %v2813
        %3883 = vmatpush.bf16.msra.mxu0 %v2805
        %3884 = vmatpush.bf16.msra.mxu0 %v2797
        %3885 = vmatpush.bf16.msra.mxu0 %v2789
        %3886 = vmatpush.bf16.msra.mxu0 %v2781
        %3887 = vmatpush.bf16.msra.mxu0 %v2773
        %3888 = vmatmul.bf16.gmra.mxu0 %v381
        %v3889 = vpop.f32.mrf.mxu0
        %v3890 = vadd.f32 %v3876, %v3889
        %v3891 = vpop.f32.mrf.mxu0
        %v3892 = vadd.f32 %v3878, %v3891
        %3893 = vdwg.mxu0
        %3894 = vmatpush.bf16.msra.mxu0 %v2893
        %3895 = vmatpush.bf16.msra.mxu0 %v2885
        %3896 = vmatpush.bf16.msra.mxu0 %v2877
        %3897 = vmatpush.bf16.msra.mxu0 %v2869
        %3898 = vmatpush.bf16.msra.mxu0 %v2861
        %3899 = vmatpush.bf16.msra.mxu0 %v2853
        %3900 = vmatpush.bf16.msra.mxu0 %v2845
        %3901 = vmatpush.bf16.msra.mxu0 %v2837
        %3902 = vmatmul.bf16.gmra.mxu0 %v382
        %v3903 = vpop.f32.mrf.mxu0
        %v3904 = vadd.f32 %v3890, %v3903
        %v3905 = vpop.f32.mrf.mxu0
        %v3906 = vadd.f32 %v3892, %v3905
        %3907 = vdwg.mxu0
        %3908 = vmatpush.bf16.msra.mxu0 %v2957
        %3909 = vmatpush.bf16.msra.mxu0 %v2949
        %3910 = vmatpush.bf16.msra.mxu0 %v2941
        %3911 = vmatpush.bf16.msra.mxu0 %v2933
        %3912 = vmatpush.bf16.msra.mxu0 %v2925
        %3913 = vmatpush.bf16.msra.mxu0 %v2917
        %3914 = vmatpush.bf16.msra.mxu0 %v2909
        %3915 = vmatpush.bf16.msra.mxu0 %v2901
        %3916 = vmatmul.bf16.gmra.mxu0 %v383
        %v3917 = vpop.f32.mrf.mxu0
        %v3918 = vadd.f32 %v3904, %v3917
        %v3919 = vpop.f32.mrf.mxu0
        %v3920 = vadd.f32 %v3906, %v3919
        %3921 = vdwg.mxu0
        %3922 = vmatpush.bf16.msra.mxu0 %v2510
        %3923 = vmatpush.bf16.msra.mxu0 %v2502
        %3924 = vmatpush.bf16.msra.mxu0 %v2494
        %3925 = vmatpush.bf16.msra.mxu0 %v2486
        %3926 = vmatpush.bf16.msra.mxu0 %v2478
        %3927 = vmatpush.bf16.msra.mxu0 %v2470
        %3928 = vmatpush.bf16.msra.mxu0 %v2462
        %3929 = vmatpush.bf16.msra.mxu0 %v2454
        %3930 = vmatmul.bf16.gmra.mxu0 %v376
        %v3931 = vpop.f32.mrf.mxu0
        %v3932 = vadd.f32 %v902, %v3931
        %v3933 = vpop.f32.mrf.mxu0
        %v3934 = vadd.f32 %v902, %v3933
        %3935 = vdwg.mxu0
        %3936 = vmatpush.bf16.msra.mxu0 %v2574
        %3937 = vmatpush.bf16.msra.mxu0 %v2566
        %3938 = vmatpush.bf16.msra.mxu0 %v2558
        %3939 = vmatpush.bf16.msra.mxu0 %v2550
        %3940 = vmatpush.bf16.msra.mxu0 %v2542
        %3941 = vmatpush.bf16.msra.mxu0 %v2534
        %3942 = vmatpush.bf16.msra.mxu0 %v2526
        %3943 = vmatpush.bf16.msra.mxu0 %v2518
        %3944 = vmatmul.bf16.gmra.mxu0 %v377
        %v3945 = vpop.f32.mrf.mxu0
        %v3946 = vadd.f32 %v3932, %v3945
        %v3947 = vpop.f32.mrf.mxu0
        %v3948 = vadd.f32 %v3934, %v3947
        %3949 = vdwg.mxu0
        %3950 = vmatpush.bf16.msra.mxu0 %v2638
        %3951 = vmatpush.bf16.msra.mxu0 %v2630
        %3952 = vmatpush.bf16.msra.mxu0 %v2622
        %3953 = vmatpush.bf16.msra.mxu0 %v2614
        %3954 = vmatpush.bf16.msra.mxu0 %v2606
        %3955 = vmatpush.bf16.msra.mxu0 %v2598
        %3956 = vmatpush.bf16.msra.mxu0 %v2590
        %3957 = vmatpush.bf16.msra.mxu0 %v2582
        %3958 = vmatmul.bf16.gmra.mxu0 %v378
        %v3959 = vpop.f32.mrf.mxu0
        %v3960 = vadd.f32 %v3946, %v3959
        %v3961 = vpop.f32.mrf.mxu0
        %v3962 = vadd.f32 %v3948, %v3961
        %3963 = vdwg.mxu0
        %3964 = vmatpush.bf16.msra.mxu0 %v2702
        %3965 = vmatpush.bf16.msra.mxu0 %v2694
        %3966 = vmatpush.bf16.msra.mxu0 %v2686
        %3967 = vmatpush.bf16.msra.mxu0 %v2678
        %3968 = vmatpush.bf16.msra.mxu0 %v2670
        %3969 = vmatpush.bf16.msra.mxu0 %v2662
        %3970 = vmatpush.bf16.msra.mxu0 %v2654
        %3971 = vmatpush.bf16.msra.mxu0 %v2646
        %3972 = vmatmul.bf16.gmra.mxu0 %v379
        %v3973 = vpop.f32.mrf.mxu0
        %v3974 = vadd.f32 %v3960, %v3973
        %v3975 = vpop.f32.mrf.mxu0
        %v3976 = vadd.f32 %v3962, %v3975
        %3977 = vdwg.mxu0
        %3978 = vmatpush.bf16.msra.mxu0 %v2766
        %3979 = vmatpush.bf16.msra.mxu0 %v2758
        %3980 = vmatpush.bf16.msra.mxu0 %v2750
        %3981 = vmatpush.bf16.msra.mxu0 %v2742
        %3982 = vmatpush.bf16.msra.mxu0 %v2734
        %3983 = vmatpush.bf16.msra.mxu0 %v2726
        %3984 = vmatpush.bf16.msra.mxu0 %v2718
        %3985 = vmatpush.bf16.msra.mxu0 %v2710
        %3986 = vmatmul.bf16.gmra.mxu0 %v380
        %v3987 = vpop.f32.mrf.mxu0
        %v3988 = vadd.f32 %v3974, %v3987
        %v3989 = vpop.f32.mrf.mxu0
        %v3990 = vadd.f32 %v3976, %v3989
        %3991 = vdwg.mxu0
        %3992 = vmatpush.bf16.msra.mxu0 %v2830
        %3993 = vmatpush.bf16.msra.mxu0 %v2822
        %3994 = vmatpush.bf16.msra.mxu0 %v2814
        %3995 = vmatpush.bf16.msra.mxu0 %v2806
        %3996 = vmatpush.bf16.msra.mxu0 %v2798
        %3997 = vmatpush.bf16.msra.mxu0 %v2790
        %3998 = vmatpush.bf16.msra.mxu0 %v2782
        %3999 = vmatpush.bf16.msra.mxu0 %v2774
        %4000 = vmatmul.bf16.gmra.mxu0 %v381
        %v4001 = vpop.f32.mrf.mxu0
        %v4002 = vadd.f32 %v3988, %v4001
        %v4003 = vpop.f32.mrf.mxu0
        %v4004 = vadd.f32 %v3990, %v4003
        %4005 = vdwg.mxu0
        %4006 = vmatpush.bf16.msra.mxu0 %v2894
        %4007 = vmatpush.bf16.msra.mxu0 %v2886
        %4008 = vmatpush.bf16.msra.mxu0 %v2878
        %4009 = vmatpush.bf16.msra.mxu0 %v2870
        %4010 = vmatpush.bf16.msra.mxu0 %v2862
        %4011 = vmatpush.bf16.msra.mxu0 %v2854
        %4012 = vmatpush.bf16.msra.mxu0 %v2846
        %4013 = vmatpush.bf16.msra.mxu0 %v2838
        %4014 = vmatmul.bf16.gmra.mxu0 %v382
        %v4015 = vpop.f32.mrf.mxu0
        %v4016 = vadd.f32 %v4002, %v4015
        %v4017 = vpop.f32.mrf.mxu0
        %v4018 = vadd.f32 %v4004, %v4017
        %4019 = vdwg.mxu0
        %4020 = vmatpush.bf16.msra.mxu0 %v2958
        %4021 = vmatpush.bf16.msra.mxu0 %v2950
        %4022 = vmatpush.bf16.msra.mxu0 %v2942
        %4023 = vmatpush.bf16.msra.mxu0 %v2934
        %4024 = vmatpush.bf16.msra.mxu0 %v2926
        %4025 = vmatpush.bf16.msra.mxu0 %v2918
        %4026 = vmatpush.bf16.msra.mxu0 %v2910
        %4027 = vmatpush.bf16.msra.mxu0 %v2902
        %4028 = vmatmul.bf16.gmra.mxu0 %v383
        %v4029 = vpop.f32.mrf.mxu0
        %v4030 = vadd.f32 %v4016, %v4029
        %v4031 = vpop.f32.mrf.mxu0
        %v4032 = vadd.f32 %v4018, %v4031
        %4033 = vdwg.mxu0
        %4034 = vmatpush.bf16.msra.mxu0 %v2511
        %4035 = vmatpush.bf16.msra.mxu0 %v2503
        %4036 = vmatpush.bf16.msra.mxu0 %v2495
        %4037 = vmatpush.bf16.msra.mxu0 %v2487
        %4038 = vmatpush.bf16.msra.mxu0 %v2479
        %4039 = vmatpush.bf16.msra.mxu0 %v2471
        %4040 = vmatpush.bf16.msra.mxu0 %v2463
        %4041 = vmatpush.bf16.msra.mxu0 %v2455
        %4042 = vmatmul.bf16.gmra.mxu0 %v376
        %v4043 = vpop.f32.mrf.mxu0
        %v4044 = vadd.f32 %v903, %v4043
        %v4045 = vpop.f32.mrf.mxu0
        %v4046 = vadd.f32 %v903, %v4045
        %4047 = vdwg.mxu0
        %4048 = vmatpush.bf16.msra.mxu0 %v2575
        %4049 = vmatpush.bf16.msra.mxu0 %v2567
        %4050 = vmatpush.bf16.msra.mxu0 %v2559
        %4051 = vmatpush.bf16.msra.mxu0 %v2551
        %4052 = vmatpush.bf16.msra.mxu0 %v2543
        %4053 = vmatpush.bf16.msra.mxu0 %v2535
        %4054 = vmatpush.bf16.msra.mxu0 %v2527
        %4055 = vmatpush.bf16.msra.mxu0 %v2519
        %4056 = vmatmul.bf16.gmra.mxu0 %v377
        %v4057 = vpop.f32.mrf.mxu0
        %v4058 = vadd.f32 %v4044, %v4057
        %v4059 = vpop.f32.mrf.mxu0
        %v4060 = vadd.f32 %v4046, %v4059
        %4061 = vdwg.mxu0
        %4062 = vmatpush.bf16.msra.mxu0 %v2639
        %4063 = vmatpush.bf16.msra.mxu0 %v2631
        %4064 = vmatpush.bf16.msra.mxu0 %v2623
        %4065 = vmatpush.bf16.msra.mxu0 %v2615
        %4066 = vmatpush.bf16.msra.mxu0 %v2607
        %4067 = vmatpush.bf16.msra.mxu0 %v2599
        %4068 = vmatpush.bf16.msra.mxu0 %v2591
        %4069 = vmatpush.bf16.msra.mxu0 %v2583
        %4070 = vmatmul.bf16.gmra.mxu0 %v378
        %v4071 = vpop.f32.mrf.mxu0
        %v4072 = vadd.f32 %v4058, %v4071
        %v4073 = vpop.f32.mrf.mxu0
        %v4074 = vadd.f32 %v4060, %v4073
        %4075 = vdwg.mxu0
        %4076 = vmatpush.bf16.msra.mxu0 %v2703
        %4077 = vmatpush.bf16.msra.mxu0 %v2695
        %4078 = vmatpush.bf16.msra.mxu0 %v2687
        %4079 = vmatpush.bf16.msra.mxu0 %v2679
        %4080 = vmatpush.bf16.msra.mxu0 %v2671
        %4081 = vmatpush.bf16.msra.mxu0 %v2663
        %4082 = vmatpush.bf16.msra.mxu0 %v2655
        %4083 = vmatpush.bf16.msra.mxu0 %v2647
        %4084 = vmatmul.bf16.gmra.mxu0 %v379
        %v4085 = vpop.f32.mrf.mxu0
        %v4086 = vadd.f32 %v4072, %v4085
        %v4087 = vpop.f32.mrf.mxu0
        %v4088 = vadd.f32 %v4074, %v4087
        %4089 = vdwg.mxu0
        %4090 = vmatpush.bf16.msra.mxu0 %v2767
        %4091 = vmatpush.bf16.msra.mxu0 %v2759
        %4092 = vmatpush.bf16.msra.mxu0 %v2751
        %4093 = vmatpush.bf16.msra.mxu0 %v2743
        %4094 = vmatpush.bf16.msra.mxu0 %v2735
        %4095 = vmatpush.bf16.msra.mxu0 %v2727
        %4096 = vmatpush.bf16.msra.mxu0 %v2719
        %4097 = vmatpush.bf16.msra.mxu0 %v2711
        %4098 = vmatmul.bf16.gmra.mxu0 %v380
        %v4099 = vpop.f32.mrf.mxu0
        %v4100 = vadd.f32 %v4086, %v4099
        %v4101 = vpop.f32.mrf.mxu0
        %v4102 = vadd.f32 %v4088, %v4101
        %4103 = vdwg.mxu0
        %4104 = vmatpush.bf16.msra.mxu0 %v2831
        %4105 = vmatpush.bf16.msra.mxu0 %v2823
        %4106 = vmatpush.bf16.msra.mxu0 %v2815
        %4107 = vmatpush.bf16.msra.mxu0 %v2807
        %4108 = vmatpush.bf16.msra.mxu0 %v2799
        %4109 = vmatpush.bf16.msra.mxu0 %v2791
        %4110 = vmatpush.bf16.msra.mxu0 %v2783
        %4111 = vmatpush.bf16.msra.mxu0 %v2775
        %4112 = vmatmul.bf16.gmra.mxu0 %v381
        %v4113 = vpop.f32.mrf.mxu0
        %v4114 = vadd.f32 %v4100, %v4113
        %v4115 = vpop.f32.mrf.mxu0
        %v4116 = vadd.f32 %v4102, %v4115
        %4117 = vdwg.mxu0
        %4118 = vmatpush.bf16.msra.mxu0 %v2895
        %4119 = vmatpush.bf16.msra.mxu0 %v2887
        %4120 = vmatpush.bf16.msra.mxu0 %v2879
        %4121 = vmatpush.bf16.msra.mxu0 %v2871
        %4122 = vmatpush.bf16.msra.mxu0 %v2863
        %4123 = vmatpush.bf16.msra.mxu0 %v2855
        %4124 = vmatpush.bf16.msra.mxu0 %v2847
        %4125 = vmatpush.bf16.msra.mxu0 %v2839
        %4126 = vmatmul.bf16.gmra.mxu0 %v382
        %v4127 = vpop.f32.mrf.mxu0
        %v4128 = vadd.f32 %v4114, %v4127
        %v4129 = vpop.f32.mrf.mxu0
        %v4130 = vadd.f32 %v4116, %v4129
        %4131 = vdwg.mxu0
        %4132 = vmatpush.bf16.msra.mxu0 %v2959
        %4133 = vmatpush.bf16.msra.mxu0 %v2951
        %4134 = vmatpush.bf16.msra.mxu0 %v2943
        %4135 = vmatpush.bf16.msra.mxu0 %v2935
        %4136 = vmatpush.bf16.msra.mxu0 %v2927
        %4137 = vmatpush.bf16.msra.mxu0 %v2919
        %4138 = vmatpush.bf16.msra.mxu0 %v2911
        %4139 = vmatpush.bf16.msra.mxu0 %v2903
        %4140 = vmatmul.bf16.gmra.mxu0 %v383
        %v4141 = vpop.f32.mrf.mxu0
        %v4142 = vadd.f32 %v4128, %v4141
        %v4143 = vpop.f32.mrf.mxu0
        %v4144 = vadd.f32 %v4130, %v4143
        %4145 = vdwg.mxu0
        %4146 = vmatpush.bf16.msra.mxu0 %v2512
        %4147 = vmatpush.bf16.msra.mxu0 %v2504
        %4148 = vmatpush.bf16.msra.mxu0 %v2496
        %4149 = vmatpush.bf16.msra.mxu0 %v2488
        %4150 = vmatpush.bf16.msra.mxu0 %v2480
        %4151 = vmatpush.bf16.msra.mxu0 %v2472
        %4152 = vmatpush.bf16.msra.mxu0 %v2464
        %4153 = vmatpush.bf16.msra.mxu0 %v2456
        %4154 = vmatmul.bf16.gmra.mxu0 %v376
        %v4155 = vpop.f32.mrf.mxu0
        %v4156 = vadd.f32 %v904, %v4155
        %v4157 = vpop.f32.mrf.mxu0
        %v4158 = vadd.f32 %v904, %v4157
        %4159 = vdwg.mxu0
        %4160 = vmatpush.bf16.msra.mxu0 %v2576
        %4161 = vmatpush.bf16.msra.mxu0 %v2568
        %4162 = vmatpush.bf16.msra.mxu0 %v2560
        %4163 = vmatpush.bf16.msra.mxu0 %v2552
        %4164 = vmatpush.bf16.msra.mxu0 %v2544
        %4165 = vmatpush.bf16.msra.mxu0 %v2536
        %4166 = vmatpush.bf16.msra.mxu0 %v2528
        %4167 = vmatpush.bf16.msra.mxu0 %v2520
        %4168 = vmatmul.bf16.gmra.mxu0 %v377
        %v4169 = vpop.f32.mrf.mxu0
        %v4170 = vadd.f32 %v4156, %v4169
        %v4171 = vpop.f32.mrf.mxu0
        %v4172 = vadd.f32 %v4158, %v4171
        %4173 = vdwg.mxu0
        %4174 = vmatpush.bf16.msra.mxu0 %v2640
        %4175 = vmatpush.bf16.msra.mxu0 %v2632
        %4176 = vmatpush.bf16.msra.mxu0 %v2624
        %4177 = vmatpush.bf16.msra.mxu0 %v2616
        %4178 = vmatpush.bf16.msra.mxu0 %v2608
        %4179 = vmatpush.bf16.msra.mxu0 %v2600
        %4180 = vmatpush.bf16.msra.mxu0 %v2592
        %4181 = vmatpush.bf16.msra.mxu0 %v2584
        %4182 = vmatmul.bf16.gmra.mxu0 %v378
        %v4183 = vpop.f32.mrf.mxu0
        %v4184 = vadd.f32 %v4170, %v4183
        %v4185 = vpop.f32.mrf.mxu0
        %v4186 = vadd.f32 %v4172, %v4185
        %4187 = vdwg.mxu0
        %4188 = vmatpush.bf16.msra.mxu0 %v2704
        %4189 = vmatpush.bf16.msra.mxu0 %v2696
        %4190 = vmatpush.bf16.msra.mxu0 %v2688
        %4191 = vmatpush.bf16.msra.mxu0 %v2680
        %4192 = vmatpush.bf16.msra.mxu0 %v2672
        %4193 = vmatpush.bf16.msra.mxu0 %v2664
        %4194 = vmatpush.bf16.msra.mxu0 %v2656
        %4195 = vmatpush.bf16.msra.mxu0 %v2648
        %4196 = vmatmul.bf16.gmra.mxu0 %v379
        %v4197 = vpop.f32.mrf.mxu0
        %v4198 = vadd.f32 %v4184, %v4197
        %v4199 = vpop.f32.mrf.mxu0
        %v4200 = vadd.f32 %v4186, %v4199
        %4201 = vdwg.mxu0
        %4202 = vmatpush.bf16.msra.mxu0 %v2768
        %4203 = vmatpush.bf16.msra.mxu0 %v2760
        %4204 = vmatpush.bf16.msra.mxu0 %v2752
        %4205 = vmatpush.bf16.msra.mxu0 %v2744
        %4206 = vmatpush.bf16.msra.mxu0 %v2736
        %4207 = vmatpush.bf16.msra.mxu0 %v2728
        %4208 = vmatpush.bf16.msra.mxu0 %v2720
        %4209 = vmatpush.bf16.msra.mxu0 %v2712
        %4210 = vmatmul.bf16.gmra.mxu0 %v380
        %v4211 = vpop.f32.mrf.mxu0
        %v4212 = vadd.f32 %v4198, %v4211
        %v4213 = vpop.f32.mrf.mxu0
        %v4214 = vadd.f32 %v4200, %v4213
        %4215 = vdwg.mxu0
        %4216 = vmatpush.bf16.msra.mxu0 %v2832
        %4217 = vmatpush.bf16.msra.mxu0 %v2824
        %4218 = vmatpush.bf16.msra.mxu0 %v2816
        %4219 = vmatpush.bf16.msra.mxu0 %v2808
        %4220 = vmatpush.bf16.msra.mxu0 %v2800
        %4221 = vmatpush.bf16.msra.mxu0 %v2792
        %4222 = vmatpush.bf16.msra.mxu0 %v2784
        %4223 = vmatpush.bf16.msra.mxu0 %v2776
        %4224 = vmatmul.bf16.gmra.mxu0 %v381
        %v4225 = vpop.f32.mrf.mxu0
        %v4226 = vadd.f32 %v4212, %v4225
        %v4227 = vpop.f32.mrf.mxu0
        %v4228 = vadd.f32 %v4214, %v4227
        %4229 = vdwg.mxu0
        %4230 = vmatpush.bf16.msra.mxu0 %v2896
        %4231 = vmatpush.bf16.msra.mxu0 %v2888
        %4232 = vmatpush.bf16.msra.mxu0 %v2880
        %4233 = vmatpush.bf16.msra.mxu0 %v2872
        %4234 = vmatpush.bf16.msra.mxu0 %v2864
        %4235 = vmatpush.bf16.msra.mxu0 %v2856
        %4236 = vmatpush.bf16.msra.mxu0 %v2848
        %4237 = vmatpush.bf16.msra.mxu0 %v2840
        %4238 = vmatmul.bf16.gmra.mxu0 %v382
        %v4239 = vpop.f32.mrf.mxu0
        %v4240 = vadd.f32 %v4226, %v4239
        %v4241 = vpop.f32.mrf.mxu0
        %v4242 = vadd.f32 %v4228, %v4241
        %4243 = vdwg.mxu0
        %4244 = vmatpush.bf16.msra.mxu0 %v2960
        %4245 = vmatpush.bf16.msra.mxu0 %v2952
        %4246 = vmatpush.bf16.msra.mxu0 %v2944
        %4247 = vmatpush.bf16.msra.mxu0 %v2936
        %4248 = vmatpush.bf16.msra.mxu0 %v2928
        %4249 = vmatpush.bf16.msra.mxu0 %v2920
        %4250 = vmatpush.bf16.msra.mxu0 %v2912
        %4251 = vmatpush.bf16.msra.mxu0 %v2904
        %4252 = vmatmul.bf16.gmra.mxu0 %v383
        %v4253 = vpop.f32.mrf.mxu0
        %v4254 = vadd.f32 %v4240, %v4253
        %v4255 = vpop.f32.mrf.mxu0
        %v4256 = vadd.f32 %v4242, %v4255
        %4257 = vdwg.mxu0
        %4258 = vmatpush.bf16.msra.mxu0 %v2513
        %4259 = vmatpush.bf16.msra.mxu0 %v2505
        %4260 = vmatpush.bf16.msra.mxu0 %v2497
        %4261 = vmatpush.bf16.msra.mxu0 %v2489
        %4262 = vmatpush.bf16.msra.mxu0 %v2481
        %4263 = vmatpush.bf16.msra.mxu0 %v2473
        %4264 = vmatpush.bf16.msra.mxu0 %v2465
        %4265 = vmatpush.bf16.msra.mxu0 %v2457
        %4266 = vmatmul.bf16.gmra.mxu0 %v376
        %v4267 = vpop.f32.mrf.mxu0
        %v4268 = vadd.f32 %v905, %v4267
        %v4269 = vpop.f32.mrf.mxu0
        %v4270 = vadd.f32 %v905, %v4269
        %4271 = vdwg.mxu0
        %4272 = vmatpush.bf16.msra.mxu0 %v2577
        %4273 = vmatpush.bf16.msra.mxu0 %v2569
        %4274 = vmatpush.bf16.msra.mxu0 %v2561
        %4275 = vmatpush.bf16.msra.mxu0 %v2553
        %4276 = vmatpush.bf16.msra.mxu0 %v2545
        %4277 = vmatpush.bf16.msra.mxu0 %v2537
        %4278 = vmatpush.bf16.msra.mxu0 %v2529
        %4279 = vmatpush.bf16.msra.mxu0 %v2521
        %4280 = vmatmul.bf16.gmra.mxu0 %v377
        %v4281 = vpop.f32.mrf.mxu0
        %v4282 = vadd.f32 %v4268, %v4281
        %v4283 = vpop.f32.mrf.mxu0
        %v4284 = vadd.f32 %v4270, %v4283
        %4285 = vdwg.mxu0
        %4286 = vmatpush.bf16.msra.mxu0 %v2641
        %4287 = vmatpush.bf16.msra.mxu0 %v2633
        %4288 = vmatpush.bf16.msra.mxu0 %v2625
        %4289 = vmatpush.bf16.msra.mxu0 %v2617
        %4290 = vmatpush.bf16.msra.mxu0 %v2609
        %4291 = vmatpush.bf16.msra.mxu0 %v2601
        %4292 = vmatpush.bf16.msra.mxu0 %v2593
        %4293 = vmatpush.bf16.msra.mxu0 %v2585
        %4294 = vmatmul.bf16.gmra.mxu0 %v378
        %v4295 = vpop.f32.mrf.mxu0
        %v4296 = vadd.f32 %v4282, %v4295
        %v4297 = vpop.f32.mrf.mxu0
        %v4298 = vadd.f32 %v4284, %v4297
        %4299 = vdwg.mxu0
        %4300 = vmatpush.bf16.msra.mxu0 %v2705
        %4301 = vmatpush.bf16.msra.mxu0 %v2697
        %4302 = vmatpush.bf16.msra.mxu0 %v2689
        %4303 = vmatpush.bf16.msra.mxu0 %v2681
        %4304 = vmatpush.bf16.msra.mxu0 %v2673
        %4305 = vmatpush.bf16.msra.mxu0 %v2665
        %4306 = vmatpush.bf16.msra.mxu0 %v2657
        %4307 = vmatpush.bf16.msra.mxu0 %v2649
        %4308 = vmatmul.bf16.gmra.mxu0 %v379
        %v4309 = vpop.f32.mrf.mxu0
        %v4310 = vadd.f32 %v4296, %v4309
        %v4311 = vpop.f32.mrf.mxu0
        %v4312 = vadd.f32 %v4298, %v4311
        %4313 = vdwg.mxu0
        %4314 = vmatpush.bf16.msra.mxu0 %v2769
        %4315 = vmatpush.bf16.msra.mxu0 %v2761
        %4316 = vmatpush.bf16.msra.mxu0 %v2753
        %4317 = vmatpush.bf16.msra.mxu0 %v2745
        %4318 = vmatpush.bf16.msra.mxu0 %v2737
        %4319 = vmatpush.bf16.msra.mxu0 %v2729
        %4320 = vmatpush.bf16.msra.mxu0 %v2721
        %4321 = vmatpush.bf16.msra.mxu0 %v2713
        %4322 = vmatmul.bf16.gmra.mxu0 %v380
        %v4323 = vpop.f32.mrf.mxu0
        %v4324 = vadd.f32 %v4310, %v4323
        %v4325 = vpop.f32.mrf.mxu0
        %v4326 = vadd.f32 %v4312, %v4325
        %4327 = vdwg.mxu0
        %4328 = vmatpush.bf16.msra.mxu0 %v2833
        %4329 = vmatpush.bf16.msra.mxu0 %v2825
        %4330 = vmatpush.bf16.msra.mxu0 %v2817
        %4331 = vmatpush.bf16.msra.mxu0 %v2809
        %4332 = vmatpush.bf16.msra.mxu0 %v2801
        %4333 = vmatpush.bf16.msra.mxu0 %v2793
        %4334 = vmatpush.bf16.msra.mxu0 %v2785
        %4335 = vmatpush.bf16.msra.mxu0 %v2777
        %4336 = vmatmul.bf16.gmra.mxu0 %v381
        %v4337 = vpop.f32.mrf.mxu0
        %v4338 = vadd.f32 %v4324, %v4337
        %v4339 = vpop.f32.mrf.mxu0
        %v4340 = vadd.f32 %v4326, %v4339
        %4341 = vdwg.mxu0
        %4342 = vmatpush.bf16.msra.mxu0 %v2897
        %4343 = vmatpush.bf16.msra.mxu0 %v2889
        %4344 = vmatpush.bf16.msra.mxu0 %v2881
        %4345 = vmatpush.bf16.msra.mxu0 %v2873
        %4346 = vmatpush.bf16.msra.mxu0 %v2865
        %4347 = vmatpush.bf16.msra.mxu0 %v2857
        %4348 = vmatpush.bf16.msra.mxu0 %v2849
        %4349 = vmatpush.bf16.msra.mxu0 %v2841
        %4350 = vmatmul.bf16.gmra.mxu0 %v382
        %v4351 = vpop.f32.mrf.mxu0
        %v4352 = vadd.f32 %v4338, %v4351
        %v4353 = vpop.f32.mrf.mxu0
        %v4354 = vadd.f32 %v4340, %v4353
        %4355 = vdwg.mxu0
        %4356 = vmatpush.bf16.msra.mxu0 %v2961
        %4357 = vmatpush.bf16.msra.mxu0 %v2953
        %4358 = vmatpush.bf16.msra.mxu0 %v2945
        %4359 = vmatpush.bf16.msra.mxu0 %v2937
        %4360 = vmatpush.bf16.msra.mxu0 %v2929
        %4361 = vmatpush.bf16.msra.mxu0 %v2921
        %4362 = vmatpush.bf16.msra.mxu0 %v2913
        %4363 = vmatpush.bf16.msra.mxu0 %v2905
        %4364 = vmatmul.bf16.gmra.mxu0 %v383
        %v4365 = vpop.f32.mrf.mxu0
        %v4366 = vadd.f32 %v4352, %v4365
        %v4367 = vpop.f32.mrf.mxu0
        %v4368 = vadd.f32 %v4354, %v4367
        %4369 = vdwg.mxu0
        %v4370 = vlaneseq
        %v4371 = vshrl.u32 %v4370, 7
        %v4372 = vadd.s32 %v4371, 8
        %vm4373 = vcmp.lt.s32.totalorder %v4371, 4
        %vm4374 = vcmp.lt.s32.totalorder %v4372, 4
        %v4375 = vsel %vm4373, %v3582, 0.0
        %v4376 = vsel %vm4373, %v3694, 0.0
        %v4377 = vsel %vm4373, %v3806, 0.0
        %v4378 = vsel %vm4373, %v3918, 0.0
        %v4379 = vsel %vm4373, %v4030, 0.0
        %v4380 = vsel %vm4373, %v4142, 0.0
        %v4381 = vsel %vm4373, %v4254, 0.0
        %v4382 = vsel %vm4373, %v4366, 0.0
        %v4383 = vsel %vm4374, %v3584, 0.0
        %v4384 = vsel %vm4374, %v3696, 0.0
        %v4385 = vsel %vm4374, %v3808, 0.0
        %v4386 = vsel %vm4374, %v3920, 0.0
        %v4387 = vsel %vm4374, %v4032, 0.0
        %v4388 = vsel %vm4374, %v4144, 0.0
        %v4389 = vsel %vm4374, %v4256, 0.0
        %v4390 = vsel %vm4374, %v4368, 0.0
        %v4391 = vadd.f32 %v4375, %v4383
        %v4392 = vrot.slane %v4391, 4
        %v4393 = vadd.f32 %v4391, %v4392
        %v4394 = vrot.slane %v4393, 2
        %v4395 = vadd.f32 %v4393, %v4394
        %v4396 = vrot.slane %v4395, 1
        %v4397 = vadd.f32 %v4395, %v4396
        %v4398 = vadd.f32 %v4376, %v4384
        %v4399 = vrot.slane %v4398, 4
        %v4400 = vadd.f32 %v4398, %v4399
        %v4401 = vrot.slane %v4400, 2
        %v4402 = vadd.f32 %v4400, %v4401
        %v4403 = vrot.slane %v4402, 1
        %v4404 = vadd.f32 %v4402, %v4403
        %v4405 = vadd.f32 %v4377, %v4385
        %v4406 = vrot.slane %v4405, 4
        %v4407 = vadd.f32 %v4405, %v4406
        %v4408 = vrot.slane %v4407, 2
        %v4409 = vadd.f32 %v4407, %v4408
        %v4410 = vrot.slane %v4409, 1
        %v4411 = vadd.f32 %v4409, %v4410
        %v4412 = vadd.f32 %v4378, %v4386
        %v4413 = vrot.slane %v4412, 4
        %v4414 = vadd.f32 %v4412, %v4413
        %v4415 = vrot.slane %v4414, 2
        %v4416 = vadd.f32 %v4414, %v4415
        %v4417 = vrot.slane %v4416, 1
        %v4418 = vadd.f32 %v4416, %v4417
        %v4419 = vadd.f32 %v4379, %v4387
        %v4420 = vrot.slane %v4419, 4
        %v4421 = vadd.f32 %v4419, %v4420
        %v4422 = vrot.slane %v4421, 2
        %v4423 = vadd.f32 %v4421, %v4422
        %v4424 = vrot.slane %v4423, 1
        %v4425 = vadd.f32 %v4423, %v4424
        %v4426 = vadd.f32 %v4380, %v4388
        %v4427 = vrot.slane %v4426, 4
        %v4428 = vadd.f32 %v4426, %v4427
        %v4429 = vrot.slane %v4428, 2
        %v4430 = vadd.f32 %v4428, %v4429
        %v4431 = vrot.slane %v4430, 1
        %v4432 = vadd.f32 %v4430, %v4431
        %v4433 = vadd.f32 %v4381, %v4389
        %v4434 = vrot.slane %v4433, 4
        %v4435 = vadd.f32 %v4433, %v4434
        %v4436 = vrot.slane %v4435, 2
        %v4437 = vadd.f32 %v4435, %v4436
        %v4438 = vrot.slane %v4437, 1
        %v4439 = vadd.f32 %v4437, %v4438
        %v4440 = vadd.f32 %v4382, %v4390
        %v4441 = vrot.slane %v4440, 4
        %v4442 = vadd.f32 %v4440, %v4441
        %v4443 = vrot.slane %v4442, 2
        %v4444 = vadd.f32 %v4442, %v4443
        %v4445 = vrot.slane %v4444, 1
        %v4446 = vadd.f32 %v4444, %v4445
        %v4447 = vmul.f32 %v4397, 0.25
        %v4448 = vmul.f32 %v4404, 0.25
        %v4449 = vmul.f32 %v4411, 0.25
        %v4450 = vmul.f32 %v4418, 0.25
        %v4451 = vmul.f32 %v4425, 0.25
        %v4452 = vmul.f32 %v4432, 0.25
        %v4453 = vmul.f32 %v4439, 0.25
        %v4454 = vmul.f32 %v4446, 0.25
        %v4455 = vsub.f32 %v3582, %v4447
        %v4456 = vsub.f32 %v3694, %v4448
        %v4457 = vsub.f32 %v3806, %v4449
        %v4458 = vsub.f32 %v3918, %v4450
        %v4459 = vsub.f32 %v4030, %v4451
        %v4460 = vsub.f32 %v4142, %v4452
        %v4461 = vsub.f32 %v4254, %v4453
        %v4462 = vsub.f32 %v4366, %v4454
        %v4463 = vsub.f32 %v3584, %v4447
        %v4464 = vsub.f32 %v3696, %v4448
        %v4465 = vsub.f32 %v3808, %v4449
        %v4466 = vsub.f32 %v3920, %v4450
        %v4467 = vsub.f32 %v4032, %v4451
        %v4468 = vsub.f32 %v4144, %v4452
        %v4469 = vsub.f32 %v4256, %v4453
        %v4470 = vsub.f32 %v4368, %v4454
        %v4471 = vsel %vm4373, %v4455, 0.0
        %v4472 = vsel %vm4373, %v4456, 0.0
        %v4473 = vsel %vm4373, %v4457, 0.0
        %v4474 = vsel %vm4373, %v4458, 0.0
        %v4475 = vsel %vm4373, %v4459, 0.0
        %v4476 = vsel %vm4373, %v4460, 0.0
        %v4477 = vsel %vm4373, %v4461, 0.0
        %v4478 = vsel %vm4373, %v4462, 0.0
        %v4479 = vsel %vm4374, %v4463, 0.0
        %v4480 = vsel %vm4374, %v4464, 0.0
        %v4481 = vsel %vm4374, %v4465, 0.0
        %v4482 = vsel %vm4374, %v4466, 0.0
        %v4483 = vsel %vm4374, %v4467, 0.0
        %v4484 = vsel %vm4374, %v4468, 0.0
        %v4485 = vsel %vm4374, %v4469, 0.0
        %v4486 = vsel %vm4374, %v4470, 0.0
        %v4487 = vmul.f32 %v4471, %v4471
        %v4488 = vmul.f32 %v4472, %v4472
        %v4489 = vmul.f32 %v4473, %v4473
        %v4490 = vmul.f32 %v4474, %v4474
        %v4491 = vmul.f32 %v4475, %v4475
        %v4492 = vmul.f32 %v4476, %v4476
        %v4493 = vmul.f32 %v4477, %v4477
        %v4494 = vmul.f32 %v4478, %v4478
        %v4495 = vmul.f32 %v4479, %v4479
        %v4496 = vmul.f32 %v4480, %v4480
        %v4497 = vmul.f32 %v4481, %v4481
        %v4498 = vmul.f32 %v4482, %v4482
        %v4499 = vmul.f32 %v4483, %v4483
        %v4500 = vmul.f32 %v4484, %v4484
        %v4501 = vmul.f32 %v4485, %v4485
        %v4502 = vmul.f32 %v4486, %v4486
        %v4503 = vadd.f32 %v4487, %v4495
        %v4504 = vrot.slane %v4503, 4
        %v4505 = vadd.f32 %v4503, %v4504
        %v4506 = vrot.slane %v4505, 2
        %v4507 = vadd.f32 %v4505, %v4506
        %v4508 = vrot.slane %v4507, 1
        %v4509 = vadd.f32 %v4507, %v4508
        %v4510 = vadd.f32 %v4488, %v4496
        %v4511 = vrot.slane %v4510, 4
        %v4512 = vadd.f32 %v4510, %v4511
        %v4513 = vrot.slane %v4512, 2
        %v4514 = vadd.f32 %v4512, %v4513
        %v4515 = vrot.slane %v4514, 1
        %v4516 = vadd.f32 %v4514, %v4515
        %v4517 = vadd.f32 %v4489, %v4497
        %v4518 = vrot.slane %v4517, 4
        %v4519 = vadd.f32 %v4517, %v4518
        %v4520 = vrot.slane %v4519, 2
        %v4521 = vadd.f32 %v4519, %v4520
        %v4522 = vrot.slane %v4521, 1
        %v4523 = vadd.f32 %v4521, %v4522
        %v4524 = vadd.f32 %v4490, %v4498
        %v4525 = vrot.slane %v4524, 4
        %v4526 = vadd.f32 %v4524, %v4525
        %v4527 = vrot.slane %v4526, 2
        %v4528 = vadd.f32 %v4526, %v4527
        %v4529 = vrot.slane %v4528, 1
        %v4530 = vadd.f32 %v4528, %v4529
        %v4531 = vadd.f32 %v4491, %v4499
        %v4532 = vrot.slane %v4531, 4
        %v4533 = vadd.f32 %v4531, %v4532
        %v4534 = vrot.slane %v4533, 2
        %v4535 = vadd.f32 %v4533, %v4534
        %v4536 = vrot.slane %v4535, 1
        %v4537 = vadd.f32 %v4535, %v4536
        %v4538 = vadd.f32 %v4492, %v4500
        %v4539 = vrot.slane %v4538, 4
        %v4540 = vadd.f32 %v4538, %v4539
        %v4541 = vrot.slane %v4540, 2
        %v4542 = vadd.f32 %v4540, %v4541
        %v4543 = vrot.slane %v4542, 1
        %v4544 = vadd.f32 %v4542, %v4543
        %v4545 = vadd.f32 %v4493, %v4501
        %v4546 = vrot.slane %v4545, 4
        %v4547 = vadd.f32 %v4545, %v4546
        %v4548 = vrot.slane %v4547, 2
        %v4549 = vadd.f32 %v4547, %v4548
        %v4550 = vrot.slane %v4549, 1
        %v4551 = vadd.f32 %v4549, %v4550
        %v4552 = vadd.f32 %v4494, %v4502
        %v4553 = vrot.slane %v4552, 4
        %v4554 = vadd.f32 %v4552, %v4553
        %v4555 = vrot.slane %v4554, 2
        %v4556 = vadd.f32 %v4554, %v4555
        %v4557 = vrot.slane %v4556, 1
        %v4558 = vadd.f32 %v4556, %v4557
        %v4559 = vmul.f32 %v4509, 0.25
        %v4560 = vmul.f32 %v4516, 0.25
        %v4561 = vmul.f32 %v4523, 0.25
        %v4562 = vmul.f32 %v4530, 0.25
        %v4563 = vmul.f32 %v4537, 0.25
        %v4564 = vmul.f32 %v4544, 0.25
        %v4565 = vmul.f32 %v4551, 0.25
        %v4566 = vmul.f32 %v4558, 0.25
        %v4567 = vld [vmem:[%s303] sm:$0xff]
        %v4568 = vadd.f32 %v4559, 1e-05
        %v4569 = vadd.f32 %v4560, 1e-05
        %v4570 = vadd.f32 %v4561, 1e-05
        %v4571 = vadd.f32 %v4562, 1e-05
        %v4572 = vadd.f32 %v4563, 1e-05
        %v4573 = vadd.f32 %v4564, 1e-05
        %v4574 = vadd.f32 %v4565, 1e-05
        %v4575 = vadd.f32 %v4566, 1e-05
        %v4576 = vrsqrt.pop %v4568
        %v4577 = vmul.f32 %v4576, %v4568
        %v4578 = vmul.f32 %v4577, %v4576
        %v4579 = vmul.f32 0.5, %v4578
        %v4580 = vsub.f32 1.5, %v4579
        %v4581 = vmul.f32 %v4576, %v4580
        %vm4582 = vweird.f32 %v4568
        %vm4583 = vweird.f32 %v4576
        %vm4584 = vmor %vm4582, %vm4583
        %v4585 = vsel %vm4584, %v4576, %v4581
        %v4586 = vrsqrt.pop %v4569
        %v4587 = vmul.f32 %v4586, %v4569
        %v4588 = vmul.f32 %v4587, %v4586
        %v4589 = vmul.f32 0.5, %v4588
        %v4590 = vsub.f32 1.5, %v4589
        %v4591 = vmul.f32 %v4586, %v4590
        %vm4592 = vweird.f32 %v4569
        %vm4593 = vweird.f32 %v4586
        %vm4594 = vmor %vm4592, %vm4593
        %v4595 = vsel %vm4594, %v4586, %v4591
        %v4596 = vrsqrt.pop %v4570
        %v4597 = vmul.f32 %v4596, %v4570
        %v4598 = vmul.f32 %v4597, %v4596
        %v4599 = vmul.f32 0.5, %v4598
        %v4600 = vsub.f32 1.5, %v4599
        %v4601 = vmul.f32 %v4596, %v4600
        %vm4602 = vweird.f32 %v4570
        %vm4603 = vweird.f32 %v4596
        %vm4604 = vmor %vm4602, %vm4603
        %v4605 = vsel %vm4604, %v4596, %v4601
        %v4606 = vrsqrt.pop %v4571
        %v4607 = vmul.f32 %v4606, %v4571
        %v4608 = vmul.f32 %v4607, %v4606
        %v4609 = vmul.f32 0.5, %v4608
        %v4610 = vsub.f32 1.5, %v4609
        %v4611 = vmul.f32 %v4606, %v4610
        %vm4612 = vweird.f32 %v4571
        %vm4613 = vweird.f32 %v4606
        %vm4614 = vmor %vm4612, %vm4613
        %v4615 = vsel %vm4614, %v4606, %v4611
        %v4616 = vrsqrt.pop %v4572
        %v4617 = vmul.f32 %v4616, %v4572
        %v4618 = vmul.f32 %v4617, %v4616
        %v4619 = vmul.f32 0.5, %v4618
        %v4620 = vsub.f32 1.5, %v4619
        %v4621 = vmul.f32 %v4616, %v4620
        %vm4622 = vweird.f32 %v4572
        %vm4623 = vweird.f32 %v4616
        %vm4624 = vmor %vm4622, %vm4623
        %v4625 = vsel %vm4624, %v4616, %v4621
        %v4626 = vrsqrt.pop %v4573
        %v4627 = vmul.f32 %v4626, %v4573
        %v4628 = vmul.f32 %v4627, %v4626
        %v4629 = vmul.f32 0.5, %v4628
        %v4630 = vsub.f32 1.5, %v4629
        %v4631 = vmul.f32 %v4626, %v4630
        %vm4632 = vweird.f32 %v4573
        %vm4633 = vweird.f32 %v4626
        %vm4634 = vmor %vm4632, %vm4633
        %v4635 = vsel %vm4634, %v4626, %v4631
        %v4636 = vrsqrt.pop %v4574
        %v4637 = vmul.f32 %v4636, %v4574
        %v4638 = vmul.f32 %v4637, %v4636
        %v4639 = vmul.f32 0.5, %v4638
        %v4640 = vsub.f32 1.5, %v4639
        %v4641 = vmul.f32 %v4636, %v4640
        %vm4642 = vweird.f32 %v4574
        %vm4643 = vweird.f32 %v4636
        %vm4644 = vmor %vm4642, %vm4643
        %v4645 = vsel %vm4644, %v4636, %v4641
        %v4646 = vrsqrt.pop %v4575
        %v4647 = vmul.f32 %v4646, %v4575
        %v4648 = vmul.f32 %v4647, %v4646
        %v4649 = vmul.f32 0.5, %v4648
        %v4650 = vsub.f32 1.5, %v4649
        %v4651 = vmul.f32 %v4646, %v4650
        %vm4652 = vweird.f32 %v4575
        %vm4653 = vweird.f32 %v4646
        %vm4654 = vmor %vm4652, %vm4653
        %v4655 = vsel %vm4654, %v4646, %v4651
        %v4664 = vrot.slane %v4595, 7
        %v4665 = vrot.slane %v4605, 6
        %v4666 = vrot.slane %v4615, 5
        %v4667 = vrot.slane %v4625, 4
        %v4668 = vrot.slane %v4635, 3
        %v4669 = vrot.slane %v4645, 2
        %v4670 = vrot.slane %v4655, 1
        %vm4671 = vcmask 1040384
        %v4672 = vsel %vm4671, %v4585, %v4664
        %vm4673 = vcmask 1042434
        %v4674 = vsel %vm4673, %v4665, %v4666
        %vm4675 = vcmask 1041408
        %v4676 = vsel %vm4675, %v4672, %v4674
        %vm4677 = vcmask 1044484
        %v4678 = vsel %vm4677, %v4667, %v4668
        %vm4679 = vcmask 1046534
        %v4680 = vsel %vm4679, %v4669, %v4670
        %vm4681 = vcmask 1045508
        %v4682 = vsel %vm4681, %v4678, %v4680
        %vm4683 = vcmask 1043456
        %v4684 = vsel %vm4683, %v4676, %v4682
        %v4686 = vmul.f32 %v4567, %v4684
        %v4688 = vperm.slane %v4686, 0
        %v4689 = vperm.slane %v4686, 1
        %v4690 = vperm.slane %v4686, 2
        %v4691 = vperm.slane %v4686, 3
        %v4692 = vperm.slane %v4686, 4
        %v4693 = vperm.slane %v4686, 5
        %v4694 = vperm.slane %v4686, 6
        %v4695 = vperm.slane %v4686, 7
        %v4704 = vmul.f32 %v4455, %v4688
        %v4705 = vmul.f32 %v4456, %v4689
        %v4706 = vmul.f32 %v4457, %v4690
        %v4707 = vmul.f32 %v4458, %v4691
        %v4708 = vmul.f32 %v4459, %v4692
        %v4709 = vmul.f32 %v4460, %v4693
        %v4710 = vmul.f32 %v4461, %v4694
        %v4711 = vmul.f32 %v4462, %v4695
        %v4712 = vmul.f32 %v4463, %v4688
        %v4713 = vmul.f32 %v4464, %v4689
        %v4714 = vmul.f32 %v4465, %v4690
        %v4715 = vmul.f32 %v4466, %v4691
        %v4716 = vmul.f32 %v4467, %v4692
        %v4717 = vmul.f32 %v4468, %v4693
        %v4718 = vmul.f32 %v4469, %v4694
        %v4719 = vmul.f32 %v4470, %v4695
        %v4720 = vld [vmem:[%s313] sm:$0xff]
        %v4722 = vperm.slane %v4720, 0
        %v4723 = vperm.slane %v4720, 1
        %v4724 = vperm.slane %v4720, 2
        %v4725 = vperm.slane %v4720, 3
        %v4726 = vperm.slane %v4720, 4
        %v4727 = vperm.slane %v4720, 5
        %v4728 = vperm.slane %v4720, 6
        %v4729 = vperm.slane %v4720, 7
        %v4738 = vadd.f32 %v4704, %v4722
        %v4739 = vadd.f32 %v4705, %v4723
        %v4740 = vadd.f32 %v4706, %v4724
        %v4741 = vadd.f32 %v4707, %v4725
        %v4742 = vadd.f32 %v4708, %v4726
        %v4743 = vadd.f32 %v4709, %v4727
        %v4744 = vadd.f32 %v4710, %v4728
        %v4745 = vadd.f32 %v4711, %v4729
        %v4746 = vadd.f32 %v4712, %v4722
        %v4747 = vadd.f32 %v4713, %v4723
        %v4748 = vadd.f32 %v4714, %v4724
        %v4749 = vadd.f32 %v4715, %v4725
        %v4750 = vadd.f32 %v4716, %v4726
        %v4751 = vadd.f32 %v4717, %v4727
        %v4752 = vadd.f32 %v4718, %v4728
        %v4753 = vadd.f32 %v4719, %v4729
        %v4754 = vmax.f32 %v4738, 0.0
        %v4755 = vmax.f32 %v4739, 0.0
        %v4756 = vmax.f32 %v4740, 0.0
        %v4757 = vmax.f32 %v4741, 0.0
        %v4758 = vmax.f32 %v4742, 0.0
        %v4759 = vmax.f32 %v4743, 0.0
        %v4760 = vmax.f32 %v4744, 0.0
        %v4761 = vmax.f32 %v4745, 0.0
        %v4762 = vmax.f32 %v4746, 0.0
        %v4763 = vmax.f32 %v4747, 0.0
        %v4764 = vmax.f32 %v4748, 0.0
        %v4765 = vmax.f32 %v4749, 0.0
        %v4766 = vmax.f32 %v4750, 0.0
        %v4767 = vmax.f32 %v4751, 0.0
        %v4768 = vmax.f32 %v4752, 0.0
        %v4769 = vmax.f32 %v4753, 0.0
        %v4770 = vsel %vm4373, %v4754, 0.0
        %v4771 = vsel %vm4373, %v4755, 0.0
        %v4772 = vsel %vm4373, %v4756, 0.0
        %v4773 = vsel %vm4373, %v4757, 0.0
        %v4774 = vsel %vm4373, %v4758, 0.0
        %v4775 = vsel %vm4373, %v4759, 0.0
        %v4776 = vsel %vm4373, %v4760, 0.0
        %v4777 = vsel %vm4373, %v4761, 0.0
        %v4778 = vsel %vm4374, %v4762, 0.0
        %v4779 = vsel %vm4374, %v4763, 0.0
        %v4780 = vsel %vm4374, %v4764, 0.0
        %v4781 = vsel %vm4374, %v4765, 0.0
        %v4782 = vsel %vm4374, %v4766, 0.0
        %v4783 = vsel %vm4374, %v4767, 0.0
        %v4784 = vsel %vm4374, %v4768, 0.0
        %v4785 = vsel %vm4374, %v4769, 0.0
        %4786 = vst [vmem:[%s354] sm:$0xff] %v4770
        %4787 = vst [vmem:[%s354 + $0x8] sm:$0xff] %v4771
        %4788 = vst [vmem:[%s354 + $0x10] sm:$0xff] %v4772
        %4789 = vst [vmem:[%s354 + $0x18] sm:$0xff] %v4773
        %4790 = vst [vmem:[%s354 + $0x20] sm:$0xff] %v4774
        %4791 = vst [vmem:[%s354 + $0x28] sm:$0xff] %v4775
        %4792 = vst [vmem:[%s354 + $0x30] sm:$0xff] %v4776
        %4793 = vst [vmem:[%s354 + $0x38] sm:$0xff] %v4777
        %4794 = vst [vmem:[%s354 + $0x40] sm:$0xff] %v4778
        %4795 = vst [vmem:[%s354 + $0x48] sm:$0xff] %v4779
        %4796 = vst [vmem:[%s354 + $0x50] sm:$0xff] %v4780
        %4797 = vst [vmem:[%s354 + $0x58] sm:$0xff] %v4781
        %4798 = vst [vmem:[%s354 + $0x60] sm:$0xff] %v4782
        %4799 = vst [vmem:[%s354 + $0x68] sm:$0xff] %v4783
        %4800 = vst [vmem:[%s354 + $0x70] sm:$0xff] %v4784
        %4801 = vst [vmem:[%s354 + $0x78] sm:$0xff] %v4785
        %s4802 = sand.u32 %s158, 1
        %s4803 = sand.u32 %s158, 1
        %s4804 = smul.addr %s4803, 128
        %s4805 = scalar_lea.vmem [#allocation9], %s4804
        // Predicated region
        $region57: #{generator_forward.5} parent=39 // pred_check
          %p4806 = pneg %p168
        $region58: #{generator_forward.5} parent=39 // pred_check_branch
          %4808 = sbr.rel (%p4806) target = $region60
        $region59: #{generator_forward.5} parent=39 // pred_region
          %s4809 = smul.u32 8, %s25
          %s4810 = smul.addr %s4809, 8
          %s4811 = scalar_lea.vmem %s5, %s4810
          // Predicated region
          $region61: #{generator_forward.5} parent=59 // pred_check
            _
          $region62: #{generator_forward.5} parent=59 // pred_check_branch
            %4813 = sbr.rel (0) target = $region64
          $region63: #{generator_forward.5} parent=59 // pred_region
            // Predicated region
            $region65: #{generator_forward.5} parent=63 // pred_check
              _
            $region66: #{generator_forward.5} parent=63 // pred_check_branch
              %4815 = sbr.rel (0) target = $region68
            $region67: #{generator_forward.5} parent=63 // pred_region
              loop: start=0, step=1, limit=1
              $region69: #{generator_forward.5} parent=67 // loop_pre_header
                _
              $region70: #{generator_forward.5} parent=67 // loop_header
                %s4817 = sphi 0, %s4821
                %p4818 = scmp.ge.s32.totalorder %s4817, 1
                %s4822 = sphi %s4805, %s4805
                %s4823 = sphi %s4811, %s4811
              $region71: #{generator_forward.5} parent=67 // loop_header_branch
                %4820 = sbr.rel (%p4818) target = $region75
              $region72: #{generator_forward.5} parent=67 // loop_body
                %v4824 = vld [vmem:[%s4822] sm:$0xff]
                %4825 = vst [vmem:[%s4823] sm:$0xff] %v4824
                %v4826 = vld [vmem:[%s4822 + $0x8] sm:$0xff]
                %4827 = vst [vmem:[%s4823 + $0x8] sm:$0xff] %v4826
                %v4828 = vld [vmem:[%s4822 + $0x10] sm:$0xff]
                %4829 = vst [vmem:[%s4823 + $0x10] sm:$0xff] %v4828
                %v4830 = vld [vmem:[%s4822 + $0x18] sm:$0xff]
                %4831 = vst [vmem:[%s4823 + $0x18] sm:$0xff] %v4830
                %v4832 = vld [vmem:[%s4822 + $0x20] sm:$0xff]
                %4833 = vst [vmem:[%s4823 + $0x20] sm:$0xff] %v4832
                %v4834 = vld [vmem:[%s4822 + $0x28] sm:$0xff]
                %4835 = vst [vmem:[%s4823 + $0x28] sm:$0xff] %v4834
                %v4836 = vld [vmem:[%s4822 + $0x30] sm:$0xff]
                %4837 = vst [vmem:[%s4823 + $0x30] sm:$0xff] %v4836
                %v4838 = vld [vmem:[%s4822 + $0x38] sm:$0xff]
                %4839 = vst [vmem:[%s4823 + $0x38] sm:$0xff] %v4838
                %v4840 = vld [vmem:[%s4822 + $0x40] sm:$0xff]
                %4841 = vst [vmem:[%s4823 + $0x80] sm:$0xff] %v4840
                %v4842 = vld [vmem:[%s4822 + $0x48] sm:$0xff]
                %4843 = vst [vmem:[%s4823 + $0x88] sm:$0xff] %v4842
                %v4844 = vld [vmem:[%s4822 + $0x50] sm:$0xff]
                %4845 = vst [vmem:[%s4823 + $0x90] sm:$0xff] %v4844
                %v4846 = vld [vmem:[%s4822 + $0x58] sm:$0xff]
                %4847 = vst [vmem:[%s4823 + $0x98] sm:$0xff] %v4846
                %v4848 = vld [vmem:[%s4822 + $0x60] sm:$0xff]
                %4849 = vst [vmem:[%s4823 + $0xa0] sm:$0xff] %v4848
                %v4850 = vld [vmem:[%s4822 + $0x68] sm:$0xff]
                %4851 = vst [vmem:[%s4823 + $0xa8] sm:$0xff] %v4850
                %v4852 = vld [vmem:[%s4822 + $0x70] sm:$0xff]
                %4853 = vst [vmem:[%s4823 + $0xb0] sm:$0xff] %v4852
                %v4854 = vld [vmem:[%s4822 + $0x78] sm:$0xff]
                %4855 = vst [vmem:[%s4823 + $0xb8] sm:$0xff] %v4854
              $region73: #{generator_forward.5} parent=67 // loop_footer
                %s4821 = sadd.s32 1, %s4817
              $region74: #{generator_forward.5} parent=67 // loop_footer_branch
                %4816 = sbr.rel target = $region70
              $region75: #{generator_forward.5} parent=67 // loop_exit
                _
            $region68: #{generator_forward.5} parent=63 // pred_fallthru
              _
            // Predicated region
            $region76: #{generator_forward.5} parent=63 // pred_check
              _
            $region77: #{generator_forward.5} parent=63 // pred_check_branch
              %4857 = sbr.rel target = $region79
            $region78: #{generator_forward.5} parent=63 // pred_region
              _
            $region79: #{generator_forward.5} parent=63 // pred_fallthru
              _
          $region64: #{generator_forward.5} parent=59 // pred_fallthru
            _
          %4858 = vnop
        $region60: #{generator_forward.5} parent=39 // pred_fallthru
          _
      $region40: #{generator_forward.5} parent=5 // pred_fallthru
        _
      %p4859 = scmp.le.s32.totalorder 2, %s20
      // Predicated region
      $region80: #{generator_forward.5} parent=5 // pred_check
        %p4860 = pneg %p4859
      $region81: #{generator_forward.5} parent=5 // pred_check_branch
        %4862 = sbr.rel (%p4860) target = $region83
      $region82: #{generator_forward.5} parent=5 // pred_region
        %s4863 = ssub.s32 %s20, 2
        // Predicated region
        $region84: #{generator_forward.5} parent=82 // pred_check
          %p4864 = pneg %p174
        $region85: #{generator_forward.5} parent=82 // pred_check_branch
          %4866 = sbr.rel (%p4864) target = $region87
        $region86: #{generator_forward.5} parent=82 // pred_region
          %s4867 = sand.u32 %s159, 1
          %s4868 = sand.u32 %s159, 1
          %s4869 = smul.addr %s4868, 128
          %s4870 = scalar_lea.vmem [#allocation9], %s4869
        $region87: #{generator_forward.5} parent=82 // pred_fallthru
          _
      $region83: #{generator_forward.5} parent=5 // pred_fallthru
        _
    $region6: #{generator_forward.5} parent=1 // loop_footer
      %s24 = sadd.s32 1, %s20
    $region7: #{generator_forward.5} parent=1 // loop_footer_branch
      %19 = sbr.rel target = $region3
    $region8: #{generator_forward.5} parent=1 // loop_exit
      _
    %4871 = vsyncpa [#allocation3], 1
    %s4872 = scalar_lea.sflag [#allocation3], 1
    %4873 = vsyncpa %s4872, 1
    %4874 = vsyncpa [#allocation5], 1
    %s4875 = scalar_lea.sflag [#allocation5], 1
    %4876 = vsyncpa %s4875, 1
    %4877 = vsyncpa [#allocation8], 1
    %s4878 = scalar_lea.sflag [#allocation8], 1
    %4879 = vsyncpa %s4878, 1

// kernel: generator_forward.6
$region0: #{generator_forward.6}
  #allocation0 [shape = 'u32[]', space=smem, size = 0x4, offset = 0x4, fixed_abs, tag = 'smem constant byte address 0x4 - core index']
  #allocation1 [shape = 'u32[72,128]{1,0:T(1,128)}', space=vmem, size = 0x9000, scoped, tag = 'internal scratch']
  %s0 = inlined_call_operand.vmem [shape: f32[4,6,6,128], index: 0, kind: input, shape index: {}]
  %s1 = inlined_call_operand.vmem [shape: bf16[4,512,64], index: 1, kind: input, shape index: {}]
  %s2 = inlined_call_operand.hbm [shape: f32[1,64], index: 2, kind: input, shape index: {}]
  %s3 = inlined_call_operand.hbm [shape: f32[1,64], index: 3, kind: input, shape index: {}]
  %s4 = inlined_call_operand.hbm [shape: f32[1,64], index: 4, kind: input, shape index: {}]
  %s5 = inlined_call_operand.vmem [shape: f32[4,64,64], index: 5, kind: output, shape index: {}]
  %s6 = sld [smem:[#allocation0]]
  $region42: #{generator_forward.6} parent=0
    _
  %s8 = ssub.s32 1, %s6
  %s9 = scalar_select 0, %s8, %s6
  $region1: #{generator_forward.6} parent=0
    #allocation2 [shape = 'u8[512]{0}', space=vmem, size = 0x400, scoped, tag = 'input window, operand 2, single buffered']
    #allocation3 [shape = 's32[1]{0}', space=sflag, size = 0x4, scoped, tag = 'scoped memory for generator_forward.6']
    #allocation4 [shape = 'u8[512]{0}', space=vmem, size = 0x400, scoped, tag = 'input window, operand 3, single buffered']
    #allocation5 [shape = 's32[1]{0}', space=sflag, size = 0x4, scoped, tag = 'scoped memory for generator_forward.6']
    #allocation6 [shape = 'u8[512]{0}', space=vmem, size = 0x400, scoped, tag = 'input window, operand 4, single buffered']
    %10 = vsyncpa [#allocation3], 0
    %11 = vsyncpa [#allocation5], 0
    // Predicated region
    $region2: #{generator_forward.6} parent=1 // pred_check
      _
    $region3: #{generator_forward.6} parent=1 // pred_check_branch
      %13 = sbr.rel (0) target = $region5
    $region4: #{generator_forward.6} parent=1 // pred_region
      _
    $region5: #{generator_forward.6} parent=1 // pred_fallthru
      _
    // Predicated region
    $region6: #{generator_forward.6} parent=1 // pred_check
      _
    $region7: #{generator_forward.6} parent=1 // pred_check_branch
      %15 = sbr.rel (0) target = $region9
    $region8: #{generator_forward.6} parent=1 // pred_region
      _
    $region9: #{generator_forward.6} parent=1 // pred_fallthru
      _
    // Predicated region
    $region10: #{generator_forward.6} parent=1 // pred_check
      _
    $region11: #{generator_forward.6} parent=1 // pred_check_branch
      %17 = sbr.rel (0) target = $region13
    $region12: #{generator_forward.6} parent=1 // pred_region
      %19 = vsyncadd [#allocation3], 0
      %s21 = sshll.u32 %s2, 4
      %s22 = int_to_ptr.hbm [resolvable:$true] %s21
      %s23 = sshll.u32 [#allocation2], 4
      %s24 = int_to_ptr.vmem [resolvable:$true] %s23
      %26 = dma.hbm_to_vmem [thread:$0]  %s22, 16, %s24, [#allocation3]
    $region13: #{generator_forward.6} parent=1 // pred_fallthru
      _
    // Predicated region
    $region14: #{generator_forward.6} parent=1 // pred_check
      _
    $region15: #{generator_forward.6} parent=1 // pred_check_branch
      %28 = sbr.rel (0) target = $region17
    $region16: #{generator_forward.6} parent=1 // pred_region
      %30 = vsyncadd [#allocation5], 0
      %s32 = sshll.u32 %s3, 4
      %s33 = int_to_ptr.hbm [resolvable:$true] %s32
      %s34 = sshll.u32 [#allocation4], 4
      %s35 = int_to_ptr.vmem [resolvable:$true] %s34
      %37 = dma.hbm_to_vmem [thread:$0]  %s33, 16, %s35, [#allocation5]
    $region17: #{generator_forward.6} parent=1 // pred_fallthru
      _
    // Predicated region
    $region18: #{generator_forward.6} parent=1 // pred_check
      _
    $region19: #{generator_forward.6} parent=1 // pred_check_branch
      %39 = sbr.rel (0) target = $region21
    $region20: #{generator_forward.6} parent=1 // pred_region
      %41 = vsyncadd [#allocation5], 0
      %s43 = sshll.u32 %s4, 4
      %s44 = int_to_ptr.hbm [resolvable:$true] %s43
      %s45 = sshll.u32 [#allocation6], 4
      %s46 = int_to_ptr.vmem [resolvable:$true] %s45
      %48 = dma.hbm_to_vmem [thread:$0]  %s44, 16, %s46, [#allocation5]
    $region21: #{generator_forward.6} parent=1 // pred_fallthru
      _
    // Predicated region
    $region22: #{generator_forward.6} parent=1 // pred_check
      _
    $region23: #{generator_forward.6} parent=1 // pred_check_branch
      %50 = sbr.rel (0) target = $region25
    $region24: #{generator_forward.6} parent=1 // pred_region
      %52 = dma.done [#allocation3], 16
    $region25: #{generator_forward.6} parent=1 // pred_fallthru
      _
    // Predicated region
    $region26: #{generator_forward.6} parent=1 // pred_check
      _
    $region27: #{generator_forward.6} parent=1 // pred_check_branch
      %54 = sbr.rel (0) target = $region29
    $region28: #{generator_forward.6} parent=1 // pred_region
      %56 = dma.done [#allocation5], 16
    $region29: #{generator_forward.6} parent=1 // pred_fallthru
      _
    // Predicated region
    $region30: #{generator_forward.6} parent=1 // pred_check
      _
    $region31: #{generator_forward.6} parent=1 // pred_check_branch
      %58 = sbr.rel (0) target = $region33
    $region32: #{generator_forward.6} parent=1 // pred_region
      %60 = dma.done [#allocation5], 16
    $region33: #{generator_forward.6} parent=1 // pred_fallthru
      _
    %v61 = vld [vmem:[%s0] sm:$0xf]
    %v62 = vld [vmem:[%s0 + $0x8] sm:$0xf]
    %v63 = vld [vmem:[%s0 + $0x10] sm:$0xf]
    %v64 = vld [vmem:[%s0 + $0x18] sm:$0xf]
    %v65 = vld [vmem:[%s0 + $0x30] sm:$0xf]
    %v66 = vld [vmem:[%s0 + $0x38] sm:$0xf]
    %v67 = vld [vmem:[%s0 + $0x40] sm:$0xf]
    %v68 = vld [vmem:[%s0 + $0x48] sm:$0xf]
    %v69 = vld [vmem:[%s0 + $0x60] sm:$0xf]
    %v70 = vld [vmem:[%s0 + $0x68] sm:$0xf]
    %v71 = vld [vmem:[%s0 + $0x70] sm:$0xf]
    %v72 = vld [vmem:[%s0 + $0x78] sm:$0xf]
    %v73 = vld [vmem:[%s0 + $0x90] sm:$0xf]
    %v74 = vld [vmem:[%s0 + $0x98] sm:$0xf]
    %v75 = vld [vmem:[%s0 + $0xa0] sm:$0xf]
    %v76 = vld [vmem:[%s0 + $0xa8] sm:$0xf]
    %93 = vst [vmem:[#allocation1] ss:$2 sm:$0xff] %v61
    %s94 = scalar_lea.vmem [#allocation1], 1
    %95 = vst [vmem:[%s94] ss:$2 sm:$0xff] %v62
    %s96 = scalar_lea.vmem [#allocation1], 16
    %97 = vst [vmem:[%s96] ss:$2 sm:$0xff] %v63
    %s98 = scalar_lea.vmem [#allocation1], 17
    %99 = vst [vmem:[%s98] ss:$2 sm:$0xff] %v64
    %s100 = scalar_lea.vmem [#allocation1], 32
    %101 = vst [vmem:[%s100] ss:$2 sm:$0xff] %v65
    %s102 = scalar_lea.vmem [#allocation1], 33
    %103 = vst [vmem:[%s102] ss:$2 sm:$0xff] %v66
    %s104 = scalar_lea.vmem [#allocation1], 48
    %105 = vst [vmem:[%s104] ss:$2 sm:$0xff] %v67
    %s106 = scalar_lea.vmem [#allocation1], 49
    %107 = vst [vmem:[%s106] ss:$2 sm:$0xff] %v68
    %v108 = vld.sshfl [vmem:[#allocation1] sm:$0xff pattern:$0x75316420]
    %v109 = vld.sshfl [vmem:[#allocation1 + $0x10] sm:$0xff pattern:$0x75316420]
    %v110 = vld.sshfl [vmem:[#allocation1 + $0x20] sm:$0xff pattern:$0x75316420]
    %v111 = vld.sshfl [vmem:[#allocation1 + $0x30] sm:$0xff pattern:$0x75316420]
    %112 = vst [vmem:[#allocation1] ss:$2 sm:$0xff] %v69
    %113 = vst [vmem:[%s94] ss:$2 sm:$0xff] %v70
    %114 = vst [vmem:[%s96] ss:$2 sm:$0xff] %v71
    %115 = vst [vmem:[%s98] ss:$2 sm:$0xff] %v72
    %116 = vst [vmem:[%s100] ss:$2 sm:$0xff] %v73
    %117 = vst [vmem:[%s102] ss:$2 sm:$0xff] %v74
    %118 = vst [vmem:[%s104] ss:$2 sm:$0xff] %v75
    %119 = vst [vmem:[%s106] ss:$2 sm:$0xff] %v76
    %v120 = vld.sshfl [vmem:[#allocation1] sm:$0xff pattern:$0x75316420]
    %v121 = vld.sshfl [vmem:[#allocation1 + $0x10] sm:$0xff pattern:$0x75316420]
    %v122 = vld.sshfl [vmem:[#allocation1 + $0x20] sm:$0xff pattern:$0x75316420]
    %v123 = vld.sshfl [vmem:[#allocation1 + $0x30] sm:$0xff pattern:$0x75316420]
    %v132 = vpack.c.bf16 %v108, %v108
    %v133 = vpack.c.bf16 %v109, %v109
    %v134 = vpack.c.bf16 %v110, %v110
    %v135 = vpack.c.bf16 %v111, %v111
    %v136 = vpack.c.bf16 %v120, %v120
    %v137 = vpack.c.bf16 %v121, %v121
    %v138 = vpack.c.bf16 %v122, %v122
    %v139 = vpack.c.bf16 %v123, %v123
    %v140 = vld [vmem:[%s0 + $0x1] sm:$0xf]
    %v141 = vld [vmem:[%s0 + $0x9] sm:$0xf]
    %v142 = vld [vmem:[%s0 + $0x11] sm:$0xf]
    %v143 = vld [vmem:[%s0 + $0x19] sm:$0xf]
    %v144 = vld [vmem:[%s0 + $0x31] sm:$0xf]
    %v145 = vld [vmem:[%s0 + $0x39] sm:$0xf]
    %v146 = vld [vmem:[%s0 + $0x41] sm:$0xf]
    %v147 = vld [vmem:[%s0 + $0x49] sm:$0xf]
    %v148 = vld [vmem:[%s0 + $0x61] sm:$0xf]
    %v149 = vld [vmem:[%s0 + $0x69] sm:$0xf]
    %v150 = vld [vmem:[%s0 + $0x71] sm:$0xf]
    %v151 = vld [vmem:[%s0 + $0x79] sm:$0xf]
    %v152 = vld [vmem:[%s0 + $0x91] sm:$0xf]
    %v153 = vld [vmem:[%s0 + $0x99] sm:$0xf]
    %v154 = vld [vmem:[%s0 + $0xa1] sm:$0xf]
    %v155 = vld [vmem:[%s0 + $0xa9] sm:$0xf]
    %172 = vst [vmem:[#allocation1] ss:$2 sm:$0xff] %v140
    %s173 = scalar_lea.vmem [#allocation1], 1
    %174 = vst [vmem:[%s173] ss:$2 sm:$0xff] %v141
    %s175 = scalar_lea.vmem [#allocation1], 16
    %176 = vst [vmem:[%s175] ss:$2 sm:$0xff] %v142
    %s177 = scalar_lea.vmem [#allocation1], 17
    %178 = vst [vmem:[%s177] ss:$2 sm:$0xff] %v143
    %s179 = scalar_lea.vmem [#allocation1], 32
    %180 = vst [vmem:[%s179] ss:$2 sm:$0xff] %v144
    %s181 = scalar_lea.vmem [#allocation1], 33
    %182 = vst [vmem:[%s181] ss:$2 sm:$0xff] %v145
    %s183 = scalar_lea.vmem [#allocation1], 48
    %184 = vst [vmem:[%s183] ss:$2 sm:$0xff] %v146
    %s185 = scalar_lea.vmem [#allocation1], 49
    %186 = vst [vmem:[%s185] ss:$2 sm:$0xff] %v147
    %v187 = vld.sshfl [vmem:[#allocation1] sm:$0xff pattern:$0x75316420]
    %v188 = vld.sshfl [vmem:[#allocation1 + $0x10] sm:$0xff pattern:$0x75316420]
    %v189 = vld.sshfl [vmem:[#allocation1 + $0x20] sm:$0xff pattern:$0x75316420]
    %v190 = vld.sshfl [vmem:[#allocation1 + $0x30] sm:$0xff pattern:$0x75316420]
    %191 = vst [vmem:[#allocation1] ss:$2 sm:$0xff] %v148
    %192 = vst [vmem:[%s173] ss:$2 sm:$0xff] %v149
    %193 = vst [vmem:[%s175] ss:$2 sm:$0xff] %v150
    %194 = vst [vmem:[%s177] ss:$2 sm:$0xff] %v151
    %195 = vst [vmem:[%s179] ss:$2 sm:$0xff] %v152
    %196 = vst [vmem:[%s181] ss:$2 sm:$0xff] %v153
    %197 = vst [vmem:[%s183] ss:$2 sm:$0xff] %v154
    %198 = vst [vmem:[%s185] ss:$2 sm:$0xff] %v155
    %v199 = vld.sshfl [vmem:[#allocation1] sm:$0xff pattern:$0x75316420]
    %v200 = vld.sshfl [vmem:[#allocation1 + $0x10] sm:$0xff pattern:$0x75316420]
    %v201 = vld.sshfl [vmem:[#allocation1 + $0x20] sm:$0xff pattern:$0x75316420]
    %v202 = vld.sshfl [vmem:[#allocation1 + $0x30] sm:$0xff pattern:$0x75316420]
    %v211 = vpack.c.bf16 %v187, %v187
    %v212 = vpack.c.bf16 %v188, %v188
    %v213 = vpack.c.bf16 %v189, %v189
    %v214 = vpack.c.bf16 %v190, %v190
    %v215 = vpack.c.bf16 %v199, %v199
    %v216 = vpack.c.bf16 %v200, %v200
    %v217 = vpack.c.bf16 %v201, %v201
    %v218 = vpack.c.bf16 %v202, %v202
    %v219 = vld [vmem:[%s0 + $0x2] sm:$0xf]
    %v220 = vld [vmem:[%s0 + $0xa] sm:$0xf]
    %v221 = vld [vmem:[%s0 + $0x12] sm:$0xf]
    %v222 = vld [vmem:[%s0 + $0x1a] sm:$0xf]
    %v223 = vld [vmem:[%s0 + $0x32] sm:$0xf]
    %v224 = vld [vmem:[%s0 + $0x3a] sm:$0xf]
    %v225 = vld [vmem:[%s0 + $0x42] sm:$0xf]
    %v226 = vld [vmem:[%s0 + $0x4a] sm:$0xf]
    %v227 = vld [vmem:[%s0 + $0x62] sm:$0xf]
    %v228 = vld [vmem:[%s0 + $0x6a] sm:$0xf]
    %v229 = vld [vmem:[%s0 + $0x72] sm:$0xf]
    %v230 = vld [vmem:[%s0 + $0x7a] sm:$0xf]
    %v231 = vld [vmem:[%s0 + $0x92] sm:$0xf]
    %v232 = vld [vmem:[%s0 + $0x9a] sm:$0xf]
    %v233 = vld [vmem:[%s0 + $0xa2] sm:$0xf]
    %v234 = vld [vmem:[%s0 + $0xaa] sm:$0xf]
    %251 = vst [vmem:[#allocation1] ss:$2 sm:$0xff] %v219
    %s252 = scalar_lea.vmem [#allocation1], 1
    %253 = vst [vmem:[%s252] ss:$2 sm:$0xff] %v220
    %s254 = scalar_lea.vmem [#allocation1], 16
    %255 = vst [vmem:[%s254] ss:$2 sm:$0xff] %v221
    %s256 = scalar_lea.vmem [#allocation1], 17
    %257 = vst [vmem:[%s256] ss:$2 sm:$0xff] %v222
    %s258 = scalar_lea.vmem [#allocation1], 32
    %259 = vst [vmem:[%s258] ss:$2 sm:$0xff] %v223
    %s260 = scalar_lea.vmem [#allocation1], 33
    %261 = vst [vmem:[%s260] ss:$2 sm:$0xff] %v224
    %s262 = scalar_lea.vmem [#allocation1], 48
    %263 = vst [vmem:[%s262] ss:$2 sm:$0xff] %v225
    %s264 = scalar_lea.vmem [#allocation1], 49
    %265 = vst [vmem:[%s264] ss:$2 sm:$0xff] %v226
    %v266 = vld.sshfl [vmem:[#allocation1] sm:$0xff pattern:$0x75316420]
    %v267 = vld.sshfl [vmem:[#allocation1 + $0x10] sm:$0xff pattern:$0x75316420]
    %v268 = vld.sshfl [vmem:[#allocation1 + $0x20] sm:$0xff pattern:$0x75316420]
    %v269 = vld.sshfl [vmem:[#allocation1 + $0x30] sm:$0xff pattern:$0x75316420]
    %270 = vst [vmem:[#allocation1] ss:$2 sm:$0xff] %v227
    %271 = vst [vmem:[%s252] ss:$2 sm:$0xff] %v228
    %272 = vst [vmem:[%s254] ss:$2 sm:$0xff] %v229
    %273 = vst [vmem:[%s256] ss:$2 sm:$0xff] %v230
    %274 = vst [vmem:[%s258] ss:$2 sm:$0xff] %v231
    %275 = vst [vmem:[%s260] ss:$2 sm:$0xff] %v232
    %276 = vst [vmem:[%s262] ss:$2 sm:$0xff] %v233
    %277 = vst [vmem:[%s264] ss:$2 sm:$0xff] %v234
    %v278 = vld.sshfl [vmem:[#allocation1] sm:$0xff pattern:$0x75316420]
    %v279 = vld.sshfl [vmem:[#allocation1 + $0x10] sm:$0xff pattern:$0x75316420]
    %v280 = vld.sshfl [vmem:[#allocation1 + $0x20] sm:$0xff pattern:$0x75316420]
    %v281 = vld.sshfl [vmem:[#allocation1 + $0x30] sm:$0xff pattern:$0x75316420]
    %v290 = vpack.c.bf16 %v266, %v266
    %v291 = vpack.c.bf16 %v267, %v267
    %v292 = vpack.c.bf16 %v268, %v268
    %v293 = vpack.c.bf16 %v269, %v269
    %v294 = vpack.c.bf16 %v278, %v278
    %v295 = vpack.c.bf16 %v279, %v279
    %v296 = vpack.c.bf16 %v280, %v280
    %v297 = vpack.c.bf16 %v281, %v281
    %s298 = scalar_lea.vmem %s0, 8
    %v299 = vld [vmem:[%s298] sm:$0xf]
    %v300 = vld [vmem:[%s298 + $0x8] sm:$0xf]
    %v301 = vld [vmem:[%s298 + $0x10] sm:$0xf]
    %v302 = vld [vmem:[%s298 + $0x18] sm:$0xf]
    %v303 = vld [vmem:[%s298 + $0x30] sm:$0xf]
    %v304 = vld [vmem:[%s298 + $0x38] sm:$0xf]
    %v305 = vld [vmem:[%s298 + $0x40] sm:$0xf]
    %v306 = vld [vmem:[%s298 + $0x48] sm:$0xf]
    %v307 = vld [vmem:[%s298 + $0x60] sm:$0xf]
    %v308 = vld [vmem:[%s298 + $0x68] sm:$0xf]
    %v309 = vld [vmem:[%s298 + $0x70] sm:$0xf]
    %v310 = vld [vmem:[%s298 + $0x78] sm:$0xf]
    %v311 = vld [vmem:[%s298 + $0x90] sm:$0xf]
    %v312 = vld [vmem:[%s298 + $0x98] sm:$0xf]
    %v313 = vld [vmem:[%s298 + $0xa0] sm:$0xf]
    %v314 = vld [vmem:[%s298 + $0xa8] sm:$0xf]
    %331 = vst [vmem:[#allocation1] ss:$2 sm:$0xff] %v299
    %s332 = scalar_lea.vmem [#allocation1], 1
    %333 = vst [vmem:[%s332] ss:$2 sm:$0xff] %v300
    %s334 = scalar_lea.vmem [#allocation1], 16
    %335 = vst [vmem:[%s334] ss:$2 sm:$0xff] %v301
    %s336 = scalar_lea.vmem [#allocation1], 17
    %337 = vst [vmem:[%s336] ss:$2 sm:$0xff] %v302
    %s338 = scalar_lea.vmem [#allocation1], 32
    %339 = vst [vmem:[%s338] ss:$2 sm:$0xff] %v303
    %s340 = scalar_lea.vmem [#allocation1], 33
    %341 = vst [vmem:[%s340] ss:$2 sm:$0xff] %v304
    %s342 = scalar_lea.vmem [#allocation1], 48
    %343 = vst [vmem:[%s342] ss:$2 sm:$0xff] %v305
    %s344 = scalar_lea.vmem [#allocation1], 49
    %345 = vst [vmem:[%s344] ss:$2 sm:$0xff] %v306
    %v346 = vld.sshfl [vmem:[#allocation1] sm:$0xff pattern:$0x75316420]
    %v347 = vld.sshfl [vmem:[#allocation1 + $0x10] sm:$0xff pattern:$0x75316420]
    %v348 = vld.sshfl [vmem:[#allocation1 + $0x20] sm:$0xff pattern:$0x75316420]
    %v349 = vld.sshfl [vmem:[#allocation1 + $0x30] sm:$0xff pattern:$0x75316420]
    %350 = vst [vmem:[#allocation1] ss:$2 sm:$0xff] %v307
    %351 = vst [vmem:[%s332] ss:$2 sm:$0xff] %v308
    %352 = vst [vmem:[%s334] ss:$2 sm:$0xff] %v309
    %353 = vst [vmem:[%s336] ss:$2 sm:$0xff] %v310
    %354 = vst [vmem:[%s338] ss:$2 sm:$0xff] %v311
    %355 = vst [vmem:[%s340] ss:$2 sm:$0xff] %v312
    %356 = vst [vmem:[%s342] ss:$2 sm:$0xff] %v313
    %357 = vst [vmem:[%s344] ss:$2 sm:$0xff] %v314
    %v358 = vld.sshfl [vmem:[#allocation1] sm:$0xff pattern:$0x75316420]
    %v359 = vld.sshfl [vmem:[#allocation1 + $0x10] sm:$0xff pattern:$0x75316420]
    %v360 = vld.sshfl [vmem:[#allocation1 + $0x20] sm:$0xff pattern:$0x75316420]
    %v361 = vld.sshfl [vmem:[#allocation1 + $0x30] sm:$0xff pattern:$0x75316420]
    %v370 = vpack.c.bf16 %v346, %v346
    %v371 = vpack.c.bf16 %v347, %v347
    %v372 = vpack.c.bf16 %v348, %v348
    %v373 = vpack.c.bf16 %v349, %v349
    %v374 = vpack.c.bf16 %v358, %v358
    %v375 = vpack.c.bf16 %v359, %v359
    %v376 = vpack.c.bf16 %v360, %v360
    %v377 = vpack.c.bf16 %v361, %v361
    %v378 = vld [vmem:[%s298 + $0x1] sm:$0xf]
    %v379 = vld [vmem:[%s298 + $0x9] sm:$0xf]
    %v380 = vld [vmem:[%s298 + $0x11] sm:$0xf]
    %v381 = vld [vmem:[%s298 + $0x19] sm:$0xf]
    %v382 = vld [vmem:[%s298 + $0x31] sm:$0xf]
    %v383 = vld [vmem:[%s298 + $0x39] sm:$0xf]
    %v384 = vld [vmem:[%s298 + $0x41] sm:$0xf]
    %v385 = vld [vmem:[%s298 + $0x49] sm:$0xf]
    %v386 = vld [vmem:[%s298 + $0x61] sm:$0xf]
    %v387 = vld [vmem:[%s298 + $0x69] sm:$0xf]
    %v388 = vld [vmem:[%s298 + $0x71] sm:$0xf]
    %v389 = vld [vmem:[%s298 + $0x79] sm:$0xf]
    %v390 = vld [vmem:[%s298 + $0x91] sm:$0xf]
    %v391 = vld [vmem:[%s298 + $0x99] sm:$0xf]
    %v392 = vld [vmem:[%s298 + $0xa1] sm:$0xf]
    %v393 = vld [vmem:[%s298 + $0xa9] sm:$0xf]
    %410 = vst [vmem:[#allocation1] ss:$2 sm:$0xff] %v378
    %s411 = scalar_lea.vmem [#allocation1], 1
    %412 = vst [vmem:[%s411] ss:$2 sm:$0xff] %v379
    %s413 = scalar_lea.vmem [#allocation1], 16
    %414 = vst [vmem:[%s413] ss:$2 sm:$0xff] %v380
    %s415 = scalar_lea.vmem [#allocation1], 17
    %416 = vst [vmem:[%s415] ss:$2 sm:$0xff] %v381
    %s417 = scalar_lea.vmem [#allocation1], 32
    %418 = vst [vmem:[%s417] ss:$2 sm:$0xff] %v382
    %s419 = scalar_lea.vmem [#allocation1], 33
    %420 = vst [vmem:[%s419] ss:$2 sm:$0xff] %v383
    %s421 = scalar_lea.vmem [#allocation1], 48
    %422 = vst [vmem:[%s421] ss:$2 sm:$0xff] %v384
    %s423 = scalar_lea.vmem [#allocation1], 49
    %424 = vst [vmem:[%s423] ss:$2 sm:$0xff] %v385
    %v425 = vld.sshfl [vmem:[#allocation1] sm:$0xff pattern:$0x75316420]
    %v426 = vld.sshfl [vmem:[#allocation1 + $0x10] sm:$0xff pattern:$0x75316420]
    %v427 = vld.sshfl [vmem:[#allocation1 + $0x20] sm:$0xff pattern:$0x75316420]
    %v428 = vld.sshfl [vmem:[#allocation1 + $0x30] sm:$0xff pattern:$0x75316420]
    %429 = vst [vmem:[#allocation1] ss:$2 sm:$0xff] %v386
    %430 = vst [vmem:[%s411] ss:$2 sm:$0xff] %v387
    %431 = vst [vmem:[%s413] ss:$2 sm:$0xff] %v388
    %432 = vst [vmem:[%s415] ss:$2 sm:$0xff] %v389
    %433 = vst [vmem:[%s417] ss:$2 sm:$0xff] %v390
    %434 = vst [vmem:[%s419] ss:$2 sm:$0xff] %v391
    %435 = vst [vmem:[%s421] ss:$2 sm:$0xff] %v392
    %436 = vst [vmem:[%s423] ss:$2 sm:$0xff] %v393
    %v437 = vld.sshfl [vmem:[#allocation1] sm:$0xff pattern:$0x75316420]
    %v438 = vld.sshfl [vmem:[#allocation1 + $0x10] sm:$0xff pattern:$0x75316420]
    %v439 = vld.sshfl [vmem:[#allocation1 + $0x20] sm:$0xff pattern:$0x75316420]
    %v440 = vld.sshfl [vmem:[#allocation1 + $0x30] sm:$0xff pattern:$0x75316420]
    %v449 = vpack.c.bf16 %v425, %v425
    %v450 = vpack.c.bf16 %v426, %v426
    %v451 = vpack.c.bf16 %v427, %v427
    %v452 = vpack.c.bf16 %v428, %v428
    %v453 = vpack.c.bf16 %v437, %v437
    %v454 = vpack.c.bf16 %v438, %v438
    %v455 = vpack.c.bf16 %v439, %v439
    %v456 = vpack.c.bf16 %v440, %v440
    %v457 = vld [vmem:[%s298 + $0x2] sm:$0xf]
    %v458 = vld [vmem:[%s298 + $0xa] sm:$0xf]
    %v459 = vld [vmem:[%s298 + $0x12] sm:$0xf]
    %v460 = vld [vmem:[%s298 + $0x1a] sm:$0xf]
    %v461 = vld [vmem:[%s298 + $0x32] sm:$0xf]
    %v462 = vld [vmem:[%s298 + $0x3a] sm:$0xf]
    %v463 = vld [vmem:[%s298 + $0x42] sm:$0xf]
    %v464 = vld [vmem:[%s298 + $0x4a] sm:$0xf]
    %v465 = vld [vmem:[%s298 + $0x62] sm:$0xf]
    %v466 = vld [vmem:[%s298 + $0x6a] sm:$0xf]
    %v467 = vld [vmem:[%s298 + $0x72] sm:$0xf]
    %v468 = vld [vmem:[%s298 + $0x7a] sm:$0xf]
    %v469 = vld [vmem:[%s298 + $0x92] sm:$0xf]
    %v470 = vld [vmem:[%s298 + $0x9a] sm:$0xf]
    %v471 = vld [vmem:[%s298 + $0xa2] sm:$0xf]
    %v472 = vld [vmem:[%s298 + $0xaa] sm:$0xf]
    %489 = vst [vmem:[#allocation1] ss:$2 sm:$0xff] %v457
    %s490 = scalar_lea.vmem [#allocation1], 1
    %491 = vst [vmem:[%s490] ss:$2 sm:$0xff] %v458
    %s492 = scalar_lea.vmem [#allocation1], 16
    %493 = vst [vmem:[%s492] ss:$2 sm:$0xff] %v459
    %s494 = scalar_lea.vmem [#allocation1], 17
    %495 = vst [vmem:[%s494] ss:$2 sm:$0xff] %v460
    %s496 = scalar_lea.vmem [#allocation1], 32
    %497 = vst [vmem:[%s496] ss:$2 sm:$0xff] %v461
    %s498 = scalar_lea.vmem [#allocation1], 33
    %499 = vst [vmem:[%s498] ss:$2 sm:$0xff] %v462
    %s500 = scalar_lea.vmem [#allocation1], 48
    %501 = vst [vmem:[%s500] ss:$2 sm:$0xff] %v463
    %s502 = scalar_lea.vmem [#allocation1], 49
    %503 = vst [vmem:[%s502] ss:$2 sm:$0xff] %v464
    %v504 = vld.sshfl [vmem:[#allocation1] sm:$0xff pattern:$0x75316420]
    %v505 = vld.sshfl [vmem:[#allocation1 + $0x10] sm:$0xff pattern:$0x75316420]
    %v506 = vld.sshfl [vmem:[#allocation1 + $0x20] sm:$0xff pattern:$0x75316420]
    %v507 = vld.sshfl [vmem:[#allocation1 + $0x30] sm:$0xff pattern:$0x75316420]
    %508 = vst [vmem:[#allocation1] ss:$2 sm:$0xff] %v465
    %509 = vst [vmem:[%s490] ss:$2 sm:$0xff] %v466
    %510 = vst [vmem:[%s492] ss:$2 sm:$0xff] %v467
    %511 = vst [vmem:[%s494] ss:$2 sm:$0xff] %v468
    %512 = vst [vmem:[%s496] ss:$2 sm:$0xff] %v469
    %513 = vst [vmem:[%s498] ss:$2 sm:$0xff] %v470
    %514 = vst [vmem:[%s500] ss:$2 sm:$0xff] %v471
    %515 = vst [vmem:[%s502] ss:$2 sm:$0xff] %v472
    %v516 = vld.sshfl [vmem:[#allocation1] sm:$0xff pattern:$0x75316420]
    %v517 = vld.sshfl [vmem:[#allocation1 + $0x10] sm:$0xff pattern:$0x75316420]
    %v518 = vld.sshfl [vmem:[#allocation1 + $0x20] sm:$0xff pattern:$0x75316420]
    %v519 = vld.sshfl [vmem:[#allocation1 + $0x30] sm:$0xff pattern:$0x75316420]
    %v528 = vpack.c.bf16 %v504, %v504
    %v529 = vpack.c.bf16 %v505, %v505
    %v530 = vpack.c.bf16 %v506, %v506
    %v531 = vpack.c.bf16 %v507, %v507
    %v532 = vpack.c.bf16 %v516, %v516
    %v533 = vpack.c.bf16 %v517, %v517
    %v534 = vpack.c.bf16 %v518, %v518
    %v535 = vpack.c.bf16 %v519, %v519
    %s536 = scalar_lea.vmem %s0, 16
    %v537 = vld [vmem:[%s536] sm:$0xf]
    %v538 = vld [vmem:[%s536 + $0x8] sm:$0xf]
    %v539 = vld [vmem:[%s536 + $0x10] sm:$0xf]
    %v540 = vld [vmem:[%s536 + $0x18] sm:$0xf]
    %v541 = vld [vmem:[%s536 + $0x30] sm:$0xf]
    %v542 = vld [vmem:[%s536 + $0x38] sm:$0xf]
    %v543 = vld [vmem:[%s536 + $0x40] sm:$0xf]
    %v544 = vld [vmem:[%s536 + $0x48] sm:$0xf]
    %v545 = vld [vmem:[%s536 + $0x60] sm:$0xf]
    %v546 = vld [vmem:[%s536 + $0x68] sm:$0xf]
    %v547 = vld [vmem:[%s536 + $0x70] sm:$0xf]
    %v548 = vld [vmem:[%s536 + $0x78] sm:$0xf]
    %v549 = vld [vmem:[%s536 + $0x90] sm:$0xf]
    %v550 = vld [vmem:[%s536 + $0x98] sm:$0xf]
    %v551 = vld [vmem:[%s536 + $0xa0] sm:$0xf]
    %v552 = vld [vmem:[%s536 + $0xa8] sm:$0xf]
    %569 = vst [vmem:[#allocation1] ss:$2 sm:$0xff] %v537
    %s570 = scalar_lea.vmem [#allocation1], 1
    %571 = vst [vmem:[%s570] ss:$2 sm:$0xff] %v538
    %s572 = scalar_lea.vmem [#allocation1], 16
    %573 = vst [vmem:[%s572] ss:$2 sm:$0xff] %v539
    %s574 = scalar_lea.vmem [#allocation1], 17
    %575 = vst [vmem:[%s574] ss:$2 sm:$0xff] %v540
    %s576 = scalar_lea.vmem [#allocation1], 32
    %577 = vst [vmem:[%s576] ss:$2 sm:$0xff] %v541
    %s578 = scalar_lea.vmem [#allocation1], 33
    %579 = vst [vmem:[%s578] ss:$2 sm:$0xff] %v542
    %s580 = scalar_lea.vmem [#allocation1], 48
    %581 = vst [vmem:[%s580] ss:$2 sm:$0xff] %v543
    %s582 = scalar_lea.vmem [#allocation1], 49
    %583 = vst [vmem:[%s582] ss:$2 sm:$0xff] %v544
    %v584 = vld.sshfl [vmem:[#allocation1] sm:$0xff pattern:$0x75316420]
    %v585 = vld.sshfl [vmem:[#allocation1 + $0x10] sm:$0xff pattern:$0x75316420]
    %v586 = vld.sshfl [vmem:[#allocation1 + $0x20] sm:$0xff pattern:$0x75316420]
    %v587 = vld.sshfl [vmem:[#allocation1 + $0x30] sm:$0xff pattern:$0x75316420]
    %588 = vst [vmem:[#allocation1] ss:$2 sm:$0xff] %v545
    %589 = vst [vmem:[%s570] ss:$2 sm:$0xff] %v546
    %590 = vst [vmem:[%s572] ss:$2 sm:$0xff] %v547
    %591 = vst [vmem:[%s574] ss:$2 sm:$0xff] %v548
    %592 = vst [vmem:[%s576] ss:$2 sm:$0xff] %v549
    %593 = vst [vmem:[%s578] ss:$2 sm:$0xff] %v550
    %594 = vst [vmem:[%s580] ss:$2 sm:$0xff] %v551
    %595 = vst [vmem:[%s582] ss:$2 sm:$0xff] %v552
    %v596 = vld.sshfl [vmem:[#allocation1] sm:$0xff pattern:$0x75316420]
    %v597 = vld.sshfl [vmem:[#allocation1 + $0x10] sm:$0xff pattern:$0x75316420]
    %v598 = vld.sshfl [vmem:[#allocation1 + $0x20] sm:$0xff pattern:$0x75316420]
    %v599 = vld.sshfl [vmem:[#allocation1 + $0x30] sm:$0xff pattern:$0x75316420]
    %v608 = vpack.c.bf16 %v584, %v584
    %v609 = vpack.c.bf16 %v585, %v585
    %v610 = vpack.c.bf16 %v586, %v586
    %v611 = vpack.c.bf16 %v587, %v587
    %v612 = vpack.c.bf16 %v596, %v596
    %v613 = vpack.c.bf16 %v597, %v597
    %v614 = vpack.c.bf16 %v598, %v598
    %v615 = vpack.c.bf16 %v599, %v599
    %v616 = vld [vmem:[%s536 + $0x1] sm:$0xf]
    %v617 = vld [vmem:[%s536 + $0x9] sm:$0xf]
    %v618 = vld [vmem:[%s536 + $0x11] sm:$0xf]
    %v619 = vld [vmem:[%s536 + $0x19] sm:$0xf]
    %v620 = vld [vmem:[%s536 + $0x31] sm:$0xf]
    %v621 = vld [vmem:[%s536 + $0x39] sm:$0xf]
    %v622 = vld [vmem:[%s536 + $0x41] sm:$0xf]
    %v623 = vld [vmem:[%s536 + $0x49] sm:$0xf]
    %v624 = vld [vmem:[%s536 + $0x61] sm:$0xf]
    %v625 = vld [vmem:[%s536 + $0x69] sm:$0xf]
    %v626 = vld [vmem:[%s536 + $0x71] sm:$0xf]
    %v627 = vld [vmem:[%s536 + $0x79] sm:$0xf]
    %v628 = vld [vmem:[%s536 + $0x91] sm:$0xf]
    %v629 = vld [vmem:[%s536 + $0x99] sm:$0xf]
    %v630 = vld [vmem:[%s536 + $0xa1] sm:$0xf]
    %v631 = vld [vmem:[%s536 + $0xa9] sm:$0xf]
    %648 = vst [vmem:[#allocation1] ss:$2 sm:$0xff] %v616
    %s649 = scalar_lea.vmem [#allocation1], 1
    %650 = vst [vmem:[%s649] ss:$2 sm:$0xff] %v617
    %s651 = scalar_lea.vmem [#allocation1], 16
    %652 = vst [vmem:[%s651] ss:$2 sm:$0xff] %v618
    %s653 = scalar_lea.vmem [#allocation1], 17
    %654 = vst [vmem:[%s653] ss:$2 sm:$0xff] %v619
    %s655 = scalar_lea.vmem [#allocation1], 32
    %656 = vst [vmem:[%s655] ss:$2 sm:$0xff] %v620
    %s657 = scalar_lea.vmem [#allocation1], 33
    %658 = vst [vmem:[%s657] ss:$2 sm:$0xff] %v621
    %s659 = scalar_lea.vmem [#allocation1], 48
    %660 = vst [vmem:[%s659] ss:$2 sm:$0xff] %v622
    %s661 = scalar_lea.vmem [#allocation1], 49
    %662 = vst [vmem:[%s661] ss:$2 sm:$0xff] %v623
    %v663 = vld.sshfl [vmem:[#allocation1] sm:$0xff pattern:$0x75316420]
    %v664 = vld.sshfl [vmem:[#allocation1 + $0x10] sm:$0xff pattern:$0x75316420]
    %v665 = vld.sshfl [vmem:[#allocation1 + $0x20] sm:$0xff pattern:$0x75316420]
    %v666 = vld.sshfl [vmem:[#allocation1 + $0x30] sm:$0xff pattern:$0x75316420]
    %667 = vst [vmem:[#allocation1] ss:$2 sm:$0xff] %v624
    %668 = vst [vmem:[%s649] ss:$2 sm:$0xff] %v625
    %669 = vst [vmem:[%s651] ss:$2 sm:$0xff] %v626
    %670 = vst [vmem:[%s653] ss:$2 sm:$0xff] %v627
    %671 = vst [vmem:[%s655] ss:$2 sm:$0xff] %v628
    %672 = vst [vmem:[%s657] ss:$2 sm:$0xff] %v629
    %673 = vst [vmem:[%s659] ss:$2 sm:$0xff] %v630
    %674 = vst [vmem:[%s661] ss:$2 sm:$0xff] %v631
    %v675 = vld.sshfl [vmem:[#allocation1] sm:$0xff pattern:$0x75316420]
    %v676 = vld.sshfl [vmem:[#allocation1 + $0x10] sm:$0xff pattern:$0x75316420]
    %v677 = vld.sshfl [vmem:[#allocation1 + $0x20] sm:$0xff pattern:$0x75316420]
    %v678 = vld.sshfl [vmem:[#allocation1 + $0x30] sm:$0xff pattern:$0x75316420]
    %v687 = vpack.c.bf16 %v663, %v663
    %v688 = vpack.c.bf16 %v664, %v664
    %v689 = vpack.c.bf16 %v665, %v665
    %v690 = vpack.c.bf16 %v666, %v666
    %v691 = vpack.c.bf16 %v675, %v675
    %v692 = vpack.c.bf16 %v676, %v676
    %v693 = vpack.c.bf16 %v677, %v677
    %v694 = vpack.c.bf16 %v678, %v678
    %v695 = vld [vmem:[%s536 + $0x2] sm:$0xf]
    %v696 = vld [vmem:[%s536 + $0xa] sm:$0xf]
    %v697 = vld [vmem:[%s536 + $0x12] sm:$0xf]
    %v698 = vld [vmem:[%s536 + $0x1a] sm:$0xf]
    %v699 = vld [vmem:[%s536 + $0x32] sm:$0xf]
    %v700 = vld [vmem:[%s536 + $0x3a] sm:$0xf]
    %v701 = vld [vmem:[%s536 + $0x42] sm:$0xf]
    %v702 = vld [vmem:[%s536 + $0x4a] sm:$0xf]
    %v703 = vld [vmem:[%s536 + $0x62] sm:$0xf]
    %v704 = vld [vmem:[%s536 + $0x6a] sm:$0xf]
    %v705 = vld [vmem:[%s536 + $0x72] sm:$0xf]
    %v706 = vld [vmem:[%s536 + $0x7a] sm:$0xf]
    %v707 = vld [vmem:[%s536 + $0x92] sm:$0xf]
    %v708 = vld [vmem:[%s536 + $0x9a] sm:$0xf]
    %v709 = vld [vmem:[%s536 + $0xa2] sm:$0xf]
    %v710 = vld [vmem:[%s536 + $0xaa] sm:$0xf]
    %727 = vst [vmem:[#allocation1] ss:$2 sm:$0xff] %v695
    %s728 = scalar_lea.vmem [#allocation1], 1
    %729 = vst [vmem:[%s728] ss:$2 sm:$0xff] %v696
    %s730 = scalar_lea.vmem [#allocation1], 16
    %731 = vst [vmem:[%s730] ss:$2 sm:$0xff] %v697
    %s732 = scalar_lea.vmem [#allocation1], 17
    %733 = vst [vmem:[%s732] ss:$2 sm:$0xff] %v698
    %s734 = scalar_lea.vmem [#allocation1], 32
    %735 = vst [vmem:[%s734] ss:$2 sm:$0xff] %v699
    %s736 = scalar_lea.vmem [#allocation1], 33
    %737 = vst [vmem:[%s736] ss:$2 sm:$0xff] %v700
    %s738 = scalar_lea.vmem [#allocation1], 48
    %739 = vst [vmem:[%s738] ss:$2 sm:$0xff] %v701
    %s740 = scalar_lea.vmem [#allocation1], 49
    %741 = vst [vmem:[%s740] ss:$2 sm:$0xff] %v702
    %v742 = vld.sshfl [vmem:[#allocation1] sm:$0xff pattern:$0x75316420]
    %v743 = vld.sshfl [vmem:[#allocation1 + $0x10] sm:$0xff pattern:$0x75316420]
    %v744 = vld.sshfl [vmem:[#allocation1 + $0x20] sm:$0xff pattern:$0x75316420]
    %v745 = vld.sshfl [vmem:[#allocation1 + $0x30] sm:$0xff pattern:$0x75316420]
    %746 = vst [vmem:[#allocation1] ss:$2 sm:$0xff] %v703
    %747 = vst [vmem:[%s728] ss:$2 sm:$0xff] %v704
    %748 = vst [vmem:[%s730] ss:$2 sm:$0xff] %v705
    %749 = vst [vmem:[%s732] ss:$2 sm:$0xff] %v706
    %750 = vst [vmem:[%s734] ss:$2 sm:$0xff] %v707
    %751 = vst [vmem:[%s736] ss:$2 sm:$0xff] %v708
    %752 = vst [vmem:[%s738] ss:$2 sm:$0xff] %v709
    %753 = vst [vmem:[%s740] ss:$2 sm:$0xff] %v710
    %v754 = vld.sshfl [vmem:[#allocation1] sm:$0xff pattern:$0x75316420]
    %v755 = vld.sshfl [vmem:[#allocation1 + $0x10] sm:$0xff pattern:$0x75316420]
    %v756 = vld.sshfl [vmem:[#allocation1 + $0x20] sm:$0xff pattern:$0x75316420]
    %v757 = vld.sshfl [vmem:[#allocation1 + $0x30] sm:$0xff pattern:$0x75316420]
    %v766 = vpack.c.bf16 %v742, %v742
    %v767 = vpack.c.bf16 %v743, %v743
    %v768 = vpack.c.bf16 %v744, %v744
    %v769 = vpack.c.bf16 %v745, %v745
    %v770 = vpack.c.bf16 %v754, %v754
    %v771 = vpack.c.bf16 %v755, %v755
    %v772 = vpack.c.bf16 %v756, %v756
    %v773 = vpack.c.bf16 %v757, %v757
    %v782 = vunpack.c.l.b16 %v449
    %v783 = vunpack.c.l.b16 %v450
    %v784 = vunpack.c.l.b16 %v451
    %v785 = vunpack.c.l.b16 %v452
    %v786 = vunpack.c.l.b16 %v453
    %v787 = vunpack.c.l.b16 %v454
    %v788 = vunpack.c.l.b16 %v455
    %v789 = vunpack.c.l.b16 %v456
    %v790 = vpack.c.b16 %v783, %v782
    %v791 = vpack.c.b16 %v785, %v784
    %v792 = vpack.c.b16 %v787, %v786
    %v793 = vpack.c.b16 %v789, %v788
    %v806 = vunpack.c.l.b16 %v370
    %v807 = vunpack.c.l.b16 %v371
    %v808 = vunpack.c.l.b16 %v372
    %v809 = vunpack.c.l.b16 %v373
    %v810 = vunpack.c.l.b16 %v374
    %v811 = vunpack.c.l.b16 %v375
    %v812 = vunpack.c.l.b16 %v376
    %v813 = vunpack.c.l.b16 %v377
    %v814 = vpack.c.b16 %v807, %v806
    %v815 = vpack.c.b16 %v809, %v808
    %v816 = vpack.c.b16 %v811, %v810
    %v817 = vpack.c.b16 %v813, %v812
    %v830 = vunpack.c.l.b16 %v211
    %v831 = vunpack.c.l.b16 %v212
    %v832 = vunpack.c.l.b16 %v213
    %v833 = vunpack.c.l.b16 %v214
    %v834 = vunpack.c.l.b16 %v215
    %v835 = vunpack.c.l.b16 %v216
    %v836 = vunpack.c.l.b16 %v217
    %v837 = vunpack.c.l.b16 %v218
    %v838 = vpack.c.b16 %v831, %v830
    %v839 = vpack.c.b16 %v833, %v832
    %v840 = vpack.c.b16 %v835, %v834
    %v841 = vpack.c.b16 %v837, %v836
    %v854 = vunpack.c.l.b16 %v132
    %v855 = vunpack.c.l.b16 %v133
    %v856 = vunpack.c.l.b16 %v134
    %v857 = vunpack.c.l.b16 %v135
    %v858 = vunpack.c.l.b16 %v136
    %v859 = vunpack.c.l.b16 %v137
    %v860 = vunpack.c.l.b16 %v138
    %v861 = vunpack.c.l.b16 %v139
    %v862 = vpack.c.b16 %v855, %v854
    %v863 = vpack.c.b16 %v857, %v856
    %v864 = vpack.c.b16 %v859, %v858
    %v865 = vpack.c.b16 %v861, %v860
    %v870 = vld [vmem:[%s1] sm:$0xf]
    %v871 = vld [vmem:[%s1 + $0x4] sm:$0xf]
    %v872 = vld [vmem:[%s1 + $0x8] sm:$0xf]
    %v873 = vld [vmem:[%s1 + $0xc] sm:$0xf]
    %v874 = vld [vmem:[%s1 + $0x10] sm:$0xf]
    %v875 = vld [vmem:[%s1 + $0x14] sm:$0xf]
    %v876 = vld [vmem:[%s1 + $0x18] sm:$0xf]
    %v877 = vld [vmem:[%s1 + $0x1c] sm:$0xf]
    %v878 = vld [vmem:[%s1 + $0x20] sm:$0xf]
    %v879 = vld [vmem:[%s1 + $0x24] sm:$0xf]
    %v880 = vld [vmem:[%s1 + $0x28] sm:$0xf]
    %v881 = vld [vmem:[%s1 + $0x2c] sm:$0xf]
    %v882 = vld [vmem:[%s1 + $0x30] sm:$0xf]
    %v883 = vld [vmem:[%s1 + $0x34] sm:$0xf]
    %v884 = vld [vmem:[%s1 + $0x38] sm:$0xf]
    %v885 = vld [vmem:[%s1 + $0x3c] sm:$0xf]
    %v886 = vld [vmem:[%s1 + $0x40] sm:$0xf]
    %v887 = vld [vmem:[%s1 + $0x44] sm:$0xf]
    %v888 = vld [vmem:[%s1 + $0x48] sm:$0xf]
    %v889 = vld [vmem:[%s1 + $0x4c] sm:$0xf]
    %v890 = vld [vmem:[%s1 + $0x50] sm:$0xf]
    %v891 = vld [vmem:[%s1 + $0x54] sm:$0xf]
    %v892 = vld [vmem:[%s1 + $0x58] sm:$0xf]
    %v893 = vld [vmem:[%s1 + $0x5c] sm:$0xf]
    %v894 = vld [vmem:[%s1 + $0x60] sm:$0xf]
    %v895 = vld [vmem:[%s1 + $0x64] sm:$0xf]
    %v896 = vld [vmem:[%s1 + $0x68] sm:$0xf]
    %v897 = vld [vmem:[%s1 + $0x6c] sm:$0xf]
    %v898 = vld [vmem:[%s1 + $0x70] sm:$0xf]
    %v899 = vld [vmem:[%s1 + $0x74] sm:$0xf]
    %v900 = vld [vmem:[%s1 + $0x78] sm:$0xf]
    %v901 = vld [vmem:[%s1 + $0x7c] sm:$0xf]
    %v902 = vld [vmem:[%s1 + $0x80] sm:$0xf]
    %v903 = vld [vmem:[%s1 + $0x84] sm:$0xf]
    %v904 = vld [vmem:[%s1 + $0x88] sm:$0xf]
    %v905 = vld [vmem:[%s1 + $0x8c] sm:$0xf]
    %v906 = vld [vmem:[%s1 + $0x90] sm:$0xf]
    %v907 = vld [vmem:[%s1 + $0x94] sm:$0xf]
    %v908 = vld [vmem:[%s1 + $0x98] sm:$0xf]
    %v909 = vld [vmem:[%s1 + $0x9c] sm:$0xf]
    %v910 = vld [vmem:[%s1 + $0xa0] sm:$0xf]
    %v911 = vld [vmem:[%s1 + $0xa4] sm:$0xf]
    %v912 = vld [vmem:[%s1 + $0xa8] sm:$0xf]
    %v913 = vld [vmem:[%s1 + $0xac] sm:$0xf]
    %v914 = vld [vmem:[%s1 + $0xb0] sm:$0xf]
    %v915 = vld [vmem:[%s1 + $0xb4] sm:$0xf]
    %v916 = vld [vmem:[%s1 + $0xb8] sm:$0xf]
    %v917 = vld [vmem:[%s1 + $0xbc] sm:$0xf]
    %v918 = vld [vmem:[%s1 + $0xc0] sm:$0xf]
    %v919 = vld [vmem:[%s1 + $0xc4] sm:$0xf]
    %v920 = vld [vmem:[%s1 + $0xc8] sm:$0xf]
    %v921 = vld [vmem:[%s1 + $0xcc] sm:$0xf]
    %v922 = vld [vmem:[%s1 + $0xd0] sm:$0xf]
    %v923 = vld [vmem:[%s1 + $0xd4] sm:$0xf]
    %v924 = vld [vmem:[%s1 + $0xd8] sm:$0xf]
    %v925 = vld [vmem:[%s1 + $0xdc] sm:$0xf]
    %v926 = vld [vmem:[%s1 + $0xe0] sm:$0xf]
    %v927 = vld [vmem:[%s1 + $0xe4] sm:$0xf]
    %v928 = vld [vmem:[%s1 + $0xe8] sm:$0xf]
    %v929 = vld [vmem:[%s1 + $0xec] sm:$0xf]
    %v930 = vld [vmem:[%s1 + $0xf0] sm:$0xf]
    %v931 = vld [vmem:[%s1 + $0xf4] sm:$0xf]
    %v932 = vld [vmem:[%s1 + $0xf8] sm:$0xf]
    %v933 = vld [vmem:[%s1 + $0xfc] sm:$0xf]
    %v934 = vld [vmem:[#allocation2] sm:$0x1]
    %v936 = vperm.slane %v934, 0
    %v1002 = vunpack.c.l.b16 %v870
    %v1003 = vunpack.c.l.b16 %v871
    %v1004 = vunpack.c.l.b16 %v872
    %v1005 = vunpack.c.l.b16 %v873
    %v1006 = vunpack.c.l.b16 %v874
    %v1007 = vunpack.c.l.b16 %v875
    %v1008 = vunpack.c.l.b16 %v876
    %v1009 = vunpack.c.l.b16 %v877
    %v1010 = vunpack.c.l.b16 %v878
    %v1011 = vunpack.c.l.b16 %v879
    %v1012 = vunpack.c.l.b16 %v880
    %v1013 = vunpack.c.l.b16 %v881
    %v1014 = vunpack.c.l.b16 %v882
    %v1015 = vunpack.c.l.b16 %v883
    %v1016 = vunpack.c.l.b16 %v884
    %v1017 = vunpack.c.l.b16 %v885
    %v1018 = vunpack.c.l.b16 %v886
    %v1019 = vunpack.c.l.b16 %v887
    %v1020 = vunpack.c.l.b16 %v888
    %v1021 = vunpack.c.l.b16 %v889
    %v1022 = vunpack.c.l.b16 %v890
    %v1023 = vunpack.c.l.b16 %v891
    %v1024 = vunpack.c.l.b16 %v892
    %v1025 = vunpack.c.l.b16 %v893
    %v1026 = vunpack.c.l.b16 %v894
    %v1027 = vunpack.c.l.b16 %v895
    %v1028 = vunpack.c.l.b16 %v896
    %v1029 = vunpack.c.l.b16 %v897
    %v1030 = vunpack.c.l.b16 %v898
    %v1031 = vunpack.c.l.b16 %v899
    %v1032 = vunpack.c.l.b16 %v900
    %v1033 = vunpack.c.l.b16 %v901
    %v1034 = vunpack.c.l.b16 %v902
    %v1035 = vunpack.c.l.b16 %v903
    %v1036 = vunpack.c.l.b16 %v904
    %v1037 = vunpack.c.l.b16 %v905
    %v1038 = vunpack.c.l.b16 %v906
    %v1039 = vunpack.c.l.b16 %v907
    %v1040 = vunpack.c.l.b16 %v908
    %v1041 = vunpack.c.l.b16 %v909
    %v1042 = vunpack.c.l.b16 %v910
    %v1043 = vunpack.c.l.b16 %v911
    %v1044 = vunpack.c.l.b16 %v912
    %v1045 = vunpack.c.l.b16 %v913
    %v1046 = vunpack.c.l.b16 %v914
    %v1047 = vunpack.c.l.b16 %v915
    %v1048 = vunpack.c.l.b16 %v916
    %v1049 = vunpack.c.l.b16 %v917
    %v1050 = vunpack.c.l.b16 %v918
    %v1051 = vunpack.c.l.b16 %v919
    %v1052 = vunpack.c.l.b16 %v920
    %v1053 = vunpack.c.l.b16 %v921
    %v1054 = vunpack.c.l.b16 %v922
    %v1055 = vunpack.c.l.b16 %v923
    %v1056 = vunpack.c.l.b16 %v924
    %v1057 = vunpack.c.l.b16 %v925
    %v1058 = vunpack.c.l.b16 %v926
    %v1059 = vunpack.c.l.b16 %v927
    %v1060 = vunpack.c.l.b16 %v928
    %v1061 = vunpack.c.l.b16 %v929
    %v1062 = vunpack.c.l.b16 %v930
    %v1063 = vunpack.c.l.b16 %v931
    %v1064 = vunpack.c.l.b16 %v932
    %v1065 = vunpack.c.l.b16 %v933
    %v1066 = vpack.c.b16 %v1003, %v1002
    %v1067 = vpack.c.b16 %v1005, %v1004
    %v1068 = vpack.c.b16 %v1007, %v1006
    %v1069 = vpack.c.b16 %v1009, %v1008
    %v1070 = vpack.c.b16 %v1011, %v1010
    %v1071 = vpack.c.b16 %v1013, %v1012
    %v1072 = vpack.c.b16 %v1015, %v1014
    %v1073 = vpack.c.b16 %v1017, %v1016
    %v1074 = vpack.c.b16 %v1019, %v1018
    %v1075 = vpack.c.b16 %v1021, %v1020
    %v1076 = vpack.c.b16 %v1023, %v1022
    %v1077 = vpack.c.b16 %v1025, %v1024
    %v1078 = vpack.c.b16 %v1027, %v1026
    %v1079 = vpack.c.b16 %v1029, %v1028
    %v1080 = vpack.c.b16 %v1031, %v1030
    %v1081 = vpack.c.b16 %v1033, %v1032
    %v1082 = vpack.c.b16 %v1035, %v1034
    %v1083 = vpack.c.b16 %v1037, %v1036
    %v1084 = vpack.c.b16 %v1039, %v1038
    %v1085 = vpack.c.b16 %v1041, %v1040
    %v1086 = vpack.c.b16 %v1043, %v1042
    %v1087 = vpack.c.b16 %v1045, %v1044
    %v1088 = vpack.c.b16 %v1047, %v1046
    %v1089 = vpack.c.b16 %v1049, %v1048
    %v1090 = vpack.c.b16 %v1051, %v1050
    %v1091 = vpack.c.b16 %v1053, %v1052
    %v1092 = vpack.c.b16 %v1055, %v1054
    %v1093 = vpack.c.b16 %v1057, %v1056
    %v1094 = vpack.c.b16 %v1059, %v1058
    %v1095 = vpack.c.b16 %v1061, %v1060
    %v1096 = vpack.c.b16 %v1063, %v1062
    %v1097 = vpack.c.b16 %v1065, %v1064
    %1130 = vmatpush.bf16.msra.mxu0 %v1073
    %1131 = vmatpush.bf16.msra.mxu0 %v1072
    %1132 = vmatpush.bf16.msra.mxu0 %v1071
    %1133 = vmatpush.bf16.msra.mxu0 %v1070
    %1134 = vmatpush.bf16.msra.mxu0 %v1069
    %1135 = vmatpush.bf16.msra.mxu0 %v1068
    %1136 = vmatpush.bf16.msra.mxu0 %v1067
    %1137 = vmatpush.bf16.msra.mxu0 %v1066
    %1138 = vmatmul.bf16.gmra.mxu0 %v790
    %v1139 = vpop.f32.mrf.mxu0
    %v1140 = vadd.f32 %v936, %v1139
    %v1141 = vpop.f32.mrf.mxu0
    %v1142 = vadd.f32 %v936, %v1141
    %1143 = vmatmul.bf16.gmra.mxu0 %v791
    %v1144 = vpop.f32.mrf.mxu0
    %v1145 = vadd.f32 %v936, %v1144
    %v1146 = vpop.f32.mrf.mxu0
    %v1147 = vadd.f32 %v936, %v1146
    %1148 = vmatmul.bf16.gmra.mxu0 %v792
    %v1149 = vpop.f32.mrf.mxu0
    %v1150 = vadd.f32 %v936, %v1149
    %v1151 = vpop.f32.mrf.mxu0
    %v1152 = vadd.f32 %v936, %v1151
    %1153 = vmatmul.bf16.gmra.mxu0 %v793
    %v1154 = vpop.f32.mrf.mxu0
    %v1155 = vadd.f32 %v936, %v1154
    %v1156 = vpop.f32.mrf.mxu0
    %v1157 = vadd.f32 %v936, %v1156
    %1158 = vdwg.mxu0
    %1159 = vmatpush.bf16.msra.mxu0 %v1081
    %1160 = vmatpush.bf16.msra.mxu0 %v1080
    %1161 = vmatpush.bf16.msra.mxu0 %v1079
    %1162 = vmatpush.bf16.msra.mxu0 %v1078
    %1163 = vmatpush.bf16.msra.mxu0 %v1077
    %1164 = vmatpush.bf16.msra.mxu0 %v1076
    %1165 = vmatpush.bf16.msra.mxu0 %v1075
    %1166 = vmatpush.bf16.msra.mxu0 %v1074
    %1167 = vmatmul.bf16.gmra.mxu0 %v814
    %v1168 = vpop.f32.mrf.mxu0
    %v1169 = vadd.f32 %v1140, %v1168
    %v1170 = vpop.f32.mrf.mxu0
    %v1171 = vadd.f32 %v1142, %v1170
    %1172 = vmatmul.bf16.gmra.mxu0 %v815
    %v1173 = vpop.f32.mrf.mxu0
    %v1174 = vadd.f32 %v1145, %v1173
    %v1175 = vpop.f32.mrf.mxu0
    %v1176 = vadd.f32 %v1147, %v1175
    %1177 = vmatmul.bf16.gmra.mxu0 %v816
    %v1178 = vpop.f32.mrf.mxu0
    %v1179 = vadd.f32 %v1150, %v1178
    %v1180 = vpop.f32.mrf.mxu0
    %v1181 = vadd.f32 %v1152, %v1180
    %1182 = vmatmul.bf16.gmra.mxu0 %v817
    %v1183 = vpop.f32.mrf.mxu0
    %v1184 = vadd.f32 %v1155, %v1183
    %v1185 = vpop.f32.mrf.mxu0
    %v1186 = vadd.f32 %v1157, %v1185
    %1187 = vdwg.mxu0
    %1188 = vmatpush.bf16.msra.mxu0 %v1089
    %1189 = vmatpush.bf16.msra.mxu0 %v1088
    %1190 = vmatpush.bf16.msra.mxu0 %v1087
    %1191 = vmatpush.bf16.msra.mxu0 %v1086
    %1192 = vmatpush.bf16.msra.mxu0 %v1085
    %1193 = vmatpush.bf16.msra.mxu0 %v1084
    %1194 = vmatpush.bf16.msra.mxu0 %v1083
    %1195 = vmatpush.bf16.msra.mxu0 %v1082
    %1196 = vmatmul.bf16.gmra.mxu0 %v838
    %v1197 = vpop.f32.mrf.mxu0
    %v1198 = vadd.f32 %v1169, %v1197
    %v1199 = vpop.f32.mrf.mxu0
    %v1200 = vadd.f32 %v1171, %v1199
    %1201 = vmatmul.bf16.gmra.mxu0 %v839
    %v1202 = vpop.f32.mrf.mxu0
    %v1203 = vadd.f32 %v1174, %v1202
    %v1204 = vpop.f32.mrf.mxu0
    %v1205 = vadd.f32 %v1176, %v1204
    %1206 = vmatmul.bf16.gmra.mxu0 %v840
    %v1207 = vpop.f32.mrf.mxu0
    %v1208 = vadd.f32 %v1179, %v1207
    %v1209 = vpop.f32.mrf.mxu0
    %v1210 = vadd.f32 %v1181, %v1209
    %1211 = vmatmul.bf16.gmra.mxu0 %v841
    %v1212 = vpop.f32.mrf.mxu0
    %v1213 = vadd.f32 %v1184, %v1212
    %v1214 = vpop.f32.mrf.mxu0
    %v1215 = vadd.f32 %v1186, %v1214
    %1216 = vdwg.mxu0
    %1217 = vmatpush.bf16.msra.mxu0 %v1097
    %1218 = vmatpush.bf16.msra.mxu0 %v1096
    %1219 = vmatpush.bf16.msra.mxu0 %v1095
    %1220 = vmatpush.bf16.msra.mxu0 %v1094
    %1221 = vmatpush.bf16.msra.mxu0 %v1093
    %1222 = vmatpush.bf16.msra.mxu0 %v1092
    %1223 = vmatpush.bf16.msra.mxu0 %v1091
    %1224 = vmatpush.bf16.msra.mxu0 %v1090
    %1225 = vmatmul.bf16.gmra.mxu0 %v862
    %v1226 = vpop.f32.mrf.mxu0
    %v1227 = vadd.f32 %v1198, %v1226
    %v1228 = vpop.f32.mrf.mxu0
    %v1229 = vadd.f32 %v1200, %v1228
    %1230 = vmatmul.bf16.gmra.mxu0 %v863
    %v1231 = vpop.f32.mrf.mxu0
    %v1232 = vadd.f32 %v1203, %v1231
    %v1233 = vpop.f32.mrf.mxu0
    %v1234 = vadd.f32 %v1205, %v1233
    %1235 = vmatmul.bf16.gmra.mxu0 %v864
    %v1236 = vpop.f32.mrf.mxu0
    %v1237 = vadd.f32 %v1208, %v1236
    %v1238 = vpop.f32.mrf.mxu0
    %v1239 = vadd.f32 %v1210, %v1238
    %1240 = vmatmul.bf16.gmra.mxu0 %v865
    %v1241 = vpop.f32.mrf.mxu0
    %v1242 = vadd.f32 %v1213, %v1241
    %v1243 = vpop.f32.mrf.mxu0
    %v1244 = vadd.f32 %v1215, %v1243
    %1245 = vdwg.mxu0
    %vm1246 = vcmask 523264
    %v1247 = vsel %vm1246, %v1227, 0.0
    %v1248 = vsel %vm1246, %v1229, 0.0
    %v1249 = vadd.f32 %v1247, %v1248
    %v1250 = vsel %vm1246, %v1232, 0.0
    %v1251 = vadd.f32 %v1249, %v1250
    %v1252 = vsel %vm1246, %v1234, 0.0
    %v1253 = vadd.f32 %v1251, %v1252
    %v1254 = vsel %vm1246, %v1237, 0.0
    %v1255 = vadd.f32 %v1253, %v1254
    %v1256 = vsel %vm1246, %v1239, 0.0
    %v1257 = vadd.f32 %v1255, %v1256
    %v1258 = vsel %vm1246, %v1242, 0.0
    %v1259 = vadd.f32 %v1257, %v1258
    %v1260 = vsel %vm1246, %v1244, 0.0
    %v1261 = vadd.f32 %v1259, %v1260
    %v1262 = vrot.slane %v1261, 4
    %v1263 = vadd.f32 %v1261, %v1262
    %v1264 = vrot.slane %v1263, 2
    %v1265 = vadd.f32 %v1263, %v1264
    %v1266 = vrot.slane %v1265, 1
    %v1267 = vadd.f32 %v1265, %v1266
    %v1268 = vadd.f32 %v1267, 0.0
    %v1269 = vmul.f32 %v1227, %v1227
    %v1270 = vmul.f32 %v1229, %v1229
    %v1271 = vmul.f32 %v1232, %v1232
    %v1272 = vmul.f32 %v1234, %v1234
    %v1273 = vmul.f32 %v1237, %v1237
    %v1274 = vmul.f32 %v1239, %v1239
    %v1275 = vmul.f32 %v1242, %v1242
    %v1276 = vmul.f32 %v1244, %v1244
    %v1277 = vsel %vm1246, %v1269, 0.0
    %v1278 = vsel %vm1246, %v1270, 0.0
    %v1279 = vadd.f32 %v1277, %v1278
    %v1280 = vsel %vm1246, %v1271, 0.0
    %v1281 = vadd.f32 %v1279, %v1280
    %v1282 = vsel %vm1246, %v1272, 0.0
    %v1283 = vadd.f32 %v1281, %v1282
    %v1284 = vsel %vm1246, %v1273, 0.0
    %v1285 = vadd.f32 %v1283, %v1284
    %v1286 = vsel %vm1246, %v1274, 0.0
    %v1287 = vadd.f32 %v1285, %v1286
    %v1288 = vsel %vm1246, %v1275, 0.0
    %v1289 = vadd.f32 %v1287, %v1288
    %v1290 = vsel %vm1246, %v1276, 0.0
    %v1291 = vadd.f32 %v1289, %v1290
    %v1292 = vrot.slane %v1291, 4
    %v1293 = vadd.f32 %v1291, %v1292
    %v1294 = vrot.slane %v1293, 2
    %v1295 = vadd.f32 %v1293, %v1294
    %v1296 = vrot.slane %v1295, 1
    %v1297 = vadd.f32 %v1295, %v1296
    %v1298 = vadd.f32 %v1297, 0.0
    %v1307 = vunpack.c.l.b16 %v528
    %v1308 = vunpack.c.l.b16 %v529
    %v1309 = vunpack.c.l.b16 %v530
    %v1310 = vunpack.c.l.b16 %v531
    %v1311 = vunpack.c.l.b16 %v532
    %v1312 = vunpack.c.l.b16 %v533
    %v1313 = vunpack.c.l.b16 %v534
    %v1314 = vunpack.c.l.b16 %v535
    %v1315 = vpack.c.b16 %v1308, %v1307
    %v1316 = vpack.c.b16 %v1310, %v1309
    %v1317 = vpack.c.b16 %v1312, %v1311
    %v1318 = vpack.c.b16 %v1314, %v1313
    %v1331 = vunpack.c.l.b16 %v290
    %v1332 = vunpack.c.l.b16 %v291
    %v1333 = vunpack.c.l.b16 %v292
    %v1334 = vunpack.c.l.b16 %v293
    %v1335 = vunpack.c.l.b16 %v294
    %v1336 = vunpack.c.l.b16 %v295
    %v1337 = vunpack.c.l.b16 %v296
    %v1338 = vunpack.c.l.b16 %v297
    %v1339 = vpack.c.b16 %v1332, %v1331
    %v1340 = vpack.c.b16 %v1334, %v1333
    %v1341 = vpack.c.b16 %v1336, %v1335
    %v1342 = vpack.c.b16 %v1338, %v1337
    %s1347 = scalar_lea.vmem %s1, 256
    %v1348 = vld [vmem:[%s1347] sm:$0xf]
    %v1349 = vld [vmem:[%s1347 + $0x4] sm:$0xf]
    %v1350 = vld [vmem:[%s1347 + $0x8] sm:$0xf]
    %v1351 = vld [vmem:[%s1347 + $0xc] sm:$0xf]
    %v1352 = vld [vmem:[%s1347 + $0x10] sm:$0xf]
    %v1353 = vld [vmem:[%s1347 + $0x14] sm:$0xf]
    %v1354 = vld [vmem:[%s1347 + $0x18] sm:$0xf]
    %v1355 = vld [vmem:[%s1347 + $0x1c] sm:$0xf]
    %v1356 = vld [vmem:[%s1347 + $0x20] sm:$0xf]
    %v1357 = vld [vmem:[%s1347 + $0x24] sm:$0xf]
    %v1358 = vld [vmem:[%s1347 + $0x28] sm:$0xf]
    %v1359 = vld [vmem:[%s1347 + $0x2c] sm:$0xf]
    %v1360 = vld [vmem:[%s1347 + $0x30] sm:$0xf]
    %v1361 = vld [vmem:[%s1347 + $0x34] sm:$0xf]
    %v1362 = vld [vmem:[%s1347 + $0x38] sm:$0xf]
    %v1363 = vld [vmem:[%s1347 + $0x3c] sm:$0xf]
    %v1364 = vld [vmem:[%s1347 + $0x40] sm:$0xf]
    %v1365 = vld [vmem:[%s1347 + $0x44] sm:$0xf]
    %v1366 = vld [vmem:[%s1347 + $0x48] sm:$0xf]
    %v1367 = vld [vmem:[%s1347 + $0x4c] sm:$0xf]
    %v1368 = vld [vmem:[%s1347 + $0x50] sm:$0xf]
    %v1369 = vld [vmem:[%s1347 + $0x54] sm:$0xf]
    %v1370 = vld [vmem:[%s1347 + $0x58] sm:$0xf]
    %v1371 = vld [vmem:[%s1347 + $0x5c] sm:$0xf]
    %v1372 = vld [vmem:[%s1347 + $0x60] sm:$0xf]
    %v1373 = vld [vmem:[%s1347 + $0x64] sm:$0xf]
    %v1374 = vld [vmem:[%s1347 + $0x68] sm:$0xf]
    %v1375 = vld [vmem:[%s1347 + $0x6c] sm:$0xf]
    %v1376 = vld [vmem:[%s1347 + $0x70] sm:$0xf]
    %v1377 = vld [vmem:[%s1347 + $0x74] sm:$0xf]
    %v1378 = vld [vmem:[%s1347 + $0x78] sm:$0xf]
    %v1379 = vld [vmem:[%s1347 + $0x7c] sm:$0xf]
    %v1380 = vld [vmem:[%s1347 + $0x80] sm:$0xf]
    %v1381 = vld [vmem:[%s1347 + $0x84] sm:$0xf]
    %v1382 = vld [vmem:[%s1347 + $0x88] sm:$0xf]
    %v1383 = vld [vmem:[%s1347 + $0x8c] sm:$0xf]
    %v1384 = vld [vmem:[%s1347 + $0x90] sm:$0xf]
    %v1385 = vld [vmem:[%s1347 + $0x94] sm:$0xf]
    %v1386 = vld [vmem:[%s1347 + $0x98] sm:$0xf]
    %v1387 = vld [vmem:[%s1347 + $0x9c] sm:$0xf]
    %v1388 = vld [vmem:[%s1347 + $0xa0] sm:$0xf]
    %v1389 = vld [vmem:[%s1347 + $0xa4] sm:$0xf]
    %v1390 = vld [vmem:[%s1347 + $0xa8] sm:$0xf]
    %v1391 = vld [vmem:[%s1347 + $0xac] sm:$0xf]
    %v1392 = vld [vmem:[%s1347 + $0xb0] sm:$0xf]
    %v1393 = vld [vmem:[%s1347 + $0xb4] sm:$0xf]
    %v1394 = vld [vmem:[%s1347 + $0xb8] sm:$0xf]
    %v1395 = vld [vmem:[%s1347 + $0xbc] sm:$0xf]
    %v1396 = vld [vmem:[%s1347 + $0xc0] sm:$0xf]
    %v1397 = vld [vmem:[%s1347 + $0xc4] sm:$0xf]
    %v1398 = vld [vmem:[%s1347 + $0xc8] sm:$0xf]
    %v1399 = vld [vmem:[%s1347 + $0xcc] sm:$0xf]
    %v1400 = vld [vmem:[%s1347 + $0xd0] sm:$0xf]
    %v1401 = vld [vmem:[%s1347 + $0xd4] sm:$0xf]
    %v1402 = vld [vmem:[%s1347 + $0xd8] sm:$0xf]
    %v1403 = vld [vmem:[%s1347 + $0xdc] sm:$0xf]
    %v1404 = vld [vmem:[%s1347 + $0xe0] sm:$0xf]
    %v1405 = vld [vmem:[%s1347 + $0xe4] sm:$0xf]
    %v1406 = vld [vmem:[%s1347 + $0xe8] sm:$0xf]
    %v1407 = vld [vmem:[%s1347 + $0xec] sm:$0xf]
    %v1408 = vld [vmem:[%s1347 + $0xf0] sm:$0xf]
    %v1409 = vld [vmem:[%s1347 + $0xf4] sm:$0xf]
    %v1410 = vld [vmem:[%s1347 + $0xf8] sm:$0xf]
    %v1411 = vld [vmem:[%s1347 + $0xfc] sm:$0xf]
    %v1476 = vunpack.c.l.b16 %v1348
    %v1477 = vunpack.c.l.b16 %v1349
    %v1478 = vunpack.c.l.b16 %v1350
    %v1479 = vunpack.c.l.b16 %v1351
    %v1480 = vunpack.c.l.b16 %v1352
    %v1481 = vunpack.c.l.b16 %v1353
    %v1482 = vunpack.c.l.b16 %v1354
    %v1483 = vunpack.c.l.b16 %v1355
    %v1484 = vunpack.c.l.b16 %v1356
    %v1485 = vunpack.c.l.b16 %v1357
    %v1486 = vunpack.c.l.b16 %v1358
    %v1487 = vunpack.c.l.b16 %v1359
    %v1488 = vunpack.c.l.b16 %v1360
    %v1489 = vunpack.c.l.b16 %v1361
    %v1490 = vunpack.c.l.b16 %v1362
    %v1491 = vunpack.c.l.b16 %v1363
    %v1492 = vunpack.c.l.b16 %v1364
    %v1493 = vunpack.c.l.b16 %v1365
    %v1494 = vunpack.c.l.b16 %v1366
    %v1495 = vunpack.c.l.b16 %v1367
    %v1496 = vunpack.c.l.b16 %v1368
    %v1497 = vunpack.c.l.b16 %v1369
    %v1498 = vunpack.c.l.b16 %v1370
    %v1499 = vunpack.c.l.b16 %v1371
    %v1500 = vunpack.c.l.b16 %v1372
    %v1501 = vunpack.c.l.b16 %v1373
    %v1502 = vunpack.c.l.b16 %v1374
    %v1503 = vunpack.c.l.b16 %v1375
    %v1504 = vunpack.c.l.b16 %v1376
    %v1505 = vunpack.c.l.b16 %v1377
    %v1506 = vunpack.c.l.b16 %v1378
    %v1507 = vunpack.c.l.b16 %v1379
    %v1508 = vunpack.c.l.b16 %v1380
    %v1509 = vunpack.c.l.b16 %v1381
    %v1510 = vunpack.c.l.b16 %v1382
    %v1511 = vunpack.c.l.b16 %v1383
    %v1512 = vunpack.c.l.b16 %v1384
    %v1513 = vunpack.c.l.b16 %v1385
    %v1514 = vunpack.c.l.b16 %v1386
    %v1515 = vunpack.c.l.b16 %v1387
    %v1516 = vunpack.c.l.b16 %v1388
    %v1517 = vunpack.c.l.b16 %v1389
    %v1518 = vunpack.c.l.b16 %v1390
    %v1519 = vunpack.c.l.b16 %v1391
    %v1520 = vunpack.c.l.b16 %v1392
    %v1521 = vunpack.c.l.b16 %v1393
    %v1522 = vunpack.c.l.b16 %v1394
    %v1523 = vunpack.c.l.b16 %v1395
    %v1524 = vunpack.c.l.b16 %v1396
    %v1525 = vunpack.c.l.b16 %v1397
    %v1526 = vunpack.c.l.b16 %v1398
    %v1527 = vunpack.c.l.b16 %v1399
    %v1528 = vunpack.c.l.b16 %v1400
    %v1529 = vunpack.c.l.b16 %v1401
    %v1530 = vunpack.c.l.b16 %v1402
    %v1531 = vunpack.c.l.b16 %v1403
    %v1532 = vunpack.c.l.b16 %v1404
    %v1533 = vunpack.c.l.b16 %v1405
    %v1534 = vunpack.c.l.b16 %v1406
    %v1535 = vunpack.c.l.b16 %v1407
    %v1536 = vunpack.c.l.b16 %v1408
    %v1537 = vunpack.c.l.b16 %v1409
    %v1538 = vunpack.c.l.b16 %v1410
    %v1539 = vunpack.c.l.b16 %v1411
    %v1540 = vpack.c.b16 %v1477, %v1476
    %v1541 = vpack.c.b16 %v1479, %v1478
    %v1542 = vpack.c.b16 %v1481, %v1480
    %v1543 = vpack.c.b16 %v1483, %v1482
    %v1544 = vpack.c.b16 %v1485, %v1484
    %v1545 = vpack.c.b16 %v1487, %v1486
    %v1546 = vpack.c.b16 %v1489, %v1488
    %v1547 = vpack.c.b16 %v1491, %v1490
    %v1548 = vpack.c.b16 %v1493, %v1492
    %v1549 = vpack.c.b16 %v1495, %v1494
    %v1550 = vpack.c.b16 %v1497, %v1496
    %v1551 = vpack.c.b16 %v1499, %v1498
    %v1552 = vpack.c.b16 %v1501, %v1500
    %v1553 = vpack.c.b16 %v1503, %v1502
    %v1554 = vpack.c.b16 %v1505, %v1504
    %v1555 = vpack.c.b16 %v1507, %v1506
    %v1556 = vpack.c.b16 %v1509, %v1508
    %v1557 = vpack.c.b16 %v1511, %v1510
    %v1558 = vpack.c.b16 %v1513, %v1512
    %v1559 = vpack.c.b16 %v1515, %v1514
    %v1560 = vpack.c.b16 %v1517, %v1516
    %v1561 = vpack.c.b16 %v1519, %v1518
    %v1562 = vpack.c.b16 %v1521, %v1520
    %v1563 = vpack.c.b16 %v1523, %v1522
    %v1564 = vpack.c.b16 %v1525, %v1524
    %v1565 = vpack.c.b16 %v1527, %v1526
    %v1566 = vpack.c.b16 %v1529, %v1528
    %v1567 = vpack.c.b16 %v1531, %v1530
    %v1568 = vpack.c.b16 %v1533, %v1532
    %v1569 = vpack.c.b16 %v1535, %v1534
    %v1570 = vpack.c.b16 %v1537, %v1536
    %v1571 = vpack.c.b16 %v1539, %v1538
    %1604 = vmatpush.bf16.msra.mxu0 %v1547
    %1605 = vmatpush.bf16.msra.mxu0 %v1546
    %1606 = vmatpush.bf16.msra.mxu0 %v1545
    %1607 = vmatpush.bf16.msra.mxu0 %v1544
    %1608 = vmatpush.bf16.msra.mxu0 %v1543
    %1609 = vmatpush.bf16.msra.mxu0 %v1542
    %1610 = vmatpush.bf16.msra.mxu0 %v1541
    %1611 = vmatpush.bf16.msra.mxu0 %v1540
    %1612 = vmatmul.bf16.gmra.mxu0 %v1315
    %v1613 = vpop.f32.mrf.mxu0
    %v1614 = vadd.f32 %v936, %v1613
    %v1615 = vpop.f32.mrf.mxu0
    %v1616 = vadd.f32 %v936, %v1615
    %1617 = vmatmul.bf16.gmra.mxu0 %v1316
    %v1618 = vpop.f32.mrf.mxu0
    %v1619 = vadd.f32 %v936, %v1618
    %v1620 = vpop.f32.mrf.mxu0
    %v1621 = vadd.f32 %v936, %v1620
    %1622 = vmatmul.bf16.gmra.mxu0 %v1317
    %v1623 = vpop.f32.mrf.mxu0
    %v1624 = vadd.f32 %v936, %v1623
    %v1625 = vpop.f32.mrf.mxu0
    %v1626 = vadd.f32 %v936, %v1625
    %1627 = vmatmul.bf16.gmra.mxu0 %v1318
    %v1628 = vpop.f32.mrf.mxu0
    %v1629 = vadd.f32 %v936, %v1628
    %v1630 = vpop.f32.mrf.mxu0
    %v1631 = vadd.f32 %v936, %v1630
    %1632 = vdwg.mxu0
    %1633 = vmatpush.bf16.msra.mxu0 %v1555
    %1634 = vmatpush.bf16.msra.mxu0 %v1554
    %1635 = vmatpush.bf16.msra.mxu0 %v1553
    %1636 = vmatpush.bf16.msra.mxu0 %v1552
    %1637 = vmatpush.bf16.msra.mxu0 %v1551
    %1638 = vmatpush.bf16.msra.mxu0 %v1550
    %1639 = vmatpush.bf16.msra.mxu0 %v1549
    %1640 = vmatpush.bf16.msra.mxu0 %v1548
    %1641 = vmatmul.bf16.gmra.mxu0 %v790
    %v1642 = vpop.f32.mrf.mxu0
    %v1643 = vadd.f32 %v1614, %v1642
    %v1644 = vpop.f32.mrf.mxu0
    %v1645 = vadd.f32 %v1616, %v1644
    %1646 = vmatmul.bf16.gmra.mxu0 %v791
    %v1647 = vpop.f32.mrf.mxu0
    %v1648 = vadd.f32 %v1619, %v1647
    %v1649 = vpop.f32.mrf.mxu0
    %v1650 = vadd.f32 %v1621, %v1649
    %1651 = vmatmul.bf16.gmra.mxu0 %v792
    %v1652 = vpop.f32.mrf.mxu0
    %v1653 = vadd.f32 %v1624, %v1652
    %v1654 = vpop.f32.mrf.mxu0
    %v1655 = vadd.f32 %v1626, %v1654
    %1656 = vmatmul.bf16.gmra.mxu0 %v793
    %v1657 = vpop.f32.mrf.mxu0
    %v1658 = vadd.f32 %v1629, %v1657
    %v1659 = vpop.f32.mrf.mxu0
    %v1660 = vadd.f32 %v1631, %v1659
    %1661 = vdwg.mxu0
    %1662 = vmatpush.bf16.msra.mxu0 %v1563
    %1663 = vmatpush.bf16.msra.mxu0 %v1562
    %1664 = vmatpush.bf16.msra.mxu0 %v1561
    %1665 = vmatpush.bf16.msra.mxu0 %v1560
    %1666 = vmatpush.bf16.msra.mxu0 %v1559
    %1667 = vmatpush.bf16.msra.mxu0 %v1558
    %1668 = vmatpush.bf16.msra.mxu0 %v1557
    %1669 = vmatpush.bf16.msra.mxu0 %v1556
    %1670 = vmatmul.bf16.gmra.mxu0 %v1339
    %v1671 = vpop.f32.mrf.mxu0
    %v1672 = vadd.f32 %v1643, %v1671
    %v1673 = vpop.f32.mrf.mxu0
    %v1674 = vadd.f32 %v1645, %v1673
    %1675 = vmatmul.bf16.gmra.mxu0 %v1340
    %v1676 = vpop.f32.mrf.mxu0
    %v1677 = vadd.f32 %v1648, %v1676
    %v1678 = vpop.f32.mrf.mxu0
    %v1679 = vadd.f32 %v1650, %v1678
    %1680 = vmatmul.bf16.gmra.mxu0 %v1341
    %v1681 = vpop.f32.mrf.mxu0
    %v1682 = vadd.f32 %v1653, %v1681
    %v1683 = vpop.f32.mrf.mxu0
    %v1684 = vadd.f32 %v1655, %v1683
    %1685 = vmatmul.bf16.gmra.mxu0 %v1342
    %v1686 = vpop.f32.mrf.mxu0
    %v1687 = vadd.f32 %v1658, %v1686
    %v1688 = vpop.f32.mrf.mxu0
    %v1689 = vadd.f32 %v1660, %v1688
    %1690 = vdwg.mxu0
    %1691 = vmatpush.bf16.msra.mxu0 %v1571
    %1692 = vmatpush.bf16.msra.mxu0 %v1570
    %1693 = vmatpush.bf16.msra.mxu0 %v1569
    %1694 = vmatpush.bf16.msra.mxu0 %v1568
    %1695 = vmatpush.bf16.msra.mxu0 %v1567
    %1696 = vmatpush.bf16.msra.mxu0 %v1566
    %1697 = vmatpush.bf16.msra.mxu0 %v1565
    %1698 = vmatpush.bf16.msra.mxu0 %v1564
    %1699 = vmatmul.bf16.gmra.mxu0 %v838
    %v1700 = vpop.f32.mrf.mxu0
    %v1701 = vadd.f32 %v1672, %v1700
    %v1702 = vpop.f32.mrf.mxu0
    %v1703 = vadd.f32 %v1674, %v1702
    %1704 = vmatmul.bf16.gmra.mxu0 %v839
    %v1705 = vpop.f32.mrf.mxu0
    %v1706 = vadd.f32 %v1677, %v1705
    %v1707 = vpop.f32.mrf.mxu0
    %v1708 = vadd.f32 %v1679, %v1707
    %1709 = vmatmul.bf16.gmra.mxu0 %v840
    %v1710 = vpop.f32.mrf.mxu0
    %v1711 = vadd.f32 %v1682, %v1710
    %v1712 = vpop.f32.mrf.mxu0
    %v1713 = vadd.f32 %v1684, %v1712
    %1714 = vmatmul.bf16.gmra.mxu0 %v841
    %v1715 = vpop.f32.mrf.mxu0
    %v1716 = vadd.f32 %v1687, %v1715
    %v1717 = vpop.f32.mrf.mxu0
    %v1718 = vadd.f32 %v1689, %v1717
    %1719 = vdwg.mxu0
    %v1720 = vsel %vm1246, %v1701, 0.0
    %v1721 = vsel %vm1246, %v1703, 0.0
    %v1722 = vadd.f32 %v1720, %v1721
    %v1723 = vsel %vm1246, %v1706, 0.0
    %v1724 = vadd.f32 %v1722, %v1723
    %v1725 = vsel %vm1246, %v1708, 0.0
    %v1726 = vadd.f32 %v1724, %v1725
    %v1727 = vsel %vm1246, %v1711, 0.0
    %v1728 = vadd.f32 %v1726, %v1727
    %v1729 = vsel %vm1246, %v1713, 0.0
    %v1730 = vadd.f32 %v1728, %v1729
    %v1731 = vsel %vm1246, %v1716, 0.0
    %v1732 = vadd.f32 %v1730, %v1731
    %v1733 = vsel %vm1246, %v1718, 0.0
    %v1734 = vadd.f32 %v1732, %v1733
    %v1735 = vrot.slane %v1734, 4
    %v1736 = vadd.f32 %v1734, %v1735
    %v1737 = vrot.slane %v1736, 2
    %v1738 = vadd.f32 %v1736, %v1737
    %v1739 = vrot.slane %v1738, 1
    %v1740 = vadd.f32 %v1738, %v1739
    %v1741 = vadd.f32 %v1268, %v1740
    %v1742 = vmul.f32 %v1701, %v1701
    %v1743 = vmul.f32 %v1703, %v1703
    %v1744 = vmul.f32 %v1706, %v1706
    %v1745 = vmul.f32 %v1708, %v1708
    %v1746 = vmul.f32 %v1711, %v1711
    %v1747 = vmul.f32 %v1713, %v1713
    %v1748 = vmul.f32 %v1716, %v1716
    %v1749 = vmul.f32 %v1718, %v1718
    %v1750 = vsel %vm1246, %v1742, 0.0
    %v1751 = vsel %vm1246, %v1743, 0.0
    %v1752 = vadd.f32 %v1750, %v1751
    %v1753 = vsel %vm1246, %v1744, 0.0
    %v1754 = vadd.f32 %v1752, %v1753
    %v1755 = vsel %vm1246, %v1745, 0.0
    %v1756 = vadd.f32 %v1754, %v1755
    %v1757 = vsel %vm1246, %v1746, 0.0
    %v1758 = vadd.f32 %v1756, %v1757
    %v1759 = vsel %vm1246, %v1747, 0.0
    %v1760 = vadd.f32 %v1758, %v1759
    %v1761 = vsel %vm1246, %v1748, 0.0
    %v1762 = vadd.f32 %v1760, %v1761
    %v1763 = vsel %vm1246, %v1749, 0.0
    %v1764 = vadd.f32 %v1762, %v1763
    %v1765 = vrot.slane %v1764, 4
    %v1766 = vadd.f32 %v1764, %v1765
    %v1767 = vrot.slane %v1766, 2
    %v1768 = vadd.f32 %v1766, %v1767
    %v1769 = vrot.slane %v1768, 1
    %v1770 = vadd.f32 %v1768, %v1769
    %v1771 = vadd.f32 %v1298, %v1770
    %v1780 = vunpack.c.l.b16 %v687
    %v1781 = vunpack.c.l.b16 %v688
    %v1782 = vunpack.c.l.b16 %v689
    %v1783 = vunpack.c.l.b16 %v690
    %v1784 = vunpack.c.l.b16 %v691
    %v1785 = vunpack.c.l.b16 %v692
    %v1786 = vunpack.c.l.b16 %v693
    %v1787 = vunpack.c.l.b16 %v694
    %v1788 = vpack.c.b16 %v1781, %v1780
    %v1789 = vpack.c.b16 %v1783, %v1782
    %v1790 = vpack.c.b16 %v1785, %v1784
    %v1791 = vpack.c.b16 %v1787, %v1786
    %v1804 = vunpack.c.l.b16 %v608
    %v1805 = vunpack.c.l.b16 %v609
    %v1806 = vunpack.c.l.b16 %v610
    %v1807 = vunpack.c.l.b16 %v611
    %v1808 = vunpack.c.l.b16 %v612
    %v1809 = vunpack.c.l.b16 %v613
    %v1810 = vunpack.c.l.b16 %v614
    %v1811 = vunpack.c.l.b16 %v615
    %v1812 = vpack.c.b16 %v1805, %v1804
    %v1813 = vpack.c.b16 %v1807, %v1806
    %v1814 = vpack.c.b16 %v1809, %v1808
    %v1815 = vpack.c.b16 %v1811, %v1810
    %s1820 = scalar_lea.vmem %s1, 512
    %v1821 = vld [vmem:[%s1820] sm:$0xf]
    %v1822 = vld [vmem:[%s1820 + $0x4] sm:$0xf]
    %v1823 = vld [vmem:[%s1820 + $0x8] sm:$0xf]
    %v1824 = vld [vmem:[%s1820 + $0xc] sm:$0xf]
    %v1825 = vld [vmem:[%s1820 + $0x10] sm:$0xf]
    %v1826 = vld [vmem:[%s1820 + $0x14] sm:$0xf]
    %v1827 = vld [vmem:[%s1820 + $0x18] sm:$0xf]
    %v1828 = vld [vmem:[%s1820 + $0x1c] sm:$0xf]
    %v1829 = vld [vmem:[%s1820 + $0x20] sm:$0xf]
    %v1830 = vld [vmem:[%s1820 + $0x24] sm:$0xf]
    %v1831 = vld [vmem:[%s1820 + $0x28] sm:$0xf]
    %v1832 = vld [vmem:[%s1820 + $0x2c] sm:$0xf]
    %v1833 = vld [vmem:[%s1820 + $0x30] sm:$0xf]
    %v1834 = vld [vmem:[%s1820 + $0x34] sm:$0xf]
    %v1835 = vld [vmem:[%s1820 + $0x38] sm:$0xf]
    %v1836 = vld [vmem:[%s1820 + $0x3c] sm:$0xf]
    %v1837 = vld [vmem:[%s1820 + $0x40] sm:$0xf]
    %v1838 = vld [vmem:[%s1820 + $0x44] sm:$0xf]
    %v1839 = vld [vmem:[%s1820 + $0x48] sm:$0xf]
    %v1840 = vld [vmem:[%s1820 + $0x4c] sm:$0xf]
    %v1841 = vld [vmem:[%s1820 + $0x50] sm:$0xf]
    %v1842 = vld [vmem:[%s1820 + $0x54] sm:$0xf]
    %v1843 = vld [vmem:[%s1820 + $0x58] sm:$0xf]
    %v1844 = vld [vmem:[%s1820 + $0x5c] sm:$0xf]
    %v1845 = vld [vmem:[%s1820 + $0x60] sm:$0xf]
    %v1846 = vld [vmem:[%s1820 + $0x64] sm:$0xf]
    %v1847 = vld [vmem:[%s1820 + $0x68] sm:$0xf]
    %v1848 = vld [vmem:[%s1820 + $0x6c] sm:$0xf]
    %v1849 = vld [vmem:[%s1820 + $0x70] sm:$0xf]
    %v1850 = vld [vmem:[%s1820 + $0x74] sm:$0xf]
    %v1851 = vld [vmem:[%s1820 + $0x78] sm:$0xf]
    %v1852 = vld [vmem:[%s1820 + $0x7c] sm:$0xf]
    %v1853 = vld [vmem:[%s1820 + $0x80] sm:$0xf]
    %v1854 = vld [vmem:[%s1820 + $0x84] sm:$0xf]
    %v1855 = vld [vmem:[%s1820 + $0x88] sm:$0xf]
    %v1856 = vld [vmem:[%s1820 + $0x8c] sm:$0xf]
    %v1857 = vld [vmem:[%s1820 + $0x90] sm:$0xf]
    %v1858 = vld [vmem:[%s1820 + $0x94] sm:$0xf]
    %v1859 = vld [vmem:[%s1820 + $0x98] sm:$0xf]
    %v1860 = vld [vmem:[%s1820 + $0x9c] sm:$0xf]
    %v1861 = vld [vmem:[%s1820 + $0xa0] sm:$0xf]
    %v1862 = vld [vmem:[%s1820 + $0xa4] sm:$0xf]
    %v1863 = vld [vmem:[%s1820 + $0xa8] sm:$0xf]
    %v1864 = vld [vmem:[%s1820 + $0xac] sm:$0xf]
    %v1865 = vld [vmem:[%s1820 + $0xb0] sm:$0xf]
    %v1866 = vld [vmem:[%s1820 + $0xb4] sm:$0xf]
    %v1867 = vld [vmem:[%s1820 + $0xb8] sm:$0xf]
    %v1868 = vld [vmem:[%s1820 + $0xbc] sm:$0xf]
    %v1869 = vld [vmem:[%s1820 + $0xc0] sm:$0xf]
    %v1870 = vld [vmem:[%s1820 + $0xc4] sm:$0xf]
    %v1871 = vld [vmem:[%s1820 + $0xc8] sm:$0xf]
    %v1872 = vld [vmem:[%s1820 + $0xcc] sm:$0xf]
    %v1873 = vld [vmem:[%s1820 + $0xd0] sm:$0xf]
    %v1874 = vld [vmem:[%s1820 + $0xd4] sm:$0xf]
    %v1875 = vld [vmem:[%s1820 + $0xd8] sm:$0xf]
    %v1876 = vld [vmem:[%s1820 + $0xdc] sm:$0xf]
    %v1877 = vld [vmem:[%s1820 + $0xe0] sm:$0xf]
    %v1878 = vld [vmem:[%s1820 + $0xe4] sm:$0xf]
    %v1879 = vld [vmem:[%s1820 + $0xe8] sm:$0xf]
    %v1880 = vld [vmem:[%s1820 + $0xec] sm:$0xf]
    %v1881 = vld [vmem:[%s1820 + $0xf0] sm:$0xf]
    %v1882 = vld [vmem:[%s1820 + $0xf4] sm:$0xf]
    %v1883 = vld [vmem:[%s1820 + $0xf8] sm:$0xf]
    %v1884 = vld [vmem:[%s1820 + $0xfc] sm:$0xf]
    %v1949 = vunpack.c.l.b16 %v1821
    %v1950 = vunpack.c.l.b16 %v1822
    %v1951 = vunpack.c.l.b16 %v1823
    %v1952 = vunpack.c.l.b16 %v1824
    %v1953 = vunpack.c.l.b16 %v1825
    %v1954 = vunpack.c.l.b16 %v1826
    %v1955 = vunpack.c.l.b16 %v1827
    %v1956 = vunpack.c.l.b16 %v1828
    %v1957 = vunpack.c.l.b16 %v1829
    %v1958 = vunpack.c.l.b16 %v1830
    %v1959 = vunpack.c.l.b16 %v1831
    %v1960 = vunpack.c.l.b16 %v1832
    %v1961 = vunpack.c.l.b16 %v1833
    %v1962 = vunpack.c.l.b16 %v1834
    %v1963 = vunpack.c.l.b16 %v1835
    %v1964 = vunpack.c.l.b16 %v1836
    %v1965 = vunpack.c.l.b16 %v1837
    %v1966 = vunpack.c.l.b16 %v1838
    %v1967 = vunpack.c.l.b16 %v1839
    %v1968 = vunpack.c.l.b16 %v1840
    %v1969 = vunpack.c.l.b16 %v1841
    %v1970 = vunpack.c.l.b16 %v1842
    %v1971 = vunpack.c.l.b16 %v1843
    %v1972 = vunpack.c.l.b16 %v1844
    %v1973 = vunpack.c.l.b16 %v1845
    %v1974 = vunpack.c.l.b16 %v1846
    %v1975 = vunpack.c.l.b16 %v1847
    %v1976 = vunpack.c.l.b16 %v1848
    %v1977 = vunpack.c.l.b16 %v1849
    %v1978 = vunpack.c.l.b16 %v1850
    %v1979 = vunpack.c.l.b16 %v1851
    %v1980 = vunpack.c.l.b16 %v1852
    %v1981 = vunpack.c.l.b16 %v1853
    %v1982 = vunpack.c.l.b16 %v1854
    %v1983 = vunpack.c.l.b16 %v1855
    %v1984 = vunpack.c.l.b16 %v1856
    %v1985 = vunpack.c.l.b16 %v1857
    %v1986 = vunpack.c.l.b16 %v1858
    %v1987 = vunpack.c.l.b16 %v1859
    %v1988 = vunpack.c.l.b16 %v1860
    %v1989 = vunpack.c.l.b16 %v1861
    %v1990 = vunpack.c.l.b16 %v1862
    %v1991 = vunpack.c.l.b16 %v1863
    %v1992 = vunpack.c.l.b16 %v1864
    %v1993 = vunpack.c.l.b16 %v1865
    %v1994 = vunpack.c.l.b16 %v1866
    %v1995 = vunpack.c.l.b16 %v1867
    %v1996 = vunpack.c.l.b16 %v1868
    %v1997 = vunpack.c.l.b16 %v1869
    %v1998 = vunpack.c.l.b16 %v1870
    %v1999 = vunpack.c.l.b16 %v1871
    %v2000 = vunpack.c.l.b16 %v1872
    %v2001 = vunpack.c.l.b16 %v1873
    %v2002 = vunpack.c.l.b16 %v1874
    %v2003 = vunpack.c.l.b16 %v1875
    %v2004 = vunpack.c.l.b16 %v1876
    %v2005 = vunpack.c.l.b16 %v1877
    %v2006 = vunpack.c.l.b16 %v1878
    %v2007 = vunpack.c.l.b16 %v1879
    %v2008 = vunpack.c.l.b16 %v1880
    %v2009 = vunpack.c.l.b16 %v1881
    %v2010 = vunpack.c.l.b16 %v1882
    %v2011 = vunpack.c.l.b16 %v1883
    %v2012 = vunpack.c.l.b16 %v1884
    %v2013 = vpack.c.b16 %v1950, %v1949
    %v2014 = vpack.c.b16 %v1952, %v1951
    %v2015 = vpack.c.b16 %v1954, %v1953
    %v2016 = vpack.c.b16 %v1956, %v1955
    %v2017 = vpack.c.b16 %v1958, %v1957
    %v2018 = vpack.c.b16 %v1960, %v1959
    %v2019 = vpack.c.b16 %v1962, %v1961
    %v2020 = vpack.c.b16 %v1964, %v1963
    %v2021 = vpack.c.b16 %v1966, %v1965
    %v2022 = vpack.c.b16 %v1968, %v1967
    %v2023 = vpack.c.b16 %v1970, %v1969
    %v2024 = vpack.c.b16 %v1972, %v1971
    %v2025 = vpack.c.b16 %v1974, %v1973
    %v2026 = vpack.c.b16 %v1976, %v1975
    %v2027 = vpack.c.b16 %v1978, %v1977
    %v2028 = vpack.c.b16 %v1980, %v1979
    %v2029 = vpack.c.b16 %v1982, %v1981
    %v2030 = vpack.c.b16 %v1984, %v1983
    %v2031 = vpack.c.b16 %v1986, %v1985
    %v2032 = vpack.c.b16 %v1988, %v1987
    %v2033 = vpack.c.b16 %v1990, %v1989
    %v2034 = vpack.c.b16 %v1992, %v1991
    %v2035 = vpack.c.b16 %v1994, %v1993
    %v2036 = vpack.c.b16 %v1996, %v1995
    %v2037 = vpack.c.b16 %v1998, %v1997
    %v2038 = vpack.c.b16 %v2000, %v1999
    %v2039 = vpack.c.b16 %v2002, %v2001
    %v2040 = vpack.c.b16 %v2004, %v2003
    %v2041 = vpack.c.b16 %v2006, %v2005
    %v2042 = vpack.c.b16 %v2008, %v2007
    %v2043 = vpack.c.b16 %v2010, %v2009
    %v2044 = vpack.c.b16 %v2012, %v2011
    %2077 = vmatpush.bf16.msra.mxu0 %v2020
    %2078 = vmatpush.bf16.msra.mxu0 %v2019
    %2079 = vmatpush.bf16.msra.mxu0 %v2018
    %2080 = vmatpush.bf16.msra.mxu0 %v2017
    %2081 = vmatpush.bf16.msra.mxu0 %v2016
    %2082 = vmatpush.bf16.msra.mxu0 %v2015
    %2083 = vmatpush.bf16.msra.mxu0 %v2014
    %2084 = vmatpush.bf16.msra.mxu0 %v2013
    %2085 = vmatmul.bf16.gmra.mxu0 %v1788
    %v2086 = vpop.f32.mrf.mxu0
    %v2087 = vadd.f32 %v936, %v2086
    %v2088 = vpop.f32.mrf.mxu0
    %v2089 = vadd.f32 %v936, %v2088
    %2090 = vmatmul.bf16.gmra.mxu0 %v1789
    %v2091 = vpop.f32.mrf.mxu0
    %v2092 = vadd.f32 %v936, %v2091
    %v2093 = vpop.f32.mrf.mxu0
    %v2094 = vadd.f32 %v936, %v2093
    %2095 = vmatmul.bf16.gmra.mxu0 %v1790
    %v2096 = vpop.f32.mrf.mxu0
    %v2097 = vadd.f32 %v936, %v2096
    %v2098 = vpop.f32.mrf.mxu0
    %v2099 = vadd.f32 %v936, %v2098
    %2100 = vmatmul.bf16.gmra.mxu0 %v1791
    %v2101 = vpop.f32.mrf.mxu0
    %v2102 = vadd.f32 %v936, %v2101
    %v2103 = vpop.f32.mrf.mxu0
    %v2104 = vadd.f32 %v936, %v2103
    %2105 = vdwg.mxu0
    %2106 = vmatpush.bf16.msra.mxu0 %v2028
    %2107 = vmatpush.bf16.msra.mxu0 %v2027
    %2108 = vmatpush.bf16.msra.mxu0 %v2026
    %2109 = vmatpush.bf16.msra.mxu0 %v2025
    %2110 = vmatpush.bf16.msra.mxu0 %v2024
    %2111 = vmatpush.bf16.msra.mxu0 %v2023
    %2112 = vmatpush.bf16.msra.mxu0 %v2022
    %2113 = vmatpush.bf16.msra.mxu0 %v2021
    %2114 = vmatmul.bf16.gmra.mxu0 %v1812
    %v2115 = vpop.f32.mrf.mxu0
    %v2116 = vadd.f32 %v2087, %v2115
    %v2117 = vpop.f32.mrf.mxu0
    %v2118 = vadd.f32 %v2089, %v2117
    %2119 = vmatmul.bf16.gmra.mxu0 %v1813
    %v2120 = vpop.f32.mrf.mxu0
    %v2121 = vadd.f32 %v2092, %v2120
    %v2122 = vpop.f32.mrf.mxu0
    %v2123 = vadd.f32 %v2094, %v2122
    %2124 = vmatmul.bf16.gmra.mxu0 %v1814
    %v2125 = vpop.f32.mrf.mxu0
    %v2126 = vadd.f32 %v2097, %v2125
    %v2127 = vpop.f32.mrf.mxu0
    %v2128 = vadd.f32 %v2099, %v2127
    %2129 = vmatmul.bf16.gmra.mxu0 %v1815
    %v2130 = vpop.f32.mrf.mxu0
    %v2131 = vadd.f32 %v2102, %v2130
    %v2132 = vpop.f32.mrf.mxu0
    %v2133 = vadd.f32 %v2104, %v2132
    %2134 = vdwg.mxu0
    %2135 = vmatpush.bf16.msra.mxu0 %v2036
    %2136 = vmatpush.bf16.msra.mxu0 %v2035
    %2137 = vmatpush.bf16.msra.mxu0 %v2034
    %2138 = vmatpush.bf16.msra.mxu0 %v2033
    %2139 = vmatpush.bf16.msra.mxu0 %v2032
    %2140 = vmatpush.bf16.msra.mxu0 %v2031
    %2141 = vmatpush.bf16.msra.mxu0 %v2030
    %2142 = vmatpush.bf16.msra.mxu0 %v2029
    %2143 = vmatmul.bf16.gmra.mxu0 %v790
    %v2144 = vpop.f32.mrf.mxu0
    %v2145 = vadd.f32 %v2116, %v2144
    %v2146 = vpop.f32.mrf.mxu0
    %v2147 = vadd.f32 %v2118, %v2146
    %2148 = vmatmul.bf16.gmra.mxu0 %v791
    %v2149 = vpop.f32.mrf.mxu0
    %v2150 = vadd.f32 %v2121, %v2149
    %v2151 = vpop.f32.mrf.mxu0
    %v2152 = vadd.f32 %v2123, %v2151
    %2153 = vmatmul.bf16.gmra.mxu0 %v792
    %v2154 = vpop.f32.mrf.mxu0
    %v2155 = vadd.f32 %v2126, %v2154
    %v2156 = vpop.f32.mrf.mxu0
    %v2157 = vadd.f32 %v2128, %v2156
    %2158 = vmatmul.bf16.gmra.mxu0 %v793
    %v2159 = vpop.f32.mrf.mxu0
    %v2160 = vadd.f32 %v2131, %v2159
    %v2161 = vpop.f32.mrf.mxu0
    %v2162 = vadd.f32 %v2133, %v2161
    %2163 = vdwg.mxu0
    %2164 = vmatpush.bf16.msra.mxu0 %v2044
    %2165 = vmatpush.bf16.msra.mxu0 %v2043
    %2166 = vmatpush.bf16.msra.mxu0 %v2042
    %2167 = vmatpush.bf16.msra.mxu0 %v2041
    %2168 = vmatpush.bf16.msra.mxu0 %v2040
    %2169 = vmatpush.bf16.msra.mxu0 %v2039
    %2170 = vmatpush.bf16.msra.mxu0 %v2038
    %2171 = vmatpush.bf16.msra.mxu0 %v2037
    %2172 = vmatmul.bf16.gmra.mxu0 %v814
    %v2173 = vpop.f32.mrf.mxu0
    %v2174 = vadd.f32 %v2145, %v2173
    %v2175 = vpop.f32.mrf.mxu0
    %v2176 = vadd.f32 %v2147, %v2175
    %2177 = vmatmul.bf16.gmra.mxu0 %v815
    %v2178 = vpop.f32.mrf.mxu0
    %v2179 = vadd.f32 %v2150, %v2178
    %v2180 = vpop.f32.mrf.mxu0
    %v2181 = vadd.f32 %v2152, %v2180
    %2182 = vmatmul.bf16.gmra.mxu0 %v816
    %v2183 = vpop.f32.mrf.mxu0
    %v2184 = vadd.f32 %v2155, %v2183
    %v2185 = vpop.f32.mrf.mxu0
    %v2186 = vadd.f32 %v2157, %v2185
    %2187 = vmatmul.bf16.gmra.mxu0 %v817
    %v2188 = vpop.f32.mrf.mxu0
    %v2189 = vadd.f32 %v2160, %v2188
    %v2190 = vpop.f32.mrf.mxu0
    %v2191 = vadd.f32 %v2162, %v2190
    %2192 = vdwg.mxu0
    %v2193 = vsel %vm1246, %v2174, 0.0
    %v2194 = vsel %vm1246, %v2176, 0.0
    %v2195 = vadd.f32 %v2193, %v2194
    %v2196 = vsel %vm1246, %v2179, 0.0
    %v2197 = vadd.f32 %v2195, %v2196
    %v2198 = vsel %vm1246, %v2181, 0.0
    %v2199 = vadd.f32 %v2197, %v2198
    %v2200 = vsel %vm1246, %v2184, 0.0
    %v2201 = vadd.f32 %v2199, %v2200
    %v2202 = vsel %vm1246, %v2186, 0.0
    %v2203 = vadd.f32 %v2201, %v2202
    %v2204 = vsel %vm1246, %v2189, 0.0
    %v2205 = vadd.f32 %v2203, %v2204
    %v2206 = vsel %vm1246, %v2191, 0.0
    %v2207 = vadd.f32 %v2205, %v2206
    %v2208 = vrot.slane %v2207, 4
    %v2209 = vadd.f32 %v2207, %v2208
    %v2210 = vrot.slane %v2209, 2
    %v2211 = vadd.f32 %v2209, %v2210
    %v2212 = vrot.slane %v2211, 1
    %v2213 = vadd.f32 %v2211, %v2212
    %v2214 = vadd.f32 %v1741, %v2213
    %v2215 = vmul.f32 %v2174, %v2174
    %v2216 = vmul.f32 %v2176, %v2176
    %v2217 = vmul.f32 %v2179, %v2179
    %v2218 = vmul.f32 %v2181, %v2181
    %v2219 = vmul.f32 %v2184, %v2184
    %v2220 = vmul.f32 %v2186, %v2186
    %v2221 = vmul.f32 %v2189, %v2189
    %v2222 = vmul.f32 %v2191, %v2191
    %v2223 = vsel %vm1246, %v2215, 0.0
    %v2224 = vsel %vm1246, %v2216, 0.0
    %v2225 = vadd.f32 %v2223, %v2224
    %v2226 = vsel %vm1246, %v2217, 0.0
    %v2227 = vadd.f32 %v2225, %v2226
    %v2228 = vsel %vm1246, %v2218, 0.0
    %v2229 = vadd.f32 %v2227, %v2228
    %v2230 = vsel %vm1246, %v2219, 0.0
    %v2231 = vadd.f32 %v2229, %v2230
    %v2232 = vsel %vm1246, %v2220, 0.0
    %v2233 = vadd.f32 %v2231, %v2232
    %v2234 = vsel %vm1246, %v2221, 0.0
    %v2235 = vadd.f32 %v2233, %v2234
    %v2236 = vsel %vm1246, %v2222, 0.0
    %v2237 = vadd.f32 %v2235, %v2236
    %v2238 = vrot.slane %v2237, 4
    %v2239 = vadd.f32 %v2237, %v2238
    %v2240 = vrot.slane %v2239, 2
    %v2241 = vadd.f32 %v2239, %v2240
    %v2242 = vrot.slane %v2241, 1
    %v2243 = vadd.f32 %v2241, %v2242
    %v2244 = vadd.f32 %v1771, %v2243
    %v2253 = vunpack.c.l.b16 %v766
    %v2254 = vunpack.c.l.b16 %v767
    %v2255 = vunpack.c.l.b16 %v768
    %v2256 = vunpack.c.l.b16 %v769
    %v2257 = vunpack.c.l.b16 %v770
    %v2258 = vunpack.c.l.b16 %v771
    %v2259 = vunpack.c.l.b16 %v772
    %v2260 = vunpack.c.l.b16 %v773
    %v2261 = vpack.c.b16 %v2254, %v2253
    %v2262 = vpack.c.b16 %v2256, %v2255
    %v2263 = vpack.c.b16 %v2258, %v2257
    %v2264 = vpack.c.b16 %v2260, %v2259
    %s2269 = scalar_lea.vmem %s1, 768
    %v2270 = vld [vmem:[%s2269] sm:$0xf]
    %v2271 = vld [vmem:[%s2269 + $0x4] sm:$0xf]
    %v2272 = vld [vmem:[%s2269 + $0x8] sm:$0xf]
    %v2273 = vld [vmem:[%s2269 + $0xc] sm:$0xf]
    %v2274 = vld [vmem:[%s2269 + $0x10] sm:$0xf]
    %v2275 = vld [vmem:[%s2269 + $0x14] sm:$0xf]
    %v2276 = vld [vmem:[%s2269 + $0x18] sm:$0xf]
    %v2277 = vld [vmem:[%s2269 + $0x1c] sm:$0xf]
    %v2278 = vld [vmem:[%s2269 + $0x20] sm:$0xf]
    %v2279 = vld [vmem:[%s2269 + $0x24] sm:$0xf]
    %v2280 = vld [vmem:[%s2269 + $0x28] sm:$0xf]
    %v2281 = vld [vmem:[%s2269 + $0x2c] sm:$0xf]
    %v2282 = vld [vmem:[%s2269 + $0x30] sm:$0xf]
    %v2283 = vld [vmem:[%s2269 + $0x34] sm:$0xf]
    %v2284 = vld [vmem:[%s2269 + $0x38] sm:$0xf]
    %v2285 = vld [vmem:[%s2269 + $0x3c] sm:$0xf]
    %v2286 = vld [vmem:[%s2269 + $0x40] sm:$0xf]
    %v2287 = vld [vmem:[%s2269 + $0x44] sm:$0xf]
    %v2288 = vld [vmem:[%s2269 + $0x48] sm:$0xf]
    %v2289 = vld [vmem:[%s2269 + $0x4c] sm:$0xf]
    %v2290 = vld [vmem:[%s2269 + $0x50] sm:$0xf]
    %v2291 = vld [vmem:[%s2269 + $0x54] sm:$0xf]
    %v2292 = vld [vmem:[%s2269 + $0x58] sm:$0xf]
    %v2293 = vld [vmem:[%s2269 + $0x5c] sm:$0xf]
    %v2294 = vld [vmem:[%s2269 + $0x60] sm:$0xf]
    %v2295 = vld [vmem:[%s2269 + $0x64] sm:$0xf]
    %v2296 = vld [vmem:[%s2269 + $0x68] sm:$0xf]
    %v2297 = vld [vmem:[%s2269 + $0x6c] sm:$0xf]
    %v2298 = vld [vmem:[%s2269 + $0x70] sm:$0xf]
    %v2299 = vld [vmem:[%s2269 + $0x74] sm:$0xf]
    %v2300 = vld [vmem:[%s2269 + $0x78] sm:$0xf]
    %v2301 = vld [vmem:[%s2269 + $0x7c] sm:$0xf]
    %v2302 = vld [vmem:[%s2269 + $0x80] sm:$0xf]
    %v2303 = vld [vmem:[%s2269 + $0x84] sm:$0xf]
    %v2304 = vld [vmem:[%s2269 + $0x88] sm:$0xf]
    %v2305 = vld [vmem:[%s2269 + $0x8c] sm:$0xf]
    %v2306 = vld [vmem:[%s2269 + $0x90] sm:$0xf]
    %v2307 = vld [vmem:[%s2269 + $0x94] sm:$0xf]
    %v2308 = vld [vmem:[%s2269 + $0x98] sm:$0xf]
    %v2309 = vld [vmem:[%s2269 + $0x9c] sm:$0xf]
    %v2310 = vld [vmem:[%s2269 + $0xa0] sm:$0xf]
    %v2311 = vld [vmem:[%s2269 + $0xa4] sm:$0xf]
    %v2312 = vld [vmem:[%s2269 + $0xa8] sm:$0xf]
    %v2313 = vld [vmem:[%s2269 + $0xac] sm:$0xf]
    %v2314 = vld [vmem:[%s2269 + $0xb0] sm:$0xf]
    %v2315 = vld [vmem:[%s2269 + $0xb4] sm:$0xf]
    %v2316 = vld [vmem:[%s2269 + $0xb8] sm:$0xf]
    %v2317 = vld [vmem:[%s2269 + $0xbc] sm:$0xf]
    %v2318 = vld [vmem:[%s2269 + $0xc0] sm:$0xf]
    %v2319 = vld [vmem:[%s2269 + $0xc4] sm:$0xf]
    %v2320 = vld [vmem:[%s2269 + $0xc8] sm:$0xf]
    %v2321 = vld [vmem:[%s2269 + $0xcc] sm:$0xf]
    %v2322 = vld [vmem:[%s2269 + $0xd0] sm:$0xf]
    %v2323 = vld [vmem:[%s2269 + $0xd4] sm:$0xf]
    %v2324 = vld [vmem:[%s2269 + $0xd8] sm:$0xf]
    %v2325 = vld [vmem:[%s2269 + $0xdc] sm:$0xf]
    %v2326 = vld [vmem:[%s2269 + $0xe0] sm:$0xf]
    %v2327 = vld [vmem:[%s2269 + $0xe4] sm:$0xf]
    %v2328 = vld [vmem:[%s2269 + $0xe8] sm:$0xf]
    %v2329 = vld [vmem:[%s2269 + $0xec] sm:$0xf]
    %v2330 = vld [vmem:[%s2269 + $0xf0] sm:$0xf]
    %v2331 = vld [vmem:[%s2269 + $0xf4] sm:$0xf]
    %v2332 = vld [vmem:[%s2269 + $0xf8] sm:$0xf]
    %v2333 = vld [vmem:[%s2269 + $0xfc] sm:$0xf]
    %v2398 = vunpack.c.l.b16 %v2270
    %v2399 = vunpack.c.l.b16 %v2271
    %v2400 = vunpack.c.l.b16 %v2272
    %v2401 = vunpack.c.l.b16 %v2273
    %v2402 = vunpack.c.l.b16 %v2274
    %v2403 = vunpack.c.l.b16 %v2275
    %v2404 = vunpack.c.l.b16 %v2276
    %v2405 = vunpack.c.l.b16 %v2277
    %v2406 = vunpack.c.l.b16 %v2278
    %v2407 = vunpack.c.l.b16 %v2279
    %v2408 = vunpack.c.l.b16 %v2280
    %v2409 = vunpack.c.l.b16 %v2281
    %v2410 = vunpack.c.l.b16 %v2282
    %v2411 = vunpack.c.l.b16 %v2283
    %v2412 = vunpack.c.l.b16 %v2284
    %v2413 = vunpack.c.l.b16 %v2285
    %v2414 = vunpack.c.l.b16 %v2286
    %v2415 = vunpack.c.l.b16 %v2287
    %v2416 = vunpack.c.l.b16 %v2288
    %v2417 = vunpack.c.l.b16 %v2289
    %v2418 = vunpack.c.l.b16 %v2290
    %v2419 = vunpack.c.l.b16 %v2291
    %v2420 = vunpack.c.l.b16 %v2292
    %v2421 = vunpack.c.l.b16 %v2293
    %v2422 = vunpack.c.l.b16 %v2294
    %v2423 = vunpack.c.l.b16 %v2295
    %v2424 = vunpack.c.l.b16 %v2296
    %v2425 = vunpack.c.l.b16 %v2297
    %v2426 = vunpack.c.l.b16 %v2298
    %v2427 = vunpack.c.l.b16 %v2299
    %v2428 = vunpack.c.l.b16 %v2300
    %v2429 = vunpack.c.l.b16 %v2301
    %v2430 = vunpack.c.l.b16 %v2302
    %v2431 = vunpack.c.l.b16 %v2303
    %v2432 = vunpack.c.l.b16 %v2304
    %v2433 = vunpack.c.l.b16 %v2305
    %v2434 = vunpack.c.l.b16 %v2306
    %v2435 = vunpack.c.l.b16 %v2307
    %v2436 = vunpack.c.l.b16 %v2308
    %v2437 = vunpack.c.l.b16 %v2309
    %v2438 = vunpack.c.l.b16 %v2310
    %v2439 = vunpack.c.l.b16 %v2311
    %v2440 = vunpack.c.l.b16 %v2312
    %v2441 = vunpack.c.l.b16 %v2313
    %v2442 = vunpack.c.l.b16 %v2314
    %v2443 = vunpack.c.l.b16 %v2315
    %v2444 = vunpack.c.l.b16 %v2316
    %v2445 = vunpack.c.l.b16 %v2317
    %v2446 = vunpack.c.l.b16 %v2318
    %v2447 = vunpack.c.l.b16 %v2319
    %v2448 = vunpack.c.l.b16 %v2320
    %v2449 = vunpack.c.l.b16 %v2321
    %v2450 = vunpack.c.l.b16 %v2322
    %v2451 = vunpack.c.l.b16 %v2323
    %v2452 = vunpack.c.l.b16 %v2324
    %v2453 = vunpack.c.l.b16 %v2325
    %v2454 = vunpack.c.l.b16 %v2326
    %v2455 = vunpack.c.l.b16 %v2327
    %v2456 = vunpack.c.l.b16 %v2328
    %v2457 = vunpack.c.l.b16 %v2329
    %v2458 = vunpack.c.l.b16 %v2330
    %v2459 = vunpack.c.l.b16 %v2331
    %v2460 = vunpack.c.l.b16 %v2332
    %v2461 = vunpack.c.l.b16 %v2333
    %v2462 = vpack.c.b16 %v2399, %v2398
    %v2463 = vpack.c.b16 %v2401, %v2400
    %v2464 = vpack.c.b16 %v2403, %v2402
    %v2465 = vpack.c.b16 %v2405, %v2404
    %v2466 = vpack.c.b16 %v2407, %v2406
    %v2467 = vpack.c.b16 %v2409, %v2408
    %v2468 = vpack.c.b16 %v2411, %v2410
    %v2469 = vpack.c.b16 %v2413, %v2412
    %v2470 = vpack.c.b16 %v2415, %v2414
    %v2471 = vpack.c.b16 %v2417, %v2416
    %v2472 = vpack.c.b16 %v2419, %v2418
    %v2473 = vpack.c.b16 %v2421, %v2420
    %v2474 = vpack.c.b16 %v2423, %v2422
    %v2475 = vpack.c.b16 %v2425, %v2424
    %v2476 = vpack.c.b16 %v2427, %v2426
    %v2477 = vpack.c.b16 %v2429, %v2428
    %v2478 = vpack.c.b16 %v2431, %v2430
    %v2479 = vpack.c.b16 %v2433, %v2432
    %v2480 = vpack.c.b16 %v2435, %v2434
    %v2481 = vpack.c.b16 %v2437, %v2436
    %v2482 = vpack.c.b16 %v2439, %v2438
    %v2483 = vpack.c.b16 %v2441, %v2440
    %v2484 = vpack.c.b16 %v2443, %v2442
    %v2485 = vpack.c.b16 %v2445, %v2444
    %v2486 = vpack.c.b16 %v2447, %v2446
    %v2487 = vpack.c.b16 %v2449, %v2448
    %v2488 = vpack.c.b16 %v2451, %v2450
    %v2489 = vpack.c.b16 %v2453, %v2452
    %v2490 = vpack.c.b16 %v2455, %v2454
    %v2491 = vpack.c.b16 %v2457, %v2456
    %v2492 = vpack.c.b16 %v2459, %v2458
    %v2493 = vpack.c.b16 %v2461, %v2460
    %2526 = vmatpush.bf16.msra.mxu0 %v2469
    %2527 = vmatpush.bf16.msra.mxu0 %v2468
    %2528 = vmatpush.bf16.msra.mxu0 %v2467
    %2529 = vmatpush.bf16.msra.mxu0 %v2466
    %2530 = vmatpush.bf16.msra.mxu0 %v2465
    %2531 = vmatpush.bf16.msra.mxu0 %v2464
    %2532 = vmatpush.bf16.msra.mxu0 %v2463
    %2533 = vmatpush.bf16.msra.mxu0 %v2462
    %2534 = vmatmul.bf16.gmra.mxu0 %v2261
    %v2535 = vpop.f32.mrf.mxu0
    %v2536 = vadd.f32 %v936, %v2535
    %v2537 = vpop.f32.mrf.mxu0
    %v2538 = vadd.f32 %v936, %v2537
    %2539 = vmatmul.bf16.gmra.mxu0 %v2262
    %v2540 = vpop.f32.mrf.mxu0
    %v2541 = vadd.f32 %v936, %v2540
    %v2542 = vpop.f32.mrf.mxu0
    %v2543 = vadd.f32 %v936, %v2542
    %2544 = vmatmul.bf16.gmra.mxu0 %v2263
    %v2545 = vpop.f32.mrf.mxu0
    %v2546 = vadd.f32 %v936, %v2545
    %v2547 = vpop.f32.mrf.mxu0
    %v2548 = vadd.f32 %v936, %v2547
    %2549 = vmatmul.bf16.gmra.mxu0 %v2264
    %v2550 = vpop.f32.mrf.mxu0
    %v2551 = vadd.f32 %v936, %v2550
    %v2552 = vpop.f32.mrf.mxu0
    %v2553 = vadd.f32 %v936, %v2552
    %2554 = vdwg.mxu0
    %2555 = vmatpush.bf16.msra.mxu0 %v2477
    %2556 = vmatpush.bf16.msra.mxu0 %v2476
    %2557 = vmatpush.bf16.msra.mxu0 %v2475
    %2558 = vmatpush.bf16.msra.mxu0 %v2474
    %2559 = vmatpush.bf16.msra.mxu0 %v2473
    %2560 = vmatpush.bf16.msra.mxu0 %v2472
    %2561 = vmatpush.bf16.msra.mxu0 %v2471
    %2562 = vmatpush.bf16.msra.mxu0 %v2470
    %2563 = vmatmul.bf16.gmra.mxu0 %v1788
    %v2564 = vpop.f32.mrf.mxu0
    %v2565 = vadd.f32 %v2536, %v2564
    %v2566 = vpop.f32.mrf.mxu0
    %v2567 = vadd.f32 %v2538, %v2566
    %2568 = vmatmul.bf16.gmra.mxu0 %v1789
    %v2569 = vpop.f32.mrf.mxu0
    %v2570 = vadd.f32 %v2541, %v2569
    %v2571 = vpop.f32.mrf.mxu0
    %v2572 = vadd.f32 %v2543, %v2571
    %2573 = vmatmul.bf16.gmra.mxu0 %v1790
    %v2574 = vpop.f32.mrf.mxu0
    %v2575 = vadd.f32 %v2546, %v2574
    %v2576 = vpop.f32.mrf.mxu0
    %v2577 = vadd.f32 %v2548, %v2576
    %2578 = vmatmul.bf16.gmra.mxu0 %v1791
    %v2579 = vpop.f32.mrf.mxu0
    %v2580 = vadd.f32 %v2551, %v2579
    %v2581 = vpop.f32.mrf.mxu0
    %v2582 = vadd.f32 %v2553, %v2581
    %2583 = vdwg.mxu0
    %2584 = vmatpush.bf16.msra.mxu0 %v2485
    %2585 = vmatpush.bf16.msra.mxu0 %v2484
    %2586 = vmatpush.bf16.msra.mxu0 %v2483
    %2587 = vmatpush.bf16.msra.mxu0 %v2482
    %2588 = vmatpush.bf16.msra.mxu0 %v2481
    %2589 = vmatpush.bf16.msra.mxu0 %v2480
    %2590 = vmatpush.bf16.msra.mxu0 %v2479
    %2591 = vmatpush.bf16.msra.mxu0 %v2478
    %2592 = vmatmul.bf16.gmra.mxu0 %v1315
    %v2593 = vpop.f32.mrf.mxu0
    %v2594 = vadd.f32 %v2565, %v2593
    %v2595 = vpop.f32.mrf.mxu0
    %v2596 = vadd.f32 %v2567, %v2595
    %2597 = vmatmul.bf16.gmra.mxu0 %v1316
    %v2598 = vpop.f32.mrf.mxu0
    %v2599 = vadd.f32 %v2570, %v2598
    %v2600 = vpop.f32.mrf.mxu0
    %v2601 = vadd.f32 %v2572, %v2600
    %2602 = vmatmul.bf16.gmra.mxu0 %v1317
    %v2603 = vpop.f32.mrf.mxu0
    %v2604 = vadd.f32 %v2575, %v2603
    %v2605 = vpop.f32.mrf.mxu0
    %v2606 = vadd.f32 %v2577, %v2605
    %2607 = vmatmul.bf16.gmra.mxu0 %v1318
    %v2608 = vpop.f32.mrf.mxu0
    %v2609 = vadd.f32 %v2580, %v2608
    %v2610 = vpop.f32.mrf.mxu0
    %v2611 = vadd.f32 %v2582, %v2610
    %2612 = vdwg.mxu0
    %2613 = vmatpush.bf16.msra.mxu0 %v2493
    %2614 = vmatpush.bf16.msra.mxu0 %v2492
    %2615 = vmatpush.bf16.msra.mxu0 %v2491
    %2616 = vmatpush.bf16.msra.mxu0 %v2490
    %2617 = vmatpush.bf16.msra.mxu0 %v2489
    %2618 = vmatpush.bf16.msra.mxu0 %v2488
    %2619 = vmatpush.bf16.msra.mxu0 %v2487
    %2620 = vmatpush.bf16.msra.mxu0 %v2486
    %2621 = vmatmul.bf16.gmra.mxu0 %v790
    %v2622 = vpop.f32.mrf.mxu0
    %v2623 = vadd.f32 %v2594, %v2622
    %v2624 = vpop.f32.mrf.mxu0
    %v2625 = vadd.f32 %v2596, %v2624
    %2626 = vmatmul.bf16.gmra.mxu0 %v791
    %v2627 = vpop.f32.mrf.mxu0
    %v2628 = vadd.f32 %v2599, %v2627
    %v2629 = vpop.f32.mrf.mxu0
    %v2630 = vadd.f32 %v2601, %v2629
    %2631 = vmatmul.bf16.gmra.mxu0 %v792
    %v2632 = vpop.f32.mrf.mxu0
    %v2633 = vadd.f32 %v2604, %v2632
    %v2634 = vpop.f32.mrf.mxu0
    %v2635 = vadd.f32 %v2606, %v2634
    %2636 = vmatmul.bf16.gmra.mxu0 %v793
    %v2637 = vpop.f32.mrf.mxu0
    %v2638 = vadd.f32 %v2609, %v2637
    %v2639 = vpop.f32.mrf.mxu0
    %v2640 = vadd.f32 %v2611, %v2639
    %2641 = vdwg.mxu0
    %v2642 = vsel %vm1246, %v2623, 0.0
    %v2643 = vsel %vm1246, %v2625, 0.0
    %v2644 = vadd.f32 %v2642, %v2643
    %v2645 = vsel %vm1246, %v2628, 0.0
    %v2646 = vadd.f32 %v2644, %v2645
    %v2647 = vsel %vm1246, %v2630, 0.0
    %v2648 = vadd.f32 %v2646, %v2647
    %v2649 = vsel %vm1246, %v2633, 0.0
    %v2650 = vadd.f32 %v2648, %v2649
    %v2651 = vsel %vm1246, %v2635, 0.0
    %v2652 = vadd.f32 %v2650, %v2651
    %v2653 = vsel %vm1246, %v2638, 0.0
    %v2654 = vadd.f32 %v2652, %v2653
    %v2655 = vsel %vm1246, %v2640, 0.0
    %v2656 = vadd.f32 %v2654, %v2655
    %v2657 = vrot.slane %v2656, 4
    %v2658 = vadd.f32 %v2656, %v2657
    %v2659 = vrot.slane %v2658, 2
    %v2660 = vadd.f32 %v2658, %v2659
    %v2661 = vrot.slane %v2660, 1
    %v2662 = vadd.f32 %v2660, %v2661
    %v2663 = vadd.f32 %v2214, %v2662
    %v2664 = vmul.f32 %v2623, %v2623
    %v2665 = vmul.f32 %v2625, %v2625
    %v2666 = vmul.f32 %v2628, %v2628
    %v2667 = vmul.f32 %v2630, %v2630
    %v2668 = vmul.f32 %v2633, %v2633
    %v2669 = vmul.f32 %v2635, %v2635
    %v2670 = vmul.f32 %v2638, %v2638
    %v2671 = vmul.f32 %v2640, %v2640
    %v2672 = vsel %vm1246, %v2664, 0.0
    %v2673 = vsel %vm1246, %v2665, 0.0
    %v2674 = vadd.f32 %v2672, %v2673
    %v2675 = vsel %vm1246, %v2666, 0.0
    %v2676 = vadd.f32 %v2674, %v2675
    %v2677 = vsel %vm1246, %v2667, 0.0
    %v2678 = vadd.f32 %v2676, %v2677
    %v2679 = vsel %vm1246, %v2668, 0.0
    %v2680 = vadd.f32 %v2678, %v2679
    %v2681 = vsel %vm1246, %v2669, 0.0
    %v2682 = vadd.f32 %v2680, %v2681
    %v2683 = vsel %vm1246, %v2670, 0.0
    %v2684 = vadd.f32 %v2682, %v2683
    %v2685 = vsel %vm1246, %v2671, 0.0
    %v2686 = vadd.f32 %v2684, %v2685
    %v2687 = vrot.slane %v2686, 4
    %v2688 = vadd.f32 %v2686, %v2687
    %v2689 = vrot.slane %v2688, 2
    %v2690 = vadd.f32 %v2688, %v2689
    %v2691 = vrot.slane %v2690, 1
    %v2692 = vadd.f32 %v2690, %v2691
    %v2693 = vadd.f32 %v2244, %v2692
    %v2694 = vrcp.pop 256.0
    %v2695 = vmul.f32 256.0, %v2694
    %v2696 = vsub.f32 1.0, %v2695
    %v2697 = vmul.f32 %v2694, %v2696
    %v2698 = vadd.f32 %v2694, %v2697
    %vm2699 = vweird.f32 %v2694
    %v2700 = vsel %vm2699, %v2694, %v2698
    %v2701 = vmul.f32 %v2663, %v2700
    %v2702 = vmul.f32 %v2693, %v2700
    %v2703 = vmul.f32 %v2701, %v2701
    %v2704 = vsub.f32 %v2702, %v2703
    %v2705 = vld [vmem:[#allocation4] sm:$0x1]
    %v2706 = vadd.f32 %v2704, 1e-05
    %v2707 = vrsqrt.pop %v2706
    %v2708 = vmul.f32 %v2707, %v2706
    %v2709 = vmul.f32 %v2708, %v2707
    %v2710 = vmul.f32 0.5, %v2709
    %v2711 = vsub.f32 1.5, %v2710
    %v2712 = vmul.f32 %v2707, %v2711
    %vm2713 = vweird.f32 %v2706
    %vm2714 = vweird.f32 %v2707
    %vm2715 = vmor %vm2713, %vm2714
    %v2716 = vsel %vm2715, %v2707, %v2712
    %v2717 = vmul.f32 %v2705, %v2716
    %v2718 = vld [vmem:[#allocation6] sm:$0x1]
    %v2719 = vmul.f32 %v2701, %v2717
    %v2720 = vsub.f32 %v2718, %v2719
    %v2722 = vperm.slane %v2717, 0
    %v2724 = vmul.f32 %v1227, %v2722
    %v2725 = vmul.f32 %v1229, %v2722
    %v2726 = vmul.f32 %v1232, %v2722
    %v2727 = vmul.f32 %v1234, %v2722
    %v2728 = vmul.f32 %v1237, %v2722
    %v2729 = vmul.f32 %v1239, %v2722
    %v2730 = vmul.f32 %v1242, %v2722
    %v2731 = vmul.f32 %v1244, %v2722
    %v2733 = vperm.slane %v2720, 0
    %v2735 = vadd.f32 %v2724, %v2733
    %v2736 = vadd.f32 %v2725, %v2733
    %v2737 = vadd.f32 %v2726, %v2733
    %v2738 = vadd.f32 %v2727, %v2733
    %v2739 = vadd.f32 %v2728, %v2733
    %v2740 = vadd.f32 %v2729, %v2733
    %v2741 = vadd.f32 %v2730, %v2733
    %v2742 = vadd.f32 %v2731, %v2733
    %v2743 = vmax.f32 %v2735, 0.0
    %v2744 = vmax.f32 %v2736, 0.0
    %v2745 = vmax.f32 %v2737, 0.0
    %v2746 = vmax.f32 %v2738, 0.0
    %v2747 = vmax.f32 %v2739, 0.0
    %v2748 = vmax.f32 %v2740, 0.0
    %v2749 = vmax.f32 %v2741, 0.0
    %v2750 = vmax.f32 %v2742, 0.0
    %2751 = vst.msk [vmem:[%s5] sm:$0xff] %vm1246, %v2743
    %2752 = vst.msk [vmem:[%s5 + $0x8] sm:$0xff] %vm1246, %v2744
    %2753 = vst.msk [vmem:[%s5 + $0x10] sm:$0xff] %vm1246, %v2745
    %2754 = vst.msk [vmem:[%s5 + $0x18] sm:$0xff] %vm1246, %v2746
    %2755 = vst.msk [vmem:[%s5 + $0x20] sm:$0xff] %vm1246, %v2747
    %2756 = vst.msk [vmem:[%s5 + $0x28] sm:$0xff] %vm1246, %v2748
    %2757 = vst.msk [vmem:[%s5 + $0x30] sm:$0xff] %vm1246, %v2749
    %2758 = vst.msk [vmem:[%s5 + $0x38] sm:$0xff] %vm1246, %v2750
    %v2759 = vmul.f32 %v1701, %v2722
    %v2760 = vmul.f32 %v1703, %v2722
    %v2761 = vmul.f32 %v1706, %v2722
    %v2762 = vmul.f32 %v1708, %v2722
    %v2763 = vmul.f32 %v1711, %v2722
    %v2764 = vmul.f32 %v1713, %v2722
    %v2765 = vmul.f32 %v1716, %v2722
    %v2766 = vmul.f32 %v1718, %v2722
    %v2767 = vadd.f32 %v2759, %v2733
    %v2768 = vadd.f32 %v2760, %v2733
    %v2769 = vadd.f32 %v2761, %v2733
    %v2770 = vadd.f32 %v2762, %v2733
    %v2771 = vadd.f32 %v2763, %v2733
    %v2772 = vadd.f32 %v2764, %v2733
    %v2773 = vadd.f32 %v2765, %v2733
    %v2774 = vadd.f32 %v2766, %v2733
    %v2775 = vmax.f32 %v2767, 0.0
    %v2776 = vmax.f32 %v2768, 0.0
    %v2777 = vmax.f32 %v2769, 0.0
    %v2778 = vmax.f32 %v2770, 0.0
    %v2779 = vmax.f32 %v2771, 0.0
    %v2780 = vmax.f32 %v2772, 0.0
    %v2781 = vmax.f32 %v2773, 0.0
    %v2782 = vmax.f32 %v2774, 0.0
    %s2783 = scalar_lea.vmem %s5, 64
    %2784 = vst.msk [vmem:[%s2783] sm:$0xff] %vm1246, %v2775
    %2785 = vst.msk [vmem:[%s2783 + $0x8] sm:$0xff] %vm1246, %v2776
    %2786 = vst.msk [vmem:[%s2783 + $0x10] sm:$0xff] %vm1246, %v2777
    %2787 = vst.msk [vmem:[%s2783 + $0x18] sm:$0xff] %vm1246, %v2778
    %2788 = vst.msk [vmem:[%s2783 + $0x20] sm:$0xff] %vm1246, %v2779
    %2789 = vst.msk [vmem:[%s2783 + $0x28] sm:$0xff] %vm1246, %v2780
    %2790 = vst.msk [vmem:[%s2783 + $0x30] sm:$0xff] %vm1246, %v2781
    %2791 = vst.msk [vmem:[%s2783 + $0x38] sm:$0xff] %vm1246, %v2782
    %v2792 = vmul.f32 %v2174, %v2722
    %v2793 = vmul.f32 %v2176, %v2722
    %v2794 = vmul.f32 %v2179, %v2722
    %v2795 = vmul.f32 %v2181, %v2722
    %v2796 = vmul.f32 %v2184, %v2722
    %v2797 = vmul.f32 %v2186, %v2722
    %v2798 = vmul.f32 %v2189, %v2722
    %v2799 = vmul.f32 %v2191, %v2722
    %v2800 = vadd.f32 %v2792, %v2733
    %v2801 = vadd.f32 %v2793, %v2733
    %v2802 = vadd.f32 %v2794, %v2733
    %v2803 = vadd.f32 %v2795, %v2733
    %v2804 = vadd.f32 %v2796, %v2733
    %v2805 = vadd.f32 %v2797, %v2733
    %v2806 = vadd.f32 %v2798, %v2733
    %v2807 = vadd.f32 %v2799, %v2733
    %v2808 = vmax.f32 %v2800, 0.0
    %v2809 = vmax.f32 %v2801, 0.0
    %v2810 = vmax.f32 %v2802, 0.0
    %v2811 = vmax.f32 %v2803, 0.0
    %v2812 = vmax.f32 %v2804, 0.0
    %v2813 = vmax.f32 %v2805, 0.0
    %v2814 = vmax.f32 %v2806, 0.0
    %v2815 = vmax.f32 %v2807, 0.0
    %s2816 = scalar_lea.vmem %s5, 128
    %2817 = vst.msk [vmem:[%s2816] sm:$0xff] %vm1246, %v2808
    %2818 = vst.msk [vmem:[%s2816 + $0x8] sm:$0xff] %vm1246, %v2809
    %2819 = vst.msk [vmem:[%s2816 + $0x10] sm:$0xff] %vm1246, %v2810
    %2820 = vst.msk [vmem:[%s2816 + $0x18] sm:$0xff] %vm1246, %v2811
    %2821 = vst.msk [vmem:[%s2816 + $0x20] sm:$0xff] %vm1246, %v2812
    %2822 = vst.msk [vmem:[%s2816 + $0x28] sm:$0xff] %vm1246, %v2813
    %2823 = vst.msk [vmem:[%s2816 + $0x30] sm:$0xff] %vm1246, %v2814
    %2824 = vst.msk [vmem:[%s2816 + $0x38] sm:$0xff] %vm1246, %v2815
    %v2825 = vmul.f32 %v2623, %v2722
    %v2826 = vmul.f32 %v2625, %v2722
    %v2827 = vmul.f32 %v2628, %v2722
    %v2828 = vmul.f32 %v2630, %v2722
    %v2829 = vmul.f32 %v2633, %v2722
    %v2830 = vmul.f32 %v2635, %v2722
    %v2831 = vmul.f32 %v2638, %v2722
    %v2832 = vmul.f32 %v2640, %v2722
    %v2833 = vadd.f32 %v2825, %v2733
    %v2834 = vadd.f32 %v2826, %v2733
    %v2835 = vadd.f32 %v2827, %v2733
    %v2836 = vadd.f32 %v2828, %v2733
    %v2837 = vadd.f32 %v2829, %v2733
    %v2838 = vadd.f32 %v2830, %v2733
    %v2839 = vadd.f32 %v2831, %v2733
    %v2840 = vadd.f32 %v2832, %v2733
    %v2841 = vmax.f32 %v2833, 0.0
    %v2842 = vmax.f32 %v2834, 0.0
    %v2843 = vmax.f32 %v2835, 0.0
    %v2844 = vmax.f32 %v2836, 0.0
    %v2845 = vmax.f32 %v2837, 0.0
    %v2846 = vmax.f32 %v2838, 0.0
    %v2847 = vmax.f32 %v2839, 0.0
    %v2848 = vmax.f32 %v2840, 0.0
    %s2849 = scalar_lea.vmem %s5, 192
    %2850 = vst.msk [vmem:[%s2849] sm:$0xff] %vm1246, %v2841
    %2851 = vst.msk [vmem:[%s2849 + $0x8] sm:$0xff] %vm1246, %v2842
    %2852 = vst.msk [vmem:[%s2849 + $0x10] sm:$0xff] %vm1246, %v2843
    %2853 = vst.msk [vmem:[%s2849 + $0x18] sm:$0xff] %vm1246, %v2844
    %2854 = vst.msk [vmem:[%s2849 + $0x20] sm:$0xff] %vm1246, %v2845
    %2855 = vst.msk [vmem:[%s2849 + $0x28] sm:$0xff] %vm1246, %v2846
    %2856 = vst.msk [vmem:[%s2849 + $0x30] sm:$0xff] %vm1246, %v2847
    %2857 = vst.msk [vmem:[%s2849 + $0x38] sm:$0xff] %vm1246, %v2848
    // Predicated region
    $region34: #{generator_forward.6} parent=1 // pred_check
      _
    $region35: #{generator_forward.6} parent=1 // pred_check_branch
      %2859 = sbr.rel (0) target = $region37
    $region36: #{generator_forward.6} parent=1 // pred_region
      _
    $region37: #{generator_forward.6} parent=1 // pred_fallthru
      _
    // Predicated region
    $region38: #{generator_forward.6} parent=1 // pred_check
      _
    $region39: #{generator_forward.6} parent=1 // pred_check_branch
      %2861 = sbr.rel (0) target = $region41
    $region40: #{generator_forward.6} parent=1 // pred_region
      _
    $region41: #{generator_forward.6} parent=1 // pred_fallthru
      _
    %2862 = vsyncpa [#allocation3], 1
    %2863 = vsyncpa [#allocation5], 1

// kernel: generator_forward.7
$region0: #{generator_forward.7}
  #allocation0 [shape = 'u32[]', space=smem, size = 0x4, offset = 0x4, fixed_abs, tag = 'smem constant byte address 0x4 - core index']
  #allocation1 [shape = 'u32[72,128]{1,0:T(1,128)}', space=vmem, size = 0x9000, scoped, tag = 'internal scratch']
  #allocation2 [shape = 'f32[1,1]{1,0:T(1,128)S(1)}', space=vmem, size = 0x200, scoped, tag = 'scoped memory for generator_forward.7']
  %s0 = inlined_call_operand.vmem [shape: f32[4,10,10,64], index: 0, kind: input, shape index: {}]
  %s1 = inlined_call_operand.hbm [shape: f32[16,64], index: 1, kind: input, shape index: {}]
  %s2 = inlined_call_operand.<no memory space> [shape: f32[1,1], index: 2, kind: input, shape index: {}]
  %s3 = inlined_call_operand.vmem [shape: f32[4,256,1], index: 3, kind: output, shape index: {}]
  %s4 = sld [smem:[#allocation0]]
  $region26: #{generator_forward.7} parent=0
    _
  %s6 = ssub.s32 1, %s4
  %s7 = scalar_select 0, %s6, %s4
  %v8 = vstv %s2
  %9 = vst [vmem:[#allocation2] sm:$0x1] %v8
  $region1: #{generator_forward.7} parent=0
    #allocation3 [shape = 'u8[8192]{0}', space=vmem, size = 0x2000, scoped, tag = 'input window, operand 1, single buffered']
    #allocation4 [shape = 's32[1]{0}', space=sflag, size = 0x4, scoped, tag = 'scoped memory for generator_forward.7']
    %10 = vsyncpa [#allocation4], 0
    // Predicated region
    $region2: #{generator_forward.7} parent=1 // pred_check
      _
    $region3: #{generator_forward.7} parent=1 // pred_check_branch
      %12 = sbr.rel (0) target = $region5
    $region4: #{generator_forward.7} parent=1 // pred_region
      _
    $region5: #{generator_forward.7} parent=1 // pred_fallthru
      _
    // Predicated region
    $region6: #{generator_forward.7} parent=1 // pred_check
      _
    $region7: #{generator_forward.7} parent=1 // pred_check_branch
      %14 = sbr.rel (0) target = $region9
    $region8: #{generator_forward.7} parent=1 // pred_region
      %16 = vsyncadd [#allocation4], 0
      %s17 = sshll.u32 %s1, 4
      %s18 = int_to_ptr.hbm [resolvable:$true] %s17
      %s19 = sshll.u32 [#allocation3], 4
      %s20 = int_to_ptr.vmem [resolvable:$true] %s19
      %25 = dma.hbm_to_vmem [thread:$0]  %s18, 256, %s20, [#allocation4], 128, 128, 8
    $region9: #{generator_forward.7} parent=1 // pred_fallthru
      _
    // Predicated region
    $region10: #{generator_forward.7} parent=1 // pred_check
      _
    $region11: #{generator_forward.7} parent=1 // pred_check_branch
      %27 = sbr.rel (0) target = $region13
    $region12: #{generator_forward.7} parent=1 // pred_region
      _
    $region13: #{generator_forward.7} parent=1 // pred_fallthru
      _
    // Predicated region
    $region14: #{generator_forward.7} parent=1 // pred_check
      _
    $region15: #{generator_forward.7} parent=1 // pred_check_branch
      %29 = sbr.rel (0) target = $region17
    $region16: #{generator_forward.7} parent=1 // pred_region
      %31 = dma.done [#allocation4], 256
    $region17: #{generator_forward.7} parent=1 // pred_fallthru
      _
    %v32 = vld [vmem:[%s0] sm:$0xff]
    %v33 = vld [vmem:[%s0 + $0x10] sm:$0xff]
    %v34 = vld [vmem:[%s0 + $0x20] sm:$0xff]
    %v35 = vld [vmem:[%s0 + $0x30] sm:$0xff]
    %v36 = vld [vmem:[%s0 + $0x40] sm:$0xff]
    %v37 = vld [vmem:[%s0 + $0x50] sm:$0xff]
    %v38 = vld [vmem:[%s0 + $0x60] sm:$0xff]
    %v39 = vld [vmem:[%s0 + $0x70] sm:$0xff]
    %v40 = vld [vmem:[%s0 + $0xa0] sm:$0xff]
    %v41 = vld [vmem:[%s0 + $0xb0] sm:$0xff]
    %v42 = vld [vmem:[%s0 + $0xc0] sm:$0xff]
    %v43 = vld [vmem:[%s0 + $0xd0] sm:$0xff]
    %v44 = vld [vmem:[%s0 + $0xe0] sm:$0xff]
    %v45 = vld [vmem:[%s0 + $0xf0] sm:$0xff]
    %v46 = vld [vmem:[%s0 + $0x100] sm:$0xff]
    %v47 = vld [vmem:[%s0 + $0x110] sm:$0xff]
    %v48 = vld [vmem:[%s0 + $0x140] sm:$0xff]
    %v49 = vld [vmem:[%s0 + $0x150] sm:$0xff]
    %v50 = vld [vmem:[%s0 + $0x160] sm:$0xff]
    %v51 = vld [vmem:[%s0 + $0x170] sm:$0xff]
    %v52 = vld [vmem:[%s0 + $0x180] sm:$0xff]
    %v53 = vld [vmem:[%s0 + $0x190] sm:$0xff]
    %v54 = vld [vmem:[%s0 + $0x1a0] sm:$0xff]
    %v55 = vld [vmem:[%s0 + $0x1b0] sm:$0xff]
    %v56 = vld [vmem:[%s0 + $0x1e0] sm:$0xff]
    %v57 = vld [vmem:[%s0 + $0x1f0] sm:$0xff]
    %v58 = vld [vmem:[%s0 + $0x200] sm:$0xff]
    %v59 = vld [vmem:[%s0 + $0x210] sm:$0xff]
    %v60 = vld [vmem:[%s0 + $0x220] sm:$0xff]
    %v61 = vld [vmem:[%s0 + $0x230] sm:$0xff]
    %v62 = vld [vmem:[%s0 + $0x240] sm:$0xff]
    %v63 = vld [vmem:[%s0 + $0x250] sm:$0xff]
    %v64 = vld [vmem:[%s0 + $0x1] sm:$0xff]
    %v65 = vld [vmem:[%s0 + $0x11] sm:$0xff]
    %v66 = vld [vmem:[%s0 + $0x21] sm:$0xff]
    %v67 = vld [vmem:[%s0 + $0x31] sm:$0xff]
    %v68 = vld [vmem:[%s0 + $0x41] sm:$0xff]
    %v69 = vld [vmem:[%s0 + $0x51] sm:$0xff]
    %v70 = vld [vmem:[%s0 + $0x61] sm:$0xff]
    %v71 = vld [vmem:[%s0 + $0x71] sm:$0xff]
    %v72 = vld [vmem:[%s0 + $0xa1] sm:$0xff]
    %v73 = vld [vmem:[%s0 + $0xb1] sm:$0xff]
    %v74 = vld [vmem:[%s0 + $0xc1] sm:$0xff]
    %v75 = vld [vmem:[%s0 + $0xd1] sm:$0xff]
    %v76 = vld [vmem:[%s0 + $0xe1] sm:$0xff]
    %v77 = vld [vmem:[%s0 + $0xf1] sm:$0xff]
    %v78 = vld [vmem:[%s0 + $0x101] sm:$0xff]
    %v79 = vld [vmem:[%s0 + $0x111] sm:$0xff]
    %v80 = vld [vmem:[%s0 + $0x141] sm:$0xff]
    %v81 = vld [vmem:[%s0 + $0x151] sm:$0xff]
    %v82 = vld [vmem:[%s0 + $0x161] sm:$0xff]
    %v83 = vld [vmem:[%s0 + $0x171] sm:$0xff]
    %v84 = vld [vmem:[%s0 + $0x181] sm:$0xff]
    %v85 = vld [vmem:[%s0 + $0x191] sm:$0xff]
    %v86 = vld [vmem:[%s0 + $0x1a1] sm:$0xff]
    %v87 = vld [vmem:[%s0 + $0x1b1] sm:$0xff]
    %v88 = vld [vmem:[%s0 + $0x1e1] sm:$0xff]
    %v89 = vld [vmem:[%s0 + $0x1f1] sm:$0xff]
    %v90 = vld [vmem:[%s0 + $0x201] sm:$0xff]
    %v91 = vld [vmem:[%s0 + $0x211] sm:$0xff]
    %v92 = vld [vmem:[%s0 + $0x221] sm:$0xff]
    %v93 = vld [vmem:[%s0 + $0x231] sm:$0xff]
    %v94 = vld [vmem:[%s0 + $0x241] sm:$0xff]
    %v95 = vld [vmem:[%s0 + $0x251] sm:$0xff]
    %v96 = vld [vmem:[%s0 + $0x2] sm:$0xff]
    %v97 = vld [vmem:[%s0 + $0x12] sm:$0xff]
    %v98 = vld [vmem:[%s0 + $0x22] sm:$0xff]
    %v99 = vld [vmem:[%s0 + $0x32] sm:$0xff]
    %v100 = vld [vmem:[%s0 + $0x42] sm:$0xff]
    %v101 = vld [vmem:[%s0 + $0x52] sm:$0xff]
    %v102 = vld [vmem:[%s0 + $0x62] sm:$0xff]
    %v103 = vld [vmem:[%s0 + $0x72] sm:$0xff]
    %v104 = vld [vmem:[%s0 + $0xa2] sm:$0xff]
    %v105 = vld [vmem:[%s0 + $0xb2] sm:$0xff]
    %v106 = vld [vmem:[%s0 + $0xc2] sm:$0xff]
    %v107 = vld [vmem:[%s0 + $0xd2] sm:$0xff]
    %v108 = vld [vmem:[%s0 + $0xe2] sm:$0xff]
    %v109 = vld [vmem:[%s0 + $0xf2] sm:$0xff]
    %v110 = vld [vmem:[%s0 + $0x102] sm:$0xff]
    %v111 = vld [vmem:[%s0 + $0x112] sm:$0xff]
    %v112 = vld [vmem:[%s0 + $0x142] sm:$0xff]
    %v113 = vld [vmem:[%s0 + $0x152] sm:$0xff]
    %v114 = vld [vmem:[%s0 + $0x162] sm:$0xff]
    %v115 = vld [vmem:[%s0 + $0x172] sm:$0xff]
    %v116 = vld [vmem:[%s0 + $0x182] sm:$0xff]
    %v117 = vld [vmem:[%s0 + $0x192] sm:$0xff]
    %v118 = vld [vmem:[%s0 + $0x1a2] sm:$0xff]
    %v119 = vld [vmem:[%s0 + $0x1b2] sm:$0xff]
    %v120 = vld [vmem:[%s0 + $0x1e2] sm:$0xff]
    %v121 = vld [vmem:[%s0 + $0x1f2] sm:$0xff]
    %v122 = vld [vmem:[%s0 + $0x202] sm:$0xff]
    %v123 = vld [vmem:[%s0 + $0x212] sm:$0xff]
    %v124 = vld [vmem:[%s0 + $0x222] sm:$0xff]
    %v125 = vld [vmem:[%s0 + $0x232] sm:$0xff]
    %v126 = vld [vmem:[%s0 + $0x242] sm:$0xff]
    %v127 = vld [vmem:[%s0 + $0x252] sm:$0xff]
    %s128 = scalar_lea.vmem %s0, 16
    %v129 = vld [vmem:[%s128] sm:$0xff]
    %v130 = vld [vmem:[%s128 + $0x10] sm:$0xff]
    %v131 = vld [vmem:[%s128 + $0x20] sm:$0xff]
    %v132 = vld [vmem:[%s128 + $0x30] sm:$0xff]
    %v133 = vld [vmem:[%s128 + $0x40] sm:$0xff]
    %v134 = vld [vmem:[%s128 + $0x50] sm:$0xff]
    %v135 = vld [vmem:[%s128 + $0x60] sm:$0xff]
    %v136 = vld [vmem:[%s128 + $0x70] sm:$0xff]
    %v137 = vld [vmem:[%s128 + $0xa0] sm:$0xff]
    %v138 = vld [vmem:[%s128 + $0xb0] sm:$0xff]
    %v139 = vld [vmem:[%s128 + $0xc0] sm:$0xff]
    %v140 = vld [vmem:[%s128 + $0xd0] sm:$0xff]
    %v141 = vld [vmem:[%s128 + $0xe0] sm:$0xff]
    %v142 = vld [vmem:[%s128 + $0xf0] sm:$0xff]
    %v143 = vld [vmem:[%s128 + $0x100] sm:$0xff]
    %v144 = vld [vmem:[%s128 + $0x110] sm:$0xff]
    %v145 = vld [vmem:[%s128 + $0x140] sm:$0xff]
    %v146 = vld [vmem:[%s128 + $0x150] sm:$0xff]
    %v147 = vld [vmem:[%s128 + $0x160] sm:$0xff]
    %v148 = vld [vmem:[%s128 + $0x170] sm:$0xff]
    %v149 = vld [vmem:[%s128 + $0x180] sm:$0xff]
    %v150 = vld [vmem:[%s128 + $0x190] sm:$0xff]
    %v151 = vld [vmem:[%s128 + $0x1a0] sm:$0xff]
    %v152 = vld [vmem:[%s128 + $0x1b0] sm:$0xff]
    %v153 = vld [vmem:[%s128 + $0x1e0] sm:$0xff]
    %v154 = vld [vmem:[%s128 + $0x1f0] sm:$0xff]
    %v155 = vld [vmem:[%s128 + $0x200] sm:$0xff]
    %v156 = vld [vmem:[%s128 + $0x210] sm:$0xff]
    %v157 = vld [vmem:[%s128 + $0x220] sm:$0xff]
    %v158 = vld [vmem:[%s128 + $0x230] sm:$0xff]
    %v159 = vld [vmem:[%s128 + $0x240] sm:$0xff]
    %v160 = vld [vmem:[%s128 + $0x250] sm:$0xff]
    %v161 = vld [vmem:[%s128 + $0x1] sm:$0xff]
    %v162 = vld [vmem:[%s128 + $0x11] sm:$0xff]
    %v163 = vld [vmem:[%s128 + $0x21] sm:$0xff]
    %v164 = vld [vmem:[%s128 + $0x31] sm:$0xff]
    %v165 = vld [vmem:[%s128 + $0x41] sm:$0xff]
    %v166 = vld [vmem:[%s128 + $0x51] sm:$0xff]
    %v167 = vld [vmem:[%s128 + $0x61] sm:$0xff]
    %v168 = vld [vmem:[%s128 + $0x71] sm:$0xff]
    %v169 = vld [vmem:[%s128 + $0xa1] sm:$0xff]
    %v170 = vld [vmem:[%s128 + $0xb1] sm:$0xff]
    %v171 = vld [vmem:[%s128 + $0xc1] sm:$0xff]
    %v172 = vld [vmem:[%s128 + $0xd1] sm:$0xff]
    %v173 = vld [vmem:[%s128 + $0xe1] sm:$0xff]
    %v174 = vld [vmem:[%s128 + $0xf1] sm:$0xff]
    %v175 = vld [vmem:[%s128 + $0x101] sm:$0xff]
    %v176 = vld [vmem:[%s128 + $0x111] sm:$0xff]
    %v177 = vld [vmem:[%s128 + $0x141] sm:$0xff]
    %v178 = vld [vmem:[%s128 + $0x151] sm:$0xff]
    %v179 = vld [vmem:[%s128 + $0x161] sm:$0xff]
    %v180 = vld [vmem:[%s128 + $0x171] sm:$0xff]
    %v181 = vld [vmem:[%s128 + $0x181] sm:$0xff]
    %v182 = vld [vmem:[%s128 + $0x191] sm:$0xff]
    %v183 = vld [vmem:[%s128 + $0x1a1] sm:$0xff]
    %v184 = vld [vmem:[%s128 + $0x1b1] sm:$0xff]
    %v185 = vld [vmem:[%s128 + $0x1e1] sm:$0xff]
    %v186 = vld [vmem:[%s128 + $0x1f1] sm:$0xff]
    %v187 = vld [vmem:[%s128 + $0x201] sm:$0xff]
    %v188 = vld [vmem:[%s128 + $0x211] sm:$0xff]
    %v189 = vld [vmem:[%s128 + $0x221] sm:$0xff]
    %v190 = vld [vmem:[%s128 + $0x231] sm:$0xff]
    %v191 = vld [vmem:[%s128 + $0x241] sm:$0xff]
    %v192 = vld [vmem:[%s128 + $0x251] sm:$0xff]
    %v193 = vld [vmem:[%s128 + $0x2] sm:$0xff]
    %v194 = vld [vmem:[%s128 + $0x12] sm:$0xff]
    %v195 = vld [vmem:[%s128 + $0x22] sm:$0xff]
    %v196 = vld [vmem:[%s128 + $0x32] sm:$0xff]
    %v197 = vld [vmem:[%s128 + $0x42] sm:$0xff]
    %v198 = vld [vmem:[%s128 + $0x52] sm:$0xff]
    %v199 = vld [vmem:[%s128 + $0x62] sm:$0xff]
    %v200 = vld [vmem:[%s128 + $0x72] sm:$0xff]
    %v201 = vld [vmem:[%s128 + $0xa2] sm:$0xff]
    %v202 = vld [vmem:[%s128 + $0xb2] sm:$0xff]
    %v203 = vld [vmem:[%s128 + $0xc2] sm:$0xff]
    %v204 = vld [vmem:[%s128 + $0xd2] sm:$0xff]
    %v205 = vld [vmem:[%s128 + $0xe2] sm:$0xff]
    %v206 = vld [vmem:[%s128 + $0xf2] sm:$0xff]
    %v207 = vld [vmem:[%s128 + $0x102] sm:$0xff]
    %v208 = vld [vmem:[%s128 + $0x112] sm:$0xff]
    %v209 = vld [vmem:[%s128 + $0x142] sm:$0xff]
    %v210 = vld [vmem:[%s128 + $0x152] sm:$0xff]
    %v211 = vld [vmem:[%s128 + $0x162] sm:$0xff]
    %v212 = vld [vmem:[%s128 + $0x172] sm:$0xff]
    %v213 = vld [vmem:[%s128 + $0x182] sm:$0xff]
    %v214 = vld [vmem:[%s128 + $0x192] sm:$0xff]
    %v215 = vld [vmem:[%s128 + $0x1a2] sm:$0xff]
    %v216 = vld [vmem:[%s128 + $0x1b2] sm:$0xff]
    %v217 = vld [vmem:[%s128 + $0x1e2] sm:$0xff]
    %v218 = vld [vmem:[%s128 + $0x1f2] sm:$0xff]
    %v219 = vld [vmem:[%s128 + $0x202] sm:$0xff]
    %v220 = vld [vmem:[%s128 + $0x212] sm:$0xff]
    %v221 = vld [vmem:[%s128 + $0x222] sm:$0xff]
    %v222 = vld [vmem:[%s128 + $0x232] sm:$0xff]
    %v223 = vld [vmem:[%s128 + $0x242] sm:$0xff]
    %v224 = vld [vmem:[%s128 + $0x252] sm:$0xff]
    %s225 = scalar_lea.vmem %s0, 32
    %v226 = vld [vmem:[%s225] sm:$0xff]
    %v227 = vld [vmem:[%s225 + $0x10] sm:$0xff]
    %v228 = vld [vmem:[%s225 + $0x20] sm:$0xff]
    %v229 = vld [vmem:[%s225 + $0x30] sm:$0xff]
    %v230 = vld [vmem:[%s225 + $0x40] sm:$0xff]
    %v231 = vld [vmem:[%s225 + $0x50] sm:$0xff]
    %v232 = vld [vmem:[%s225 + $0x60] sm:$0xff]
    %v233 = vld [vmem:[%s225 + $0x70] sm:$0xff]
    %v234 = vld [vmem:[%s225 + $0xa0] sm:$0xff]
    %v235 = vld [vmem:[%s225 + $0xb0] sm:$0xff]
    %v236 = vld [vmem:[%s225 + $0xc0] sm:$0xff]
    %v237 = vld [vmem:[%s225 + $0xd0] sm:$0xff]
    %v238 = vld [vmem:[%s225 + $0xe0] sm:$0xff]
    %v239 = vld [vmem:[%s225 + $0xf0] sm:$0xff]
    %v240 = vld [vmem:[%s225 + $0x100] sm:$0xff]
    %v241 = vld [vmem:[%s225 + $0x110] sm:$0xff]
    %v242 = vld [vmem:[%s225 + $0x140] sm:$0xff]
    %v243 = vld [vmem:[%s225 + $0x150] sm:$0xff]
    %v244 = vld [vmem:[%s225 + $0x160] sm:$0xff]
    %v245 = vld [vmem:[%s225 + $0x170] sm:$0xff]
    %v246 = vld [vmem:[%s225 + $0x180] sm:$0xff]
    %v247 = vld [vmem:[%s225 + $0x190] sm:$0xff]
    %v248 = vld [vmem:[%s225 + $0x1a0] sm:$0xff]
    %v249 = vld [vmem:[%s225 + $0x1b0] sm:$0xff]
    %v250 = vld [vmem:[%s225 + $0x1e0] sm:$0xff]
    %v251 = vld [vmem:[%s225 + $0x1f0] sm:$0xff]
    %v252 = vld [vmem:[%s225 + $0x200] sm:$0xff]
    %v253 = vld [vmem:[%s225 + $0x210] sm:$0xff]
    %v254 = vld [vmem:[%s225 + $0x220] sm:$0xff]
    %v255 = vld [vmem:[%s225 + $0x230] sm:$0xff]
    %v256 = vld [vmem:[%s225 + $0x240] sm:$0xff]
    %v257 = vld [vmem:[%s225 + $0x250] sm:$0xff]
    %v258 = vld [vmem:[%s225 + $0x1] sm:$0xff]
    %v259 = vld [vmem:[%s225 + $0x11] sm:$0xff]
    %v260 = vld [vmem:[%s225 + $0x21] sm:$0xff]
    %v261 = vld [vmem:[%s225 + $0x31] sm:$0xff]
    %v262 = vld [vmem:[%s225 + $0x41] sm:$0xff]
    %v263 = vld [vmem:[%s225 + $0x51] sm:$0xff]
    %v264 = vld [vmem:[%s225 + $0x61] sm:$0xff]
    %v265 = vld [vmem:[%s225 + $0x71] sm:$0xff]
    %v266 = vld [vmem:[%s225 + $0xa1] sm:$0xff]
    %v267 = vld [vmem:[%s225 + $0xb1] sm:$0xff]
    %v268 = vld [vmem:[%s225 + $0xc1] sm:$0xff]
    %v269 = vld [vmem:[%s225 + $0xd1] sm:$0xff]
    %v270 = vld [vmem:[%s225 + $0xe1] sm:$0xff]
    %v271 = vld [vmem:[%s225 + $0xf1] sm:$0xff]
    %v272 = vld [vmem:[%s225 + $0x101] sm:$0xff]
    %v273 = vld [vmem:[%s225 + $0x111] sm:$0xff]
    %v274 = vld [vmem:[%s225 + $0x141] sm:$0xff]
    %v275 = vld [vmem:[%s225 + $0x151] sm:$0xff]
    %v276 = vld [vmem:[%s225 + $0x161] sm:$0xff]
    %v277 = vld [vmem:[%s225 + $0x171] sm:$0xff]
    %v278 = vld [vmem:[%s225 + $0x181] sm:$0xff]
    %v279 = vld [vmem:[%s225 + $0x191] sm:$0xff]
    %v280 = vld [vmem:[%s225 + $0x1a1] sm:$0xff]
    %v281 = vld [vmem:[%s225 + $0x1b1] sm:$0xff]
    %v282 = vld [vmem:[%s225 + $0x1e1] sm:$0xff]
    %v283 = vld [vmem:[%s225 + $0x1f1] sm:$0xff]
    %v284 = vld [vmem:[%s225 + $0x201] sm:$0xff]
    %v285 = vld [vmem:[%s225 + $0x211] sm:$0xff]
    %v286 = vld [vmem:[%s225 + $0x221] sm:$0xff]
    %v287 = vld [vmem:[%s225 + $0x231] sm:$0xff]
    %v288 = vld [vmem:[%s225 + $0x241] sm:$0xff]
    %v289 = vld [vmem:[%s225 + $0x251] sm:$0xff]
    %v290 = vld [vmem:[%s225 + $0x2] sm:$0xff]
    %v291 = vld [vmem:[%s225 + $0x12] sm:$0xff]
    %v292 = vld [vmem:[%s225 + $0x22] sm:$0xff]
    %v293 = vld [vmem:[%s225 + $0x32] sm:$0xff]
    %v294 = vld [vmem:[%s225 + $0x42] sm:$0xff]
    %v295 = vld [vmem:[%s225 + $0x52] sm:$0xff]
    %v296 = vld [vmem:[%s225 + $0x62] sm:$0xff]
    %v297 = vld [vmem:[%s225 + $0x72] sm:$0xff]
    %v298 = vld [vmem:[%s225 + $0xa2] sm:$0xff]
    %v299 = vld [vmem:[%s225 + $0xb2] sm:$0xff]
    %v300 = vld [vmem:[%s225 + $0xc2] sm:$0xff]
    %v301 = vld [vmem:[%s225 + $0xd2] sm:$0xff]
    %v302 = vld [vmem:[%s225 + $0xe2] sm:$0xff]
    %v303 = vld [vmem:[%s225 + $0xf2] sm:$0xff]
    %v304 = vld [vmem:[%s225 + $0x102] sm:$0xff]
    %v305 = vld [vmem:[%s225 + $0x112] sm:$0xff]
    %v306 = vld [vmem:[%s225 + $0x142] sm:$0xff]
    %v307 = vld [vmem:[%s225 + $0x152] sm:$0xff]
    %v308 = vld [vmem:[%s225 + $0x162] sm:$0xff]
    %v309 = vld [vmem:[%s225 + $0x172] sm:$0xff]
    %v310 = vld [vmem:[%s225 + $0x182] sm:$0xff]
    %v311 = vld [vmem:[%s225 + $0x192] sm:$0xff]
    %v312 = vld [vmem:[%s225 + $0x1a2] sm:$0xff]
    %v313 = vld [vmem:[%s225 + $0x1b2] sm:$0xff]
    %v314 = vld [vmem:[%s225 + $0x1e2] sm:$0xff]
    %v315 = vld [vmem:[%s225 + $0x1f2] sm:$0xff]
    %v316 = vld [vmem:[%s225 + $0x202] sm:$0xff]
    %v317 = vld [vmem:[%s225 + $0x212] sm:$0xff]
    %v318 = vld [vmem:[%s225 + $0x222] sm:$0xff]
    %v319 = vld [vmem:[%s225 + $0x232] sm:$0xff]
    %v320 = vld [vmem:[%s225 + $0x242] sm:$0xff]
    %v321 = vld [vmem:[%s225 + $0x252] sm:$0xff]
    %v322 = vld [vmem:[#allocation2] sm:$0x1]
    %v324 = vperm.slane %v322, 0
    %v326 = vadd.f32 %v324, 0.0
    %v327 = vld [vmem:[#allocation3] sm:$0x1]
    %v328 = vperm.slane %v327, 0
    %v329 = vmul.f32 %v161, %v328
    %v330 = vmul.f32 %v162, %v328
    %v331 = vmul.f32 %v163, %v328
    %v332 = vmul.f32 %v164, %v328
    %v333 = vmul.f32 %v165, %v328
    %v334 = vmul.f32 %v166, %v328
    %v335 = vmul.f32 %v167, %v328
    %v336 = vmul.f32 %v168, %v328
    %v337 = vmul.f32 %v169, %v328
    %v338 = vmul.f32 %v170, %v328
    %v339 = vmul.f32 %v171, %v328
    %v340 = vmul.f32 %v172, %v328
    %v341 = vmul.f32 %v173, %v328
    %v342 = vmul.f32 %v174, %v328
    %v343 = vmul.f32 %v175, %v328
    %v344 = vmul.f32 %v176, %v328
    %v345 = vmul.f32 %v177, %v328
    %v346 = vmul.f32 %v178, %v328
    %v347 = vmul.f32 %v179, %v328
    %v348 = vmul.f32 %v180, %v328
    %v349 = vmul.f32 %v181, %v328
    %v350 = vmul.f32 %v182, %v328
    %v351 = vmul.f32 %v183, %v328
    %v352 = vmul.f32 %v184, %v328
    %v353 = vmul.f32 %v185, %v328
    %v354 = vmul.f32 %v186, %v328
    %v355 = vmul.f32 %v187, %v328
    %v356 = vmul.f32 %v188, %v328
    %v357 = vmul.f32 %v189, %v328
    %v358 = vmul.f32 %v190, %v328
    %v359 = vmul.f32 %v191, %v328
    %v360 = vmul.f32 %v192, %v328
    %vm361 = vcmask 523264
    %v362 = vsel %vm361, %v329, 0.0
    %363 = vadd.xlane.f32.xlu0 %v362
    %v364 = vpop.xlane.xlu0 %363
    %v365 = vsel %vm361, %v330, 0.0
    %366 = vadd.xlane.f32.xlu0 %v365
    %v367 = vpop.xlane.xlu0 %366
    %v368 = vsel %vm361, %v331, 0.0
    %369 = vadd.xlane.f32.xlu0 %v368
    %v370 = vpop.xlane.xlu0 %369
    %v371 = vsel %vm361, %v332, 0.0
    %372 = vadd.xlane.f32.xlu0 %v371
    %v373 = vpop.xlane.xlu0 %372
    %v374 = vsel %vm361, %v333, 0.0
    %375 = vadd.xlane.f32.xlu0 %v374
    %v376 = vpop.xlane.xlu0 %375
    %v377 = vsel %vm361, %v334, 0.0
    %378 = vadd.xlane.f32.xlu0 %v377
    %v379 = vpop.xlane.xlu0 %378
    %v380 = vsel %vm361, %v335, 0.0
    %381 = vadd.xlane.f32.xlu0 %v380
    %v382 = vpop.xlane.xlu0 %381
    %v383 = vsel %vm361, %v336, 0.0
    %384 = vadd.xlane.f32.xlu0 %v383
    %v385 = vpop.xlane.xlu0 %384
    %v386 = vsel %vm361, %v337, 0.0
    %387 = vadd.xlane.f32.xlu0 %v386
    %v388 = vpop.xlane.xlu0 %387
    %v389 = vsel %vm361, %v338, 0.0
    %390 = vadd.xlane.f32.xlu0 %v389
    %v391 = vpop.xlane.xlu0 %390
    %v392 = vsel %vm361, %v339, 0.0
    %393 = vadd.xlane.f32.xlu0 %v392
    %v394 = vpop.xlane.xlu0 %393
    %v395 = vsel %vm361, %v340, 0.0
    %396 = vadd.xlane.f32.xlu0 %v395
    %v397 = vpop.xlane.xlu0 %396
    %v398 = vsel %vm361, %v341, 0.0
    %399 = vadd.xlane.f32.xlu0 %v398
    %v400 = vpop.xlane.xlu0 %399
    %v401 = vsel %vm361, %v342, 0.0
    %402 = vadd.xlane.f32.xlu0 %v401
    %v403 = vpop.xlane.xlu0 %402
    %v404 = vsel %vm361, %v343, 0.0
    %405 = vadd.xlane.f32.xlu0 %v404
    %v406 = vpop.xlane.xlu0 %405
    %v407 = vsel %vm361, %v344, 0.0
    %408 = vadd.xlane.f32.xlu0 %v407
    %v409 = vpop.xlane.xlu0 %408
    %v410 = vsel %vm361, %v345, 0.0
    %411 = vadd.xlane.f32.xlu0 %v410
    %v412 = vpop.xlane.xlu0 %411
    %v413 = vsel %vm361, %v346, 0.0
    %414 = vadd.xlane.f32.xlu0 %v413
    %v415 = vpop.xlane.xlu0 %414
    %v416 = vsel %vm361, %v347, 0.0
    %417 = vadd.xlane.f32.xlu0 %v416
    %v418 = vpop.xlane.xlu0 %417
    %v419 = vsel %vm361, %v348, 0.0
    %420 = vadd.xlane.f32.xlu0 %v419
    %v421 = vpop.xlane.xlu0 %420
    %v422 = vsel %vm361, %v349, 0.0
    %423 = vadd.xlane.f32.xlu0 %v422
    %v424 = vpop.xlane.xlu0 %423
    %v425 = vsel %vm361, %v350, 0.0
    %426 = vadd.xlane.f32.xlu0 %v425
    %v427 = vpop.xlane.xlu0 %426
    %v428 = vsel %vm361, %v351, 0.0
    %429 = vadd.xlane.f32.xlu0 %v428
    %v430 = vpop.xlane.xlu0 %429
    %v431 = vsel %vm361, %v352, 0.0
    %432 = vadd.xlane.f32.xlu0 %v431
    %v433 = vpop.xlane.xlu0 %432
    %v434 = vsel %vm361, %v353, 0.0
    %435 = vadd.xlane.f32.xlu0 %v434
    %v436 = vpop.xlane.xlu0 %435
    %v437 = vsel %vm361, %v354, 0.0
    %438 = vadd.xlane.f32.xlu0 %v437
    %v439 = vpop.xlane.xlu0 %438
    %v440 = vsel %vm361, %v355, 0.0
    %441 = vadd.xlane.f32.xlu0 %v440
    %v442 = vpop.xlane.xlu0 %441
    %v443 = vsel %vm361, %v356, 0.0
    %444 = vadd.xlane.f32.xlu0 %v443
    %v445 = vpop.xlane.xlu0 %444
    %v446 = vsel %vm361, %v357, 0.0
    %447 = vadd.xlane.f32.xlu0 %v446
    %v448 = vpop.xlane.xlu0 %447
    %v449 = vsel %vm361, %v358, 0.0
    %450 = vadd.xlane.f32.xlu0 %v449
    %v451 = vpop.xlane.xlu0 %450
    %v452 = vsel %vm361, %v359, 0.0
    %453 = vadd.xlane.f32.xlu0 %v452
    %v454 = vpop.xlane.xlu0 %453
    %v455 = vsel %vm361, %v360, 0.0
    %456 = vadd.xlane.f32.xlu0 %v455
    %v457 = vpop.xlane.xlu0 %456
    %v458 = vadd.f32 %v326, %v364
    %v459 = vadd.f32 %v326, %v367
    %v460 = vadd.f32 %v326, %v370
    %v461 = vadd.f32 %v326, %v373
    %v462 = vadd.f32 %v326, %v376
    %v463 = vadd.f32 %v326, %v379
    %v464 = vadd.f32 %v326, %v382
    %v465 = vadd.f32 %v326, %v385
    %v466 = vadd.f32 %v326, %v388
    %v467 = vadd.f32 %v326, %v391
    %v468 = vadd.f32 %v326, %v394
    %v469 = vadd.f32 %v326, %v397
    %v470 = vadd.f32 %v326, %v400
    %v471 = vadd.f32 %v326, %v403
    %v472 = vadd.f32 %v326, %v406
    %v473 = vadd.f32 %v326, %v409
    %v474 = vadd.f32 %v326, %v412
    %v475 = vadd.f32 %v326, %v415
    %v476 = vadd.f32 %v326, %v418
    %v477 = vadd.f32 %v326, %v421
    %v478 = vadd.f32 %v326, %v424
    %v479 = vadd.f32 %v326, %v427
    %v480 = vadd.f32 %v326, %v430
    %v481 = vadd.f32 %v326, %v433
    %v482 = vadd.f32 %v326, %v436
    %v483 = vadd.f32 %v326, %v439
    %v484 = vadd.f32 %v326, %v442
    %v485 = vadd.f32 %v326, %v445
    %v486 = vadd.f32 %v326, %v448
    %v487 = vadd.f32 %v326, %v451
    %v488 = vadd.f32 %v326, %v454
    %v489 = vadd.f32 %v326, %v457
    %v490 = vld [vmem:[#allocation3 + $0x1] sm:$0x1]
    %v491 = vperm.slane %v490, 0
    %v492 = vmul.f32 %v129, %v491
    %v493 = vmul.f32 %v130, %v491
    %v494 = vmul.f32 %v131, %v491
    %v495 = vmul.f32 %v132, %v491
    %v496 = vmul.f32 %v133, %v491
    %v497 = vmul.f32 %v134, %v491
    %v498 = vmul.f32 %v135, %v491
    %v499 = vmul.f32 %v136, %v491
    %v500 = vmul.f32 %v137, %v491
    %v501 = vmul.f32 %v138, %v491
    %v502 = vmul.f32 %v139, %v491
    %v503 = vmul.f32 %v140, %v491
    %v504 = vmul.f32 %v141, %v491
    %v505 = vmul.f32 %v142, %v491
    %v506 = vmul.f32 %v143, %v491
    %v507 = vmul.f32 %v144, %v491
    %v508 = vmul.f32 %v145, %v491
    %v509 = vmul.f32 %v146, %v491
    %v510 = vmul.f32 %v147, %v491
    %v511 = vmul.f32 %v148, %v491
    %v512 = vmul.f32 %v149, %v491
    %v513 = vmul.f32 %v150, %v491
    %v514 = vmul.f32 %v151, %v491
    %v515 = vmul.f32 %v152, %v491
    %v516 = vmul.f32 %v153, %v491
    %v517 = vmul.f32 %v154, %v491
    %v518 = vmul.f32 %v155, %v491
    %v519 = vmul.f32 %v156, %v491
    %v520 = vmul.f32 %v157, %v491
    %v521 = vmul.f32 %v158, %v491
    %v522 = vmul.f32 %v159, %v491
    %v523 = vmul.f32 %v160, %v491
    %v524 = vsel %vm361, %v492, 0.0
    %525 = vadd.xlane.f32.xlu0 %v524
    %v526 = vpop.xlane.xlu0 %525
    %v527 = vsel %vm361, %v493, 0.0
    %528 = vadd.xlane.f32.xlu0 %v527
    %v529 = vpop.xlane.xlu0 %528
    %v530 = vsel %vm361, %v494, 0.0
    %531 = vadd.xlane.f32.xlu0 %v530
    %v532 = vpop.xlane.xlu0 %531
    %v533 = vsel %vm361, %v495, 0.0
    %534 = vadd.xlane.f32.xlu0 %v533
    %v535 = vpop.xlane.xlu0 %534
    %v536 = vsel %vm361, %v496, 0.0
    %537 = vadd.xlane.f32.xlu0 %v536
    %v538 = vpop.xlane.xlu0 %537
    %v539 = vsel %vm361, %v497, 0.0
    %540 = vadd.xlane.f32.xlu0 %v539
    %v541 = vpop.xlane.xlu0 %540
    %v542 = vsel %vm361, %v498, 0.0
    %543 = vadd.xlane.f32.xlu0 %v542
    %v544 = vpop.xlane.xlu0 %543
    %v545 = vsel %vm361, %v499, 0.0
    %546 = vadd.xlane.f32.xlu0 %v545
    %v547 = vpop.xlane.xlu0 %546
    %v548 = vsel %vm361, %v500, 0.0
    %549 = vadd.xlane.f32.xlu0 %v548
    %v550 = vpop.xlane.xlu0 %549
    %v551 = vsel %vm361, %v501, 0.0
    %552 = vadd.xlane.f32.xlu0 %v551
    %v553 = vpop.xlane.xlu0 %552
    %v554 = vsel %vm361, %v502, 0.0
    %555 = vadd.xlane.f32.xlu0 %v554
    %v556 = vpop.xlane.xlu0 %555
    %v557 = vsel %vm361, %v503, 0.0
    %558 = vadd.xlane.f32.xlu0 %v557
    %v559 = vpop.xlane.xlu0 %558
    %v560 = vsel %vm361, %v504, 0.0
    %561 = vadd.xlane.f32.xlu0 %v560
    %v562 = vpop.xlane.xlu0 %561
    %v563 = vsel %vm361, %v505, 0.0
    %564 = vadd.xlane.f32.xlu0 %v563
    %v565 = vpop.xlane.xlu0 %564
    %v566 = vsel %vm361, %v506, 0.0
    %567 = vadd.xlane.f32.xlu0 %v566
    %v568 = vpop.xlane.xlu0 %567
    %v569 = vsel %vm361, %v507, 0.0
    %570 = vadd.xlane.f32.xlu0 %v569
    %v571 = vpop.xlane.xlu0 %570
    %v572 = vsel %vm361, %v508, 0.0
    %573 = vadd.xlane.f32.xlu0 %v572
    %v574 = vpop.xlane.xlu0 %573
    %v575 = vsel %vm361, %v509, 0.0
    %576 = vadd.xlane.f32.xlu0 %v575
    %v577 = vpop.xlane.xlu0 %576
    %v578 = vsel %vm361, %v510, 0.0
    %579 = vadd.xlane.f32.xlu0 %v578
    %v580 = vpop.xlane.xlu0 %579
    %v581 = vsel %vm361, %v511, 0.0
    %582 = vadd.xlane.f32.xlu0 %v581
    %v583 = vpop.xlane.xlu0 %582
    %v584 = vsel %vm361, %v512, 0.0
    %585 = vadd.xlane.f32.xlu0 %v584
    %v586 = vpop.xlane.xlu0 %585
    %v587 = vsel %vm361, %v513, 0.0
    %588 = vadd.xlane.f32.xlu0 %v587
    %v589 = vpop.xlane.xlu0 %588
    %v590 = vsel %vm361, %v514, 0.0
    %591 = vadd.xlane.f32.xlu0 %v590
    %v592 = vpop.xlane.xlu0 %591
    %v593 = vsel %vm361, %v515, 0.0
    %594 = vadd.xlane.f32.xlu0 %v593
    %v595 = vpop.xlane.xlu0 %594
    %v596 = vsel %vm361, %v516, 0.0
    %597 = vadd.xlane.f32.xlu0 %v596
    %v598 = vpop.xlane.xlu0 %597
    %v599 = vsel %vm361, %v517, 0.0
    %600 = vadd.xlane.f32.xlu0 %v599
    %v601 = vpop.xlane.xlu0 %600
    %v602 = vsel %vm361, %v518, 0.0
    %603 = vadd.xlane.f32.xlu0 %v602
    %v604 = vpop.xlane.xlu0 %603
    %v605 = vsel %vm361, %v519, 0.0
    %606 = vadd.xlane.f32.xlu0 %v605
    %v607 = vpop.xlane.xlu0 %606
    %v608 = vsel %vm361, %v520, 0.0
    %609 = vadd.xlane.f32.xlu0 %v608
    %v610 = vpop.xlane.xlu0 %609
    %v611 = vsel %vm361, %v521, 0.0
    %612 = vadd.xlane.f32.xlu0 %v611
    %v613 = vpop.xlane.xlu0 %612
    %v614 = vsel %vm361, %v522, 0.0
    %615 = vadd.xlane.f32.xlu0 %v614
    %v616 = vpop.xlane.xlu0 %615
    %v617 = vsel %vm361, %v523, 0.0
    %618 = vadd.xlane.f32.xlu0 %v617
    %v619 = vpop.xlane.xlu0 %618
    %v620 = vadd.f32 %v458, %v526
    %v621 = vadd.f32 %v459, %v529
    %v622 = vadd.f32 %v460, %v532
    %v623 = vadd.f32 %v461, %v535
    %v624 = vadd.f32 %v462, %v538
    %v625 = vadd.f32 %v463, %v541
    %v626 = vadd.f32 %v464, %v544
    %v627 = vadd.f32 %v465, %v547
    %v628 = vadd.f32 %v466, %v550
    %v629 = vadd.f32 %v467, %v553
    %v630 = vadd.f32 %v468, %v556
    %v631 = vadd.f32 %v469, %v559
    %v632 = vadd.f32 %v470, %v562
    %v633 = vadd.f32 %v471, %v565
    %v634 = vadd.f32 %v472, %v568
    %v635 = vadd.f32 %v473, %v571
    %v636 = vadd.f32 %v474, %v574
    %v637 = vadd.f32 %v475, %v577
    %v638 = vadd.f32 %v476, %v580
    %v639 = vadd.f32 %v477, %v583
    %v640 = vadd.f32 %v478, %v586
    %v641 = vadd.f32 %v479, %v589
    %v642 = vadd.f32 %v480, %v592
    %v643 = vadd.f32 %v481, %v595
    %v644 = vadd.f32 %v482, %v598
    %v645 = vadd.f32 %v483, %v601
    %v646 = vadd.f32 %v484, %v604
    %v647 = vadd.f32 %v485, %v607
    %v648 = vadd.f32 %v486, %v610
    %v649 = vadd.f32 %v487, %v613
    %v650 = vadd.f32 %v488, %v616
    %v651 = vadd.f32 %v489, %v619
    %v652 = vld [vmem:[#allocation3 + $0x2] sm:$0x1]
    %v653 = vperm.slane %v652, 0
    %v654 = vmul.f32 %v64, %v653
    %v655 = vmul.f32 %v65, %v653
    %v656 = vmul.f32 %v66, %v653
    %v657 = vmul.f32 %v67, %v653
    %v658 = vmul.f32 %v68, %v653
    %v659 = vmul.f32 %v69, %v653
    %v660 = vmul.f32 %v70, %v653
    %v661 = vmul.f32 %v71, %v653
    %v662 = vmul.f32 %v72, %v653
    %v663 = vmul.f32 %v73, %v653
    %v664 = vmul.f32 %v74, %v653
    %v665 = vmul.f32 %v75, %v653
    %v666 = vmul.f32 %v76, %v653
    %v667 = vmul.f32 %v77, %v653
    %v668 = vmul.f32 %v78, %v653
    %v669 = vmul.f32 %v79, %v653
    %v670 = vmul.f32 %v80, %v653
    %v671 = vmul.f32 %v81, %v653
    %v672 = vmul.f32 %v82, %v653
    %v673 = vmul.f32 %v83, %v653
    %v674 = vmul.f32 %v84, %v653
    %v675 = vmul.f32 %v85, %v653
    %v676 = vmul.f32 %v86, %v653
    %v677 = vmul.f32 %v87, %v653
    %v678 = vmul.f32 %v88, %v653
    %v679 = vmul.f32 %v89, %v653
    %v680 = vmul.f32 %v90, %v653
    %v681 = vmul.f32 %v91, %v653
    %v682 = vmul.f32 %v92, %v653
    %v683 = vmul.f32 %v93, %v653
    %v684 = vmul.f32 %v94, %v653
    %v685 = vmul.f32 %v95, %v653
    %v686 = vsel %vm361, %v654, 0.0
    %687 = vadd.xlane.f32.xlu0 %v686
    %v688 = vpop.xlane.xlu0 %687
    %v689 = vsel %vm361, %v655, 0.0
    %690 = vadd.xlane.f32.xlu0 %v689
    %v691 = vpop.xlane.xlu0 %690
    %v692 = vsel %vm361, %v656, 0.0
    %693 = vadd.xlane.f32.xlu0 %v692
    %v694 = vpop.xlane.xlu0 %693
    %v695 = vsel %vm361, %v657, 0.0
    %696 = vadd.xlane.f32.xlu0 %v695
    %v697 = vpop.xlane.xlu0 %696
    %v698 = vsel %vm361, %v658, 0.0
    %699 = vadd.xlane.f32.xlu0 %v698
    %v700 = vpop.xlane.xlu0 %699
    %v701 = vsel %vm361, %v659, 0.0
    %702 = vadd.xlane.f32.xlu0 %v701
    %v703 = vpop.xlane.xlu0 %702
    %v704 = vsel %vm361, %v660, 0.0
    %705 = vadd.xlane.f32.xlu0 %v704
    %v706 = vpop.xlane.xlu0 %705
    %v707 = vsel %vm361, %v661, 0.0
    %708 = vadd.xlane.f32.xlu0 %v707
    %v709 = vpop.xlane.xlu0 %708
    %v710 = vsel %vm361, %v662, 0.0
    %711 = vadd.xlane.f32.xlu0 %v710
    %v712 = vpop.xlane.xlu0 %711
    %v713 = vsel %vm361, %v663, 0.0
    %714 = vadd.xlane.f32.xlu0 %v713
    %v715 = vpop.xlane.xlu0 %714
    %v716 = vsel %vm361, %v664, 0.0
    %717 = vadd.xlane.f32.xlu0 %v716
    %v718 = vpop.xlane.xlu0 %717
    %v719 = vsel %vm361, %v665, 0.0
    %720 = vadd.xlane.f32.xlu0 %v719
    %v721 = vpop.xlane.xlu0 %720
    %v722 = vsel %vm361, %v666, 0.0
    %723 = vadd.xlane.f32.xlu0 %v722
    %v724 = vpop.xlane.xlu0 %723
    %v725 = vsel %vm361, %v667, 0.0
    %726 = vadd.xlane.f32.xlu0 %v725
    %v727 = vpop.xlane.xlu0 %726
    %v728 = vsel %vm361, %v668, 0.0
    %729 = vadd.xlane.f32.xlu0 %v728
    %v730 = vpop.xlane.xlu0 %729
    %v731 = vsel %vm361, %v669, 0.0
    %732 = vadd.xlane.f32.xlu0 %v731
    %v733 = vpop.xlane.xlu0 %732
    %v734 = vsel %vm361, %v670, 0.0
    %735 = vadd.xlane.f32.xlu0 %v734
    %v736 = vpop.xlane.xlu0 %735
    %v737 = vsel %vm361, %v671, 0.0
    %738 = vadd.xlane.f32.xlu0 %v737
    %v739 = vpop.xlane.xlu0 %738
    %v740 = vsel %vm361, %v672, 0.0
    %741 = vadd.xlane.f32.xlu0 %v740
    %v742 = vpop.xlane.xlu0 %741
    %v743 = vsel %vm361, %v673, 0.0
    %744 = vadd.xlane.f32.xlu0 %v743
    %v745 = vpop.xlane.xlu0 %744
    %v746 = vsel %vm361, %v674, 0.0
    %747 = vadd.xlane.f32.xlu0 %v746
    %v748 = vpop.xlane.xlu0 %747
    %v749 = vsel %vm361, %v675, 0.0
    %750 = vadd.xlane.f32.xlu0 %v749
    %v751 = vpop.xlane.xlu0 %750
    %v752 = vsel %vm361, %v676, 0.0
    %753 = vadd.xlane.f32.xlu0 %v752
    %v754 = vpop.xlane.xlu0 %753
    %v755 = vsel %vm361, %v677, 0.0
    %756 = vadd.xlane.f32.xlu0 %v755
    %v757 = vpop.xlane.xlu0 %756
    %v758 = vsel %vm361, %v678, 0.0
    %759 = vadd.xlane.f32.xlu0 %v758
    %v760 = vpop.xlane.xlu0 %759
    %v761 = vsel %vm361, %v679, 0.0
    %762 = vadd.xlane.f32.xlu0 %v761
    %v763 = vpop.xlane.xlu0 %762
    %v764 = vsel %vm361, %v680, 0.0
    %765 = vadd.xlane.f32.xlu0 %v764
    %v766 = vpop.xlane.xlu0 %765
    %v767 = vsel %vm361, %v681, 0.0
    %768 = vadd.xlane.f32.xlu0 %v767
    %v769 = vpop.xlane.xlu0 %768
    %v770 = vsel %vm361, %v682, 0.0
    %771 = vadd.xlane.f32.xlu0 %v770
    %v772 = vpop.xlane.xlu0 %771
    %v773 = vsel %vm361, %v683, 0.0
    %774 = vadd.xlane.f32.xlu0 %v773
    %v775 = vpop.xlane.xlu0 %774
    %v776 = vsel %vm361, %v684, 0.0
    %777 = vadd.xlane.f32.xlu0 %v776
    %v778 = vpop.xlane.xlu0 %777
    %v779 = vsel %vm361, %v685, 0.0
    %780 = vadd.xlane.f32.xlu0 %v779
    %v781 = vpop.xlane.xlu0 %780
    %v782 = vadd.f32 %v620, %v688
    %v783 = vadd.f32 %v621, %v691
    %v784 = vadd.f32 %v622, %v694
    %v785 = vadd.f32 %v623, %v697
    %v786 = vadd.f32 %v624, %v700
    %v787 = vadd.f32 %v625, %v703
    %v788 = vadd.f32 %v626, %v706
    %v789 = vadd.f32 %v627, %v709
    %v790 = vadd.f32 %v628, %v712
    %v791 = vadd.f32 %v629, %v715
    %v792 = vadd.f32 %v630, %v718
    %v793 = vadd.f32 %v631, %v721
    %v794 = vadd.f32 %v632, %v724
    %v795 = vadd.f32 %v633, %v727
    %v796 = vadd.f32 %v634, %v730
    %v797 = vadd.f32 %v635, %v733
    %v798 = vadd.f32 %v636, %v736
    %v799 = vadd.f32 %v637, %v739
    %v800 = vadd.f32 %v638, %v742
    %v801 = vadd.f32 %v639, %v745
    %v802 = vadd.f32 %v640, %v748
    %v803 = vadd.f32 %v641, %v751
    %v804 = vadd.f32 %v642, %v754
    %v805 = vadd.f32 %v643, %v757
    %v806 = vadd.f32 %v644, %v760
    %v807 = vadd.f32 %v645, %v763
    %v808 = vadd.f32 %v646, %v766
    %v809 = vadd.f32 %v647, %v769
    %v810 = vadd.f32 %v648, %v772
    %v811 = vadd.f32 %v649, %v775
    %v812 = vadd.f32 %v650, %v778
    %v813 = vadd.f32 %v651, %v781
    %v814 = vld [vmem:[#allocation3 + $0x3] sm:$0x1]
    %v815 = vperm.slane %v814, 0
    %v816 = vmul.f32 %v32, %v815
    %v817 = vmul.f32 %v33, %v815
    %v818 = vmul.f32 %v34, %v815
    %v819 = vmul.f32 %v35, %v815
    %v820 = vmul.f32 %v36, %v815
    %v821 = vmul.f32 %v37, %v815
    %v822 = vmul.f32 %v38, %v815
    %v823 = vmul.f32 %v39, %v815
    %v824 = vmul.f32 %v40, %v815
    %v825 = vmul.f32 %v41, %v815
    %v826 = vmul.f32 %v42, %v815
    %v827 = vmul.f32 %v43, %v815
    %v828 = vmul.f32 %v44, %v815
    %v829 = vmul.f32 %v45, %v815
    %v830 = vmul.f32 %v46, %v815
    %v831 = vmul.f32 %v47, %v815
    %v832 = vmul.f32 %v48, %v815
    %v833 = vmul.f32 %v49, %v815
    %v834 = vmul.f32 %v50, %v815
    %v835 = vmul.f32 %v51, %v815
    %v836 = vmul.f32 %v52, %v815
    %v837 = vmul.f32 %v53, %v815
    %v838 = vmul.f32 %v54, %v815
    %v839 = vmul.f32 %v55, %v815
    %v840 = vmul.f32 %v56, %v815
    %v841 = vmul.f32 %v57, %v815
    %v842 = vmul.f32 %v58, %v815
    %v843 = vmul.f32 %v59, %v815
    %v844 = vmul.f32 %v60, %v815
    %v845 = vmul.f32 %v61, %v815
    %v846 = vmul.f32 %v62, %v815
    %v847 = vmul.f32 %v63, %v815
    %v848 = vsel %vm361, %v816, 0.0
    %849 = vadd.xlane.f32.xlu0 %v848
    %v850 = vpop.xlane.xlu0 %849
    %v851 = vsel %vm361, %v817, 0.0
    %852 = vadd.xlane.f32.xlu0 %v851
    %v853 = vpop.xlane.xlu0 %852
    %v854 = vsel %vm361, %v818, 0.0
    %855 = vadd.xlane.f32.xlu0 %v854
    %v856 = vpop.xlane.xlu0 %855
    %v857 = vsel %vm361, %v819, 0.0
    %858 = vadd.xlane.f32.xlu0 %v857
    %v859 = vpop.xlane.xlu0 %858
    %v860 = vsel %vm361, %v820, 0.0
    %861 = vadd.xlane.f32.xlu0 %v860
    %v862 = vpop.xlane.xlu0 %861
    %v863 = vsel %vm361, %v821, 0.0
    %864 = vadd.xlane.f32.xlu0 %v863
    %v865 = vpop.xlane.xlu0 %864
    %v866 = vsel %vm361, %v822, 0.0
    %867 = vadd.xlane.f32.xlu0 %v866
    %v868 = vpop.xlane.xlu0 %867
    %v869 = vsel %vm361, %v823, 0.0
    %870 = vadd.xlane.f32.xlu0 %v869
    %v871 = vpop.xlane.xlu0 %870
    %v872 = vsel %vm361, %v824, 0.0
    %873 = vadd.xlane.f32.xlu0 %v872
    %v874 = vpop.xlane.xlu0 %873
    %v875 = vsel %vm361, %v825, 0.0
    %876 = vadd.xlane.f32.xlu0 %v875
    %v877 = vpop.xlane.xlu0 %876
    %v878 = vsel %vm361, %v826, 0.0
    %879 = vadd.xlane.f32.xlu0 %v878
    %v880 = vpop.xlane.xlu0 %879
    %v881 = vsel %vm361, %v827, 0.0
    %882 = vadd.xlane.f32.xlu0 %v881
    %v883 = vpop.xlane.xlu0 %882
    %v884 = vsel %vm361, %v828, 0.0
    %885 = vadd.xlane.f32.xlu0 %v884
    %v886 = vpop.xlane.xlu0 %885
    %v887 = vsel %vm361, %v829, 0.0
    %888 = vadd.xlane.f32.xlu0 %v887
    %v889 = vpop.xlane.xlu0 %888
    %v890 = vsel %vm361, %v830, 0.0
    %891 = vadd.xlane.f32.xlu0 %v890
    %v892 = vpop.xlane.xlu0 %891
    %v893 = vsel %vm361, %v831, 0.0
    %894 = vadd.xlane.f32.xlu0 %v893
    %v895 = vpop.xlane.xlu0 %894
    %v896 = vsel %vm361, %v832, 0.0
    %897 = vadd.xlane.f32.xlu0 %v896
    %v898 = vpop.xlane.xlu0 %897
    %v899 = vsel %vm361, %v833, 0.0
    %900 = vadd.xlane.f32.xlu0 %v899
    %v901 = vpop.xlane.xlu0 %900
    %v902 = vsel %vm361, %v834, 0.0
    %903 = vadd.xlane.f32.xlu0 %v902
    %v904 = vpop.xlane.xlu0 %903
    %v905 = vsel %vm361, %v835, 0.0
    %906 = vadd.xlane.f32.xlu0 %v905
    %v907 = vpop.xlane.xlu0 %906
    %v908 = vsel %vm361, %v836, 0.0
    %909 = vadd.xlane.f32.xlu0 %v908
    %v910 = vpop.xlane.xlu0 %909
    %v911 = vsel %vm361, %v837, 0.0
    %912 = vadd.xlane.f32.xlu0 %v911
    %v913 = vpop.xlane.xlu0 %912
    %v914 = vsel %vm361, %v838, 0.0
    %915 = vadd.xlane.f32.xlu0 %v914
    %v916 = vpop.xlane.xlu0 %915
    %v917 = vsel %vm361, %v839, 0.0
    %918 = vadd.xlane.f32.xlu0 %v917
    %v919 = vpop.xlane.xlu0 %918
    %v920 = vsel %vm361, %v840, 0.0
    %921 = vadd.xlane.f32.xlu0 %v920
    %v922 = vpop.xlane.xlu0 %921
    %v923 = vsel %vm361, %v841, 0.0
    %924 = vadd.xlane.f32.xlu0 %v923
    %v925 = vpop.xlane.xlu0 %924
    %v926 = vsel %vm361, %v842, 0.0
    %927 = vadd.xlane.f32.xlu0 %v926
    %v928 = vpop.xlane.xlu0 %927
    %v929 = vsel %vm361, %v843, 0.0
    %930 = vadd.xlane.f32.xlu0 %v929
    %v931 = vpop.xlane.xlu0 %930
    %v932 = vsel %vm361, %v844, 0.0
    %933 = vadd.xlane.f32.xlu0 %v932
    %v934 = vpop.xlane.xlu0 %933
    %v935 = vsel %vm361, %v845, 0.0
    %936 = vadd.xlane.f32.xlu0 %v935
    %v937 = vpop.xlane.xlu0 %936
    %v938 = vsel %vm361, %v846, 0.0
    %939 = vadd.xlane.f32.xlu0 %v938
    %v940 = vpop.xlane.xlu0 %939
    %v941 = vsel %vm361, %v847, 0.0
    %942 = vadd.xlane.f32.xlu0 %v941
    %v943 = vpop.xlane.xlu0 %942
    %v944 = vadd.f32 %v782, %v850
    %v945 = vadd.f32 %v783, %v853
    %v946 = vadd.f32 %v784, %v856
    %v947 = vadd.f32 %v785, %v859
    %v948 = vadd.f32 %v786, %v862
    %v949 = vadd.f32 %v787, %v865
    %v950 = vadd.f32 %v788, %v868
    %v951 = vadd.f32 %v789, %v871
    %v952 = vadd.f32 %v790, %v874
    %v953 = vadd.f32 %v791, %v877
    %v954 = vadd.f32 %v792, %v880
    %v955 = vadd.f32 %v793, %v883
    %v956 = vadd.f32 %v794, %v886
    %v957 = vadd.f32 %v795, %v889
    %v958 = vadd.f32 %v796, %v892
    %v959 = vadd.f32 %v797, %v895
    %v960 = vadd.f32 %v798, %v898
    %v961 = vadd.f32 %v799, %v901
    %v962 = vadd.f32 %v800, %v904
    %v963 = vadd.f32 %v801, %v907
    %v964 = vadd.f32 %v802, %v910
    %v965 = vadd.f32 %v803, %v913
    %v966 = vadd.f32 %v804, %v916
    %v967 = vadd.f32 %v805, %v919
    %v968 = vadd.f32 %v806, %v922
    %v969 = vadd.f32 %v807, %v925
    %v970 = vadd.f32 %v808, %v928
    %v971 = vadd.f32 %v809, %v931
    %v972 = vadd.f32 %v810, %v934
    %v973 = vadd.f32 %v811, %v937
    %v974 = vadd.f32 %v812, %v940
    %v975 = vadd.f32 %v813, %v943
    %v976 = vtanh.pop %v944
    %v977 = vtanh.pop %v945
    %v978 = vtanh.pop %v946
    %v979 = vtanh.pop %v947
    %v980 = vtanh.pop %v948
    %v981 = vtanh.pop %v949
    %v982 = vtanh.pop %v950
    %v983 = vtanh.pop %v951
    %v984 = vtanh.pop %v952
    %v985 = vtanh.pop %v953
    %v986 = vtanh.pop %v954
    %v987 = vtanh.pop %v955
    %v988 = vtanh.pop %v956
    %v989 = vtanh.pop %v957
    %v990 = vtanh.pop %v958
    %v991 = vtanh.pop %v959
    %v992 = vtanh.pop %v960
    %v993 = vtanh.pop %v961
    %v994 = vtanh.pop %v962
    %v995 = vtanh.pop %v963
    %v996 = vtanh.pop %v964
    %v997 = vtanh.pop %v965
    %v998 = vtanh.pop %v966
    %v999 = vtanh.pop %v967
    %v1000 = vtanh.pop %v968
    %v1001 = vtanh.pop %v969
    %v1002 = vtanh.pop %v970
    %v1003 = vtanh.pop %v971
    %v1004 = vtanh.pop %v972
    %v1005 = vtanh.pop %v973
    %v1006 = vtanh.pop %v974
    %v1007 = vtanh.pop %v975
    %vm1008 = vcmask 7168
    %1009 = vst.msk [vmem:[%s3] sm:$0xff] %vm1008, %v976
    %1010 = vst.msk [vmem:[%s3 + $0x8] sm:$0xff] %vm1008, %v977
    %1011 = vst.msk [vmem:[%s3 + $0x10] sm:$0xff] %vm1008, %v978
    %1012 = vst.msk [vmem:[%s3 + $0x18] sm:$0xff] %vm1008, %v979
    %1013 = vst.msk [vmem:[%s3 + $0x20] sm:$0xff] %vm1008, %v980
    %1014 = vst.msk [vmem:[%s3 + $0x28] sm:$0xff] %vm1008, %v981
    %1015 = vst.msk [vmem:[%s3 + $0x30] sm:$0xff] %vm1008, %v982
    %1016 = vst.msk [vmem:[%s3 + $0x38] sm:$0xff] %vm1008, %v983
    %1017 = vst.msk [vmem:[%s3 + $0x40] sm:$0xff] %vm1008, %v984
    %1018 = vst.msk [vmem:[%s3 + $0x48] sm:$0xff] %vm1008, %v985
    %1019 = vst.msk [vmem:[%s3 + $0x50] sm:$0xff] %vm1008, %v986
    %1020 = vst.msk [vmem:[%s3 + $0x58] sm:$0xff] %vm1008, %v987
    %1021 = vst.msk [vmem:[%s3 + $0x60] sm:$0xff] %vm1008, %v988
    %1022 = vst.msk [vmem:[%s3 + $0x68] sm:$0xff] %vm1008, %v989
    %1023 = vst.msk [vmem:[%s3 + $0x70] sm:$0xff] %vm1008, %v990
    %1024 = vst.msk [vmem:[%s3 + $0x78] sm:$0xff] %vm1008, %v991
    %1025 = vst.msk [vmem:[%s3 + $0x80] sm:$0xff] %vm1008, %v992
    %1026 = vst.msk [vmem:[%s3 + $0x88] sm:$0xff] %vm1008, %v993
    %1027 = vst.msk [vmem:[%s3 + $0x90] sm:$0xff] %vm1008, %v994
    %1028 = vst.msk [vmem:[%s3 + $0x98] sm:$0xff] %vm1008, %v995
    %1029 = vst.msk [vmem:[%s3 + $0xa0] sm:$0xff] %vm1008, %v996
    %1030 = vst.msk [vmem:[%s3 + $0xa8] sm:$0xff] %vm1008, %v997
    %1031 = vst.msk [vmem:[%s3 + $0xb0] sm:$0xff] %vm1008, %v998
    %1032 = vst.msk [vmem:[%s3 + $0xb8] sm:$0xff] %vm1008, %v999
    %1033 = vst.msk [vmem:[%s3 + $0xc0] sm:$0xff] %vm1008, %v1000
    %1034 = vst.msk [vmem:[%s3 + $0xc8] sm:$0xff] %vm1008, %v1001
    %1035 = vst.msk [vmem:[%s3 + $0xd0] sm:$0xff] %vm1008, %v1002
    %1036 = vst.msk [vmem:[%s3 + $0xd8] sm:$0xff] %vm1008, %v1003
    %1037 = vst.msk [vmem:[%s3 + $0xe0] sm:$0xff] %vm1008, %v1004
    %1038 = vst.msk [vmem:[%s3 + $0xe8] sm:$0xff] %vm1008, %v1005
    %1039 = vst.msk [vmem:[%s3 + $0xf0] sm:$0xff] %vm1008, %v1006
    %1040 = vst.msk [vmem:[%s3 + $0xf8] sm:$0xff] %vm1008, %v1007
    %v1041 = vld [vmem:[#allocation2] sm:$0x1]
    %v1043 = vperm.slane %v1041, 0
    %v1045 = vadd.f32 %v1043, 0.0
    %v1046 = vld [vmem:[#allocation3 + $0x4] sm:$0x1]
    %v1047 = vperm.slane %v1046, 0
    %v1048 = vmul.f32 %v193, %v1047
    %v1049 = vmul.f32 %v194, %v1047
    %v1050 = vmul.f32 %v195, %v1047
    %v1051 = vmul.f32 %v196, %v1047
    %v1052 = vmul.f32 %v197, %v1047
    %v1053 = vmul.f32 %v198, %v1047
    %v1054 = vmul.f32 %v199, %v1047
    %v1055 = vmul.f32 %v200, %v1047
    %v1056 = vmul.f32 %v201, %v1047
    %v1057 = vmul.f32 %v202, %v1047
    %v1058 = vmul.f32 %v203, %v1047
    %v1059 = vmul.f32 %v204, %v1047
    %v1060 = vmul.f32 %v205, %v1047
    %v1061 = vmul.f32 %v206, %v1047
    %v1062 = vmul.f32 %v207, %v1047
    %v1063 = vmul.f32 %v208, %v1047
    %v1064 = vmul.f32 %v209, %v1047
    %v1065 = vmul.f32 %v210, %v1047
    %v1066 = vmul.f32 %v211, %v1047
    %v1067 = vmul.f32 %v212, %v1047
    %v1068 = vmul.f32 %v213, %v1047
    %v1069 = vmul.f32 %v214, %v1047
    %v1070 = vmul.f32 %v215, %v1047
    %v1071 = vmul.f32 %v216, %v1047
    %v1072 = vmul.f32 %v217, %v1047
    %v1073 = vmul.f32 %v218, %v1047
    %v1074 = vmul.f32 %v219, %v1047
    %v1075 = vmul.f32 %v220, %v1047
    %v1076 = vmul.f32 %v221, %v1047
    %v1077 = vmul.f32 %v222, %v1047
    %v1078 = vmul.f32 %v223, %v1047
    %v1079 = vmul.f32 %v224, %v1047
    %v1080 = vsel %vm361, %v1048, 0.0
    %1081 = vadd.xlane.f32.xlu0 %v1080
    %v1082 = vpop.xlane.xlu0 %1081
    %v1083 = vsel %vm361, %v1049, 0.0
    %1084 = vadd.xlane.f32.xlu0 %v1083
    %v1085 = vpop.xlane.xlu0 %1084
    %v1086 = vsel %vm361, %v1050, 0.0
    %1087 = vadd.xlane.f32.xlu0 %v1086
    %v1088 = vpop.xlane.xlu0 %1087
    %v1089 = vsel %vm361, %v1051, 0.0
    %1090 = vadd.xlane.f32.xlu0 %v1089
    %v1091 = vpop.xlane.xlu0 %1090
    %v1092 = vsel %vm361, %v1052, 0.0
    %1093 = vadd.xlane.f32.xlu0 %v1092
    %v1094 = vpop.xlane.xlu0 %1093
    %v1095 = vsel %vm361, %v1053, 0.0
    %1096 = vadd.xlane.f32.xlu0 %v1095
    %v1097 = vpop.xlane.xlu0 %1096
    %v1098 = vsel %vm361, %v1054, 0.0
    %1099 = vadd.xlane.f32.xlu0 %v1098
    %v1100 = vpop.xlane.xlu0 %1099
    %v1101 = vsel %vm361, %v1055, 0.0
    %1102 = vadd.xlane.f32.xlu0 %v1101
    %v1103 = vpop.xlane.xlu0 %1102
    %v1104 = vsel %vm361, %v1056, 0.0
    %1105 = vadd.xlane.f32.xlu0 %v1104
    %v1106 = vpop.xlane.xlu0 %1105
    %v1107 = vsel %vm361, %v1057, 0.0
    %1108 = vadd.xlane.f32.xlu0 %v1107
    %v1109 = vpop.xlane.xlu0 %1108
    %v1110 = vsel %vm361, %v1058, 0.0
    %1111 = vadd.xlane.f32.xlu0 %v1110
    %v1112 = vpop.xlane.xlu0 %1111
    %v1113 = vsel %vm361, %v1059, 0.0
    %1114 = vadd.xlane.f32.xlu0 %v1113
    %v1115 = vpop.xlane.xlu0 %1114
    %v1116 = vsel %vm361, %v1060, 0.0
    %1117 = vadd.xlane.f32.xlu0 %v1116
    %v1118 = vpop.xlane.xlu0 %1117
    %v1119 = vsel %vm361, %v1061, 0.0
    %1120 = vadd.xlane.f32.xlu0 %v1119
    %v1121 = vpop.xlane.xlu0 %1120
    %v1122 = vsel %vm361, %v1062, 0.0
    %1123 = vadd.xlane.f32.xlu0 %v1122
    %v1124 = vpop.xlane.xlu0 %1123
    %v1125 = vsel %vm361, %v1063, 0.0
    %1126 = vadd.xlane.f32.xlu0 %v1125
    %v1127 = vpop.xlane.xlu0 %1126
    %v1128 = vsel %vm361, %v1064, 0.0
    %1129 = vadd.xlane.f32.xlu0 %v1128
    %v1130 = vpop.xlane.xlu0 %1129
    %v1131 = vsel %vm361, %v1065, 0.0
    %1132 = vadd.xlane.f32.xlu0 %v1131
    %v1133 = vpop.xlane.xlu0 %1132
    %v1134 = vsel %vm361, %v1066, 0.0
    %1135 = vadd.xlane.f32.xlu0 %v1134
    %v1136 = vpop.xlane.xlu0 %1135
    %v1137 = vsel %vm361, %v1067, 0.0
    %1138 = vadd.xlane.f32.xlu0 %v1137
    %v1139 = vpop.xlane.xlu0 %1138
    %v1140 = vsel %vm361, %v1068, 0.0
    %1141 = vadd.xlane.f32.xlu0 %v1140
    %v1142 = vpop.xlane.xlu0 %1141
    %v1143 = vsel %vm361, %v1069, 0.0
    %1144 = vadd.xlane.f32.xlu0 %v1143
    %v1145 = vpop.xlane.xlu0 %1144
    %v1146 = vsel %vm361, %v1070, 0.0
    %1147 = vadd.xlane.f32.xlu0 %v1146
    %v1148 = vpop.xlane.xlu0 %1147
    %v1149 = vsel %vm361, %v1071, 0.0
    %1150 = vadd.xlane.f32.xlu0 %v1149
    %v1151 = vpop.xlane.xlu0 %1150
    %v1152 = vsel %vm361, %v1072, 0.0
    %1153 = vadd.xlane.f32.xlu0 %v1152
    %v1154 = vpop.xlane.xlu0 %1153
    %v1155 = vsel %vm361, %v1073, 0.0
    %1156 = vadd.xlane.f32.xlu0 %v1155
    %v1157 = vpop.xlane.xlu0 %1156
    %v1158 = vsel %vm361, %v1074, 0.0
    %1159 = vadd.xlane.f32.xlu0 %v1158
    %v1160 = vpop.xlane.xlu0 %1159
    %v1161 = vsel %vm361, %v1075, 0.0
    %1162 = vadd.xlane.f32.xlu0 %v1161
    %v1163 = vpop.xlane.xlu0 %1162
    %v1164 = vsel %vm361, %v1076, 0.0
    %1165 = vadd.xlane.f32.xlu0 %v1164
    %v1166 = vpop.xlane.xlu0 %1165
    %v1167 = vsel %vm361, %v1077, 0.0
    %1168 = vadd.xlane.f32.xlu0 %v1167
    %v1169 = vpop.xlane.xlu0 %1168
    %v1170 = vsel %vm361, %v1078, 0.0
    %1171 = vadd.xlane.f32.xlu0 %v1170
    %v1172 = vpop.xlane.xlu0 %1171
    %v1173 = vsel %vm361, %v1079, 0.0
    %1174 = vadd.xlane.f32.xlu0 %v1173
    %v1175 = vpop.xlane.xlu0 %1174
    %v1176 = vadd.f32 %v1045, %v1082
    %v1177 = vadd.f32 %v1045, %v1085
    %v1178 = vadd.f32 %v1045, %v1088
    %v1179 = vadd.f32 %v1045, %v1091
    %v1180 = vadd.f32 %v1045, %v1094
    %v1181 = vadd.f32 %v1045, %v1097
    %v1182 = vadd.f32 %v1045, %v1100
    %v1183 = vadd.f32 %v1045, %v1103
    %v1184 = vadd.f32 %v1045, %v1106
    %v1185 = vadd.f32 %v1045, %v1109
    %v1186 = vadd.f32 %v1045, %v1112
    %v1187 = vadd.f32 %v1045, %v1115
    %v1188 = vadd.f32 %v1045, %v1118
    %v1189 = vadd.f32 %v1045, %v1121
    %v1190 = vadd.f32 %v1045, %v1124
    %v1191 = vadd.f32 %v1045, %v1127
    %v1192 = vadd.f32 %v1045, %v1130
    %v1193 = vadd.f32 %v1045, %v1133
    %v1194 = vadd.f32 %v1045, %v1136
    %v1195 = vadd.f32 %v1045, %v1139
    %v1196 = vadd.f32 %v1045, %v1142
    %v1197 = vadd.f32 %v1045, %v1145
    %v1198 = vadd.f32 %v1045, %v1148
    %v1199 = vadd.f32 %v1045, %v1151
    %v1200 = vadd.f32 %v1045, %v1154
    %v1201 = vadd.f32 %v1045, %v1157
    %v1202 = vadd.f32 %v1045, %v1160
    %v1203 = vadd.f32 %v1045, %v1163
    %v1204 = vadd.f32 %v1045, %v1166
    %v1205 = vadd.f32 %v1045, %v1169
    %v1206 = vadd.f32 %v1045, %v1172
    %v1207 = vadd.f32 %v1045, %v1175
    %v1208 = vld [vmem:[#allocation3 + $0x5] sm:$0x1]
    %v1209 = vperm.slane %v1208, 0
    %v1210 = vmul.f32 %v161, %v1209
    %v1211 = vmul.f32 %v162, %v1209
    %v1212 = vmul.f32 %v163, %v1209
    %v1213 = vmul.f32 %v164, %v1209
    %v1214 = vmul.f32 %v165, %v1209
    %v1215 = vmul.f32 %v166, %v1209
    %v1216 = vmul.f32 %v167, %v1209
    %v1217 = vmul.f32 %v168, %v1209
    %v1218 = vmul.f32 %v169, %v1209
    %v1219 = vmul.f32 %v170, %v1209
    %v1220 = vmul.f32 %v171, %v1209
    %v1221 = vmul.f32 %v172, %v1209
    %v1222 = vmul.f32 %v173, %v1209
    %v1223 = vmul.f32 %v174, %v1209
    %v1224 = vmul.f32 %v175, %v1209
    %v1225 = vmul.f32 %v176, %v1209
    %v1226 = vmul.f32 %v177, %v1209
    %v1227 = vmul.f32 %v178, %v1209
    %v1228 = vmul.f32 %v179, %v1209
    %v1229 = vmul.f32 %v180, %v1209
    %v1230 = vmul.f32 %v181, %v1209
    %v1231 = vmul.f32 %v182, %v1209
    %v1232 = vmul.f32 %v183, %v1209
    %v1233 = vmul.f32 %v184, %v1209
    %v1234 = vmul.f32 %v185, %v1209
    %v1235 = vmul.f32 %v186, %v1209
    %v1236 = vmul.f32 %v187, %v1209
    %v1237 = vmul.f32 %v188, %v1209
    %v1238 = vmul.f32 %v189, %v1209
    %v1239 = vmul.f32 %v190, %v1209
    %v1240 = vmul.f32 %v191, %v1209
    %v1241 = vmul.f32 %v192, %v1209
    %v1242 = vsel %vm361, %v1210, 0.0
    %1243 = vadd.xlane.f32.xlu0 %v1242
    %v1244 = vpop.xlane.xlu0 %1243
    %v1245 = vsel %vm361, %v1211, 0.0
    %1246 = vadd.xlane.f32.xlu0 %v1245
    %v1247 = vpop.xlane.xlu0 %1246
    %v1248 = vsel %vm361, %v1212, 0.0
    %1249 = vadd.xlane.f32.xlu0 %v1248
    %v1250 = vpop.xlane.xlu0 %1249
    %v1251 = vsel %vm361, %v1213, 0.0
    %1252 = vadd.xlane.f32.xlu0 %v1251
    %v1253 = vpop.xlane.xlu0 %1252
    %v1254 = vsel %vm361, %v1214, 0.0
    %1255 = vadd.xlane.f32.xlu0 %v1254
    %v1256 = vpop.xlane.xlu0 %1255
    %v1257 = vsel %vm361, %v1215, 0.0
    %1258 = vadd.xlane.f32.xlu0 %v1257
    %v1259 = vpop.xlane.xlu0 %1258
    %v1260 = vsel %vm361, %v1216, 0.0
    %1261 = vadd.xlane.f32.xlu0 %v1260
    %v1262 = vpop.xlane.xlu0 %1261
    %v1263 = vsel %vm361, %v1217, 0.0
    %1264 = vadd.xlane.f32.xlu0 %v1263
    %v1265 = vpop.xlane.xlu0 %1264
    %v1266 = vsel %vm361, %v1218, 0.0
    %1267 = vadd.xlane.f32.xlu0 %v1266
    %v1268 = vpop.xlane.xlu0 %1267
    %v1269 = vsel %vm361, %v1219, 0.0
    %1270 = vadd.xlane.f32.xlu0 %v1269
    %v1271 = vpop.xlane.xlu0 %1270
    %v1272 = vsel %vm361, %v1220, 0.0
    %1273 = vadd.xlane.f32.xlu0 %v1272
    %v1274 = vpop.xlane.xlu0 %1273
    %v1275 = vsel %vm361, %v1221, 0.0
    %1276 = vadd.xlane.f32.xlu0 %v1275
    %v1277 = vpop.xlane.xlu0 %1276
    %v1278 = vsel %vm361, %v1222, 0.0
    %1279 = vadd.xlane.f32.xlu0 %v1278
    %v1280 = vpop.xlane.xlu0 %1279
    %v1281 = vsel %vm361, %v1223, 0.0
    %1282 = vadd.xlane.f32.xlu0 %v1281
    %v1283 = vpop.xlane.xlu0 %1282
    %v1284 = vsel %vm361, %v1224, 0.0
    %1285 = vadd.xlane.f32.xlu0 %v1284
    %v1286 = vpop.xlane.xlu0 %1285
    %v1287 = vsel %vm361, %v1225, 0.0
    %1288 = vadd.xlane.f32.xlu0 %v1287
    %v1289 = vpop.xlane.xlu0 %1288
    %v1290 = vsel %vm361, %v1226, 0.0
    %1291 = vadd.xlane.f32.xlu0 %v1290
    %v1292 = vpop.xlane.xlu0 %1291
    %v1293 = vsel %vm361, %v1227, 0.0
    %1294 = vadd.xlane.f32.xlu0 %v1293
    %v1295 = vpop.xlane.xlu0 %1294
    %v1296 = vsel %vm361, %v1228, 0.0
    %1297 = vadd.xlane.f32.xlu0 %v1296
    %v1298 = vpop.xlane.xlu0 %1297
    %v1299 = vsel %vm361, %v1229, 0.0
    %1300 = vadd.xlane.f32.xlu0 %v1299
    %v1301 = vpop.xlane.xlu0 %1300
    %v1302 = vsel %vm361, %v1230, 0.0
    %1303 = vadd.xlane.f32.xlu0 %v1302
    %v1304 = vpop.xlane.xlu0 %1303
    %v1305 = vsel %vm361, %v1231, 0.0
    %1306 = vadd.xlane.f32.xlu0 %v1305
    %v1307 = vpop.xlane.xlu0 %1306
    %v1308 = vsel %vm361, %v1232, 0.0
    %1309 = vadd.xlane.f32.xlu0 %v1308
    %v1310 = vpop.xlane.xlu0 %1309
    %v1311 = vsel %vm361, %v1233, 0.0
    %1312 = vadd.xlane.f32.xlu0 %v1311
    %v1313 = vpop.xlane.xlu0 %1312
    %v1314 = vsel %vm361, %v1234, 0.0
    %1315 = vadd.xlane.f32.xlu0 %v1314
    %v1316 = vpop.xlane.xlu0 %1315
    %v1317 = vsel %vm361, %v1235, 0.0
    %1318 = vadd.xlane.f32.xlu0 %v1317
    %v1319 = vpop.xlane.xlu0 %1318
    %v1320 = vsel %vm361, %v1236, 0.0
    %1321 = vadd.xlane.f32.xlu0 %v1320
    %v1322 = vpop.xlane.xlu0 %1321
    %v1323 = vsel %vm361, %v1237, 0.0
    %1324 = vadd.xlane.f32.xlu0 %v1323
    %v1325 = vpop.xlane.xlu0 %1324
    %v1326 = vsel %vm361, %v1238, 0.0
    %1327 = vadd.xlane.f32.xlu0 %v1326
    %v1328 = vpop.xlane.xlu0 %1327
    %v1329 = vsel %vm361, %v1239, 0.0
    %1330 = vadd.xlane.f32.xlu0 %v1329
    %v1331 = vpop.xlane.xlu0 %1330
    %v1332 = vsel %vm361, %v1240, 0.0
    %1333 = vadd.xlane.f32.xlu0 %v1332
    %v1334 = vpop.xlane.xlu0 %1333
    %v1335 = vsel %vm361, %v1241, 0.0
    %1336 = vadd.xlane.f32.xlu0 %v1335
    %v1337 = vpop.xlane.xlu0 %1336
    %v1338 = vadd.f32 %v1176, %v1244
    %v1339 = vadd.f32 %v1177, %v1247
    %v1340 = vadd.f32 %v1178, %v1250
    %v1341 = vadd.f32 %v1179, %v1253
    %v1342 = vadd.f32 %v1180, %v1256
    %v1343 = vadd.f32 %v1181, %v1259
    %v1344 = vadd.f32 %v1182, %v1262
    %v1345 = vadd.f32 %v1183, %v1265
    %v1346 = vadd.f32 %v1184, %v1268
    %v1347 = vadd.f32 %v1185, %v1271
    %v1348 = vadd.f32 %v1186, %v1274
    %v1349 = vadd.f32 %v1187, %v1277
    %v1350 = vadd.f32 %v1188, %v1280
    %v1351 = vadd.f32 %v1189, %v1283
    %v1352 = vadd.f32 %v1190, %v1286
    %v1353 = vadd.f32 %v1191, %v1289
    %v1354 = vadd.f32 %v1192, %v1292
    %v1355 = vadd.f32 %v1193, %v1295
    %v1356 = vadd.f32 %v1194, %v1298
    %v1357 = vadd.f32 %v1195, %v1301
    %v1358 = vadd.f32 %v1196, %v1304
    %v1359 = vadd.f32 %v1197, %v1307
    %v1360 = vadd.f32 %v1198, %v1310
    %v1361 = vadd.f32 %v1199, %v1313
    %v1362 = vadd.f32 %v1200, %v1316
    %v1363 = vadd.f32 %v1201, %v1319
    %v1364 = vadd.f32 %v1202, %v1322
    %v1365 = vadd.f32 %v1203, %v1325
    %v1366 = vadd.f32 %v1204, %v1328
    %v1367 = vadd.f32 %v1205, %v1331
    %v1368 = vadd.f32 %v1206, %v1334
    %v1369 = vadd.f32 %v1207, %v1337
    %v1370 = vld [vmem:[#allocation3 + $0x6] sm:$0x1]
    %v1371 = vperm.slane %v1370, 0
    %v1372 = vmul.f32 %v96, %v1371
    %v1373 = vmul.f32 %v97, %v1371
    %v1374 = vmul.f32 %v98, %v1371
    %v1375 = vmul.f32 %v99, %v1371
    %v1376 = vmul.f32 %v100, %v1371
    %v1377 = vmul.f32 %v101, %v1371
    %v1378 = vmul.f32 %v102, %v1371
    %v1379 = vmul.f32 %v103, %v1371
    %v1380 = vmul.f32 %v104, %v1371
    %v1381 = vmul.f32 %v105, %v1371
    %v1382 = vmul.f32 %v106, %v1371
    %v1383 = vmul.f32 %v107, %v1371
    %v1384 = vmul.f32 %v108, %v1371
    %v1385 = vmul.f32 %v109, %v1371
    %v1386 = vmul.f32 %v110, %v1371
    %v1387 = vmul.f32 %v111, %v1371
    %v1388 = vmul.f32 %v112, %v1371
    %v1389 = vmul.f32 %v113, %v1371
    %v1390 = vmul.f32 %v114, %v1371
    %v1391 = vmul.f32 %v115, %v1371
    %v1392 = vmul.f32 %v116, %v1371
    %v1393 = vmul.f32 %v117, %v1371
    %v1394 = vmul.f32 %v118, %v1371
    %v1395 = vmul.f32 %v119, %v1371
    %v1396 = vmul.f32 %v120, %v1371
    %v1397 = vmul.f32 %v121, %v1371
    %v1398 = vmul.f32 %v122, %v1371
    %v1399 = vmul.f32 %v123, %v1371
    %v1400 = vmul.f32 %v124, %v1371
    %v1401 = vmul.f32 %v125, %v1371
    %v1402 = vmul.f32 %v126, %v1371
    %v1403 = vmul.f32 %v127, %v1371
    %v1404 = vsel %vm361, %v1372, 0.0
    %1405 = vadd.xlane.f32.xlu0 %v1404
    %v1406 = vpop.xlane.xlu0 %1405
    %v1407 = vsel %vm361, %v1373, 0.0
    %1408 = vadd.xlane.f32.xlu0 %v1407
    %v1409 = vpop.xlane.xlu0 %1408
    %v1410 = vsel %vm361, %v1374, 0.0
    %1411 = vadd.xlane.f32.xlu0 %v1410
    %v1412 = vpop.xlane.xlu0 %1411
    %v1413 = vsel %vm361, %v1375, 0.0
    %1414 = vadd.xlane.f32.xlu0 %v1413
    %v1415 = vpop.xlane.xlu0 %1414
    %v1416 = vsel %vm361, %v1376, 0.0
    %1417 = vadd.xlane.f32.xlu0 %v1416
    %v1418 = vpop.xlane.xlu0 %1417
    %v1419 = vsel %vm361, %v1377, 0.0
    %1420 = vadd.xlane.f32.xlu0 %v1419
    %v1421 = vpop.xlane.xlu0 %1420
    %v1422 = vsel %vm361, %v1378, 0.0
    %1423 = vadd.xlane.f32.xlu0 %v1422
    %v1424 = vpop.xlane.xlu0 %1423
    %v1425 = vsel %vm361, %v1379, 0.0
    %1426 = vadd.xlane.f32.xlu0 %v1425
    %v1427 = vpop.xlane.xlu0 %1426
    %v1428 = vsel %vm361, %v1380, 0.0
    %1429 = vadd.xlane.f32.xlu0 %v1428
    %v1430 = vpop.xlane.xlu0 %1429
    %v1431 = vsel %vm361, %v1381, 0.0
    %1432 = vadd.xlane.f32.xlu0 %v1431
    %v1433 = vpop.xlane.xlu0 %1432
    %v1434 = vsel %vm361, %v1382, 0.0
    %1435 = vadd.xlane.f32.xlu0 %v1434
    %v1436 = vpop.xlane.xlu0 %1435
    %v1437 = vsel %vm361, %v1383, 0.0
    %1438 = vadd.xlane.f32.xlu0 %v1437
    %v1439 = vpop.xlane.xlu0 %1438
    %v1440 = vsel %vm361, %v1384, 0.0
    %1441 = vadd.xlane.f32.xlu0 %v1440
    %v1442 = vpop.xlane.xlu0 %1441
    %v1443 = vsel %vm361, %v1385, 0.0
    %1444 = vadd.xlane.f32.xlu0 %v1443
    %v1445 = vpop.xlane.xlu0 %1444
    %v1446 = vsel %vm361, %v1386, 0.0
    %1447 = vadd.xlane.f32.xlu0 %v1446
    %v1448 = vpop.xlane.xlu0 %1447
    %v1449 = vsel %vm361, %v1387, 0.0
    %1450 = vadd.xlane.f32.xlu0 %v1449
    %v1451 = vpop.xlane.xlu0 %1450
    %v1452 = vsel %vm361, %v1388, 0.0
    %1453 = vadd.xlane.f32.xlu0 %v1452
    %v1454 = vpop.xlane.xlu0 %1453
    %v1455 = vsel %vm361, %v1389, 0.0
    %1456 = vadd.xlane.f32.xlu0 %v1455
    %v1457 = vpop.xlane.xlu0 %1456
    %v1458 = vsel %vm361, %v1390, 0.0
    %1459 = vadd.xlane.f32.xlu0 %v1458
    %v1460 = vpop.xlane.xlu0 %1459
    %v1461 = vsel %vm361, %v1391, 0.0
    %1462 = vadd.xlane.f32.xlu0 %v1461
    %v1463 = vpop.xlane.xlu0 %1462
    %v1464 = vsel %vm361, %v1392, 0.0
    %1465 = vadd.xlane.f32.xlu0 %v1464
    %v1466 = vpop.xlane.xlu0 %1465
    %v1467 = vsel %vm361, %v1393, 0.0
    %1468 = vadd.xlane.f32.xlu0 %v1467
    %v1469 = vpop.xlane.xlu0 %1468
    %v1470 = vsel %vm361, %v1394, 0.0
    %1471 = vadd.xlane.f32.xlu0 %v1470
    %v1472 = vpop.xlane.xlu0 %1471
    %v1473 = vsel %vm361, %v1395, 0.0
    %1474 = vadd.xlane.f32.xlu0 %v1473
    %v1475 = vpop.xlane.xlu0 %1474
    %v1476 = vsel %vm361, %v1396, 0.0
    %1477 = vadd.xlane.f32.xlu0 %v1476
    %v1478 = vpop.xlane.xlu0 %1477
    %v1479 = vsel %vm361, %v1397, 0.0
    %1480 = vadd.xlane.f32.xlu0 %v1479
    %v1481 = vpop.xlane.xlu0 %1480
    %v1482 = vsel %vm361, %v1398, 0.0
    %1483 = vadd.xlane.f32.xlu0 %v1482
    %v1484 = vpop.xlane.xlu0 %1483
    %v1485 = vsel %vm361, %v1399, 0.0
    %1486 = vadd.xlane.f32.xlu0 %v1485
    %v1487 = vpop.xlane.xlu0 %1486
    %v1488 = vsel %vm361, %v1400, 0.0
    %1489 = vadd.xlane.f32.xlu0 %v1488
    %v1490 = vpop.xlane.xlu0 %1489
    %v1491 = vsel %vm361, %v1401, 0.0
    %1492 = vadd.xlane.f32.xlu0 %v1491
    %v1493 = vpop.xlane.xlu0 %1492
    %v1494 = vsel %vm361, %v1402, 0.0
    %1495 = vadd.xlane.f32.xlu0 %v1494
    %v1496 = vpop.xlane.xlu0 %1495
    %v1497 = vsel %vm361, %v1403, 0.0
    %1498 = vadd.xlane.f32.xlu0 %v1497
    %v1499 = vpop.xlane.xlu0 %1498
    %v1500 = vadd.f32 %v1338, %v1406
    %v1501 = vadd.f32 %v1339, %v1409
    %v1502 = vadd.f32 %v1340, %v1412
    %v1503 = vadd.f32 %v1341, %v1415
    %v1504 = vadd.f32 %v1342, %v1418
    %v1505 = vadd.f32 %v1343, %v1421
    %v1506 = vadd.f32 %v1344, %v1424
    %v1507 = vadd.f32 %v1345, %v1427
    %v1508 = vadd.f32 %v1346, %v1430
    %v1509 = vadd.f32 %v1347, %v1433
    %v1510 = vadd.f32 %v1348, %v1436
    %v1511 = vadd.f32 %v1349, %v1439
    %v1512 = vadd.f32 %v1350, %v1442
    %v1513 = vadd.f32 %v1351, %v1445
    %v1514 = vadd.f32 %v1352, %v1448
    %v1515 = vadd.f32 %v1353, %v1451
    %v1516 = vadd.f32 %v1354, %v1454
    %v1517 = vadd.f32 %v1355, %v1457
    %v1518 = vadd.f32 %v1356, %v1460
    %v1519 = vadd.f32 %v1357, %v1463
    %v1520 = vadd.f32 %v1358, %v1466
    %v1521 = vadd.f32 %v1359, %v1469
    %v1522 = vadd.f32 %v1360, %v1472
    %v1523 = vadd.f32 %v1361, %v1475
    %v1524 = vadd.f32 %v1362, %v1478
    %v1525 = vadd.f32 %v1363, %v1481
    %v1526 = vadd.f32 %v1364, %v1484
    %v1527 = vadd.f32 %v1365, %v1487
    %v1528 = vadd.f32 %v1366, %v1490
    %v1529 = vadd.f32 %v1367, %v1493
    %v1530 = vadd.f32 %v1368, %v1496
    %v1531 = vadd.f32 %v1369, %v1499
    %v1532 = vld [vmem:[#allocation3 + $0x7] sm:$0x1]
    %v1533 = vperm.slane %v1532, 0
    %v1534 = vmul.f32 %v64, %v1533
    %v1535 = vmul.f32 %v65, %v1533
    %v1536 = vmul.f32 %v66, %v1533
    %v1537 = vmul.f32 %v67, %v1533
    %v1538 = vmul.f32 %v68, %v1533
    %v1539 = vmul.f32 %v69, %v1533
    %v1540 = vmul.f32 %v70, %v1533
    %v1541 = vmul.f32 %v71, %v1533
    %v1542 = vmul.f32 %v72, %v1533
    %v1543 = vmul.f32 %v73, %v1533
    %v1544 = vmul.f32 %v74, %v1533
    %v1545 = vmul.f32 %v75, %v1533
    %v1546 = vmul.f32 %v76, %v1533
    %v1547 = vmul.f32 %v77, %v1533
    %v1548 = vmul.f32 %v78, %v1533
    %v1549 = vmul.f32 %v79, %v1533
    %v1550 = vmul.f32 %v80, %v1533
    %v1551 = vmul.f32 %v81, %v1533
    %v1552 = vmul.f32 %v82, %v1533
    %v1553 = vmul.f32 %v83, %v1533
    %v1554 = vmul.f32 %v84, %v1533
    %v1555 = vmul.f32 %v85, %v1533
    %v1556 = vmul.f32 %v86, %v1533
    %v1557 = vmul.f32 %v87, %v1533
    %v1558 = vmul.f32 %v88, %v1533
    %v1559 = vmul.f32 %v89, %v1533
    %v1560 = vmul.f32 %v90, %v1533
    %v1561 = vmul.f32 %v91, %v1533
    %v1562 = vmul.f32 %v92, %v1533
    %v1563 = vmul.f32 %v93, %v1533
    %v1564 = vmul.f32 %v94, %v1533
    %v1565 = vmul.f32 %v95, %v1533
    %v1566 = vsel %vm361, %v1534, 0.0
    %1567 = vadd.xlane.f32.xlu0 %v1566
    %v1568 = vpop.xlane.xlu0 %1567
    %v1569 = vsel %vm361, %v1535, 0.0
    %1570 = vadd.xlane.f32.xlu0 %v1569
    %v1571 = vpop.xlane.xlu0 %1570
    %v1572 = vsel %vm361, %v1536, 0.0
    %1573 = vadd.xlane.f32.xlu0 %v1572
    %v1574 = vpop.xlane.xlu0 %1573
    %v1575 = vsel %vm361, %v1537, 0.0
    %1576 = vadd.xlane.f32.xlu0 %v1575
    %v1577 = vpop.xlane.xlu0 %1576
    %v1578 = vsel %vm361, %v1538, 0.0
    %1579 = vadd.xlane.f32.xlu0 %v1578
    %v1580 = vpop.xlane.xlu0 %1579
    %v1581 = vsel %vm361, %v1539, 0.0
    %1582 = vadd.xlane.f32.xlu0 %v1581
    %v1583 = vpop.xlane.xlu0 %1582
    %v1584 = vsel %vm361, %v1540, 0.0
    %1585 = vadd.xlane.f32.xlu0 %v1584
    %v1586 = vpop.xlane.xlu0 %1585
    %v1587 = vsel %vm361, %v1541, 0.0
    %1588 = vadd.xlane.f32.xlu0 %v1587
    %v1589 = vpop.xlane.xlu0 %1588
    %v1590 = vsel %vm361, %v1542, 0.0
    %1591 = vadd.xlane.f32.xlu0 %v1590
    %v1592 = vpop.xlane.xlu0 %1591
    %v1593 = vsel %vm361, %v1543, 0.0
    %1594 = vadd.xlane.f32.xlu0 %v1593
    %v1595 = vpop.xlane.xlu0 %1594
    %v1596 = vsel %vm361, %v1544, 0.0
    %1597 = vadd.xlane.f32.xlu0 %v1596
    %v1598 = vpop.xlane.xlu0 %1597
    %v1599 = vsel %vm361, %v1545, 0.0
    %1600 = vadd.xlane.f32.xlu0 %v1599
    %v1601 = vpop.xlane.xlu0 %1600
    %v1602 = vsel %vm361, %v1546, 0.0
    %1603 = vadd.xlane.f32.xlu0 %v1602
    %v1604 = vpop.xlane.xlu0 %1603
    %v1605 = vsel %vm361, %v1547, 0.0
    %1606 = vadd.xlane.f32.xlu0 %v1605
    %v1607 = vpop.xlane.xlu0 %1606
    %v1608 = vsel %vm361, %v1548, 0.0
    %1609 = vadd.xlane.f32.xlu0 %v1608
    %v1610 = vpop.xlane.xlu0 %1609
    %v1611 = vsel %vm361, %v1549, 0.0
    %1612 = vadd.xlane.f32.xlu0 %v1611
    %v1613 = vpop.xlane.xlu0 %1612
    %v1614 = vsel %vm361, %v1550, 0.0
    %1615 = vadd.xlane.f32.xlu0 %v1614
    %v1616 = vpop.xlane.xlu0 %1615
    %v1617 = vsel %vm361, %v1551, 0.0
    %1618 = vadd.xlane.f32.xlu0 %v1617
    %v1619 = vpop.xlane.xlu0 %1618
    %v1620 = vsel %vm361, %v1552, 0.0
    %1621 = vadd.xlane.f32.xlu0 %v1620
    %v1622 = vpop.xlane.xlu0 %1621
    %v1623 = vsel %vm361, %v1553, 0.0
    %1624 = vadd.xlane.f32.xlu0 %v1623
    %v1625 = vpop.xlane.xlu0 %1624
    %v1626 = vsel %vm361, %v1554, 0.0
    %1627 = vadd.xlane.f32.xlu0 %v1626
    %v1628 = vpop.xlane.xlu0 %1627
    %v1629 = vsel %vm361, %v1555, 0.0
    %1630 = vadd.xlane.f32.xlu0 %v1629
    %v1631 = vpop.xlane.xlu0 %1630
    %v1632 = vsel %vm361, %v1556, 0.0
    %1633 = vadd.xlane.f32.xlu0 %v1632
    %v1634 = vpop.xlane.xlu0 %1633
    %v1635 = vsel %vm361, %v1557, 0.0
    %1636 = vadd.xlane.f32.xlu0 %v1635
    %v1637 = vpop.xlane.xlu0 %1636
    %v1638 = vsel %vm361, %v1558, 0.0
    %1639 = vadd.xlane.f32.xlu0 %v1638
    %v1640 = vpop.xlane.xlu0 %1639
    %v1641 = vsel %vm361, %v1559, 0.0
    %1642 = vadd.xlane.f32.xlu0 %v1641
    %v1643 = vpop.xlane.xlu0 %1642
    %v1644 = vsel %vm361, %v1560, 0.0
    %1645 = vadd.xlane.f32.xlu0 %v1644
    %v1646 = vpop.xlane.xlu0 %1645
    %v1647 = vsel %vm361, %v1561, 0.0
    %1648 = vadd.xlane.f32.xlu0 %v1647
    %v1649 = vpop.xlane.xlu0 %1648
    %v1650 = vsel %vm361, %v1562, 0.0
    %1651 = vadd.xlane.f32.xlu0 %v1650
    %v1652 = vpop.xlane.xlu0 %1651
    %v1653 = vsel %vm361, %v1563, 0.0
    %1654 = vadd.xlane.f32.xlu0 %v1653
    %v1655 = vpop.xlane.xlu0 %1654
    %v1656 = vsel %vm361, %v1564, 0.0
    %1657 = vadd.xlane.f32.xlu0 %v1656
    %v1658 = vpop.xlane.xlu0 %1657
    %v1659 = vsel %vm361, %v1565, 0.0
    %1660 = vadd.xlane.f32.xlu0 %v1659
    %v1661 = vpop.xlane.xlu0 %1660
    %v1662 = vadd.f32 %v1500, %v1568
    %v1663 = vadd.f32 %v1501, %v1571
    %v1664 = vadd.f32 %v1502, %v1574
    %v1665 = vadd.f32 %v1503, %v1577
    %v1666 = vadd.f32 %v1504, %v1580
    %v1667 = vadd.f32 %v1505, %v1583
    %v1668 = vadd.f32 %v1506, %v1586
    %v1669 = vadd.f32 %v1507, %v1589
    %v1670 = vadd.f32 %v1508, %v1592
    %v1671 = vadd.f32 %v1509, %v1595
    %v1672 = vadd.f32 %v1510, %v1598
    %v1673 = vadd.f32 %v1511, %v1601
    %v1674 = vadd.f32 %v1512, %v1604
    %v1675 = vadd.f32 %v1513, %v1607
    %v1676 = vadd.f32 %v1514, %v1610
    %v1677 = vadd.f32 %v1515, %v1613
    %v1678 = vadd.f32 %v1516, %v1616
    %v1679 = vadd.f32 %v1517, %v1619
    %v1680 = vadd.f32 %v1518, %v1622
    %v1681 = vadd.f32 %v1519, %v1625
    %v1682 = vadd.f32 %v1520, %v1628
    %v1683 = vadd.f32 %v1521, %v1631
    %v1684 = vadd.f32 %v1522, %v1634
    %v1685 = vadd.f32 %v1523, %v1637
    %v1686 = vadd.f32 %v1524, %v1640
    %v1687 = vadd.f32 %v1525, %v1643
    %v1688 = vadd.f32 %v1526, %v1646
    %v1689 = vadd.f32 %v1527, %v1649
    %v1690 = vadd.f32 %v1528, %v1652
    %v1691 = vadd.f32 %v1529, %v1655
    %v1692 = vadd.f32 %v1530, %v1658
    %v1693 = vadd.f32 %v1531, %v1661
    %v1694 = vtanh.pop %v1662
    %v1695 = vtanh.pop %v1663
    %v1696 = vtanh.pop %v1664
    %v1697 = vtanh.pop %v1665
    %v1698 = vtanh.pop %v1666
    %v1699 = vtanh.pop %v1667
    %v1700 = vtanh.pop %v1668
    %v1701 = vtanh.pop %v1669
    %v1702 = vtanh.pop %v1670
    %v1703 = vtanh.pop %v1671
    %v1704 = vtanh.pop %v1672
    %v1705 = vtanh.pop %v1673
    %v1706 = vtanh.pop %v1674
    %v1707 = vtanh.pop %v1675
    %v1708 = vtanh.pop %v1676
    %v1709 = vtanh.pop %v1677
    %v1710 = vtanh.pop %v1678
    %v1711 = vtanh.pop %v1679
    %v1712 = vtanh.pop %v1680
    %v1713 = vtanh.pop %v1681
    %v1714 = vtanh.pop %v1682
    %v1715 = vtanh.pop %v1683
    %v1716 = vtanh.pop %v1684
    %v1717 = vtanh.pop %v1685
    %v1718 = vtanh.pop %v1686
    %v1719 = vtanh.pop %v1687
    %v1720 = vtanh.pop %v1688
    %v1721 = vtanh.pop %v1689
    %v1722 = vtanh.pop %v1690
    %v1723 = vtanh.pop %v1691
    %v1724 = vtanh.pop %v1692
    %v1725 = vtanh.pop %v1693
    %s1726 = scalar_lea.vmem %s3, 256
    %1727 = vst.msk [vmem:[%s1726] sm:$0xff] %vm1008, %v1694
    %1728 = vst.msk [vmem:[%s1726 + $0x8] sm:$0xff] %vm1008, %v1695
    %1729 = vst.msk [vmem:[%s1726 + $0x10] sm:$0xff] %vm1008, %v1696
    %1730 = vst.msk [vmem:[%s1726 + $0x18] sm:$0xff] %vm1008, %v1697
    %1731 = vst.msk [vmem:[%s1726 + $0x20] sm:$0xff] %vm1008, %v1698
    %1732 = vst.msk [vmem:[%s1726 + $0x28] sm:$0xff] %vm1008, %v1699
    %1733 = vst.msk [vmem:[%s1726 + $0x30] sm:$0xff] %vm1008, %v1700
    %1734 = vst.msk [vmem:[%s1726 + $0x38] sm:$0xff] %vm1008, %v1701
    %1735 = vst.msk [vmem:[%s1726 + $0x40] sm:$0xff] %vm1008, %v1702
    %1736 = vst.msk [vmem:[%s1726 + $0x48] sm:$0xff] %vm1008, %v1703
    %1737 = vst.msk [vmem:[%s1726 + $0x50] sm:$0xff] %vm1008, %v1704
    %1738 = vst.msk [vmem:[%s1726 + $0x58] sm:$0xff] %vm1008, %v1705
    %1739 = vst.msk [vmem:[%s1726 + $0x60] sm:$0xff] %vm1008, %v1706
    %1740 = vst.msk [vmem:[%s1726 + $0x68] sm:$0xff] %vm1008, %v1707
    %1741 = vst.msk [vmem:[%s1726 + $0x70] sm:$0xff] %vm1008, %v1708
    %1742 = vst.msk [vmem:[%s1726 + $0x78] sm:$0xff] %vm1008, %v1709
    %1743 = vst.msk [vmem:[%s1726 + $0x80] sm:$0xff] %vm1008, %v1710
    %1744 = vst.msk [vmem:[%s1726 + $0x88] sm:$0xff] %vm1008, %v1711
    %1745 = vst.msk [vmem:[%s1726 + $0x90] sm:$0xff] %vm1008, %v1712
    %1746 = vst.msk [vmem:[%s1726 + $0x98] sm:$0xff] %vm1008, %v1713
    %1747 = vst.msk [vmem:[%s1726 + $0xa0] sm:$0xff] %vm1008, %v1714
    %1748 = vst.msk [vmem:[%s1726 + $0xa8] sm:$0xff] %vm1008, %v1715
    %1749 = vst.msk [vmem:[%s1726 + $0xb0] sm:$0xff] %vm1008, %v1716
    %1750 = vst.msk [vmem:[%s1726 + $0xb8] sm:$0xff] %vm1008, %v1717
    %1751 = vst.msk [vmem:[%s1726 + $0xc0] sm:$0xff] %vm1008, %v1718
    %1752 = vst.msk [vmem:[%s1726 + $0xc8] sm:$0xff] %vm1008, %v1719
    %1753 = vst.msk [vmem:[%s1726 + $0xd0] sm:$0xff] %vm1008, %v1720
    %1754 = vst.msk [vmem:[%s1726 + $0xd8] sm:$0xff] %vm1008, %v1721
    %1755 = vst.msk [vmem:[%s1726 + $0xe0] sm:$0xff] %vm1008, %v1722
    %1756 = vst.msk [vmem:[%s1726 + $0xe8] sm:$0xff] %vm1008, %v1723
    %1757 = vst.msk [vmem:[%s1726 + $0xf0] sm:$0xff] %vm1008, %v1724
    %1758 = vst.msk [vmem:[%s1726 + $0xf8] sm:$0xff] %vm1008, %v1725
    %v1759 = vld [vmem:[#allocation2] sm:$0x1]
    %v1761 = vperm.slane %v1759, 0
    %v1763 = vadd.f32 %v1761, 0.0
    %v1764 = vld [vmem:[#allocation3 + $0x8] sm:$0x1]
    %v1765 = vperm.slane %v1764, 0
    %v1766 = vmul.f32 %v258, %v1765
    %v1767 = vmul.f32 %v259, %v1765
    %v1768 = vmul.f32 %v260, %v1765
    %v1769 = vmul.f32 %v261, %v1765
    %v1770 = vmul.f32 %v262, %v1765
    %v1771 = vmul.f32 %v263, %v1765
    %v1772 = vmul.f32 %v264, %v1765
    %v1773 = vmul.f32 %v265, %v1765
    %v1774 = vmul.f32 %v266, %v1765
    %v1775 = vmul.f32 %v267, %v1765
    %v1776 = vmul.f32 %v268, %v1765
    %v1777 = vmul.f32 %v269, %v1765
    %v1778 = vmul.f32 %v270, %v1765
    %v1779 = vmul.f32 %v271, %v1765
    %v1780 = vmul.f32 %v272, %v1765
    %v1781 = vmul.f32 %v273, %v1765
    %v1782 = vmul.f32 %v274, %v1765
    %v1783 = vmul.f32 %v275, %v1765
    %v1784 = vmul.f32 %v276, %v1765
    %v1785 = vmul.f32 %v277, %v1765
    %v1786 = vmul.f32 %v278, %v1765
    %v1787 = vmul.f32 %v279, %v1765
    %v1788 = vmul.f32 %v280, %v1765
    %v1789 = vmul.f32 %v281, %v1765
    %v1790 = vmul.f32 %v282, %v1765
    %v1791 = vmul.f32 %v283, %v1765
    %v1792 = vmul.f32 %v284, %v1765
    %v1793 = vmul.f32 %v285, %v1765
    %v1794 = vmul.f32 %v286, %v1765
    %v1795 = vmul.f32 %v287, %v1765
    %v1796 = vmul.f32 %v288, %v1765
    %v1797 = vmul.f32 %v289, %v1765
    %v1798 = vsel %vm361, %v1766, 0.0
    %1799 = vadd.xlane.f32.xlu0 %v1798
    %v1800 = vpop.xlane.xlu0 %1799
    %v1801 = vsel %vm361, %v1767, 0.0
    %1802 = vadd.xlane.f32.xlu0 %v1801
    %v1803 = vpop.xlane.xlu0 %1802
    %v1804 = vsel %vm361, %v1768, 0.0
    %1805 = vadd.xlane.f32.xlu0 %v1804
    %v1806 = vpop.xlane.xlu0 %1805
    %v1807 = vsel %vm361, %v1769, 0.0
    %1808 = vadd.xlane.f32.xlu0 %v1807
    %v1809 = vpop.xlane.xlu0 %1808
    %v1810 = vsel %vm361, %v1770, 0.0
    %1811 = vadd.xlane.f32.xlu0 %v1810
    %v1812 = vpop.xlane.xlu0 %1811
    %v1813 = vsel %vm361, %v1771, 0.0
    %1814 = vadd.xlane.f32.xlu0 %v1813
    %v1815 = vpop.xlane.xlu0 %1814
    %v1816 = vsel %vm361, %v1772, 0.0
    %1817 = vadd.xlane.f32.xlu0 %v1816
    %v1818 = vpop.xlane.xlu0 %1817
    %v1819 = vsel %vm361, %v1773, 0.0
    %1820 = vadd.xlane.f32.xlu0 %v1819
    %v1821 = vpop.xlane.xlu0 %1820
    %v1822 = vsel %vm361, %v1774, 0.0
    %1823 = vadd.xlane.f32.xlu0 %v1822
    %v1824 = vpop.xlane.xlu0 %1823
    %v1825 = vsel %vm361, %v1775, 0.0
    %1826 = vadd.xlane.f32.xlu0 %v1825
    %v1827 = vpop.xlane.xlu0 %1826
    %v1828 = vsel %vm361, %v1776, 0.0
    %1829 = vadd.xlane.f32.xlu0 %v1828
    %v1830 = vpop.xlane.xlu0 %1829
    %v1831 = vsel %vm361, %v1777, 0.0
    %1832 = vadd.xlane.f32.xlu0 %v1831
    %v1833 = vpop.xlane.xlu0 %1832
    %v1834 = vsel %vm361, %v1778, 0.0
    %1835 = vadd.xlane.f32.xlu0 %v1834
    %v1836 = vpop.xlane.xlu0 %1835
    %v1837 = vsel %vm361, %v1779, 0.0
    %1838 = vadd.xlane.f32.xlu0 %v1837
    %v1839 = vpop.xlane.xlu0 %1838
    %v1840 = vsel %vm361, %v1780, 0.0
    %1841 = vadd.xlane.f32.xlu0 %v1840
    %v1842 = vpop.xlane.xlu0 %1841
    %v1843 = vsel %vm361, %v1781, 0.0
    %1844 = vadd.xlane.f32.xlu0 %v1843
    %v1845 = vpop.xlane.xlu0 %1844
    %v1846 = vsel %vm361, %v1782, 0.0
    %1847 = vadd.xlane.f32.xlu0 %v1846
    %v1848 = vpop.xlane.xlu0 %1847
    %v1849 = vsel %vm361, %v1783, 0.0
    %1850 = vadd.xlane.f32.xlu0 %v1849
    %v1851 = vpop.xlane.xlu0 %1850
    %v1852 = vsel %vm361, %v1784, 0.0
    %1853 = vadd.xlane.f32.xlu0 %v1852
    %v1854 = vpop.xlane.xlu0 %1853
    %v1855 = vsel %vm361, %v1785, 0.0
    %1856 = vadd.xlane.f32.xlu0 %v1855
    %v1857 = vpop.xlane.xlu0 %1856
    %v1858 = vsel %vm361, %v1786, 0.0
    %1859 = vadd.xlane.f32.xlu0 %v1858
    %v1860 = vpop.xlane.xlu0 %1859
    %v1861 = vsel %vm361, %v1787, 0.0
    %1862 = vadd.xlane.f32.xlu0 %v1861
    %v1863 = vpop.xlane.xlu0 %1862
    %v1864 = vsel %vm361, %v1788, 0.0
    %1865 = vadd.xlane.f32.xlu0 %v1864
    %v1866 = vpop.xlane.xlu0 %1865
    %v1867 = vsel %vm361, %v1789, 0.0
    %1868 = vadd.xlane.f32.xlu0 %v1867
    %v1869 = vpop.xlane.xlu0 %1868
    %v1870 = vsel %vm361, %v1790, 0.0
    %1871 = vadd.xlane.f32.xlu0 %v1870
    %v1872 = vpop.xlane.xlu0 %1871
    %v1873 = vsel %vm361, %v1791, 0.0
    %1874 = vadd.xlane.f32.xlu0 %v1873
    %v1875 = vpop.xlane.xlu0 %1874
    %v1876 = vsel %vm361, %v1792, 0.0
    %1877 = vadd.xlane.f32.xlu0 %v1876
    %v1878 = vpop.xlane.xlu0 %1877
    %v1879 = vsel %vm361, %v1793, 0.0
    %1880 = vadd.xlane.f32.xlu0 %v1879
    %v1881 = vpop.xlane.xlu0 %1880
    %v1882 = vsel %vm361, %v1794, 0.0
    %1883 = vadd.xlane.f32.xlu0 %v1882
    %v1884 = vpop.xlane.xlu0 %1883
    %v1885 = vsel %vm361, %v1795, 0.0
    %1886 = vadd.xlane.f32.xlu0 %v1885
    %v1887 = vpop.xlane.xlu0 %1886
    %v1888 = vsel %vm361, %v1796, 0.0
    %1889 = vadd.xlane.f32.xlu0 %v1888
    %v1890 = vpop.xlane.xlu0 %1889
    %v1891 = vsel %vm361, %v1797, 0.0
    %1892 = vadd.xlane.f32.xlu0 %v1891
    %v1893 = vpop.xlane.xlu0 %1892
    %v1894 = vadd.f32 %v1763, %v1800
    %v1895 = vadd.f32 %v1763, %v1803
    %v1896 = vadd.f32 %v1763, %v1806
    %v1897 = vadd.f32 %v1763, %v1809
    %v1898 = vadd.f32 %v1763, %v1812
    %v1899 = vadd.f32 %v1763, %v1815
    %v1900 = vadd.f32 %v1763, %v1818
    %v1901 = vadd.f32 %v1763, %v1821
    %v1902 = vadd.f32 %v1763, %v1824
    %v1903 = vadd.f32 %v1763, %v1827
    %v1904 = vadd.f32 %v1763, %v1830
    %v1905 = vadd.f32 %v1763, %v1833
    %v1906 = vadd.f32 %v1763, %v1836
    %v1907 = vadd.f32 %v1763, %v1839
    %v1908 = vadd.f32 %v1763, %v1842
    %v1909 = vadd.f32 %v1763, %v1845
    %v1910 = vadd.f32 %v1763, %v1848
    %v1911 = vadd.f32 %v1763, %v1851
    %v1912 = vadd.f32 %v1763, %v1854
    %v1913 = vadd.f32 %v1763, %v1857
    %v1914 = vadd.f32 %v1763, %v1860
    %v1915 = vadd.f32 %v1763, %v1863
    %v1916 = vadd.f32 %v1763, %v1866
    %v1917 = vadd.f32 %v1763, %v1869
    %v1918 = vadd.f32 %v1763, %v1872
    %v1919 = vadd.f32 %v1763, %v1875
    %v1920 = vadd.f32 %v1763, %v1878
    %v1921 = vadd.f32 %v1763, %v1881
    %v1922 = vadd.f32 %v1763, %v1884
    %v1923 = vadd.f32 %v1763, %v1887
    %v1924 = vadd.f32 %v1763, %v1890
    %v1925 = vadd.f32 %v1763, %v1893
    %v1926 = vld [vmem:[#allocation3 + $0x9] sm:$0x1]
    %v1927 = vperm.slane %v1926, 0
    %v1928 = vmul.f32 %v226, %v1927
    %v1929 = vmul.f32 %v227, %v1927
    %v1930 = vmul.f32 %v228, %v1927
    %v1931 = vmul.f32 %v229, %v1927
    %v1932 = vmul.f32 %v230, %v1927
    %v1933 = vmul.f32 %v231, %v1927
    %v1934 = vmul.f32 %v232, %v1927
    %v1935 = vmul.f32 %v233, %v1927
    %v1936 = vmul.f32 %v234, %v1927
    %v1937 = vmul.f32 %v235, %v1927
    %v1938 = vmul.f32 %v236, %v1927
    %v1939 = vmul.f32 %v237, %v1927
    %v1940 = vmul.f32 %v238, %v1927
    %v1941 = vmul.f32 %v239, %v1927
    %v1942 = vmul.f32 %v240, %v1927
    %v1943 = vmul.f32 %v241, %v1927
    %v1944 = vmul.f32 %v242, %v1927
    %v1945 = vmul.f32 %v243, %v1927
    %v1946 = vmul.f32 %v244, %v1927
    %v1947 = vmul.f32 %v245, %v1927
    %v1948 = vmul.f32 %v246, %v1927
    %v1949 = vmul.f32 %v247, %v1927
    %v1950 = vmul.f32 %v248, %v1927
    %v1951 = vmul.f32 %v249, %v1927
    %v1952 = vmul.f32 %v250, %v1927
    %v1953 = vmul.f32 %v251, %v1927
    %v1954 = vmul.f32 %v252, %v1927
    %v1955 = vmul.f32 %v253, %v1927
    %v1956 = vmul.f32 %v254, %v1927
    %v1957 = vmul.f32 %v255, %v1927
    %v1958 = vmul.f32 %v256, %v1927
    %v1959 = vmul.f32 %v257, %v1927
    %v1960 = vsel %vm361, %v1928, 0.0
    %1961 = vadd.xlane.f32.xlu0 %v1960
    %v1962 = vpop.xlane.xlu0 %1961
    %v1963 = vsel %vm361, %v1929, 0.0
    %1964 = vadd.xlane.f32.xlu0 %v1963
    %v1965 = vpop.xlane.xlu0 %1964
    %v1966 = vsel %vm361, %v1930, 0.0
    %1967 = vadd.xlane.f32.xlu0 %v1966
    %v1968 = vpop.xlane.xlu0 %1967
    %v1969 = vsel %vm361, %v1931, 0.0
    %1970 = vadd.xlane.f32.xlu0 %v1969
    %v1971 = vpop.xlane.xlu0 %1970
    %v1972 = vsel %vm361, %v1932, 0.0
    %1973 = vadd.xlane.f32.xlu0 %v1972
    %v1974 = vpop.xlane.xlu0 %1973
    %v1975 = vsel %vm361, %v1933, 0.0
    %1976 = vadd.xlane.f32.xlu0 %v1975
    %v1977 = vpop.xlane.xlu0 %1976
    %v1978 = vsel %vm361, %v1934, 0.0
    %1979 = vadd.xlane.f32.xlu0 %v1978
    %v1980 = vpop.xlane.xlu0 %1979
    %v1981 = vsel %vm361, %v1935, 0.0
    %1982 = vadd.xlane.f32.xlu0 %v1981
    %v1983 = vpop.xlane.xlu0 %1982
    %v1984 = vsel %vm361, %v1936, 0.0
    %1985 = vadd.xlane.f32.xlu0 %v1984
    %v1986 = vpop.xlane.xlu0 %1985
    %v1987 = vsel %vm361, %v1937, 0.0
    %1988 = vadd.xlane.f32.xlu0 %v1987
    %v1989 = vpop.xlane.xlu0 %1988
    %v1990 = vsel %vm361, %v1938, 0.0
    %1991 = vadd.xlane.f32.xlu0 %v1990
    %v1992 = vpop.xlane.xlu0 %1991
    %v1993 = vsel %vm361, %v1939, 0.0
    %1994 = vadd.xlane.f32.xlu0 %v1993
    %v1995 = vpop.xlane.xlu0 %1994
    %v1996 = vsel %vm361, %v1940, 0.0
    %1997 = vadd.xlane.f32.xlu0 %v1996
    %v1998 = vpop.xlane.xlu0 %1997
    %v1999 = vsel %vm361, %v1941, 0.0
    %2000 = vadd.xlane.f32.xlu0 %v1999
    %v2001 = vpop.xlane.xlu0 %2000
    %v2002 = vsel %vm361, %v1942, 0.0
    %2003 = vadd.xlane.f32.xlu0 %v2002
    %v2004 = vpop.xlane.xlu0 %2003
    %v2005 = vsel %vm361, %v1943, 0.0
    %2006 = vadd.xlane.f32.xlu0 %v2005
    %v2007 = vpop.xlane.xlu0 %2006
    %v2008 = vsel %vm361, %v1944, 0.0
    %2009 = vadd.xlane.f32.xlu0 %v2008
    %v2010 = vpop.xlane.xlu0 %2009
    %v2011 = vsel %vm361, %v1945, 0.0
    %2012 = vadd.xlane.f32.xlu0 %v2011
    %v2013 = vpop.xlane.xlu0 %2012
    %v2014 = vsel %vm361, %v1946, 0.0
    %2015 = vadd.xlane.f32.xlu0 %v2014
    %v2016 = vpop.xlane.xlu0 %2015
    %v2017 = vsel %vm361, %v1947, 0.0
    %2018 = vadd.xlane.f32.xlu0 %v2017
    %v2019 = vpop.xlane.xlu0 %2018
    %v2020 = vsel %vm361, %v1948, 0.0
    %2021 = vadd.xlane.f32.xlu0 %v2020
    %v2022 = vpop.xlane.xlu0 %2021
    %v2023 = vsel %vm361, %v1949, 0.0
    %2024 = vadd.xlane.f32.xlu0 %v2023
    %v2025 = vpop.xlane.xlu0 %2024
    %v2026 = vsel %vm361, %v1950, 0.0
    %2027 = vadd.xlane.f32.xlu0 %v2026
    %v2028 = vpop.xlane.xlu0 %2027
    %v2029 = vsel %vm361, %v1951, 0.0
    %2030 = vadd.xlane.f32.xlu0 %v2029
    %v2031 = vpop.xlane.xlu0 %2030
    %v2032 = vsel %vm361, %v1952, 0.0
    %2033 = vadd.xlane.f32.xlu0 %v2032
    %v2034 = vpop.xlane.xlu0 %2033
    %v2035 = vsel %vm361, %v1953, 0.0
    %2036 = vadd.xlane.f32.xlu0 %v2035
    %v2037 = vpop.xlane.xlu0 %2036
    %v2038 = vsel %vm361, %v1954, 0.0
    %2039 = vadd.xlane.f32.xlu0 %v2038
    %v2040 = vpop.xlane.xlu0 %2039
    %v2041 = vsel %vm361, %v1955, 0.0
    %2042 = vadd.xlane.f32.xlu0 %v2041
    %v2043 = vpop.xlane.xlu0 %2042
    %v2044 = vsel %vm361, %v1956, 0.0
    %2045 = vadd.xlane.f32.xlu0 %v2044
    %v2046 = vpop.xlane.xlu0 %2045
    %v2047 = vsel %vm361, %v1957, 0.0
    %2048 = vadd.xlane.f32.xlu0 %v2047
    %v2049 = vpop.xlane.xlu0 %2048
    %v2050 = vsel %vm361, %v1958, 0.0
    %2051 = vadd.xlane.f32.xlu0 %v2050
    %v2052 = vpop.xlane.xlu0 %2051
    %v2053 = vsel %vm361, %v1959, 0.0
    %2054 = vadd.xlane.f32.xlu0 %v2053
    %v2055 = vpop.xlane.xlu0 %2054
    %v2056 = vadd.f32 %v1894, %v1962
    %v2057 = vadd.f32 %v1895, %v1965
    %v2058 = vadd.f32 %v1896, %v1968
    %v2059 = vadd.f32 %v1897, %v1971
    %v2060 = vadd.f32 %v1898, %v1974
    %v2061 = vadd.f32 %v1899, %v1977
    %v2062 = vadd.f32 %v1900, %v1980
    %v2063 = vadd.f32 %v1901, %v1983
    %v2064 = vadd.f32 %v1902, %v1986
    %v2065 = vadd.f32 %v1903, %v1989
    %v2066 = vadd.f32 %v1904, %v1992
    %v2067 = vadd.f32 %v1905, %v1995
    %v2068 = vadd.f32 %v1906, %v1998
    %v2069 = vadd.f32 %v1907, %v2001
    %v2070 = vadd.f32 %v1908, %v2004
    %v2071 = vadd.f32 %v1909, %v2007
    %v2072 = vadd.f32 %v1910, %v2010
    %v2073 = vadd.f32 %v1911, %v2013
    %v2074 = vadd.f32 %v1912, %v2016
    %v2075 = vadd.f32 %v1913, %v2019
    %v2076 = vadd.f32 %v1914, %v2022
    %v2077 = vadd.f32 %v1915, %v2025
    %v2078 = vadd.f32 %v1916, %v2028
    %v2079 = vadd.f32 %v1917, %v2031
    %v2080 = vadd.f32 %v1918, %v2034
    %v2081 = vadd.f32 %v1919, %v2037
    %v2082 = vadd.f32 %v1920, %v2040
    %v2083 = vadd.f32 %v1921, %v2043
    %v2084 = vadd.f32 %v1922, %v2046
    %v2085 = vadd.f32 %v1923, %v2049
    %v2086 = vadd.f32 %v1924, %v2052
    %v2087 = vadd.f32 %v1925, %v2055
    %v2088 = vld [vmem:[#allocation3 + $0xa] sm:$0x1]
    %v2089 = vperm.slane %v2088, 0
    %v2090 = vmul.f32 %v161, %v2089
    %v2091 = vmul.f32 %v162, %v2089
    %v2092 = vmul.f32 %v163, %v2089
    %v2093 = vmul.f32 %v164, %v2089
    %v2094 = vmul.f32 %v165, %v2089
    %v2095 = vmul.f32 %v166, %v2089
    %v2096 = vmul.f32 %v167, %v2089
    %v2097 = vmul.f32 %v168, %v2089
    %v2098 = vmul.f32 %v169, %v2089
    %v2099 = vmul.f32 %v170, %v2089
    %v2100 = vmul.f32 %v171, %v2089
    %v2101 = vmul.f32 %v172, %v2089
    %v2102 = vmul.f32 %v173, %v2089
    %v2103 = vmul.f32 %v174, %v2089
    %v2104 = vmul.f32 %v175, %v2089
    %v2105 = vmul.f32 %v176, %v2089
    %v2106 = vmul.f32 %v177, %v2089
    %v2107 = vmul.f32 %v178, %v2089
    %v2108 = vmul.f32 %v179, %v2089
    %v2109 = vmul.f32 %v180, %v2089
    %v2110 = vmul.f32 %v181, %v2089
    %v2111 = vmul.f32 %v182, %v2089
    %v2112 = vmul.f32 %v183, %v2089
    %v2113 = vmul.f32 %v184, %v2089
    %v2114 = vmul.f32 %v185, %v2089
    %v2115 = vmul.f32 %v186, %v2089
    %v2116 = vmul.f32 %v187, %v2089
    %v2117 = vmul.f32 %v188, %v2089
    %v2118 = vmul.f32 %v189, %v2089
    %v2119 = vmul.f32 %v190, %v2089
    %v2120 = vmul.f32 %v191, %v2089
    %v2121 = vmul.f32 %v192, %v2089
    %v2122 = vsel %vm361, %v2090, 0.0
    %2123 = vadd.xlane.f32.xlu0 %v2122
    %v2124 = vpop.xlane.xlu0 %2123
    %v2125 = vsel %vm361, %v2091, 0.0
    %2126 = vadd.xlane.f32.xlu0 %v2125
    %v2127 = vpop.xlane.xlu0 %2126
    %v2128 = vsel %vm361, %v2092, 0.0
    %2129 = vadd.xlane.f32.xlu0 %v2128
    %v2130 = vpop.xlane.xlu0 %2129
    %v2131 = vsel %vm361, %v2093, 0.0
    %2132 = vadd.xlane.f32.xlu0 %v2131
    %v2133 = vpop.xlane.xlu0 %2132
    %v2134 = vsel %vm361, %v2094, 0.0
    %2135 = vadd.xlane.f32.xlu0 %v2134
    %v2136 = vpop.xlane.xlu0 %2135
    %v2137 = vsel %vm361, %v2095, 0.0
    %2138 = vadd.xlane.f32.xlu0 %v2137
    %v2139 = vpop.xlane.xlu0 %2138
    %v2140 = vsel %vm361, %v2096, 0.0
    %2141 = vadd.xlane.f32.xlu0 %v2140
    %v2142 = vpop.xlane.xlu0 %2141
    %v2143 = vsel %vm361, %v2097, 0.0
    %2144 = vadd.xlane.f32.xlu0 %v2143
    %v2145 = vpop.xlane.xlu0 %2144
    %v2146 = vsel %vm361, %v2098, 0.0
    %2147 = vadd.xlane.f32.xlu0 %v2146
    %v2148 = vpop.xlane.xlu0 %2147
    %v2149 = vsel %vm361, %v2099, 0.0
    %2150 = vadd.xlane.f32.xlu0 %v2149
    %v2151 = vpop.xlane.xlu0 %2150
    %v2152 = vsel %vm361, %v2100, 0.0
    %2153 = vadd.xlane.f32.xlu0 %v2152
    %v2154 = vpop.xlane.xlu0 %2153
    %v2155 = vsel %vm361, %v2101, 0.0
    %2156 = vadd.xlane.f32.xlu0 %v2155
    %v2157 = vpop.xlane.xlu0 %2156
    %v2158 = vsel %vm361, %v2102, 0.0
    %2159 = vadd.xlane.f32.xlu0 %v2158
    %v2160 = vpop.xlane.xlu0 %2159
    %v2161 = vsel %vm361, %v2103, 0.0
    %2162 = vadd.xlane.f32.xlu0 %v2161
    %v2163 = vpop.xlane.xlu0 %2162
    %v2164 = vsel %vm361, %v2104, 0.0
    %2165 = vadd.xlane.f32.xlu0 %v2164
    %v2166 = vpop.xlane.xlu0 %2165
    %v2167 = vsel %vm361, %v2105, 0.0
    %2168 = vadd.xlane.f32.xlu0 %v2167
    %v2169 = vpop.xlane.xlu0 %2168
    %v2170 = vsel %vm361, %v2106, 0.0
    %2171 = vadd.xlane.f32.xlu0 %v2170
    %v2172 = vpop.xlane.xlu0 %2171
    %v2173 = vsel %vm361, %v2107, 0.0
    %2174 = vadd.xlane.f32.xlu0 %v2173
    %v2175 = vpop.xlane.xlu0 %2174
    %v2176 = vsel %vm361, %v2108, 0.0
    %2177 = vadd.xlane.f32.xlu0 %v2176
    %v2178 = vpop.xlane.xlu0 %2177
    %v2179 = vsel %vm361, %v2109, 0.0
    %2180 = vadd.xlane.f32.xlu0 %v2179
    %v2181 = vpop.xlane.xlu0 %2180
    %v2182 = vsel %vm361, %v2110, 0.0
    %2183 = vadd.xlane.f32.xlu0 %v2182
    %v2184 = vpop.xlane.xlu0 %2183
    %v2185 = vsel %vm361, %v2111, 0.0
    %2186 = vadd.xlane.f32.xlu0 %v2185
    %v2187 = vpop.xlane.xlu0 %2186
    %v2188 = vsel %vm361, %v2112, 0.0
    %2189 = vadd.xlane.f32.xlu0 %v2188
    %v2190 = vpop.xlane.xlu0 %2189
    %v2191 = vsel %vm361, %v2113, 0.0
    %2192 = vadd.xlane.f32.xlu0 %v2191
    %v2193 = vpop.xlane.xlu0 %2192
    %v2194 = vsel %vm361, %v2114, 0.0
    %2195 = vadd.xlane.f32.xlu0 %v2194
    %v2196 = vpop.xlane.xlu0 %2195
    %v2197 = vsel %vm361, %v2115, 0.0
    %2198 = vadd.xlane.f32.xlu0 %v2197
    %v2199 = vpop.xlane.xlu0 %2198
    %v2200 = vsel %vm361, %v2116, 0.0
    %2201 = vadd.xlane.f32.xlu0 %v2200
    %v2202 = vpop.xlane.xlu0 %2201
    %v2203 = vsel %vm361, %v2117, 0.0
    %2204 = vadd.xlane.f32.xlu0 %v2203
    %v2205 = vpop.xlane.xlu0 %2204
    %v2206 = vsel %vm361, %v2118, 0.0
    %2207 = vadd.xlane.f32.xlu0 %v2206
    %v2208 = vpop.xlane.xlu0 %2207
    %v2209 = vsel %vm361, %v2119, 0.0
    %2210 = vadd.xlane.f32.xlu0 %v2209
    %v2211 = vpop.xlane.xlu0 %2210
    %v2212 = vsel %vm361, %v2120, 0.0
    %2213 = vadd.xlane.f32.xlu0 %v2212
    %v2214 = vpop.xlane.xlu0 %2213
    %v2215 = vsel %vm361, %v2121, 0.0
    %2216 = vadd.xlane.f32.xlu0 %v2215
    %v2217 = vpop.xlane.xlu0 %2216
    %v2218 = vadd.f32 %v2056, %v2124
    %v2219 = vadd.f32 %v2057, %v2127
    %v2220 = vadd.f32 %v2058, %v2130
    %v2221 = vadd.f32 %v2059, %v2133
    %v2222 = vadd.f32 %v2060, %v2136
    %v2223 = vadd.f32 %v2061, %v2139
    %v2224 = vadd.f32 %v2062, %v2142
    %v2225 = vadd.f32 %v2063, %v2145
    %v2226 = vadd.f32 %v2064, %v2148
    %v2227 = vadd.f32 %v2065, %v2151
    %v2228 = vadd.f32 %v2066, %v2154
    %v2229 = vadd.f32 %v2067, %v2157
    %v2230 = vadd.f32 %v2068, %v2160
    %v2231 = vadd.f32 %v2069, %v2163
    %v2232 = vadd.f32 %v2070, %v2166
    %v2233 = vadd.f32 %v2071, %v2169
    %v2234 = vadd.f32 %v2072, %v2172
    %v2235 = vadd.f32 %v2073, %v2175
    %v2236 = vadd.f32 %v2074, %v2178
    %v2237 = vadd.f32 %v2075, %v2181
    %v2238 = vadd.f32 %v2076, %v2184
    %v2239 = vadd.f32 %v2077, %v2187
    %v2240 = vadd.f32 %v2078, %v2190
    %v2241 = vadd.f32 %v2079, %v2193
    %v2242 = vadd.f32 %v2080, %v2196
    %v2243 = vadd.f32 %v2081, %v2199
    %v2244 = vadd.f32 %v2082, %v2202
    %v2245 = vadd.f32 %v2083, %v2205
    %v2246 = vadd.f32 %v2084, %v2208
    %v2247 = vadd.f32 %v2085, %v2211
    %v2248 = vadd.f32 %v2086, %v2214
    %v2249 = vadd.f32 %v2087, %v2217
    %v2250 = vld [vmem:[#allocation3 + $0xb] sm:$0x1]
    %v2251 = vperm.slane %v2250, 0
    %v2252 = vmul.f32 %v129, %v2251
    %v2253 = vmul.f32 %v130, %v2251
    %v2254 = vmul.f32 %v131, %v2251
    %v2255 = vmul.f32 %v132, %v2251
    %v2256 = vmul.f32 %v133, %v2251
    %v2257 = vmul.f32 %v134, %v2251
    %v2258 = vmul.f32 %v135, %v2251
    %v2259 = vmul.f32 %v136, %v2251
    %v2260 = vmul.f32 %v137, %v2251
    %v2261 = vmul.f32 %v138, %v2251
    %v2262 = vmul.f32 %v139, %v2251
    %v2263 = vmul.f32 %v140, %v2251
    %v2264 = vmul.f32 %v141, %v2251
    %v2265 = vmul.f32 %v142, %v2251
    %v2266 = vmul.f32 %v143, %v2251
    %v2267 = vmul.f32 %v144, %v2251
    %v2268 = vmul.f32 %v145, %v2251
    %v2269 = vmul.f32 %v146, %v2251
    %v2270 = vmul.f32 %v147, %v2251
    %v2271 = vmul.f32 %v148, %v2251
    %v2272 = vmul.f32 %v149, %v2251
    %v2273 = vmul.f32 %v150, %v2251
    %v2274 = vmul.f32 %v151, %v2251
    %v2275 = vmul.f32 %v152, %v2251
    %v2276 = vmul.f32 %v153, %v2251
    %v2277 = vmul.f32 %v154, %v2251
    %v2278 = vmul.f32 %v155, %v2251
    %v2279 = vmul.f32 %v156, %v2251
    %v2280 = vmul.f32 %v157, %v2251
    %v2281 = vmul.f32 %v158, %v2251
    %v2282 = vmul.f32 %v159, %v2251
    %v2283 = vmul.f32 %v160, %v2251
    %v2284 = vsel %vm361, %v2252, 0.0
    %2285 = vadd.xlane.f32.xlu0 %v2284
    %v2286 = vpop.xlane.xlu0 %2285
    %v2287 = vsel %vm361, %v2253, 0.0
    %2288 = vadd.xlane.f32.xlu0 %v2287
    %v2289 = vpop.xlane.xlu0 %2288
    %v2290 = vsel %vm361, %v2254, 0.0
    %2291 = vadd.xlane.f32.xlu0 %v2290
    %v2292 = vpop.xlane.xlu0 %2291
    %v2293 = vsel %vm361, %v2255, 0.0
    %2294 = vadd.xlane.f32.xlu0 %v2293
    %v2295 = vpop.xlane.xlu0 %2294
    %v2296 = vsel %vm361, %v2256, 0.0
    %2297 = vadd.xlane.f32.xlu0 %v2296
    %v2298 = vpop.xlane.xlu0 %2297
    %v2299 = vsel %vm361, %v2257, 0.0
    %2300 = vadd.xlane.f32.xlu0 %v2299
    %v2301 = vpop.xlane.xlu0 %2300
    %v2302 = vsel %vm361, %v2258, 0.0
    %2303 = vadd.xlane.f32.xlu0 %v2302
    %v2304 = vpop.xlane.xlu0 %2303
    %v2305 = vsel %vm361, %v2259, 0.0
    %2306 = vadd.xlane.f32.xlu0 %v2305
    %v2307 = vpop.xlane.xlu0 %2306
    %v2308 = vsel %vm361, %v2260, 0.0
    %2309 = vadd.xlane.f32.xlu0 %v2308
    %v2310 = vpop.xlane.xlu0 %2309
    %v2311 = vsel %vm361, %v2261, 0.0
    %2312 = vadd.xlane.f32.xlu0 %v2311
    %v2313 = vpop.xlane.xlu0 %2312
    %v2314 = vsel %vm361, %v2262, 0.0
    %2315 = vadd.xlane.f32.xlu0 %v2314
    %v2316 = vpop.xlane.xlu0 %2315
    %v2317 = vsel %vm361, %v2263, 0.0
    %2318 = vadd.xlane.f32.xlu0 %v2317
    %v2319 = vpop.xlane.xlu0 %2318
    %v2320 = vsel %vm361, %v2264, 0.0
    %2321 = vadd.xlane.f32.xlu0 %v2320
    %v2322 = vpop.xlane.xlu0 %2321
    %v2323 = vsel %vm361, %v2265, 0.0
    %2324 = vadd.xlane.f32.xlu0 %v2323
    %v2325 = vpop.xlane.xlu0 %2324
    %v2326 = vsel %vm361, %v2266, 0.0
    %2327 = vadd.xlane.f32.xlu0 %v2326
    %v2328 = vpop.xlane.xlu0 %2327
    %v2329 = vsel %vm361, %v2267, 0.0
    %2330 = vadd.xlane.f32.xlu0 %v2329
    %v2331 = vpop.xlane.xlu0 %2330
    %v2332 = vsel %vm361, %v2268, 0.0
    %2333 = vadd.xlane.f32.xlu0 %v2332
    %v2334 = vpop.xlane.xlu0 %2333
    %v2335 = vsel %vm361, %v2269, 0.0
    %2336 = vadd.xlane.f32.xlu0 %v2335
    %v2337 = vpop.xlane.xlu0 %2336
    %v2338 = vsel %vm361, %v2270, 0.0
    %2339 = vadd.xlane.f32.xlu0 %v2338
    %v2340 = vpop.xlane.xlu0 %2339
    %v2341 = vsel %vm361, %v2271, 0.0
    %2342 = vadd.xlane.f32.xlu0 %v2341
    %v2343 = vpop.xlane.xlu0 %2342
    %v2344 = vsel %vm361, %v2272, 0.0
    %2345 = vadd.xlane.f32.xlu0 %v2344
    %v2346 = vpop.xlane.xlu0 %2345
    %v2347 = vsel %vm361, %v2273, 0.0
    %2348 = vadd.xlane.f32.xlu0 %v2347
    %v2349 = vpop.xlane.xlu0 %2348
    %v2350 = vsel %vm361, %v2274, 0.0
    %2351 = vadd.xlane.f32.xlu0 %v2350
    %v2352 = vpop.xlane.xlu0 %2351
    %v2353 = vsel %vm361, %v2275, 0.0
    %2354 = vadd.xlane.f32.xlu0 %v2353
    %v2355 = vpop.xlane.xlu0 %2354
    %v2356 = vsel %vm361, %v2276, 0.0
    %2357 = vadd.xlane.f32.xlu0 %v2356
    %v2358 = vpop.xlane.xlu0 %2357
    %v2359 = vsel %vm361, %v2277, 0.0
    %2360 = vadd.xlane.f32.xlu0 %v2359
    %v2361 = vpop.xlane.xlu0 %2360
    %v2362 = vsel %vm361, %v2278, 0.0
    %2363 = vadd.xlane.f32.xlu0 %v2362
    %v2364 = vpop.xlane.xlu0 %2363
    %v2365 = vsel %vm361, %v2279, 0.0
    %2366 = vadd.xlane.f32.xlu0 %v2365
    %v2367 = vpop.xlane.xlu0 %2366
    %v2368 = vsel %vm361, %v2280, 0.0
    %2369 = vadd.xlane.f32.xlu0 %v2368
    %v2370 = vpop.xlane.xlu0 %2369
    %v2371 = vsel %vm361, %v2281, 0.0
    %2372 = vadd.xlane.f32.xlu0 %v2371
    %v2373 = vpop.xlane.xlu0 %2372
    %v2374 = vsel %vm361, %v2282, 0.0
    %2375 = vadd.xlane.f32.xlu0 %v2374
    %v2376 = vpop.xlane.xlu0 %2375
    %v2377 = vsel %vm361, %v2283, 0.0
    %2378 = vadd.xlane.f32.xlu0 %v2377
    %v2379 = vpop.xlane.xlu0 %2378
    %v2380 = vadd.f32 %v2218, %v2286
    %v2381 = vadd.f32 %v2219, %v2289
    %v2382 = vadd.f32 %v2220, %v2292
    %v2383 = vadd.f32 %v2221, %v2295
    %v2384 = vadd.f32 %v2222, %v2298
    %v2385 = vadd.f32 %v2223, %v2301
    %v2386 = vadd.f32 %v2224, %v2304
    %v2387 = vadd.f32 %v2225, %v2307
    %v2388 = vadd.f32 %v2226, %v2310
    %v2389 = vadd.f32 %v2227, %v2313
    %v2390 = vadd.f32 %v2228, %v2316
    %v2391 = vadd.f32 %v2229, %v2319
    %v2392 = vadd.f32 %v2230, %v2322
    %v2393 = vadd.f32 %v2231, %v2325
    %v2394 = vadd.f32 %v2232, %v2328
    %v2395 = vadd.f32 %v2233, %v2331
    %v2396 = vadd.f32 %v2234, %v2334
    %v2397 = vadd.f32 %v2235, %v2337
    %v2398 = vadd.f32 %v2236, %v2340
    %v2399 = vadd.f32 %v2237, %v2343
    %v2400 = vadd.f32 %v2238, %v2346
    %v2401 = vadd.f32 %v2239, %v2349
    %v2402 = vadd.f32 %v2240, %v2352
    %v2403 = vadd.f32 %v2241, %v2355
    %v2404 = vadd.f32 %v2242, %v2358
    %v2405 = vadd.f32 %v2243, %v2361
    %v2406 = vadd.f32 %v2244, %v2364
    %v2407 = vadd.f32 %v2245, %v2367
    %v2408 = vadd.f32 %v2246, %v2370
    %v2409 = vadd.f32 %v2247, %v2373
    %v2410 = vadd.f32 %v2248, %v2376
    %v2411 = vadd.f32 %v2249, %v2379
    %v2412 = vtanh.pop %v2380
    %v2413 = vtanh.pop %v2381
    %v2414 = vtanh.pop %v2382
    %v2415 = vtanh.pop %v2383
    %v2416 = vtanh.pop %v2384
    %v2417 = vtanh.pop %v2385
    %v2418 = vtanh.pop %v2386
    %v2419 = vtanh.pop %v2387
    %v2420 = vtanh.pop %v2388
    %v2421 = vtanh.pop %v2389
    %v2422 = vtanh.pop %v2390
    %v2423 = vtanh.pop %v2391
    %v2424 = vtanh.pop %v2392
    %v2425 = vtanh.pop %v2393
    %v2426 = vtanh.pop %v2394
    %v2427 = vtanh.pop %v2395
    %v2428 = vtanh.pop %v2396
    %v2429 = vtanh.pop %v2397
    %v2430 = vtanh.pop %v2398
    %v2431 = vtanh.pop %v2399
    %v2432 = vtanh.pop %v2400
    %v2433 = vtanh.pop %v2401
    %v2434 = vtanh.pop %v2402
    %v2435 = vtanh.pop %v2403
    %v2436 = vtanh.pop %v2404
    %v2437 = vtanh.pop %v2405
    %v2438 = vtanh.pop %v2406
    %v2439 = vtanh.pop %v2407
    %v2440 = vtanh.pop %v2408
    %v2441 = vtanh.pop %v2409
    %v2442 = vtanh.pop %v2410
    %v2443 = vtanh.pop %v2411
    %s2444 = scalar_lea.vmem %s3, 512
    %2445 = vst.msk [vmem:[%s2444] sm:$0xff] %vm1008, %v2412
    %2446 = vst.msk [vmem:[%s2444 + $0x8] sm:$0xff] %vm1008, %v2413
    %2447 = vst.msk [vmem:[%s2444 + $0x10] sm:$0xff] %vm1008, %v2414
    %2448 = vst.msk [vmem:[%s2444 + $0x18] sm:$0xff] %vm1008, %v2415
    %2449 = vst.msk [vmem:[%s2444 + $0x20] sm:$0xff] %vm1008, %v2416
    %2450 = vst.msk [vmem:[%s2444 + $0x28] sm:$0xff] %vm1008, %v2417
    %2451 = vst.msk [vmem:[%s2444 + $0x30] sm:$0xff] %vm1008, %v2418
    %2452 = vst.msk [vmem:[%s2444 + $0x38] sm:$0xff] %vm1008, %v2419
    %2453 = vst.msk [vmem:[%s2444 + $0x40] sm:$0xff] %vm1008, %v2420
    %2454 = vst.msk [vmem:[%s2444 + $0x48] sm:$0xff] %vm1008, %v2421
    %2455 = vst.msk [vmem:[%s2444 + $0x50] sm:$0xff] %vm1008, %v2422
    %2456 = vst.msk [vmem:[%s2444 + $0x58] sm:$0xff] %vm1008, %v2423
    %2457 = vst.msk [vmem:[%s2444 + $0x60] sm:$0xff] %vm1008, %v2424
    %2458 = vst.msk [vmem:[%s2444 + $0x68] sm:$0xff] %vm1008, %v2425
    %2459 = vst.msk [vmem:[%s2444 + $0x70] sm:$0xff] %vm1008, %v2426
    %2460 = vst.msk [vmem:[%s2444 + $0x78] sm:$0xff] %vm1008, %v2427
    %2461 = vst.msk [vmem:[%s2444 + $0x80] sm:$0xff] %vm1008, %v2428
    %2462 = vst.msk [vmem:[%s2444 + $0x88] sm:$0xff] %vm1008, %v2429
    %2463 = vst.msk [vmem:[%s2444 + $0x90] sm:$0xff] %vm1008, %v2430
    %2464 = vst.msk [vmem:[%s2444 + $0x98] sm:$0xff] %vm1008, %v2431
    %2465 = vst.msk [vmem:[%s2444 + $0xa0] sm:$0xff] %vm1008, %v2432
    %2466 = vst.msk [vmem:[%s2444 + $0xa8] sm:$0xff] %vm1008, %v2433
    %2467 = vst.msk [vmem:[%s2444 + $0xb0] sm:$0xff] %vm1008, %v2434
    %2468 = vst.msk [vmem:[%s2444 + $0xb8] sm:$0xff] %vm1008, %v2435
    %2469 = vst.msk [vmem:[%s2444 + $0xc0] sm:$0xff] %vm1008, %v2436
    %2470 = vst.msk [vmem:[%s2444 + $0xc8] sm:$0xff] %vm1008, %v2437
    %2471 = vst.msk [vmem:[%s2444 + $0xd0] sm:$0xff] %vm1008, %v2438
    %2472 = vst.msk [vmem:[%s2444 + $0xd8] sm:$0xff] %vm1008, %v2439
    %2473 = vst.msk [vmem:[%s2444 + $0xe0] sm:$0xff] %vm1008, %v2440
    %2474 = vst.msk [vmem:[%s2444 + $0xe8] sm:$0xff] %vm1008, %v2441
    %2475 = vst.msk [vmem:[%s2444 + $0xf0] sm:$0xff] %vm1008, %v2442
    %2476 = vst.msk [vmem:[%s2444 + $0xf8] sm:$0xff] %vm1008, %v2443
    %v2477 = vld [vmem:[#allocation2] sm:$0x1]
    %v2479 = vperm.slane %v2477, 0
    %v2481 = vadd.f32 %v2479, 0.0
    %v2482 = vld [vmem:[#allocation3 + $0xc] sm:$0x1]
    %v2483 = vperm.slane %v2482, 0
    %v2484 = vmul.f32 %v290, %v2483
    %v2485 = vmul.f32 %v291, %v2483
    %v2486 = vmul.f32 %v292, %v2483
    %v2487 = vmul.f32 %v293, %v2483
    %v2488 = vmul.f32 %v294, %v2483
    %v2489 = vmul.f32 %v295, %v2483
    %v2490 = vmul.f32 %v296, %v2483
    %v2491 = vmul.f32 %v297, %v2483
    %v2492 = vmul.f32 %v298, %v2483
    %v2493 = vmul.f32 %v299, %v2483
    %v2494 = vmul.f32 %v300, %v2483
    %v2495 = vmul.f32 %v301, %v2483
    %v2496 = vmul.f32 %v302, %v2483
    %v2497 = vmul.f32 %v303, %v2483
    %v2498 = vmul.f32 %v304, %v2483
    %v2499 = vmul.f32 %v305, %v2483
    %v2500 = vmul.f32 %v306, %v2483
    %v2501 = vmul.f32 %v307, %v2483
    %v2502 = vmul.f32 %v308, %v2483
    %v2503 = vmul.f32 %v309, %v2483
    %v2504 = vmul.f32 %v310, %v2483
    %v2505 = vmul.f32 %v311, %v2483
    %v2506 = vmul.f32 %v312, %v2483
    %v2507 = vmul.f32 %v313, %v2483
    %v2508 = vmul.f32 %v314, %v2483
    %v2509 = vmul.f32 %v315, %v2483
    %v2510 = vmul.f32 %v316, %v2483
    %v2511 = vmul.f32 %v317, %v2483
    %v2512 = vmul.f32 %v318, %v2483
    %v2513 = vmul.f32 %v319, %v2483
    %v2514 = vmul.f32 %v320, %v2483
    %v2515 = vmul.f32 %v321, %v2483
    %v2516 = vsel %vm361, %v2484, 0.0
    %2517 = vadd.xlane.f32.xlu0 %v2516
    %v2518 = vpop.xlane.xlu0 %2517
    %v2519 = vsel %vm361, %v2485, 0.0
    %2520 = vadd.xlane.f32.xlu0 %v2519
    %v2521 = vpop.xlane.xlu0 %2520
    %v2522 = vsel %vm361, %v2486, 0.0
    %2523 = vadd.xlane.f32.xlu0 %v2522
    %v2524 = vpop.xlane.xlu0 %2523
    %v2525 = vsel %vm361, %v2487, 0.0
    %2526 = vadd.xlane.f32.xlu0 %v2525
    %v2527 = vpop.xlane.xlu0 %2526
    %v2528 = vsel %vm361, %v2488, 0.0
    %2529 = vadd.xlane.f32.xlu0 %v2528
    %v2530 = vpop.xlane.xlu0 %2529
    %v2531 = vsel %vm361, %v2489, 0.0
    %2532 = vadd.xlane.f32.xlu0 %v2531
    %v2533 = vpop.xlane.xlu0 %2532
    %v2534 = vsel %vm361, %v2490, 0.0
    %2535 = vadd.xlane.f32.xlu0 %v2534
    %v2536 = vpop.xlane.xlu0 %2535
    %v2537 = vsel %vm361, %v2491, 0.0
    %2538 = vadd.xlane.f32.xlu0 %v2537
    %v2539 = vpop.xlane.xlu0 %2538
    %v2540 = vsel %vm361, %v2492, 0.0
    %2541 = vadd.xlane.f32.xlu0 %v2540
    %v2542 = vpop.xlane.xlu0 %2541
    %v2543 = vsel %vm361, %v2493, 0.0
    %2544 = vadd.xlane.f32.xlu0 %v2543
    %v2545 = vpop.xlane.xlu0 %2544
    %v2546 = vsel %vm361, %v2494, 0.0
    %2547 = vadd.xlane.f32.xlu0 %v2546
    %v2548 = vpop.xlane.xlu0 %2547
    %v2549 = vsel %vm361, %v2495, 0.0
    %2550 = vadd.xlane.f32.xlu0 %v2549
    %v2551 = vpop.xlane.xlu0 %2550
    %v2552 = vsel %vm361, %v2496, 0.0
    %2553 = vadd.xlane.f32.xlu0 %v2552
    %v2554 = vpop.xlane.xlu0 %2553
    %v2555 = vsel %vm361, %v2497, 0.0
    %2556 = vadd.xlane.f32.xlu0 %v2555
    %v2557 = vpop.xlane.xlu0 %2556
    %v2558 = vsel %vm361, %v2498, 0.0
    %2559 = vadd.xlane.f32.xlu0 %v2558
    %v2560 = vpop.xlane.xlu0 %2559
    %v2561 = vsel %vm361, %v2499, 0.0
    %2562 = vadd.xlane.f32.xlu0 %v2561
    %v2563 = vpop.xlane.xlu0 %2562
    %v2564 = vsel %vm361, %v2500, 0.0
    %2565 = vadd.xlane.f32.xlu0 %v2564
    %v2566 = vpop.xlane.xlu0 %2565
    %v2567 = vsel %vm361, %v2501, 0.0
    %2568 = vadd.xlane.f32.xlu0 %v2567
    %v2569 = vpop.xlane.xlu0 %2568
    %v2570 = vsel %vm361, %v2502, 0.0
    %2571 = vadd.xlane.f32.xlu0 %v2570
    %v2572 = vpop.xlane.xlu0 %2571
    %v2573 = vsel %vm361, %v2503, 0.0
    %2574 = vadd.xlane.f32.xlu0 %v2573
    %v2575 = vpop.xlane.xlu0 %2574
    %v2576 = vsel %vm361, %v2504, 0.0
    %2577 = vadd.xlane.f32.xlu0 %v2576
    %v2578 = vpop.xlane.xlu0 %2577
    %v2579 = vsel %vm361, %v2505, 0.0
    %2580 = vadd.xlane.f32.xlu0 %v2579
    %v2581 = vpop.xlane.xlu0 %2580
    %v2582 = vsel %vm361, %v2506, 0.0
    %2583 = vadd.xlane.f32.xlu0 %v2582
    %v2584 = vpop.xlane.xlu0 %2583
    %v2585 = vsel %vm361, %v2507, 0.0
    %2586 = vadd.xlane.f32.xlu0 %v2585
    %v2587 = vpop.xlane.xlu0 %2586
    %v2588 = vsel %vm361, %v2508, 0.0
    %2589 = vadd.xlane.f32.xlu0 %v2588
    %v2590 = vpop.xlane.xlu0 %2589
    %v2591 = vsel %vm361, %v2509, 0.0
    %2592 = vadd.xlane.f32.xlu0 %v2591
    %v2593 = vpop.xlane.xlu0 %2592
    %v2594 = vsel %vm361, %v2510, 0.0
    %2595 = vadd.xlane.f32.xlu0 %v2594
    %v2596 = vpop.xlane.xlu0 %2595
    %v2597 = vsel %vm361, %v2511, 0.0
    %2598 = vadd.xlane.f32.xlu0 %v2597
    %v2599 = vpop.xlane.xlu0 %2598
    %v2600 = vsel %vm361, %v2512, 0.0
    %2601 = vadd.xlane.f32.xlu0 %v2600
    %v2602 = vpop.xlane.xlu0 %2601
    %v2603 = vsel %vm361, %v2513, 0.0
    %2604 = vadd.xlane.f32.xlu0 %v2603
    %v2605 = vpop.xlane.xlu0 %2604
    %v2606 = vsel %vm361, %v2514, 0.0
    %2607 = vadd.xlane.f32.xlu0 %v2606
    %v2608 = vpop.xlane.xlu0 %2607
    %v2609 = vsel %vm361, %v2515, 0.0
    %2610 = vadd.xlane.f32.xlu0 %v2609
    %v2611 = vpop.xlane.xlu0 %2610
    %v2612 = vadd.f32 %v2481, %v2518
    %v2613 = vadd.f32 %v2481, %v2521
    %v2614 = vadd.f32 %v2481, %v2524
    %v2615 = vadd.f32 %v2481, %v2527
    %v2616 = vadd.f32 %v2481, %v2530
    %v2617 = vadd.f32 %v2481, %v2533
    %v2618 = vadd.f32 %v2481, %v2536
    %v2619 = vadd.f32 %v2481, %v2539
    %v2620 = vadd.f32 %v2481, %v2542
    %v2621 = vadd.f32 %v2481, %v2545
    %v2622 = vadd.f32 %v2481, %v2548
    %v2623 = vadd.f32 %v2481, %v2551
    %v2624 = vadd.f32 %v2481, %v2554
    %v2625 = vadd.f32 %v2481, %v2557
    %v2626 = vadd.f32 %v2481, %v2560
    %v2627 = vadd.f32 %v2481, %v2563
    %v2628 = vadd.f32 %v2481, %v2566
    %v2629 = vadd.f32 %v2481, %v2569
    %v2630 = vadd.f32 %v2481, %v2572
    %v2631 = vadd.f32 %v2481, %v2575
    %v2632 = vadd.f32 %v2481, %v2578
    %v2633 = vadd.f32 %v2481, %v2581
    %v2634 = vadd.f32 %v2481, %v2584
    %v2635 = vadd.f32 %v2481, %v2587
    %v2636 = vadd.f32 %v2481, %v2590
    %v2637 = vadd.f32 %v2481, %v2593
    %v2638 = vadd.f32 %v2481, %v2596
    %v2639 = vadd.f32 %v2481, %v2599
    %v2640 = vadd.f32 %v2481, %v2602
    %v2641 = vadd.f32 %v2481, %v2605
    %v2642 = vadd.f32 %v2481, %v2608
    %v2643 = vadd.f32 %v2481, %v2611
    %v2644 = vld [vmem:[#allocation3 + $0xd] sm:$0x1]
    %v2645 = vperm.slane %v2644, 0
    %v2646 = vmul.f32 %v258, %v2645
    %v2647 = vmul.f32 %v259, %v2645
    %v2648 = vmul.f32 %v260, %v2645
    %v2649 = vmul.f32 %v261, %v2645
    %v2650 = vmul.f32 %v262, %v2645
    %v2651 = vmul.f32 %v263, %v2645
    %v2652 = vmul.f32 %v264, %v2645
    %v2653 = vmul.f32 %v265, %v2645
    %v2654 = vmul.f32 %v266, %v2645
    %v2655 = vmul.f32 %v267, %v2645
    %v2656 = vmul.f32 %v268, %v2645
    %v2657 = vmul.f32 %v269, %v2645
    %v2658 = vmul.f32 %v270, %v2645
    %v2659 = vmul.f32 %v271, %v2645
    %v2660 = vmul.f32 %v272, %v2645
    %v2661 = vmul.f32 %v273, %v2645
    %v2662 = vmul.f32 %v274, %v2645
    %v2663 = vmul.f32 %v275, %v2645
    %v2664 = vmul.f32 %v276, %v2645
    %v2665 = vmul.f32 %v277, %v2645
    %v2666 = vmul.f32 %v278, %v2645
    %v2667 = vmul.f32 %v279, %v2645
    %v2668 = vmul.f32 %v280, %v2645
    %v2669 = vmul.f32 %v281, %v2645
    %v2670 = vmul.f32 %v282, %v2645
    %v2671 = vmul.f32 %v283, %v2645
    %v2672 = vmul.f32 %v284, %v2645
    %v2673 = vmul.f32 %v285, %v2645
    %v2674 = vmul.f32 %v286, %v2645
    %v2675 = vmul.f32 %v287, %v2645
    %v2676 = vmul.f32 %v288, %v2645
    %v2677 = vmul.f32 %v289, %v2645
    %v2678 = vsel %vm361, %v2646, 0.0
    %2679 = vadd.xlane.f32.xlu0 %v2678
    %v2680 = vpop.xlane.xlu0 %2679
    %v2681 = vsel %vm361, %v2647, 0.0
    %2682 = vadd.xlane.f32.xlu0 %v2681
    %v2683 = vpop.xlane.xlu0 %2682
    %v2684 = vsel %vm361, %v2648, 0.0
    %2685 = vadd.xlane.f32.xlu0 %v2684
    %v2686 = vpop.xlane.xlu0 %2685
    %v2687 = vsel %vm361, %v2649, 0.0
    %2688 = vadd.xlane.f32.xlu0 %v2687
    %v2689 = vpop.xlane.xlu0 %2688
    %v2690 = vsel %vm361, %v2650, 0.0
    %2691 = vadd.xlane.f32.xlu0 %v2690
    %v2692 = vpop.xlane.xlu0 %2691
    %v2693 = vsel %vm361, %v2651, 0.0
    %2694 = vadd.xlane.f32.xlu0 %v2693
    %v2695 = vpop.xlane.xlu0 %2694
    %v2696 = vsel %vm361, %v2652, 0.0
    %2697 = vadd.xlane.f32.xlu0 %v2696
    %v2698 = vpop.xlane.xlu0 %2697
    %v2699 = vsel %vm361, %v2653, 0.0
    %2700 = vadd.xlane.f32.xlu0 %v2699
    %v2701 = vpop.xlane.xlu0 %2700
    %v2702 = vsel %vm361, %v2654, 0.0
    %2703 = vadd.xlane.f32.xlu0 %v2702
    %v2704 = vpop.xlane.xlu0 %2703
    %v2705 = vsel %vm361, %v2655, 0.0
    %2706 = vadd.xlane.f32.xlu0 %v2705
    %v2707 = vpop.xlane.xlu0 %2706
    %v2708 = vsel %vm361, %v2656, 0.0
    %2709 = vadd.xlane.f32.xlu0 %v2708
    %v2710 = vpop.xlane.xlu0 %2709
    %v2711 = vsel %vm361, %v2657, 0.0
    %2712 = vadd.xlane.f32.xlu0 %v2711
    %v2713 = vpop.xlane.xlu0 %2712
    %v2714 = vsel %vm361, %v2658, 0.0
    %2715 = vadd.xlane.f32.xlu0 %v2714
    %v2716 = vpop.xlane.xlu0 %2715
    %v2717 = vsel %vm361, %v2659, 0.0
    %2718 = vadd.xlane.f32.xlu0 %v2717
    %v2719 = vpop.xlane.xlu0 %2718
    %v2720 = vsel %vm361, %v2660, 0.0
    %2721 = vadd.xlane.f32.xlu0 %v2720
    %v2722 = vpop.xlane.xlu0 %2721
    %v2723 = vsel %vm361, %v2661, 0.0
    %2724 = vadd.xlane.f32.xlu0 %v2723
    %v2725 = vpop.xlane.xlu0 %2724
    %v2726 = vsel %vm361, %v2662, 0.0
    %2727 = vadd.xlane.f32.xlu0 %v2726
    %v2728 = vpop.xlane.xlu0 %2727
    %v2729 = vsel %vm361, %v2663, 0.0
    %2730 = vadd.xlane.f32.xlu0 %v2729
    %v2731 = vpop.xlane.xlu0 %2730
    %v2732 = vsel %vm361, %v2664, 0.0
    %2733 = vadd.xlane.f32.xlu0 %v2732
    %v2734 = vpop.xlane.xlu0 %2733
    %v2735 = vsel %vm361, %v2665, 0.0
    %2736 = vadd.xlane.f32.xlu0 %v2735
    %v2737 = vpop.xlane.xlu0 %2736
    %v2738 = vsel %vm361, %v2666, 0.0
    %2739 = vadd.xlane.f32.xlu0 %v2738
    %v2740 = vpop.xlane.xlu0 %2739
    %v2741 = vsel %vm361, %v2667, 0.0
    %2742 = vadd.xlane.f32.xlu0 %v2741
    %v2743 = vpop.xlane.xlu0 %2742
    %v2744 = vsel %vm361, %v2668, 0.0
    %2745 = vadd.xlane.f32.xlu0 %v2744
    %v2746 = vpop.xlane.xlu0 %2745
    %v2747 = vsel %vm361, %v2669, 0.0
    %2748 = vadd.xlane.f32.xlu0 %v2747
    %v2749 = vpop.xlane.xlu0 %2748
    %v2750 = vsel %vm361, %v2670, 0.0
    %2751 = vadd.xlane.f32.xlu0 %v2750
    %v2752 = vpop.xlane.xlu0 %2751
    %v2753 = vsel %vm361, %v2671, 0.0
    %2754 = vadd.xlane.f32.xlu0 %v2753
    %v2755 = vpop.xlane.xlu0 %2754
    %v2756 = vsel %vm361, %v2672, 0.0
    %2757 = vadd.xlane.f32.xlu0 %v2756
    %v2758 = vpop.xlane.xlu0 %2757
    %v2759 = vsel %vm361, %v2673, 0.0
    %2760 = vadd.xlane.f32.xlu0 %v2759
    %v2761 = vpop.xlane.xlu0 %2760
    %v2762 = vsel %vm361, %v2674, 0.0
    %2763 = vadd.xlane.f32.xlu0 %v2762
    %v2764 = vpop.xlane.xlu0 %2763
    %v2765 = vsel %vm361, %v2675, 0.0
    %2766 = vadd.xlane.f32.xlu0 %v2765
    %v2767 = vpop.xlane.xlu0 %2766
    %v2768 = vsel %vm361, %v2676, 0.0
    %2769 = vadd.xlane.f32.xlu0 %v2768
    %v2770 = vpop.xlane.xlu0 %2769
    %v2771 = vsel %vm361, %v2677, 0.0
    %2772 = vadd.xlane.f32.xlu0 %v2771
    %v2773 = vpop.xlane.xlu0 %2772
    %v2774 = vadd.f32 %v2612, %v2680
    %v2775 = vadd.f32 %v2613, %v2683
    %v2776 = vadd.f32 %v2614, %v2686
    %v2777 = vadd.f32 %v2615, %v2689
    %v2778 = vadd.f32 %v2616, %v2692
    %v2779 = vadd.f32 %v2617, %v2695
    %v2780 = vadd.f32 %v2618, %v2698
    %v2781 = vadd.f32 %v2619, %v2701
    %v2782 = vadd.f32 %v2620, %v2704
    %v2783 = vadd.f32 %v2621, %v2707
    %v2784 = vadd.f32 %v2622, %v2710
    %v2785 = vadd.f32 %v2623, %v2713
    %v2786 = vadd.f32 %v2624, %v2716
    %v2787 = vadd.f32 %v2625, %v2719
    %v2788 = vadd.f32 %v2626, %v2722
    %v2789 = vadd.f32 %v2627, %v2725
    %v2790 = vadd.f32 %v2628, %v2728
    %v2791 = vadd.f32 %v2629, %v2731
    %v2792 = vadd.f32 %v2630, %v2734
    %v2793 = vadd.f32 %v2631, %v2737
    %v2794 = vadd.f32 %v2632, %v2740
    %v2795 = vadd.f32 %v2633, %v2743
    %v2796 = vadd.f32 %v2634, %v2746
    %v2797 = vadd.f32 %v2635, %v2749
    %v2798 = vadd.f32 %v2636, %v2752
    %v2799 = vadd.f32 %v2637, %v2755
    %v2800 = vadd.f32 %v2638, %v2758
    %v2801 = vadd.f32 %v2639, %v2761
    %v2802 = vadd.f32 %v2640, %v2764
    %v2803 = vadd.f32 %v2641, %v2767
    %v2804 = vadd.f32 %v2642, %v2770
    %v2805 = vadd.f32 %v2643, %v2773
    %v2806 = vld [vmem:[#allocation3 + $0xe] sm:$0x1]
    %v2807 = vperm.slane %v2806, 0
    %v2808 = vmul.f32 %v193, %v2807
    %v2809 = vmul.f32 %v194, %v2807
    %v2810 = vmul.f32 %v195, %v2807
    %v2811 = vmul.f32 %v196, %v2807
    %v2812 = vmul.f32 %v197, %v2807
    %v2813 = vmul.f32 %v198, %v2807
    %v2814 = vmul.f32 %v199, %v2807
    %v2815 = vmul.f32 %v200, %v2807
    %v2816 = vmul.f32 %v201, %v2807
    %v2817 = vmul.f32 %v202, %v2807
    %v2818 = vmul.f32 %v203, %v2807
    %v2819 = vmul.f32 %v204, %v2807
    %v2820 = vmul.f32 %v205, %v2807
    %v2821 = vmul.f32 %v206, %v2807
    %v2822 = vmul.f32 %v207, %v2807
    %v2823 = vmul.f32 %v208, %v2807
    %v2824 = vmul.f32 %v209, %v2807
    %v2825 = vmul.f32 %v210, %v2807
    %v2826 = vmul.f32 %v211, %v2807
    %v2827 = vmul.f32 %v212, %v2807
    %v2828 = vmul.f32 %v213, %v2807
    %v2829 = vmul.f32 %v214, %v2807
    %v2830 = vmul.f32 %v215, %v2807
    %v2831 = vmul.f32 %v216, %v2807
    %v2832 = vmul.f32 %v217, %v2807
    %v2833 = vmul.f32 %v218, %v2807
    %v2834 = vmul.f32 %v219, %v2807
    %v2835 = vmul.f32 %v220, %v2807
    %v2836 = vmul.f32 %v221, %v2807
    %v2837 = vmul.f32 %v222, %v2807
    %v2838 = vmul.f32 %v223, %v2807
    %v2839 = vmul.f32 %v224, %v2807
    %v2840 = vsel %vm361, %v2808, 0.0
    %2841 = vadd.xlane.f32.xlu0 %v2840
    %v2842 = vpop.xlane.xlu0 %2841
    %v2843 = vsel %vm361, %v2809, 0.0
    %2844 = vadd.xlane.f32.xlu0 %v2843
    %v2845 = vpop.xlane.xlu0 %2844
    %v2846 = vsel %vm361, %v2810, 0.0
    %2847 = vadd.xlane.f32.xlu0 %v2846
    %v2848 = vpop.xlane.xlu0 %2847
    %v2849 = vsel %vm361, %v2811, 0.0
    %2850 = vadd.xlane.f32.xlu0 %v2849
    %v2851 = vpop.xlane.xlu0 %2850
    %v2852 = vsel %vm361, %v2812, 0.0
    %2853 = vadd.xlane.f32.xlu0 %v2852
    %v2854 = vpop.xlane.xlu0 %2853
    %v2855 = vsel %vm361, %v2813, 0.0
    %2856 = vadd.xlane.f32.xlu0 %v2855
    %v2857 = vpop.xlane.xlu0 %2856
    %v2858 = vsel %vm361, %v2814, 0.0
    %2859 = vadd.xlane.f32.xlu0 %v2858
    %v2860 = vpop.xlane.xlu0 %2859
    %v2861 = vsel %vm361, %v2815, 0.0
    %2862 = vadd.xlane.f32.xlu0 %v2861
    %v2863 = vpop.xlane.xlu0 %2862
    %v2864 = vsel %vm361, %v2816, 0.0
    %2865 = vadd.xlane.f32.xlu0 %v2864
    %v2866 = vpop.xlane.xlu0 %2865
    %v2867 = vsel %vm361, %v2817, 0.0
    %2868 = vadd.xlane.f32.xlu0 %v2867
    %v2869 = vpop.xlane.xlu0 %2868
    %v2870 = vsel %vm361, %v2818, 0.0
    %2871 = vadd.xlane.f32.xlu0 %v2870
    %v2872 = vpop.xlane.xlu0 %2871
    %v2873 = vsel %vm361, %v2819, 0.0
    %2874 = vadd.xlane.f32.xlu0 %v2873
    %v2875 = vpop.xlane.xlu0 %2874
    %v2876 = vsel %vm361, %v2820, 0.0
    %2877 = vadd.xlane.f32.xlu0 %v2876
    %v2878 = vpop.xlane.xlu0 %2877
    %v2879 = vsel %vm361, %v2821, 0.0
    %2880 = vadd.xlane.f32.xlu0 %v2879
    %v2881 = vpop.xlane.xlu0 %2880
    %v2882 = vsel %vm361, %v2822, 0.0
    %2883 = vadd.xlane.f32.xlu0 %v2882
    %v2884 = vpop.xlane.xlu0 %2883
    %v2885 = vsel %vm361, %v2823, 0.0
    %2886 = vadd.xlane.f32.xlu0 %v2885
    %v2887 = vpop.xlane.xlu0 %2886
    %v2888 = vsel %vm361, %v2824, 0.0
    %2889 = vadd.xlane.f32.xlu0 %v2888
    %v2890 = vpop.xlane.xlu0 %2889
    %v2891 = vsel %vm361, %v2825, 0.0
    %2892 = vadd.xlane.f32.xlu0 %v2891
    %v2893 = vpop.xlane.xlu0 %2892
    %v2894 = vsel %vm361, %v2826, 0.0
    %2895 = vadd.xlane.f32.xlu0 %v2894
    %v2896 = vpop.xlane.xlu0 %2895
    %v2897 = vsel %vm361, %v2827, 0.0
    %2898 = vadd.xlane.f32.xlu0 %v2897
    %v2899 = vpop.xlane.xlu0 %2898
    %v2900 = vsel %vm361, %v2828, 0.0
    %2901 = vadd.xlane.f32.xlu0 %v2900
    %v2902 = vpop.xlane.xlu0 %2901
    %v2903 = vsel %vm361, %v2829, 0.0
    %2904 = vadd.xlane.f32.xlu0 %v2903
    %v2905 = vpop.xlane.xlu0 %2904
    %v2906 = vsel %vm361, %v2830, 0.0
    %2907 = vadd.xlane.f32.xlu0 %v2906
    %v2908 = vpop.xlane.xlu0 %2907
    %v2909 = vsel %vm361, %v2831, 0.0
    %2910 = vadd.xlane.f32.xlu0 %v2909
    %v2911 = vpop.xlane.xlu0 %2910
    %v2912 = vsel %vm361, %v2832, 0.0
    %2913 = vadd.xlane.f32.xlu0 %v2912
    %v2914 = vpop.xlane.xlu0 %2913
    %v2915 = vsel %vm361, %v2833, 0.0
    %2916 = vadd.xlane.f32.xlu0 %v2915
    %v2917 = vpop.xlane.xlu0 %2916
    %v2918 = vsel %vm361, %v2834, 0.0
    %2919 = vadd.xlane.f32.xlu0 %v2918
    %v2920 = vpop.xlane.xlu0 %2919
    %v2921 = vsel %vm361, %v2835, 0.0
    %2922 = vadd.xlane.f32.xlu0 %v2921
    %v2923 = vpop.xlane.xlu0 %2922
    %v2924 = vsel %vm361, %v2836, 0.0
    %2925 = vadd.xlane.f32.xlu0 %v2924
    %v2926 = vpop.xlane.xlu0 %2925
    %v2927 = vsel %vm361, %v2837, 0.0
    %2928 = vadd.xlane.f32.xlu0 %v2927
    %v2929 = vpop.xlane.xlu0 %2928
    %v2930 = vsel %vm361, %v2838, 0.0
    %2931 = vadd.xlane.f32.xlu0 %v2930
    %v2932 = vpop.xlane.xlu0 %2931
    %v2933 = vsel %vm361, %v2839, 0.0
    %2934 = vadd.xlane.f32.xlu0 %v2933
    %v2935 = vpop.xlane.xlu0 %2934
    %v2936 = vadd.f32 %v2774, %v2842
    %v2937 = vadd.f32 %v2775, %v2845
    %v2938 = vadd.f32 %v2776, %v2848
    %v2939 = vadd.f32 %v2777, %v2851
    %v2940 = vadd.f32 %v2778, %v2854
    %v2941 = vadd.f32 %v2779, %v2857
    %v2942 = vadd.f32 %v2780, %v2860
    %v2943 = vadd.f32 %v2781, %v2863
    %v2944 = vadd.f32 %v2782, %v2866
    %v2945 = vadd.f32 %v2783, %v2869
    %v2946 = vadd.f32 %v2784, %v2872
    %v2947 = vadd.f32 %v2785, %v2875
    %v2948 = vadd.f32 %v2786, %v2878
    %v2949 = vadd.f32 %v2787, %v2881
    %v2950 = vadd.f32 %v2788, %v2884
    %v2951 = vadd.f32 %v2789, %v2887
    %v2952 = vadd.f32 %v2790, %v2890
    %v2953 = vadd.f32 %v2791, %v2893
    %v2954 = vadd.f32 %v2792, %v2896
    %v2955 = vadd.f32 %v2793, %v2899
    %v2956 = vadd.f32 %v2794, %v2902
    %v2957 = vadd.f32 %v2795, %v2905
    %v2958 = vadd.f32 %v2796, %v2908
    %v2959 = vadd.f32 %v2797, %v2911
    %v2960 = vadd.f32 %v2798, %v2914
    %v2961 = vadd.f32 %v2799, %v2917
    %v2962 = vadd.f32 %v2800, %v2920
    %v2963 = vadd.f32 %v2801, %v2923
    %v2964 = vadd.f32 %v2802, %v2926
    %v2965 = vadd.f32 %v2803, %v2929
    %v2966 = vadd.f32 %v2804, %v2932
    %v2967 = vadd.f32 %v2805, %v2935
    %v2968 = vld [vmem:[#allocation3 + $0xf] sm:$0x1]
    %v2969 = vperm.slane %v2968, 0
    %v2970 = vmul.f32 %v161, %v2969
    %v2971 = vmul.f32 %v162, %v2969
    %v2972 = vmul.f32 %v163, %v2969
    %v2973 = vmul.f32 %v164, %v2969
    %v2974 = vmul.f32 %v165, %v2969
    %v2975 = vmul.f32 %v166, %v2969
    %v2976 = vmul.f32 %v167, %v2969
    %v2977 = vmul.f32 %v168, %v2969
    %v2978 = vmul.f32 %v169, %v2969
    %v2979 = vmul.f32 %v170, %v2969
    %v2980 = vmul.f32 %v171, %v2969
    %v2981 = vmul.f32 %v172, %v2969
    %v2982 = vmul.f32 %v173, %v2969
    %v2983 = vmul.f32 %v174, %v2969
    %v2984 = vmul.f32 %v175, %v2969
    %v2985 = vmul.f32 %v176, %v2969
    %v2986 = vmul.f32 %v177, %v2969
    %v2987 = vmul.f32 %v178, %v2969
    %v2988 = vmul.f32 %v179, %v2969
    %v2989 = vmul.f32 %v180, %v2969
    %v2990 = vmul.f32 %v181, %v2969
    %v2991 = vmul.f32 %v182, %v2969
    %v2992 = vmul.f32 %v183, %v2969
    %v2993 = vmul.f32 %v184, %v2969
    %v2994 = vmul.f32 %v185, %v2969
    %v2995 = vmul.f32 %v186, %v2969
    %v2996 = vmul.f32 %v187, %v2969
    %v2997 = vmul.f32 %v188, %v2969
    %v2998 = vmul.f32 %v189, %v2969
    %v2999 = vmul.f32 %v190, %v2969
    %v3000 = vmul.f32 %v191, %v2969
    %v3001 = vmul.f32 %v192, %v2969
    %v3002 = vsel %vm361, %v2970, 0.0
    %3003 = vadd.xlane.f32.xlu0 %v3002
    %v3004 = vpop.xlane.xlu0 %3003
    %v3005 = vsel %vm361, %v2971, 0.0
    %3006 = vadd.xlane.f32.xlu0 %v3005
    %v3007 = vpop.xlane.xlu0 %3006
    %v3008 = vsel %vm361, %v2972, 0.0
    %3009 = vadd.xlane.f32.xlu0 %v3008
    %v3010 = vpop.xlane.xlu0 %3009
    %v3011 = vsel %vm361, %v2973, 0.0
    %3012 = vadd.xlane.f32.xlu0 %v3011
    %v3013 = vpop.xlane.xlu0 %3012
    %v3014 = vsel %vm361, %v2974, 0.0
    %3015 = vadd.xlane.f32.xlu0 %v3014
    %v3016 = vpop.xlane.xlu0 %3015
    %v3017 = vsel %vm361, %v2975, 0.0
    %3018 = vadd.xlane.f32.xlu0 %v3017
    %v3019 = vpop.xlane.xlu0 %3018
    %v3020 = vsel %vm361, %v2976, 0.0
    %3021 = vadd.xlane.f32.xlu0 %v3020
    %v3022 = vpop.xlane.xlu0 %3021
    %v3023 = vsel %vm361, %v2977, 0.0
    %3024 = vadd.xlane.f32.xlu0 %v3023
    %v3025 = vpop.xlane.xlu0 %3024
    %v3026 = vsel %vm361, %v2978, 0.0
    %3027 = vadd.xlane.f32.xlu0 %v3026
    %v3028 = vpop.xlane.xlu0 %3027
    %v3029 = vsel %vm361, %v2979, 0.0
    %3030 = vadd.xlane.f32.xlu0 %v3029
    %v3031 = vpop.xlane.xlu0 %3030
    %v3032 = vsel %vm361, %v2980, 0.0
    %3033 = vadd.xlane.f32.xlu0 %v3032
    %v3034 = vpop.xlane.xlu0 %3033
    %v3035 = vsel %vm361, %v2981, 0.0
    %3036 = vadd.xlane.f32.xlu0 %v3035
    %v3037 = vpop.xlane.xlu0 %3036
    %v3038 = vsel %vm361, %v2982, 0.0
    %3039 = vadd.xlane.f32.xlu0 %v3038
    %v3040 = vpop.xlane.xlu0 %3039
    %v3041 = vsel %vm361, %v2983, 0.0
    %3042 = vadd.xlane.f32.xlu0 %v3041
    %v3043 = vpop.xlane.xlu0 %3042
    %v3044 = vsel %vm361, %v2984, 0.0
    %3045 = vadd.xlane.f32.xlu0 %v3044
    %v3046 = vpop.xlane.xlu0 %3045
    %v3047 = vsel %vm361, %v2985, 0.0
    %3048 = vadd.xlane.f32.xlu0 %v3047
    %v3049 = vpop.xlane.xlu0 %3048
    %v3050 = vsel %vm361, %v2986, 0.0
    %3051 = vadd.xlane.f32.xlu0 %v3050
    %v3052 = vpop.xlane.xlu0 %3051
    %v3053 = vsel %vm361, %v2987, 0.0
    %3054 = vadd.xlane.f32.xlu0 %v3053
    %v3055 = vpop.xlane.xlu0 %3054
    %v3056 = vsel %vm361, %v2988, 0.0
    %3057 = vadd.xlane.f32.xlu0 %v3056
    %v3058 = vpop.xlane.xlu0 %3057
    %v3059 = vsel %vm361, %v2989, 0.0
    %3060 = vadd.xlane.f32.xlu0 %v3059
    %v3061 = vpop.xlane.xlu0 %3060
    %v3062 = vsel %vm361, %v2990, 0.0
    %3063 = vadd.xlane.f32.xlu0 %v3062
    %v3064 = vpop.xlane.xlu0 %3063
    %v3065 = vsel %vm361, %v2991, 0.0
    %3066 = vadd.xlane.f32.xlu0 %v3065
    %v3067 = vpop.xlane.xlu0 %3066
    %v3068 = vsel %vm361, %v2992, 0.0
    %3069 = vadd.xlane.f32.xlu0 %v3068
    %v3070 = vpop.xlane.xlu0 %3069
    %v3071 = vsel %vm361, %v2993, 0.0
    %3072 = vadd.xlane.f32.xlu0 %v3071
    %v3073 = vpop.xlane.xlu0 %3072
    %v3074 = vsel %vm361, %v2994, 0.0
    %3075 = vadd.xlane.f32.xlu0 %v3074
    %v3076 = vpop.xlane.xlu0 %3075
    %v3077 = vsel %vm361, %v2995, 0.0
    %3078 = vadd.xlane.f32.xlu0 %v3077
    %v3079 = vpop.xlane.xlu0 %3078
    %v3080 = vsel %vm361, %v2996, 0.0
    %3081 = vadd.xlane.f32.xlu0 %v3080
    %v3082 = vpop.xlane.xlu0 %3081
    %v3083 = vsel %vm361, %v2997, 0.0
    %3084 = vadd.xlane.f32.xlu0 %v3083
    %v3085 = vpop.xlane.xlu0 %3084
    %v3086 = vsel %vm361, %v2998, 0.0
    %3087 = vadd.xlane.f32.xlu0 %v3086
    %v3088 = vpop.xlane.xlu0 %3087
    %v3089 = vsel %vm361, %v2999, 0.0
    %3090 = vadd.xlane.f32.xlu0 %v3089
    %v3091 = vpop.xlane.xlu0 %3090
    %v3092 = vsel %vm361, %v3000, 0.0
    %3093 = vadd.xlane.f32.xlu0 %v3092
    %v3094 = vpop.xlane.xlu0 %3093
    %v3095 = vsel %vm361, %v3001, 0.0
    %3096 = vadd.xlane.f32.xlu0 %v3095
    %v3097 = vpop.xlane.xlu0 %3096
    %v3098 = vadd.f32 %v2936, %v3004
    %v3099 = vadd.f32 %v2937, %v3007
    %v3100 = vadd.f32 %v2938, %v3010
    %v3101 = vadd.f32 %v2939, %v3013
    %v3102 = vadd.f32 %v2940, %v3016
    %v3103 = vadd.f32 %v2941, %v3019
    %v3104 = vadd.f32 %v2942, %v3022
    %v3105 = vadd.f32 %v2943, %v3025
    %v3106 = vadd.f32 %v2944, %v3028
    %v3107 = vadd.f32 %v2945, %v3031
    %v3108 = vadd.f32 %v2946, %v3034
    %v3109 = vadd.f32 %v2947, %v3037
    %v3110 = vadd.f32 %v2948, %v3040
    %v3111 = vadd.f32 %v2949, %v3043
    %v3112 = vadd.f32 %v2950, %v3046
    %v3113 = vadd.f32 %v2951, %v3049
    %v3114 = vadd.f32 %v2952, %v3052
    %v3115 = vadd.f32 %v2953, %v3055
    %v3116 = vadd.f32 %v2954, %v3058
    %v3117 = vadd.f32 %v2955, %v3061
    %v3118 = vadd.f32 %v2956, %v3064
    %v3119 = vadd.f32 %v2957, %v3067
    %v3120 = vadd.f32 %v2958, %v3070
    %v3121 = vadd.f32 %v2959, %v3073
    %v3122 = vadd.f32 %v2960, %v3076
    %v3123 = vadd.f32 %v2961, %v3079
    %v3124 = vadd.f32 %v2962, %v3082
    %v3125 = vadd.f32 %v2963, %v3085
    %v3126 = vadd.f32 %v2964, %v3088
    %v3127 = vadd.f32 %v2965, %v3091
    %v3128 = vadd.f32 %v2966, %v3094
    %v3129 = vadd.f32 %v2967, %v3097
    %v3130 = vtanh.pop %v3098
    %v3131 = vtanh.pop %v3099
    %v3132 = vtanh.pop %v3100
    %v3133 = vtanh.pop %v3101
    %v3134 = vtanh.pop %v3102
    %v3135 = vtanh.pop %v3103
    %v3136 = vtanh.pop %v3104
    %v3137 = vtanh.pop %v3105
    %v3138 = vtanh.pop %v3106
    %v3139 = vtanh.pop %v3107
    %v3140 = vtanh.pop %v3108
    %v3141 = vtanh.pop %v3109
    %v3142 = vtanh.pop %v3110
    %v3143 = vtanh.pop %v3111
    %v3144 = vtanh.pop %v3112
    %v3145 = vtanh.pop %v3113
    %v3146 = vtanh.pop %v3114
    %v3147 = vtanh.pop %v3115
    %v3148 = vtanh.pop %v3116
    %v3149 = vtanh.pop %v3117
    %v3150 = vtanh.pop %v3118
    %v3151 = vtanh.pop %v3119
    %v3152 = vtanh.pop %v3120
    %v3153 = vtanh.pop %v3121
    %v3154 = vtanh.pop %v3122
    %v3155 = vtanh.pop %v3123
    %v3156 = vtanh.pop %v3124
    %v3157 = vtanh.pop %v3125
    %v3158 = vtanh.pop %v3126
    %v3159 = vtanh.pop %v3127
    %v3160 = vtanh.pop %v3128
    %v3161 = vtanh.pop %v3129
    %s3162 = scalar_lea.vmem %s3, 768
    %3163 = vst.msk [vmem:[%s3162] sm:$0xff] %vm1008, %v3130
    %3164 = vst.msk [vmem:[%s3162 + $0x8] sm:$0xff] %vm1008, %v3131
    %3165 = vst.msk [vmem:[%s3162 + $0x10] sm:$0xff] %vm1008, %v3132
    %3166 = vst.msk [vmem:[%s3162 + $0x18] sm:$0xff] %vm1008, %v3133
    %3167 = vst.msk [vmem:[%s3162 + $0x20] sm:$0xff] %vm1008, %v3134
    %3168 = vst.msk [vmem:[%s3162 + $0x28] sm:$0xff] %vm1008, %v3135
    %3169 = vst.msk [vmem:[%s3162 + $0x30] sm:$0xff] %vm1008, %v3136
    %3170 = vst.msk [vmem:[%s3162 + $0x38] sm:$0xff] %vm1008, %v3137
    %3171 = vst.msk [vmem:[%s3162 + $0x40] sm:$0xff] %vm1008, %v3138
    %3172 = vst.msk [vmem:[%s3162 + $0x48] sm:$0xff] %vm1008, %v3139
    %3173 = vst.msk [vmem:[%s3162 + $0x50] sm:$0xff] %vm1008, %v3140
    %3174 = vst.msk [vmem:[%s3162 + $0x58] sm:$0xff] %vm1008, %v3141
    %3175 = vst.msk [vmem:[%s3162 + $0x60] sm:$0xff] %vm1008, %v3142
    %3176 = vst.msk [vmem:[%s3162 + $0x68] sm:$0xff] %vm1008, %v3143
    %3177 = vst.msk [vmem:[%s3162 + $0x70] sm:$0xff] %vm1008, %v3144
    %3178 = vst.msk [vmem:[%s3162 + $0x78] sm:$0xff] %vm1008, %v3145
    %3179 = vst.msk [vmem:[%s3162 + $0x80] sm:$0xff] %vm1008, %v3146
    %3180 = vst.msk [vmem:[%s3162 + $0x88] sm:$0xff] %vm1008, %v3147
    %3181 = vst.msk [vmem:[%s3162 + $0x90] sm:$0xff] %vm1008, %v3148
    %3182 = vst.msk [vmem:[%s3162 + $0x98] sm:$0xff] %vm1008, %v3149
    %3183 = vst.msk [vmem:[%s3162 + $0xa0] sm:$0xff] %vm1008, %v3150
    %3184 = vst.msk [vmem:[%s3162 + $0xa8] sm:$0xff] %vm1008, %v3151
    %3185 = vst.msk [vmem:[%s3162 + $0xb0] sm:$0xff] %vm1008, %v3152
    %3186 = vst.msk [vmem:[%s3162 + $0xb8] sm:$0xff] %vm1008, %v3153
    %3187 = vst.msk [vmem:[%s3162 + $0xc0] sm:$0xff] %vm1008, %v3154
    %3188 = vst.msk [vmem:[%s3162 + $0xc8] sm:$0xff] %vm1008, %v3155
    %3189 = vst.msk [vmem:[%s3162 + $0xd0] sm:$0xff] %vm1008, %v3156
    %3190 = vst.msk [vmem:[%s3162 + $0xd8] sm:$0xff] %vm1008, %v3157
    %3191 = vst.msk [vmem:[%s3162 + $0xe0] sm:$0xff] %vm1008, %v3158
    %3192 = vst.msk [vmem:[%s3162 + $0xe8] sm:$0xff] %vm1008, %v3159
    %3193 = vst.msk [vmem:[%s3162 + $0xf0] sm:$0xff] %vm1008, %v3160
    %3194 = vst.msk [vmem:[%s3162 + $0xf8] sm:$0xff] %vm1008, %v3161
    // Predicated region
    $region18: #{generator_forward.7} parent=1 // pred_check
      _
    $region19: #{generator_forward.7} parent=1 // pred_check_branch
      %3196 = sbr.rel (0) target = $region21
    $region20: #{generator_forward.7} parent=1 // pred_region
      _
    $region21: #{generator_forward.7} parent=1 // pred_fallthru
      _
    // Predicated region
    $region22: #{generator_forward.7} parent=1 // pred_check
      _
    $region23: #{generator_forward.7} parent=1 // pred_check_branch
      %3198 = sbr.rel (0) target = $region25
    $region24: #{generator_forward.7} parent=1 // pred_region
      _
    $region25: #{generator_forward.7} parent=1 // pred_fallthru
      _
    %3199 = vsyncpa [#allocation4], 1

</llo_original>
